<compile_context>
chip_gen: v7x
topology: tpu7x:2x2x1
jax: 0.10.0
libtpu: 0.0.40
codegen_flags: <defaults>
</compile_context>

<pallas_src>
import functools

import jax
import jax.numpy as jnp
from jax.experimental import pallas as pl
from jax.experimental.pallas import tpu as pltpu

EPS = 1e-5


# ---------------------------------------------------------------------------
# In-kernel helper: reflect-padded unit shift of a [N, H, W, C] tensor
# (kernel_size=3, dilation=1 => |dh|, |dw| <= 1), built from static slices.
# ---------------------------------------------------------------------------
def _shift_reflect(a, dh, dw):
    H, W = a.shape[1], a.shape[2]
    if dh == -1:
        a = jnp.concatenate([a[:, 1:2], a[:, :H - 1]], axis=1)
    elif dh == 1:
        a = jnp.concatenate([a[:, 1:], a[:, H - 2:H - 1]], axis=1)
    if dw == -1:
        a = jnp.concatenate([a[:, :, 1:2], a[:, :, :W - 1]], axis=2)
    elif dw == 1:
        a = jnp.concatenate([a[:, :, 1:], a[:, :, W - 2:W - 1]], axis=2)
    return a


# ---------------------------------------------------------------------------
# Pallas kernel: the whole Bottleneck forward, all batches in one invocation
# ---------------------------------------------------------------------------
def _bottleneck_kernel(x_ref,
                       bn1s_ref, bn1t_ref,
                       wp_ref, bp_ref,
                       bnas_ref, bnat_ref, wcw1_ref,
                       bnbs_ref, bnbt_ref, wcw2_ref, bcw2_ref,
                       bn2s_ref, bn2t_ref, wc_ref, bc_ref,
                       expand_ref,
                       out_ref, *, N, H, W, rel, mid, hn, offsets):
    L = H * W
    M = N * L
    K = len(offsets)

    x = x_ref[...]                                              # [M, Cin]

    # bn1 (eval, folded to scale/shift) + ReLU
    y = jnp.maximum(x * bn1s_ref[...] + bn1t_ref[...], 0.0)

    # Fused SAM 1x1 projections (conv1 | conv2 | conv3) -> one MXU matmul.
    proj = jnp.dot(y, wp_ref[...], preferred_element_type=jnp.float32) + bp_ref[...]
    x1 = proj[:, :rel]                                          # [M, rel]
    x2 = proj[:, rel:2 * rel].reshape(N, H, W, rel)
    x3 = proj[:, 2 * rel:].reshape(N, H, W, mid)

    # Subtraction2: x1(center) - x2(reflect-padded neighbor k), built from
    # static shifts of the *post-conv* x2 (no duplicated gathered input).
    subs = [(x1 - _shift_reflect(x2, dh, dw).reshape(M, rel)) for (dh, dw) in offsets]
    sub = jnp.concatenate(subs, axis=0)                         # [K*M, rel]

    # conv_w: BN -> ReLU -> 1x1 conv (no bias) -> BN -> ReLU -> 1x1 conv
    z = jnp.maximum(sub * bnas_ref[...] + bnat_ref[...], 0.0)
    z = jnp.dot(z, wcw1_ref[...], preferred_element_type=jnp.float32)
    z = jnp.maximum(z * bnbs_ref[...] + bnbt_ref[...], 0.0)
    logits = jnp.dot(z, wcw2_ref[...], preferred_element_type=jnp.float32) + bcw2_ref[...]

    # Softmax over the K kernel positions (torch Softmax(dim=-2)).
    logits = logits.reshape(K, M, hn)
    mx = jnp.max(logits, axis=0, keepdims=True)
    e = jnp.exp(logits - mx)
    den = jnp.sum(e, axis=0, keepdims=True)
    wgt = e * pl.reciprocal(den, approx=True)                   # [K, M, hn]

    # Expand per-head weights to per-channel weights (channel c -> head c % hn)
    # with a tiny 0/1 matmul instead of K materialized jnp.tile copies.
    wfull = jnp.dot(wgt.reshape(K * M, hn), expand_ref[...],
                    preferred_element_type=jnp.float32)         # [K*M, mid]

    # Aggregation over the reflect-padded neighborhood of x3.
    acc = jnp.zeros((M, mid), jnp.float32)
    for k, (dh, dw) in enumerate(offsets):
        x3k = _shift_reflect(x3, dh, dw).reshape(M, mid)
        acc = acc + wfull[k * M:(k + 1) * M, :] * x3k

    # bn2 (eval) + ReLU, final 1x1 conv, residual add.
    o = jnp.maximum(acc * bn2s_ref[...] + bn2t_ref[...], 0.0)
    out = jnp.dot(o, wc_ref[...], preferred_element_type=jnp.float32) + bc_ref[...]
    out_ref[...] = (out + x).astype(out_ref.dtype)


# ---------------------------------------------------------------------------
# JAX glue
# ---------------------------------------------------------------------------
def bottleneck_forward(x_nchw, params, kernel_size=3, dilation=1):
    assert kernel_size == 3 and dilation == 1, "only k=3, dilation=1 implemented"
    N, Cin, H, W = x_nchw.shape
    L = H * W
    rel = params["w1"].shape[1]
    mid = params["w3"].shape[1]
    hn = params["wcw2"].shape[1]
    Cout = params["wc"].shape[1]

    # NCHW -> [N*L, Cin] (channels-last, batch folded into the matmul M dim)
    x_flat = jnp.transpose(x_nchw.reshape(N, Cin, L), (0, 2, 1)).reshape(N * L, Cin)

    # Fused projection weight / bias and the head->channel broadcast matrix.
    wp = jnp.concatenate([params["w1"], params["w2"], params["w3"]], axis=1)
    bp = jnp.concatenate([params["b1"], params["b2"], params["b3"]], axis=1)
    expand = (jnp.arange(mid)[None, :] % hn
              == jnp.arange(hn)[:, None]).astype(jnp.float32)       # [hn, mid]

    # kh-major, kw-minor ordering (matches torch unfold / the CUDA ops).
    offsets = tuple((dh, dw) for dh in (-1, 0, 1) for dw in (-1, 0, 1))

    kernel = functools.partial(_bottleneck_kernel, N=N, H=H, W=W,
                               rel=rel, mid=mid, hn=hn, offsets=offsets)

    out_flat = pl.pallas_call(
        kernel,
        out_shape=jax.ShapeDtypeStruct((N * L, Cout), jnp.float32),
        compiler_params=pltpu.CompilerParams(vmem_limit_bytes=32 * 1024 * 1024),
    )(x_flat,
      params["bn1_s"], params["bn1_t"], wp, bp,
      params["bna_s"], params["bna_t"], params["wcw1"],
      params["bnb_s"], params["bnb_t"], params["wcw2"], params["bcw2"],
      params["bn2_s"], params["bn2_t"], params["wc"], params["bc"],
      expand)

    out = out_flat.reshape(N, L, Cout)
    return jnp.transpose(out, (0, 2, 1)).reshape(N, Cout, H, W)


# ---------------------------------------------------------------------------
# Plain-JAX reference (same math, no Pallas) for verification
# ---------------------------------------------------------------------------
def _reflect(idx, size):
    idx = jnp.where(idx < 0, -idx, idx)
    idx = jnp.where(idx >= size, 2 * (size - 1) - idx, idx)
    return idx


def _neighbor_indices(H, W, kernel_size, dilation=1):
    pad = (dilation * (kernel_size - 1) + 1) // 2
    hh = jnp.arange(H)
    ww = jnp.arange(W)
    kk = jnp.arange(kernel_size)
    nh = _reflect(hh[None, :] + (kk[:, None] - pad) * dilation, H)   # [k, H]
    nw = _reflect(ww[None, :] + (kk[:, None] - pad) * dilation, W)   # [k, W]
    idx = nh[:, None, :, None] * W + nw[None, :, None, :]            # [k, k, H, W]
    return idx.reshape(kernel_size * kernel_size, H * W)             # [K, L]


def bottleneck_reference(x_nchw, params, kernel_size=3, dilation=1):
    N, Cin, H, W = x_nchw.shape
    L = H * W
    K = kernel_size * kernel_size
    mid = params["wc"].shape[0]
    hn = params["wcw2"].shape[1]
    share = mid // hn

    x = jnp.transpose(x_nchw.reshape(N, Cin, L), (0, 2, 1))            # [N, L, Cin]
    idx = _neighbor_indices(H, W, kernel_size, dilation).reshape(-1)

    y = jnp.maximum(x * params["bn1_s"] + params["bn1_t"], 0.0)
    x1 = y @ params["w1"] + params["b1"]
    x2 = y @ params["w2"] + params["b2"]
    x3 = y @ params["w3"] + params["b3"]
    x2u = jnp.take(x2, idx, axis=1).reshape(N, K, L, -1)
    x3u = jnp.take(x3, idx, axis=1).reshape(N, K, L, -1)

    sub = x1[:, None] - x2u                                            # [N, K, L, rel]
    z = jnp.maximum(sub * params["bna_s"] + params["bna_t"], 0.0)
    z = z @ params["wcw1"]
    z = jnp.maximum(z * params["bnb_s"] + params["bnb_t"], 0.0)
    logits = z @ params["wcw2"] + params["bcw2"]                       # [N, K, L, hn]
    w = jax.nn.softmax(logits, axis=1)
    w_full = jnp.tile(w, (1, 1, 1, share))                             # channel c -> head c % hn
    agg = jnp.sum(w_full * x3u, axis=1)                                # [N, L, mid]

    o = jnp.maximum(agg * params["bn2_s"] + params["bn2_t"], 0.0)
    out = o @ params["wc"] + params["bc"] + x
    return jnp.transpose(out, (0, 2, 1)).reshape(N, -1, H, W)


# ---------------------------------------------------------------------------
# Deterministic parameter construction (eval-mode BN folded to scale/shift)
# ---------------------------------------------------------------------------
def _bn_scale_shift(key, c):
    k1, k2, k3, k4 = jax.random.split(key, 4)
    gamma = 1.0 + 0.1 * jax.random.normal(k1, (c,), jnp.float32)
    beta = 0.1 * jax.random.normal(k2, (c,), jnp.float32)
    mean = 0.1 * jax.random.normal(k3, (c,), jnp.float32)
    var = 1.0 + 0.1 * jax.random.uniform(k4, (c,), jnp.float32)
    scale = gamma / jnp.sqrt(var + EPS)
    shift = beta - mean * scale
    return scale.reshape(1, c), shift.reshape(1, c)


def _conv_w(key, cin, cout):
    return jax.random.normal(key, (cin, cout), jnp.float32) / jnp.sqrt(float(cin))


def make_params(key, in_planes, rel_planes, mid_planes, out_planes, share_planes):
    hn = mid_planes // share_planes
    ks = jax.random.split(key, 16)
    p = {}
    p["bn1_s"], p["bn1_t"] = _bn_scale_shift(ks[0], in_planes)
    p["w1"] = _conv_w(ks[1], in_planes, rel_planes)
    p["b1"] = 0.1 * jax.random.normal(ks[2], (1, rel_planes), jnp.float32)
    p["w2"] = _conv_w(ks[3], in_planes, rel_planes)
    p["b2"] = 0.1 * jax.random.normal(ks[4], (1, rel_planes), jnp.float32)
    p["w3"] = _conv_w(ks[5], in_planes, mid_planes)
    p["b3"] = 0.1 * jax.random.normal(ks[6], (1, mid_planes), jnp.float32)
    p["bna_s"], p["bna_t"] = _bn_scale_shift(ks[7], rel_planes)
    p["wcw1"] = _conv_w(ks[8], rel_planes, rel_planes)
    p["bnb_s"], p["bnb_t"] = _bn_scale_shift(ks[9], rel_planes)
    p["wcw2"] = _conv_w(ks[10], rel_planes, hn)
    p["bcw2"] = 0.1 * jax.random.normal(ks[11], (1, hn), jnp.float32)
    p["bn2_s"], p["bn2_t"] = _bn_scale_shift(ks[12], mid_planes)
    p["wc"] = _conv_w(ks[13], mid_planes, out_planes)
    p["bc"] = 0.1 * jax.random.normal(ks[14], (1, out_planes), jnp.float32)
    return p


if __name__ == "__main__":
    # batch=2, in=out=16, rel=4, mid=16, share_planes=8 (-> hn=2),
    # kernel_size=3, spatial 8x8.
    N, Cin, H, W = 2, 16, 8, 8
    rel, mid, Cout, share, ksize = 4, 16, 16, 8, 3

    key = jax.random.PRNGKey(0)
    kx, kp = jax.random.split(key)
    x = jax.random.normal(kx, (N, Cin, H, W), jnp.float32)
    params = make_params(kp, Cin, rel, mid, Cout, share)

    out = bottleneck_forward(x, params, kernel_size=ksize)
    out = jax.block_until_ready(out)

    ref = bottleneck_reference(x, params, kernel_size=ksize)
    err = float(jnp.max(jnp.abs(out - ref)))
    if err > 1e-2:
        raise RuntimeError(f"Pallas kernel mismatch vs reference: max abs err {err}")

    print("KERNEL_OK")
</pallas_src>

<mosaic_0001>
module attributes {stable_mosaic.version = 11 : i64} {
  func.func @_bottleneck_kernel(%arg0: memref<128x16xf32, #tpu.memory_space<vmem>>, %arg1: memref<1x16xf32, #tpu.memory_space<vmem>>, %arg2: memref<1x16xf32, #tpu.memory_space<vmem>>, %arg3: memref<16x24xf32, #tpu.memory_space<vmem>>, %arg4: memref<1x24xf32, #tpu.memory_space<vmem>>, %arg5: memref<1x4xf32, #tpu.memory_space<vmem>>, %arg6: memref<1x4xf32, #tpu.memory_space<vmem>>, %arg7: memref<4x4xf32, #tpu.memory_space<vmem>>, %arg8: memref<1x4xf32, #tpu.memory_space<vmem>>, %arg9: memref<1x4xf32, #tpu.memory_space<vmem>>, %arg10: memref<4x2xf32, #tpu.memory_space<vmem>>, %arg11: memref<1x2xf32, #tpu.memory_space<vmem>>, %arg12: memref<1x16xf32, #tpu.memory_space<vmem>>, %arg13: memref<1x16xf32, #tpu.memory_space<vmem>>, %arg14: memref<16x16xf32, #tpu.memory_space<vmem>>, %arg15: memref<1x16xf32, #tpu.memory_space<vmem>>, %arg16: memref<2x16xf32, #tpu.memory_space<vmem>>, %arg17: memref<128x16xf32, #tpu.memory_space<vmem>>) attributes {dimension_semantics = [], scalar_prefetch = 0 : i64, scratch_operands = 0 : i64, tpu.core_type = #tpu.core_type<tc>} {
    %c0 = arith.constant 0 : index
    %c0_0 = arith.constant 0 : index
    %0 = vector.load %arg0[%c0, %c0_0] : memref<128x16xf32, #tpu.memory_space<vmem>>, vector<128x16xf32>
    %c0_1 = arith.constant 0 : index
    %c0_2 = arith.constant 0 : index
    %1 = vector.load %arg1[%c0_1, %c0_2] : memref<1x16xf32, #tpu.memory_space<vmem>>, vector<1x16xf32>
    %2 = vector.broadcast %1 : vector<1x16xf32> to vector<128x16xf32>
    %3 = arith.mulf %0, %2 : vector<128x16xf32>
    %c0_3 = arith.constant 0 : index
    %c0_4 = arith.constant 0 : index
    %4 = vector.load %arg2[%c0_3, %c0_4] : memref<1x16xf32, #tpu.memory_space<vmem>>, vector<1x16xf32>
    %5 = vector.broadcast %4 : vector<1x16xf32> to vector<128x16xf32>
    %6 = arith.addf %3, %5 : vector<128x16xf32>
    %cst = arith.constant 0.000000e+00 : f32
    %7 = vector.broadcast %cst : f32 to vector<128x16xf32>
    %8 = arith.maximumf %6, %7 : vector<128x16xf32>
    %c0_5 = arith.constant 0 : index
    %c0_6 = arith.constant 0 : index
    %9 = vector.load %arg3[%c0_5, %c0_6] : memref<16x24xf32, #tpu.memory_space<vmem>>, vector<16x24xf32>
    %cst_7 = arith.constant dense<0.000000e+00> : vector<128x24xf32>
    %10 = tpu.matmul %8, %9, %cst_7 {dimension_numbers = #tpu.dot_dimension_numbers<[1], [0], [0], [1], [0, 0, 1, 1], [], []>} : vector<128x16xf32>, vector<16x24xf32>, vector<128x24xf32> -> vector<128x24xf32>
    %c0_8 = arith.constant 0 : index
    %c0_9 = arith.constant 0 : index
    %11 = vector.load %arg4[%c0_8, %c0_9] : memref<1x24xf32, #tpu.memory_space<vmem>>, vector<1x24xf32>
    %12 = vector.broadcast %11 : vector<1x24xf32> to vector<128x24xf32>
    %13 = arith.addf %10, %12 : vector<128x24xf32>
    %14 = vector.extract_strided_slice %13 {offsets = [0, 0], sizes = [128, 4], strides = [1, 1]} : vector<128x24xf32> to vector<128x4xf32>
    %15 = vector.extract_strided_slice %13 {offsets = [0, 4], sizes = [128, 4], strides = [1, 1]} : vector<128x24xf32> to vector<128x4xf32>
    %16 = vector.shape_cast %15 : vector<128x4xf32> to vector<2x8x8x4xf32>
    %17 = vector.extract_strided_slice %13 {offsets = [0, 8], sizes = [128, 16], strides = [1, 1]} : vector<128x24xf32> to vector<128x16xf32>
    %18 = vector.shape_cast %17 : vector<128x16xf32> to vector<2x8x8x16xf32>
    %19 = vector.extract_strided_slice %16 {offsets = [0, 1, 0, 0], sizes = [2, 1, 8, 4], strides = [1, 1, 1, 1]} : vector<2x8x8x4xf32> to vector<2x1x8x4xf32>
    %20 = vector.extract_strided_slice %16 {offsets = [0, 0, 0, 0], sizes = [2, 7, 8, 4], strides = [1, 1, 1, 1]} : vector<2x8x8x4xf32> to vector<2x7x8x4xf32>
    %21 = tpu.concatenate %19, %20 in 1 : vector<2x1x8x4xf32>, vector<2x7x8x4xf32> -> vector<2x8x8x4xf32>
    %22 = vector.extract_strided_slice %21 {offsets = [0, 0, 1, 0], sizes = [2, 8, 1, 4], strides = [1, 1, 1, 1]} : vector<2x8x8x4xf32> to vector<2x8x1x4xf32>
    %23 = vector.extract_strided_slice %21 {offsets = [0, 0, 0, 0], sizes = [2, 8, 7, 4], strides = [1, 1, 1, 1]} : vector<2x8x8x4xf32> to vector<2x8x7x4xf32>
    %24 = tpu.concatenate %22, %23 in 2 : vector<2x8x1x4xf32>, vector<2x8x7x4xf32> -> vector<2x8x8x4xf32>
    %25 = vector.shape_cast %24 : vector<2x8x8x4xf32> to vector<128x4xf32>
    %26 = arith.subf %14, %25 : vector<128x4xf32>
    %27 = vector.extract_strided_slice %16 {offsets = [0, 1, 0, 0], sizes = [2, 1, 8, 4], strides = [1, 1, 1, 1]} : vector<2x8x8x4xf32> to vector<2x1x8x4xf32>
    %28 = vector.extract_strided_slice %16 {offsets = [0, 0, 0, 0], sizes = [2, 7, 8, 4], strides = [1, 1, 1, 1]} : vector<2x8x8x4xf32> to vector<2x7x8x4xf32>
    %29 = tpu.concatenate %27, %28 in 1 : vector<2x1x8x4xf32>, vector<2x7x8x4xf32> -> vector<2x8x8x4xf32>
    %30 = vector.shape_cast %29 : vector<2x8x8x4xf32> to vector<128x4xf32>
    %31 = arith.subf %14, %30 : vector<128x4xf32>
    %32 = vector.extract_strided_slice %16 {offsets = [0, 1, 0, 0], sizes = [2, 1, 8, 4], strides = [1, 1, 1, 1]} : vector<2x8x8x4xf32> to vector<2x1x8x4xf32>
    %33 = vector.extract_strided_slice %16 {offsets = [0, 0, 0, 0], sizes = [2, 7, 8, 4], strides = [1, 1, 1, 1]} : vector<2x8x8x4xf32> to vector<2x7x8x4xf32>
    %34 = tpu.concatenate %32, %33 in 1 : vector<2x1x8x4xf32>, vector<2x7x8x4xf32> -> vector<2x8x8x4xf32>
    %35 = vector.extract_strided_slice %34 {offsets = [0, 0, 1, 0], sizes = [2, 8, 7, 4], strides = [1, 1, 1, 1]} : vector<2x8x8x4xf32> to vector<2x8x7x4xf32>
    %36 = vector.extract_strided_slice %34 {offsets = [0, 0, 6, 0], sizes = [2, 8, 1, 4], strides = [1, 1, 1, 1]} : vector<2x8x8x4xf32> to vector<2x8x1x4xf32>
    %37 = tpu.concatenate %35, %36 in 2 : vector<2x8x7x4xf32>, vector<2x8x1x4xf32> -> vector<2x8x8x4xf32>
    %38 = vector.shape_cast %37 : vector<2x8x8x4xf32> to vector<128x4xf32>
    %39 = arith.subf %14, %38 : vector<128x4xf32>
    %40 = vector.extract_strided_slice %16 {offsets = [0, 0, 1, 0], sizes = [2, 8, 1, 4], strides = [1, 1, 1, 1]} : vector<2x8x8x4xf32> to vector<2x8x1x4xf32>
    %41 = vector.extract_strided_slice %16 {offsets = [0, 0, 0, 0], sizes = [2, 8, 7, 4], strides = [1, 1, 1, 1]} : vector<2x8x8x4xf32> to vector<2x8x7x4xf32>
    %42 = tpu.concatenate %40, %41 in 2 : vector<2x8x1x4xf32>, vector<2x8x7x4xf32> -> vector<2x8x8x4xf32>
    %43 = vector.shape_cast %42 : vector<2x8x8x4xf32> to vector<128x4xf32>
    %44 = arith.subf %14, %43 : vector<128x4xf32>
    %45 = vector.shape_cast %16 : vector<2x8x8x4xf32> to vector<128x4xf32>
    %46 = arith.subf %14, %45 : vector<128x4xf32>
    %47 = vector.extract_strided_slice %16 {offsets = [0, 0, 1, 0], sizes = [2, 8, 7, 4], strides = [1, 1, 1, 1]} : vector<2x8x8x4xf32> to vector<2x8x7x4xf32>
    %48 = vector.extract_strided_slice %16 {offsets = [0, 0, 6, 0], sizes = [2, 8, 1, 4], strides = [1, 1, 1, 1]} : vector<2x8x8x4xf32> to vector<2x8x1x4xf32>
    %49 = tpu.concatenate %47, %48 in 2 : vector<2x8x7x4xf32>, vector<2x8x1x4xf32> -> vector<2x8x8x4xf32>
    %50 = vector.shape_cast %49 : vector<2x8x8x4xf32> to vector<128x4xf32>
    %51 = arith.subf %14, %50 : vector<128x4xf32>
    %52 = vector.extract_strided_slice %16 {offsets = [0, 1, 0, 0], sizes = [2, 7, 8, 4], strides = [1, 1, 1, 1]} : vector<2x8x8x4xf32> to vector<2x7x8x4xf32>
    %53 = vector.extract_strided_slice %16 {offsets = [0, 6, 0, 0], sizes = [2, 1, 8, 4], strides = [1, 1, 1, 1]} : vector<2x8x8x4xf32> to vector<2x1x8x4xf32>
    %54 = tpu.concatenate %52, %53 in 1 : vector<2x7x8x4xf32>, vector<2x1x8x4xf32> -> vector<2x8x8x4xf32>
    %55 = vector.extract_strided_slice %54 {offsets = [0, 0, 1, 0], sizes = [2, 8, 1, 4], strides = [1, 1, 1, 1]} : vector<2x8x8x4xf32> to vector<2x8x1x4xf32>
    %56 = vector.extract_strided_slice %54 {offsets = [0, 0, 0, 0], sizes = [2, 8, 7, 4], strides = [1, 1, 1, 1]} : vector<2x8x8x4xf32> to vector<2x8x7x4xf32>
    %57 = tpu.concatenate %55, %56 in 2 : vector<2x8x1x4xf32>, vector<2x8x7x4xf32> -> vector<2x8x8x4xf32>
    %58 = vector.shape_cast %57 : vector<2x8x8x4xf32> to vector<128x4xf32>
    %59 = arith.subf %14, %58 : vector<128x4xf32>
    %60 = vector.extract_strided_slice %16 {offsets = [0, 1, 0, 0], sizes = [2, 7, 8, 4], strides = [1, 1, 1, 1]} : vector<2x8x8x4xf32> to vector<2x7x8x4xf32>
    %61 = vector.extract_strided_slice %16 {offsets = [0, 6, 0, 0], sizes = [2, 1, 8, 4], strides = [1, 1, 1, 1]} : vector<2x8x8x4xf32> to vector<2x1x8x4xf32>
    %62 = tpu.concatenate %60, %61 in 1 : vector<2x7x8x4xf32>, vector<2x1x8x4xf32> -> vector<2x8x8x4xf32>
    %63 = vector.shape_cast %62 : vector<2x8x8x4xf32> to vector<128x4xf32>
    %64 = arith.subf %14, %63 : vector<128x4xf32>
    %65 = vector.extract_strided_slice %16 {offsets = [0, 1, 0, 0], sizes = [2, 7, 8, 4], strides = [1, 1, 1, 1]} : vector<2x8x8x4xf32> to vector<2x7x8x4xf32>
    %66 = vector.extract_strided_slice %16 {offsets = [0, 6, 0, 0], sizes = [2, 1, 8, 4], strides = [1, 1, 1, 1]} : vector<2x8x8x4xf32> to vector<2x1x8x4xf32>
    %67 = tpu.concatenate %65, %66 in 1 : vector<2x7x8x4xf32>, vector<2x1x8x4xf32> -> vector<2x8x8x4xf32>
    %68 = vector.extract_strided_slice %67 {offsets = [0, 0, 1, 0], sizes = [2, 8, 7, 4], strides = [1, 1, 1, 1]} : vector<2x8x8x4xf32> to vector<2x8x7x4xf32>
    %69 = vector.extract_strided_slice %67 {offsets = [0, 0, 6, 0], sizes = [2, 8, 1, 4], strides = [1, 1, 1, 1]} : vector<2x8x8x4xf32> to vector<2x8x1x4xf32>
    %70 = tpu.concatenate %68, %69 in 2 : vector<2x8x7x4xf32>, vector<2x8x1x4xf32> -> vector<2x8x8x4xf32>
    %71 = vector.shape_cast %70 : vector<2x8x8x4xf32> to vector<128x4xf32>
    %72 = arith.subf %14, %71 : vector<128x4xf32>
    %73 = tpu.concatenate %26, %31, %39, %44, %46, %51, %59, %64, %72 in 0 : vector<128x4xf32>, vector<128x4xf32>, vector<128x4xf32>, vector<128x4xf32>, vector<128x4xf32>, vector<128x4xf32>, vector<128x4xf32>, vector<128x4xf32>, vector<128x4xf32> -> vector<1152x4xf32>
    %c0_10 = arith.constant 0 : index
    %c0_11 = arith.constant 0 : index
    %74 = vector.load %arg5[%c0_10, %c0_11] : memref<1x4xf32, #tpu.memory_space<vmem>>, vector<1x4xf32>
    %75 = vector.broadcast %74 : vector<1x4xf32> to vector<1152x4xf32>
    %76 = arith.mulf %73, %75 : vector<1152x4xf32>
    %c0_12 = arith.constant 0 : index
    %c0_13 = arith.constant 0 : index
    %77 = vector.load %arg6[%c0_12, %c0_13] : memref<1x4xf32, #tpu.memory_space<vmem>>, vector<1x4xf32>
    %78 = vector.broadcast %77 : vector<1x4xf32> to vector<1152x4xf32>
    %79 = arith.addf %76, %78 : vector<1152x4xf32>
    %cst_14 = arith.constant 0.000000e+00 : f32
    %80 = vector.broadcast %cst_14 : f32 to vector<1152x4xf32>
    %81 = arith.maximumf %79, %80 : vector<1152x4xf32>
    %c0_15 = arith.constant 0 : index
    %c0_16 = arith.constant 0 : index
    %82 = vector.load %arg7[%c0_15, %c0_16] : memref<4x4xf32, #tpu.memory_space<vmem>>, vector<4x4xf32>
    %cst_17 = arith.constant dense<0.000000e+00> : vector<1152x4xf32>
    %83 = tpu.matmul %81, %82, %cst_17 {dimension_numbers = #tpu.dot_dimension_numbers<[1], [0], [0], [1], [0, 0, 1, 1], [], []>} : vector<1152x4xf32>, vector<4x4xf32>, vector<1152x4xf32> -> vector<1152x4xf32>
    %c0_18 = arith.constant 0 : index
    %c0_19 = arith.constant 0 : index
    %84 = vector.load %arg8[%c0_18, %c0_19] : memref<1x4xf32, #tpu.memory_space<vmem>>, vector<1x4xf32>
    %85 = vector.broadcast %84 : vector<1x4xf32> to vector<1152x4xf32>
    %86 = arith.mulf %83, %85 : vector<1152x4xf32>
    %c0_20 = arith.constant 0 : index
    %c0_21 = arith.constant 0 : index
    %87 = vector.load %arg9[%c0_20, %c0_21] : memref<1x4xf32, #tpu.memory_space<vmem>>, vector<1x4xf32>
    %88 = vector.broadcast %87 : vector<1x4xf32> to vector<1152x4xf32>
    %89 = arith.addf %86, %88 : vector<1152x4xf32>
    %cst_22 = arith.constant 0.000000e+00 : f32
    %90 = vector.broadcast %cst_22 : f32 to vector<1152x4xf32>
    %91 = arith.maximumf %89, %90 : vector<1152x4xf32>
    %c0_23 = arith.constant 0 : index
    %c0_24 = arith.constant 0 : index
    %92 = vector.load %arg10[%c0_23, %c0_24] : memref<4x2xf32, #tpu.memory_space<vmem>>, vector<4x2xf32>
    %cst_25 = arith.constant dense<0.000000e+00> : vector<1152x2xf32>
    %93 = tpu.matmul %91, %92, %cst_25 {dimension_numbers = #tpu.dot_dimension_numbers<[1], [0], [0], [1], [0, 0, 1, 1], [], []>} : vector<1152x4xf32>, vector<4x2xf32>, vector<1152x2xf32> -> vector<1152x2xf32>
    %c0_26 = arith.constant 0 : index
    %c0_27 = arith.constant 0 : index
    %94 = vector.load %arg11[%c0_26, %c0_27] : memref<1x2xf32, #tpu.memory_space<vmem>>, vector<1x2xf32>
    %95 = vector.broadcast %94 : vector<1x2xf32> to vector<1152x2xf32>
    %96 = arith.addf %93, %95 : vector<1152x2xf32>
    %97 = vector.shape_cast %96 : vector<1152x2xf32> to vector<9x128x2xf32>
    %cst_28 = arith.constant dense<0xFF800000> : vector<128x2xf32>
    %98 = vector.multi_reduction <maximumf>, %97, %cst_28 [0] : vector<9x128x2xf32> to vector<128x2xf32>
    %99 = vector.shape_cast %98 : vector<128x2xf32> to vector<1x128x2xf32>
    %100 = vector.broadcast %99 : vector<1x128x2xf32> to vector<9x128x2xf32>
    %101 = arith.subf %97, %100 : vector<9x128x2xf32>
    %102 = math.exp %101 : vector<9x128x2xf32>
    %cst_29 = arith.constant dense<0.000000e+00> : vector<128x2xf32>
    %103 = vector.multi_reduction <add>, %102, %cst_29 [0] : vector<9x128x2xf32> to vector<128x2xf32>
    %104 = vector.shape_cast %103 : vector<128x2xf32> to vector<1x128x2xf32>
    %105 = tpu.reciprocal %104 {approx = true} : vector<1x128x2xf32> -> vector<1x128x2xf32>
    %106 = vector.broadcast %105 : vector<1x128x2xf32> to vector<9x128x2xf32>
    %107 = arith.mulf %102, %106 : vector<9x128x2xf32>
    %108 = vector.shape_cast %107 : vector<9x128x2xf32> to vector<1152x2xf32>
    %c0_30 = arith.constant 0 : index
    %c0_31 = arith.constant 0 : index
    %109 = vector.load %arg16[%c0_30, %c0_31] : memref<2x16xf32, #tpu.memory_space<vmem>>, vector<2x16xf32>
    %cst_32 = arith.constant dense<0.000000e+00> : vector<1152x16xf32>
    %110 = tpu.matmul %108, %109, %cst_32 {dimension_numbers = #tpu.dot_dimension_numbers<[1], [0], [0], [1], [0, 0, 1, 1], [], []>} : vector<1152x2xf32>, vector<2x16xf32>, vector<1152x16xf32> -> vector<1152x16xf32>
    %cst_33 = arith.constant 0.000000e+00 : f32
    %111 = vector.broadcast %cst_33 : f32 to vector<128x16xf32>
    %112 = vector.extract_strided_slice %18 {offsets = [0, 1, 0, 0], sizes = [2, 1, 8, 16], strides = [1, 1, 1, 1]} : vector<2x8x8x16xf32> to vector<2x1x8x16xf32>
    %113 = vector.extract_strided_slice %18 {offsets = [0, 0, 0, 0], sizes = [2, 7, 8, 16], strides = [1, 1, 1, 1]} : vector<2x8x8x16xf32> to vector<2x7x8x16xf32>
    %114 = tpu.concatenate %112, %113 in 1 : vector<2x1x8x16xf32>, vector<2x7x8x16xf32> -> vector<2x8x8x16xf32>
    %115 = vector.extract_strided_slice %114 {offsets = [0, 0, 1, 0], sizes = [2, 8, 1, 16], strides = [1, 1, 1, 1]} : vector<2x8x8x16xf32> to vector<2x8x1x16xf32>
    %116 = vector.extract_strided_slice %114 {offsets = [0, 0, 0, 0], sizes = [2, 8, 7, 16], strides = [1, 1, 1, 1]} : vector<2x8x8x16xf32> to vector<2x8x7x16xf32>
    %117 = tpu.concatenate %115, %116 in 2 : vector<2x8x1x16xf32>, vector<2x8x7x16xf32> -> vector<2x8x8x16xf32>
    %118 = vector.shape_cast %117 : vector<2x8x8x16xf32> to vector<128x16xf32>
    %119 = vector.extract_strided_slice %110 {offsets = [0, 0], sizes = [128, 16], strides = [1, 1]} : vector<1152x16xf32> to vector<128x16xf32>
    %120 = arith.mulf %119, %118 : vector<128x16xf32>
    %121 = arith.addf %111, %120 : vector<128x16xf32>
    %122 = vector.extract_strided_slice %18 {offsets = [0, 1, 0, 0], sizes = [2, 1, 8, 16], strides = [1, 1, 1, 1]} : vector<2x8x8x16xf32> to vector<2x1x8x16xf32>
    %123 = vector.extract_strided_slice %18 {offsets = [0, 0, 0, 0], sizes = [2, 7, 8, 16], strides = [1, 1, 1, 1]} : vector<2x8x8x16xf32> to vector<2x7x8x16xf32>
    %124 = tpu.concatenate %122, %123 in 1 : vector<2x1x8x16xf32>, vector<2x7x8x16xf32> -> vector<2x8x8x16xf32>
    %125 = vector.shape_cast %124 : vector<2x8x8x16xf32> to vector<128x16xf32>
    %126 = vector.extract_strided_slice %110 {offsets = [128, 0], sizes = [128, 16], strides = [1, 1]} : vector<1152x16xf32> to vector<128x16xf32>
    %127 = arith.mulf %126, %125 : vector<128x16xf32>
    %128 = arith.addf %121, %127 : vector<128x16xf32>
    %129 = vector.extract_strided_slice %18 {offsets = [0, 1, 0, 0], sizes = [2, 1, 8, 16], strides = [1, 1, 1, 1]} : vector<2x8x8x16xf32> to vector<2x1x8x16xf32>
    %130 = vector.extract_strided_slice %18 {offsets = [0, 0, 0, 0], sizes = [2, 7, 8, 16], strides = [1, 1, 1, 1]} : vector<2x8x8x16xf32> to vector<2x7x8x16xf32>
    %131 = tpu.concatenate %129, %130 in 1 : vector<2x1x8x16xf32>, vector<2x7x8x16xf32> -> vector<2x8x8x16xf32>
    %132 = vector.extract_strided_slice %131 {offsets = [0, 0, 1, 0], sizes = [2, 8, 7, 16], strides = [1, 1, 1, 1]} : vector<2x8x8x16xf32> to vector<2x8x7x16xf32>
    %133 = vector.extract_strided_slice %131 {offsets = [0, 0, 6, 0], sizes = [2, 8, 1, 16], strides = [1, 1, 1, 1]} : vector<2x8x8x16xf32> to vector<2x8x1x16xf32>
    %134 = tpu.concatenate %132, %133 in 2 : vector<2x8x7x16xf32>, vector<2x8x1x16xf32> -> vector<2x8x8x16xf32>
    %135 = vector.shape_cast %134 : vector<2x8x8x16xf32> to vector<128x16xf32>
    %136 = vector.extract_strided_slice %110 {offsets = [256, 0], sizes = [128, 16], strides = [1, 1]} : vector<1152x16xf32> to vector<128x16xf32>
    %137 = arith.mulf %136, %135 : vector<128x16xf32>
    %138 = arith.addf %128, %137 : vector<128x16xf32>
    %139 = vector.extract_strided_slice %18 {offsets = [0, 0, 1, 0], sizes = [2, 8, 1, 16], strides = [1, 1, 1, 1]} : vector<2x8x8x16xf32> to vector<2x8x1x16xf32>
    %140 = vector.extract_strided_slice %18 {offsets = [0, 0, 0, 0], sizes = [2, 8, 7, 16], strides = [1, 1, 1, 1]} : vector<2x8x8x16xf32> to vector<2x8x7x16xf32>
    %141 = tpu.concatenate %139, %140 in 2 : vector<2x8x1x16xf32>, vector<2x8x7x16xf32> -> vector<2x8x8x16xf32>
    %142 = vector.shape_cast %141 : vector<2x8x8x16xf32> to vector<128x16xf32>
    %143 = vector.extract_strided_slice %110 {offsets = [384, 0], sizes = [128, 16], strides = [1, 1]} : vector<1152x16xf32> to vector<128x16xf32>
    %144 = arith.mulf %143, %142 : vector<128x16xf32>
    %145 = arith.addf %138, %144 : vector<128x16xf32>
    %146 = vector.shape_cast %18 : vector<2x8x8x16xf32> to vector<128x16xf32>
    %147 = vector.extract_strided_slice %110 {offsets = [512, 0], sizes = [128, 16], strides = [1, 1]} : vector<1152x16xf32> to vector<128x16xf32>
    %148 = arith.mulf %147, %146 : vector<128x16xf32>
    %149 = arith.addf %145, %148 : vector<128x16xf32>
    %150 = vector.extract_strided_slice %18 {offsets = [0, 0, 1, 0], sizes = [2, 8, 7, 16], strides = [1, 1, 1, 1]} : vector<2x8x8x16xf32> to vector<2x8x7x16xf32>
    %151 = vector.extract_strided_slice %18 {offsets = [0, 0, 6, 0], sizes = [2, 8, 1, 16], strides = [1, 1, 1, 1]} : vector<2x8x8x16xf32> to vector<2x8x1x16xf32>
    %152 = tpu.concatenate %150, %151 in 2 : vector<2x8x7x16xf32>, vector<2x8x1x16xf32> -> vector<2x8x8x16xf32>
    %153 = vector.shape_cast %152 : vector<2x8x8x16xf32> to vector<128x16xf32>
    %154 = vector.extract_strided_slice %110 {offsets = [640, 0], sizes = [128, 16], strides = [1, 1]} : vector<1152x16xf32> to vector<128x16xf32>
    %155 = arith.mulf %154, %153 : vector<128x16xf32>
    %156 = arith.addf %149, %155 : vector<128x16xf32>
    %157 = vector.extract_strided_slice %18 {offsets = [0, 1, 0, 0], sizes = [2, 7, 8, 16], strides = [1, 1, 1, 1]} : vector<2x8x8x16xf32> to vector<2x7x8x16xf32>
    %158 = vector.extract_strided_slice %18 {offsets = [0, 6, 0, 0], sizes = [2, 1, 8, 16], strides = [1, 1, 1, 1]} : vector<2x8x8x16xf32> to vector<2x1x8x16xf32>
    %159 = tpu.concatenate %157, %158 in 1 : vector<2x7x8x16xf32>, vector<2x1x8x16xf32> -> vector<2x8x8x16xf32>
    %160 = vector.extract_strided_slice %159 {offsets = [0, 0, 1, 0], sizes = [2, 8, 1, 16], strides = [1, 1, 1, 1]} : vector<2x8x8x16xf32> to vector<2x8x1x16xf32>
    %161 = vector.extract_strided_slice %159 {offsets = [0, 0, 0, 0], sizes = [2, 8, 7, 16], strides = [1, 1, 1, 1]} : vector<2x8x8x16xf32> to vector<2x8x7x16xf32>
    %162 = tpu.concatenate %160, %161 in 2 : vector<2x8x1x16xf32>, vector<2x8x7x16xf32> -> vector<2x8x8x16xf32>
    %163 = vector.shape_cast %162 : vector<2x8x8x16xf32> to vector<128x16xf32>
    %164 = vector.extract_strided_slice %110 {offsets = [768, 0], sizes = [128, 16], strides = [1, 1]} : vector<1152x16xf32> to vector<128x16xf32>
    %165 = arith.mulf %164, %163 : vector<128x16xf32>
    %166 = arith.addf %156, %165 : vector<128x16xf32>
    %167 = vector.extract_strided_slice %18 {offsets = [0, 1, 0, 0], sizes = [2, 7, 8, 16], strides = [1, 1, 1, 1]} : vector<2x8x8x16xf32> to vector<2x7x8x16xf32>
    %168 = vector.extract_strided_slice %18 {offsets = [0, 6, 0, 0], sizes = [2, 1, 8, 16], strides = [1, 1, 1, 1]} : vector<2x8x8x16xf32> to vector<2x1x8x16xf32>
    %169 = tpu.concatenate %167, %168 in 1 : vector<2x7x8x16xf32>, vector<2x1x8x16xf32> -> vector<2x8x8x16xf32>
    %170 = vector.shape_cast %169 : vector<2x8x8x16xf32> to vector<128x16xf32>
    %171 = vector.extract_strided_slice %110 {offsets = [896, 0], sizes = [128, 16], strides = [1, 1]} : vector<1152x16xf32> to vector<128x16xf32>
    %172 = arith.mulf %171, %170 : vector<128x16xf32>
    %173 = arith.addf %166, %172 : vector<128x16xf32>
    %174 = vector.extract_strided_slice %18 {offsets = [0, 1, 0, 0], sizes = [2, 7, 8, 16], strides = [1, 1, 1, 1]} : vector<2x8x8x16xf32> to vector<2x7x8x16xf32>
    %175 = vector.extract_strided_slice %18 {offsets = [0, 6, 0, 0], sizes = [2, 1, 8, 16], strides = [1, 1, 1, 1]} : vector<2x8x8x16xf32> to vector<2x1x8x16xf32>
    %176 = tpu.concatenate %174, %175 in 1 : vector<2x7x8x16xf32>, vector<2x1x8x16xf32> -> vector<2x8x8x16xf32>
    %177 = vector.extract_strided_slice %176 {offsets = [0, 0, 1, 0], sizes = [2, 8, 7, 16], strides = [1, 1, 1, 1]} : vector<2x8x8x16xf32> to vector<2x8x7x16xf32>
    %178 = vector.extract_strided_slice %176 {offsets = [0, 0, 6, 0], sizes = [2, 8, 1, 16], strides = [1, 1, 1, 1]} : vector<2x8x8x16xf32> to vector<2x8x1x16xf32>
    %179 = tpu.concatenate %177, %178 in 2 : vector<2x8x7x16xf32>, vector<2x8x1x16xf32> -> vector<2x8x8x16xf32>
    %180 = vector.shape_cast %179 : vector<2x8x8x16xf32> to vector<128x16xf32>
    %181 = vector.extract_strided_slice %110 {offsets = [1024, 0], sizes = [128, 16], strides = [1, 1]} : vector<1152x16xf32> to vector<128x16xf32>
    %182 = arith.mulf %181, %180 : vector<128x16xf32>
    %183 = arith.addf %173, %182 : vector<128x16xf32>
    %c0_34 = arith.constant 0 : index
    %c0_35 = arith.constant 0 : index
    %184 = vector.load %arg12[%c0_34, %c0_35] : memref<1x16xf32, #tpu.memory_space<vmem>>, vector<1x16xf32>
    %185 = vector.broadcast %184 : vector<1x16xf32> to vector<128x16xf32>
    %186 = arith.mulf %183, %185 : vector<128x16xf32>
    %c0_36 = arith.constant 0 : index
    %c0_37 = arith.constant 0 : index
    %187 = vector.load %arg13[%c0_36, %c0_37] : memref<1x16xf32, #tpu.memory_space<vmem>>, vector<1x16xf32>
    %188 = vector.broadcast %187 : vector<1x16xf32> to vector<128x16xf32>
    %189 = arith.addf %186, %188 : vector<128x16xf32>
    %cst_38 = arith.constant 0.000000e+00 : f32
    %190 = vector.broadcast %cst_38 : f32 to vector<128x16xf32>
    %191 = arith.maximumf %189, %190 : vector<128x16xf32>
    %c0_39 = arith.constant 0 : index
    %c0_40 = arith.constant 0 : index
    %192 = vector.load %arg14[%c0_39, %c0_40] : memref<16x16xf32, #tpu.memory_space<vmem>>, vector<16x16xf32>
    %cst_41 = arith.constant dense<0.000000e+00> : vector<128x16xf32>
    %193 = tpu.matmul %191, %192, %cst_41 {dimension_numbers = #tpu.dot_dimension_numbers<[1], [0], [0], [1], [0, 0, 1, 1], [], []>} : vector<128x16xf32>, vector<16x16xf32>, vector<128x16xf32> -> vector<128x16xf32>
    %c0_42 = arith.constant 0 : index
    %c0_43 = arith.constant 0 : index
    %194 = vector.load %arg15[%c0_42, %c0_43] : memref<1x16xf32, #tpu.memory_space<vmem>>, vector<1x16xf32>
    %195 = vector.broadcast %194 : vector<1x16xf32> to vector<128x16xf32>
    %196 = arith.addf %193, %195 : vector<128x16xf32>
    %197 = arith.addf %196, %0 : vector<128x16xf32>
    %c0_44 = arith.constant 0 : index
    %c0_45 = arith.constant 0 : index
    %198 = vector.load %arg17[%c0_44, %c0_45] : memref<128x16xf32, #tpu.memory_space<vmem>>, vector<128x16xf32>
    tpu.vector_store %arg17[%c0_44, %c0_45], %197 {strides = array<i32>} : memref<128x16xf32, #tpu.memory_space<vmem>>, vector<128x16xf32>,
    return
  }
}

</mosaic_0001>

<llo_original>
// kernel: tpu_custom_call.1
$region0: #{tpu_custom_call.1}
  #allocation0 [shape = 'u32[]', space=smem, size = 0x4, offset = 0x4, fixed_abs, tag = 'smem constant byte address 0x4 - core index']
  #allocation1 [shape = 'u32[144,128]{1,0:T(1,128)}', space=vmem, size = 0x12000, scoped, tag = 'internal scratch']
  %s0 = inlined_call_operand.vmem [shape: f32[128,16], index: 0, kind: input, shape index: {}]
  %s1 = inlined_call_operand.vmem [shape: f32[1,16], index: 1, kind: input, shape index: {}]
  %s2 = inlined_call_operand.vmem [shape: f32[1,16], index: 2, kind: input, shape index: {}]
  %s3 = inlined_call_operand.vmem [shape: f32[16,24], index: 3, kind: input, shape index: {}]
  %s4 = inlined_call_operand.vmem [shape: f32[1,24], index: 4, kind: input, shape index: {}]
  %s5 = inlined_call_operand.vmem [shape: f32[1,4], index: 5, kind: input, shape index: {}]
  %s6 = inlined_call_operand.vmem [shape: f32[1,4], index: 6, kind: input, shape index: {}]
  %s7 = inlined_call_operand.vmem [shape: f32[4,4], index: 7, kind: input, shape index: {}]
  %s8 = inlined_call_operand.vmem [shape: f32[1,4], index: 8, kind: input, shape index: {}]
  %s9 = inlined_call_operand.vmem [shape: f32[1,4], index: 9, kind: input, shape index: {}]
  %s10 = inlined_call_operand.vmem [shape: f32[4,2], index: 10, kind: input, shape index: {}]
  %s11 = inlined_call_operand.vmem [shape: f32[1,2], index: 11, kind: input, shape index: {}]
  %s12 = inlined_call_operand.vmem [shape: f32[1,16], index: 12, kind: input, shape index: {}]
  %s13 = inlined_call_operand.vmem [shape: f32[1,16], index: 13, kind: input, shape index: {}]
  %s14 = inlined_call_operand.vmem [shape: f32[16,16], index: 14, kind: input, shape index: {}]
  %s15 = inlined_call_operand.vmem [shape: f32[1,16], index: 15, kind: input, shape index: {}]
  %s16 = inlined_call_operand.vmem [shape: f32[2,16], index: 16, kind: input, shape index: {}]
  %s17 = inlined_call_operand.vmem [shape: f32[128,16], index: 17, kind: output, shape index: {}]
  %s18 = sld [smem:[#allocation0]]
  $region78: #{tpu_custom_call.1} parent=0
    _
  %s20 = ssub.s32 1, %s18
  %s21 = scalar_select 0, %s20, %s18
  // Predicated region
  $region2: #{tpu_custom_call.1} parent=0 // pred_check
    _
  $region3: #{tpu_custom_call.1} parent=0 // pred_check_branch
    %23 = sbr.rel (0) target = $region5
  $region4: #{tpu_custom_call.1} parent=0 // pred_region
    _
  $region5: #{tpu_custom_call.1} parent=0 // pred_fallthru
    _
  // Predicated region
  $region6: #{tpu_custom_call.1} parent=0 // pred_check
    _
  $region7: #{tpu_custom_call.1} parent=0 // pred_check_branch
    %25 = sbr.rel (0) target = $region9
  $region8: #{tpu_custom_call.1} parent=0 // pred_region
    _
  $region9: #{tpu_custom_call.1} parent=0 // pred_fallthru
    _
  // Predicated region
  $region10: #{tpu_custom_call.1} parent=0 // pred_check
    _
  $region11: #{tpu_custom_call.1} parent=0 // pred_check_branch
    %27 = sbr.rel (0) target = $region13
  $region12: #{tpu_custom_call.1} parent=0 // pred_region
    _
  $region13: #{tpu_custom_call.1} parent=0 // pred_fallthru
    _
  // Predicated region
  $region14: #{tpu_custom_call.1} parent=0 // pred_check
    _
  $region15: #{tpu_custom_call.1} parent=0 // pred_check_branch
    %29 = sbr.rel (0) target = $region17
  $region16: #{tpu_custom_call.1} parent=0 // pred_region
    _
  $region17: #{tpu_custom_call.1} parent=0 // pred_fallthru
    _
  // Predicated region
  $region18: #{tpu_custom_call.1} parent=0 // pred_check
    _
  $region19: #{tpu_custom_call.1} parent=0 // pred_check_branch
    %31 = sbr.rel (0) target = $region21
  $region20: #{tpu_custom_call.1} parent=0 // pred_region
    _
  $region21: #{tpu_custom_call.1} parent=0 // pred_fallthru
    _
  // Predicated region
  $region22: #{tpu_custom_call.1} parent=0 // pred_check
    _
  $region23: #{tpu_custom_call.1} parent=0 // pred_check_branch
    %33 = sbr.rel (0) target = $region25
  $region24: #{tpu_custom_call.1} parent=0 // pred_region
    _
  $region25: #{tpu_custom_call.1} parent=0 // pred_fallthru
    _
  // Predicated region
  $region26: #{tpu_custom_call.1} parent=0 // pred_check
    _
  $region27: #{tpu_custom_call.1} parent=0 // pred_check_branch
    %35 = sbr.rel (0) target = $region29
  $region28: #{tpu_custom_call.1} parent=0 // pred_region
    _
  $region29: #{tpu_custom_call.1} parent=0 // pred_fallthru
    _
  // Predicated region
  $region30: #{tpu_custom_call.1} parent=0 // pred_check
    _
  $region31: #{tpu_custom_call.1} parent=0 // pred_check_branch
    %37 = sbr.rel (0) target = $region33
  $region32: #{tpu_custom_call.1} parent=0 // pred_region
    _
  $region33: #{tpu_custom_call.1} parent=0 // pred_fallthru
    _
  // Predicated region
  $region34: #{tpu_custom_call.1} parent=0 // pred_check
    _
  $region35: #{tpu_custom_call.1} parent=0 // pred_check_branch
    %39 = sbr.rel (0) target = $region37
  $region36: #{tpu_custom_call.1} parent=0 // pred_region
    _
  $region37: #{tpu_custom_call.1} parent=0 // pred_fallthru
    _
  // Predicated region
  $region38: #{tpu_custom_call.1} parent=0 // pred_check
    _
  $region39: #{tpu_custom_call.1} parent=0 // pred_check_branch
    %41 = sbr.rel (0) target = $region41
  $region40: #{tpu_custom_call.1} parent=0 // pred_region
    _
  $region41: #{tpu_custom_call.1} parent=0 // pred_fallthru
    _
  // Predicated region
  $region42: #{tpu_custom_call.1} parent=0 // pred_check
    _
  $region43: #{tpu_custom_call.1} parent=0 // pred_check_branch
    %43 = sbr.rel (0) target = $region45
  $region44: #{tpu_custom_call.1} parent=0 // pred_region
    _
  $region45: #{tpu_custom_call.1} parent=0 // pred_fallthru
    _
  // Predicated region
  $region46: #{tpu_custom_call.1} parent=0 // pred_check
    _
  $region47: #{tpu_custom_call.1} parent=0 // pred_check_branch
    %45 = sbr.rel (0) target = $region49
  $region48: #{tpu_custom_call.1} parent=0 // pred_region
    _
  $region49: #{tpu_custom_call.1} parent=0 // pred_fallthru
    _
  // Predicated region
  $region50: #{tpu_custom_call.1} parent=0 // pred_check
    _
  $region51: #{tpu_custom_call.1} parent=0 // pred_check_branch
    %47 = sbr.rel (0) target = $region53
  $region52: #{tpu_custom_call.1} parent=0 // pred_region
    _
  $region53: #{tpu_custom_call.1} parent=0 // pred_fallthru
    _
  // Predicated region
  $region54: #{tpu_custom_call.1} parent=0 // pred_check
    _
  $region55: #{tpu_custom_call.1} parent=0 // pred_check_branch
    %49 = sbr.rel (0) target = $region57
  $region56: #{tpu_custom_call.1} parent=0 // pred_region
    _
  $region57: #{tpu_custom_call.1} parent=0 // pred_fallthru
    _
  // Predicated region
  $region58: #{tpu_custom_call.1} parent=0 // pred_check
    _
  $region59: #{tpu_custom_call.1} parent=0 // pred_check_branch
    %51 = sbr.rel (0) target = $region61
  $region60: #{tpu_custom_call.1} parent=0 // pred_region
    _
  $region61: #{tpu_custom_call.1} parent=0 // pred_fallthru
    _
  // Predicated region
  $region62: #{tpu_custom_call.1} parent=0 // pred_check
    _
  $region63: #{tpu_custom_call.1} parent=0 // pred_check_branch
    %53 = sbr.rel (0) target = $region65
  $region64: #{tpu_custom_call.1} parent=0 // pred_region
    _
  $region65: #{tpu_custom_call.1} parent=0 // pred_fallthru
    _
  // Predicated region
  $region66: #{tpu_custom_call.1} parent=0 // pred_check
    _
  $region67: #{tpu_custom_call.1} parent=0 // pred_check_branch
    %55 = sbr.rel (0) target = $region69
  $region68: #{tpu_custom_call.1} parent=0 // pred_region
    _
  $region69: #{tpu_custom_call.1} parent=0 // pred_fallthru
    _
  %v56 = vld [vmem:[%s0] sm:$0xff]
  %v57 = vld [vmem:[%s0 + $0x8] sm:$0xff]
  %v58 = vld [vmem:[%s0 + $0x10] sm:$0xff]
  %v59 = vld [vmem:[%s0 + $0x18] sm:$0xff]
  %v60 = vld [vmem:[%s0 + $0x20] sm:$0xff]
  %v61 = vld [vmem:[%s0 + $0x28] sm:$0xff]
  %v62 = vld [vmem:[%s0 + $0x30] sm:$0xff]
  %v63 = vld [vmem:[%s0 + $0x38] sm:$0xff]
  %v64 = vld [vmem:[%s0 + $0x40] sm:$0xff]
  %v65 = vld [vmem:[%s0 + $0x48] sm:$0xff]
  %v66 = vld [vmem:[%s0 + $0x50] sm:$0xff]
  %v67 = vld [vmem:[%s0 + $0x58] sm:$0xff]
  %v68 = vld [vmem:[%s0 + $0x60] sm:$0xff]
  %v69 = vld [vmem:[%s0 + $0x68] sm:$0xff]
  %v70 = vld [vmem:[%s0 + $0x70] sm:$0xff]
  %v71 = vld [vmem:[%s0 + $0x78] sm:$0xff]
  %v72 = vld [vmem:[%s1] sm:$0x1]
  %v74 = vlaneseq
  %v75 = vshrl.u32 %v74, 7
  %v76 = vsub.s32 0, %v75
  %v77 = vrot.slane %v72, %v76
  %v79 = vmul.f32 %v56, %v77
  %v80 = vmul.f32 %v57, %v77
  %v81 = vmul.f32 %v58, %v77
  %v82 = vmul.f32 %v59, %v77
  %v83 = vmul.f32 %v60, %v77
  %v84 = vmul.f32 %v61, %v77
  %v85 = vmul.f32 %v62, %v77
  %v86 = vmul.f32 %v63, %v77
  %v87 = vmul.f32 %v64, %v77
  %v88 = vmul.f32 %v65, %v77
  %v89 = vmul.f32 %v66, %v77
  %v90 = vmul.f32 %v67, %v77
  %v91 = vmul.f32 %v68, %v77
  %v92 = vmul.f32 %v69, %v77
  %v93 = vmul.f32 %v70, %v77
  %v94 = vmul.f32 %v71, %v77
  %v95 = vld [vmem:[%s2] sm:$0x1]
  %v97 = vlaneseq
  %v98 = vshrl.u32 %v97, 7
  %v99 = vsub.s32 0, %v98
  %v100 = vrot.slane %v95, %v99
  %v102 = vadd.f32 %v79, %v100
  %v103 = vadd.f32 %v80, %v100
  %v104 = vadd.f32 %v81, %v100
  %v105 = vadd.f32 %v82, %v100
  %v106 = vadd.f32 %v83, %v100
  %v107 = vadd.f32 %v84, %v100
  %v108 = vadd.f32 %v85, %v100
  %v109 = vadd.f32 %v86, %v100
  %v110 = vadd.f32 %v87, %v100
  %v111 = vadd.f32 %v88, %v100
  %v112 = vadd.f32 %v89, %v100
  %v113 = vadd.f32 %v90, %v100
  %v114 = vadd.f32 %v91, %v100
  %v115 = vadd.f32 %v92, %v100
  %v116 = vadd.f32 %v93, %v100
  %v117 = vadd.f32 %v94, %v100
  %v118 = vmax.f32 %v102, 0.0
  %v119 = vmax.f32 %v103, 0.0
  %v120 = vmax.f32 %v104, 0.0
  %v121 = vmax.f32 %v105, 0.0
  %v122 = vmax.f32 %v106, 0.0
  %v123 = vmax.f32 %v107, 0.0
  %v124 = vmax.f32 %v108, 0.0
  %v125 = vmax.f32 %v109, 0.0
  %v126 = vmax.f32 %v110, 0.0
  %v127 = vmax.f32 %v111, 0.0
  %v128 = vmax.f32 %v112, 0.0
  %v129 = vmax.f32 %v113, 0.0
  %v130 = vmax.f32 %v114, 0.0
  %v131 = vmax.f32 %v115, 0.0
  %v132 = vmax.f32 %v116, 0.0
  %v133 = vmax.f32 %v117, 0.0
  %v134 = vld [vmem:[%s3] sm:$0xff]
  %v135 = vld [vmem:[%s3 + $0x8] sm:$0xff]
  %v136 = vld [vmem:[%s4] sm:$0x1]
  %v138 = vlaneseq
  %v139 = vshrl.u32 %v138, 7
  %v140 = vsub.s32 0, %v139
  %v141 = vrot.slane %v136, %v140
  %vm143 = vcmask 130048
  %v145 = vsel %vm143, %v118, 0
  %v148 = vsel %vm143, %v119, 0
  %v151 = vsel %vm143, %v120, 0
  %v154 = vsel %vm143, %v121, 0
  %v157 = vsel %vm143, %v122, 0
  %v160 = vsel %vm143, %v123, 0
  %v163 = vsel %vm143, %v124, 0
  %v166 = vsel %vm143, %v125, 0
  %v169 = vsel %vm143, %v126, 0
  %v172 = vsel %vm143, %v127, 0
  %v175 = vsel %vm143, %v128, 0
  %v178 = vsel %vm143, %v129, 0
  %v181 = vsel %vm143, %v130, 0
  %v184 = vsel %vm143, %v131, 0
  %v187 = vsel %vm143, %v132, 0
  %v190 = vsel %vm143, %v133, 0
  %192 = vmatprep.subr.mxu0 0.0
  %193 = vmatpush1.msra.mxu0 %v134
  %194 = vmatprep.subr.mxu0 0.0
  %195 = vmatpush1.msra.mxu0 %v135
  %196 = vmatprep.subr.mxu0 0.0
  %197 = vmatpush1.msra.mxu0 0.0
  %198 = vmatprep.subr.mxu0 0.0
  %199 = vmatpush1.msra.mxu0 0.0
  %200 = vmatprep.subr.mxu0 0.0
  %201 = vmatpush1.msra.mxu0 0.0
  %202 = vmatprep.subr.mxu0 0.0
  %203 = vmatpush1.msra.mxu0 0.0
  %204 = vmatprep.subr.mxu0 0.0
  %205 = vmatpush1.msra.mxu0 0.0
  %206 = vmatprep.subr.mxu0 0.0
  %207 = vmatpush1.msra.mxu0 0.0
  %208 = vmatprep.subr.mxu0 0.0
  %209 = vmatpush1.msra.mxu0 0.0
  %210 = vmatprep.subr.mxu0 0.0
  %211 = vmatpush1.msra.mxu0 0.0
  %212 = vmatprep.subr.mxu0 0.0
  %213 = vmatpush1.msra.mxu0 0.0
  %214 = vmatprep.subr.mxu0 0.0
  %215 = vmatpush1.msra.mxu0 0.0
  %216 = vmatprep.subr.mxu0 0.0
  %217 = vmatpush1.msra.mxu0 0.0
  %218 = vmatprep.subr.mxu0 0.0
  %219 = vmatpush1.msra.mxu0 0.0
  %220 = vmatprep.subr.mxu0 0.0
  %221 = vmatpush1.msra.mxu0 0.0
  %222 = vmatprep.subr.mxu0 0.0
  %223 = vmatpush1.msra.mxu0 0.0
  %224 = vmatprep.subr.mxu0 0.0
  %225 = vmatpush1.msra.mxu0 0.0
  %226 = vmatprep.subr.mxu0 0.0
  %227 = vmatpush1.msra.mxu0 0.0
  %228 = vmatprep.subr.mxu0 0.0
  %229 = vmatpush1.msra.mxu0 0.0
  %230 = vmatprep.subr.mxu0 0.0
  %231 = vmatpush1.msra.mxu0 0.0
  %232 = vmatprep.subr.mxu0 0.0
  %233 = vmatpush1.msra.mxu0 0.0
  %234 = vmatprep.subr.mxu0 0.0
  %235 = vmatpush1.msra.mxu0 0.0
  %236 = vmatprep.subr.mxu0 0.0
  %237 = vmatpush1.msra.mxu0 0.0
  %238 = vmatprep.subr.mxu0 0.0
  %239 = vmatpush1.msra.mxu0 0.0
  %240 = vmatprep.subr.mxu0 0.0
  %241 = vmatpush1.msra.mxu0 0.0
  %242 = vmatprep.subr.mxu0 0.0
  %243 = vmatpush1.msra.mxu0 0.0
  %244 = vmatprep.subr.mxu0 0.0
  %245 = vmatpush1.msra.mxu0 0.0
  %246 = vmatprep.subr.mxu0 0.0
  %247 = vmatpush1.msra.mxu0 0.0
  %248 = vmatprep.subr.mxu0 0.0
  %249 = vmatpush1.msra.mxu0 0.0
  %250 = vmatprep.subr.mxu0 0.0
  %251 = vmatpush1.msra.mxu0 0.0
  %252 = vmatprep.subr.mxu0 0.0
  %253 = vmatpush1.msra.mxu0 0.0
  %254 = vmatprep.subr.mxu0 0.0
  %255 = vmatpush1.msra.mxu0 0.0
  %256 = vmatprep.mubr.f32.mxu0 0.0
  %257 = vmatmul.mubr.f32.gmra.mrb[0].mxu0 %v145
  %v258 = vpop.f32.mrb[0].mxu0
  %v259 = vadd.f32 %v141, %v258
  %v260 = vpop.f32.mrb[0].mxu0
  %261 = vmatprep.mubr.f32.mxu0 0.0
  %262 = vmatmul.mubr.f32.gmra.mrb[0].mxu0 %v148
  %v263 = vpop.f32.mrb[0].mxu0
  %v264 = vadd.f32 %v141, %v263
  %v265 = vpop.f32.mrb[0].mxu0
  %266 = vmatprep.mubr.f32.mxu0 0.0
  %267 = vmatmul.mubr.f32.gmra.mrb[0].mxu0 %v151
  %v268 = vpop.f32.mrb[0].mxu0
  %v269 = vadd.f32 %v141, %v268
  %v270 = vpop.f32.mrb[0].mxu0
  %271 = vmatprep.mubr.f32.mxu0 0.0
  %272 = vmatmul.mubr.f32.gmra.mrb[0].mxu0 %v154
  %v273 = vpop.f32.mrb[0].mxu0
  %v274 = vadd.f32 %v141, %v273
  %v275 = vpop.f32.mrb[0].mxu0
  %276 = vmatprep.mubr.f32.mxu0 0.0
  %277 = vmatmul.mubr.f32.gmra.mrb[0].mxu0 %v157
  %v278 = vpop.f32.mrb[0].mxu0
  %v279 = vadd.f32 %v141, %v278
  %v280 = vpop.f32.mrb[0].mxu0
  %281 = vmatprep.mubr.f32.mxu0 0.0
  %282 = vmatmul.mubr.f32.gmra.mrb[0].mxu0 %v160
  %v283 = vpop.f32.mrb[0].mxu0
  %v284 = vadd.f32 %v141, %v283
  %v285 = vpop.f32.mrb[0].mxu0
  %286 = vmatprep.mubr.f32.mxu0 0.0
  %287 = vmatmul.mubr.f32.gmra.mrb[0].mxu0 %v163
  %v288 = vpop.f32.mrb[0].mxu0
  %v289 = vadd.f32 %v141, %v288
  %v290 = vpop.f32.mrb[0].mxu0
  %291 = vmatprep.mubr.f32.mxu0 0.0
  %292 = vmatmul.mubr.f32.gmra.mrb[0].mxu0 %v166
  %v293 = vpop.f32.mrb[0].mxu0
  %v294 = vadd.f32 %v141, %v293
  %v295 = vpop.f32.mrb[0].mxu0
  %296 = vmatprep.mubr.f32.mxu0 0.0
  %297 = vmatmul.mubr.f32.gmra.mrb[0].mxu0 %v169
  %v298 = vpop.f32.mrb[0].mxu0
  %v299 = vadd.f32 %v141, %v298
  %v300 = vpop.f32.mrb[0].mxu0
  %301 = vmatprep.mubr.f32.mxu0 0.0
  %302 = vmatmul.mubr.f32.gmra.mrb[0].mxu0 %v172
  %v303 = vpop.f32.mrb[0].mxu0
  %v304 = vadd.f32 %v141, %v303
  %v305 = vpop.f32.mrb[0].mxu0
  %306 = vmatprep.mubr.f32.mxu0 0.0
  %307 = vmatmul.mubr.f32.gmra.mrb[0].mxu0 %v175
  %v308 = vpop.f32.mrb[0].mxu0
  %v309 = vadd.f32 %v141, %v308
  %v310 = vpop.f32.mrb[0].mxu0
  %311 = vmatprep.mubr.f32.mxu0 0.0
  %312 = vmatmul.mubr.f32.gmra.mrb[0].mxu0 %v178
  %v313 = vpop.f32.mrb[0].mxu0
  %v314 = vadd.f32 %v141, %v313
  %v315 = vpop.f32.mrb[0].mxu0
  %316 = vmatprep.mubr.f32.mxu0 0.0
  %317 = vmatmul.mubr.f32.gmra.mrb[0].mxu0 %v181
  %v318 = vpop.f32.mrb[0].mxu0
  %v319 = vadd.f32 %v141, %v318
  %v320 = vpop.f32.mrb[0].mxu0
  %321 = vmatprep.mubr.f32.mxu0 0.0
  %322 = vmatmul.mubr.f32.gmra.mrb[0].mxu0 %v184
  %v323 = vpop.f32.mrb[0].mxu0
  %v324 = vadd.f32 %v141, %v323
  %v325 = vpop.f32.mrb[0].mxu0
  %326 = vmatprep.mubr.f32.mxu0 0.0
  %327 = vmatmul.mubr.f32.gmra.mrb[0].mxu0 %v187
  %v328 = vpop.f32.mrb[0].mxu0
  %v329 = vadd.f32 %v141, %v328
  %v330 = vpop.f32.mrb[0].mxu0
  %331 = vmatprep.mubr.f32.mxu0 0.0
  %332 = vmatmul.mubr.f32.gmra.mrb[0].mxu0 %v190
  %v333 = vpop.f32.mrb[0].mxu0
  %v334 = vadd.f32 %v141, %v333
  %v335 = vpop.f32.mrb[0].mxu0
  %336 = vdwg.mxu0
  %v351 = vrot.slane %v264, 1
  %v352 = vrot.slane %v259, 1
  %v353 = vrot.slane %v269, 1
  %v354 = vrot.slane %v274, 1
  %v355 = vrot.slane %v279, 1
  %v356 = vrot.slane %v284, 1
  %v357 = vrot.slane %v289, 1
  %v358 = vrot.slane %v304, 1
  %v359 = vrot.slane %v299, 1
  %v360 = vrot.slane %v309, 1
  %v361 = vrot.slane %v314, 1
  %v362 = vrot.slane %v319, 1
  %v363 = vrot.slane %v324, 1
  %v364 = vrot.slane %v329, 1
  %v379 = vrot.slane %v264, 7
  %v380 = vrot.slane %v259, 7
  %v381 = vrot.slane %v269, 7
  %v382 = vrot.slane %v274, 7
  %v383 = vrot.slane %v279, 7
  %v384 = vrot.slane %v284, 7
  %v385 = vrot.slane %v289, 7
  %v386 = vrot.slane %v304, 7
  %v387 = vrot.slane %v299, 7
  %v388 = vrot.slane %v309, 7
  %v389 = vrot.slane %v314, 7
  %v390 = vrot.slane %v319, 7
  %v391 = vrot.slane %v324, 7
  %v392 = vrot.slane %v329, 7
  %vm407 = vcmask 1040384
  %v408 = vsel %vm407, %v351, %v379
  %v409 = vsel %vm407, %v352, %v380
  %v410 = vsel %vm407, %v353, %v381
  %v411 = vsel %vm407, %v354, %v382
  %v412 = vsel %vm407, %v355, %v383
  %v413 = vsel %vm407, %v356, %v384
  %v414 = vsel %vm407, %v357, %v385
  %v415 = vsel %vm407, %v358, %v386
  %v416 = vsel %vm407, %v359, %v387
  %v417 = vsel %vm407, %v360, %v388
  %v418 = vsel %vm407, %v361, %v389
  %v419 = vsel %vm407, %v362, %v390
  %v420 = vsel %vm407, %v363, %v391
  %v421 = vsel %vm407, %v364, %v392
  %436 = vrot.lane.b32.xlu0 %v408, 124
  %v437 = vpop.permute.xlu0 %436
  %438 = vrot.lane.b32.xlu0 %v409, 124
  %v439 = vpop.permute.xlu0 %438
  %440 = vrot.lane.b32.xlu0 %v410, 124
  %v441 = vpop.permute.xlu0 %440
  %442 = vrot.lane.b32.xlu0 %v411, 124
  %v443 = vpop.permute.xlu0 %442
  %444 = vrot.lane.b32.xlu0 %v412, 124
  %v445 = vpop.permute.xlu0 %444
  %446 = vrot.lane.b32.xlu0 %v413, 124
  %v447 = vpop.permute.xlu0 %446
  %448 = vrot.lane.b32.xlu0 %v414, 124
  %v449 = vpop.permute.xlu0 %448
  %450 = vrot.lane.b32.xlu0 %v415, 124
  %v451 = vpop.permute.xlu0 %450
  %452 = vrot.lane.b32.xlu0 %v416, 124
  %v453 = vpop.permute.xlu0 %452
  %454 = vrot.lane.b32.xlu0 %v417, 124
  %v455 = vpop.permute.xlu0 %454
  %456 = vrot.lane.b32.xlu0 %v418, 124
  %v457 = vpop.permute.xlu0 %456
  %458 = vrot.lane.b32.xlu0 %v419, 124
  %v459 = vpop.permute.xlu0 %458
  %460 = vrot.lane.b32.xlu0 %v420, 124
  %v461 = vpop.permute.xlu0 %460
  %462 = vrot.lane.b32.xlu0 %v421, 124
  %v463 = vpop.permute.xlu0 %462
  %v478 = vsub.f32 %v259, %v437
  %v479 = vsub.f32 %v264, %v439
  %v480 = vsub.f32 %v269, %v437
  %v481 = vsub.f32 %v274, %v441
  %v482 = vsub.f32 %v279, %v443
  %v483 = vsub.f32 %v284, %v445
  %v484 = vsub.f32 %v289, %v447
  %v485 = vsub.f32 %v294, %v449
  %v486 = vsub.f32 %v299, %v451
  %v487 = vsub.f32 %v304, %v453
  %v488 = vsub.f32 %v309, %v451
  %v489 = vsub.f32 %v314, %v455
  %v490 = vsub.f32 %v319, %v457
  %v491 = vsub.f32 %v324, %v459
  %v492 = vsub.f32 %v329, %v461
  %v493 = vsub.f32 %v334, %v463
  %494 = vrot.lane.b32.xlu0 %v264, 124
  %v495 = vpop.permute.xlu0 %494
  %496 = vrot.lane.b32.xlu0 %v259, 124
  %v497 = vpop.permute.xlu0 %496
  %498 = vrot.lane.b32.xlu0 %v269, 124
  %v499 = vpop.permute.xlu0 %498
  %500 = vrot.lane.b32.xlu0 %v274, 124
  %v501 = vpop.permute.xlu0 %500
  %502 = vrot.lane.b32.xlu0 %v279, 124
  %v503 = vpop.permute.xlu0 %502
  %504 = vrot.lane.b32.xlu0 %v284, 124
  %v505 = vpop.permute.xlu0 %504
  %506 = vrot.lane.b32.xlu0 %v289, 124
  %v507 = vpop.permute.xlu0 %506
  %508 = vrot.lane.b32.xlu0 %v304, 124
  %v509 = vpop.permute.xlu0 %508
  %510 = vrot.lane.b32.xlu0 %v299, 124
  %v511 = vpop.permute.xlu0 %510
  %512 = vrot.lane.b32.xlu0 %v309, 124
  %v513 = vpop.permute.xlu0 %512
  %514 = vrot.lane.b32.xlu0 %v314, 124
  %v515 = vpop.permute.xlu0 %514
  %516 = vrot.lane.b32.xlu0 %v319, 124
  %v517 = vpop.permute.xlu0 %516
  %518 = vrot.lane.b32.xlu0 %v324, 124
  %v519 = vpop.permute.xlu0 %518
  %520 = vrot.lane.b32.xlu0 %v329, 124
  %v521 = vpop.permute.xlu0 %520
  %v536 = vsub.f32 %v259, %v495
  %v537 = vsub.f32 %v264, %v497
  %v538 = vsub.f32 %v269, %v495
  %v539 = vsub.f32 %v274, %v499
  %v540 = vsub.f32 %v279, %v501
  %v541 = vsub.f32 %v284, %v503
  %v542 = vsub.f32 %v289, %v505
  %v543 = vsub.f32 %v294, %v507
  %v544 = vsub.f32 %v299, %v509
  %v545 = vsub.f32 %v304, %v511
  %v546 = vsub.f32 %v309, %v509
  %v547 = vsub.f32 %v314, %v513
  %v548 = vsub.f32 %v319, %v515
  %v549 = vsub.f32 %v324, %v517
  %v550 = vsub.f32 %v329, %v519
  %v551 = vsub.f32 %v334, %v521
  %vm552 = vcmask 1046528
  %v553 = vsel %vm552, %v351, %v379
  %v554 = vsel %vm552, %v352, %v380
  %v555 = vsel %vm552, %v353, %v381
  %v556 = vsel %vm552, %v354, %v382
  %v557 = vsel %vm552, %v355, %v383
  %v558 = vsel %vm552, %v356, %v384
  %v559 = vsel %vm552, %v357, %v385
  %v560 = vsel %vm552, %v358, %v386
  %v561 = vsel %vm552, %v359, %v387
  %v562 = vsel %vm552, %v360, %v388
  %v563 = vsel %vm552, %v361, %v389
  %v564 = vsel %vm552, %v362, %v390
  %v565 = vsel %vm552, %v363, %v391
  %v566 = vsel %vm552, %v364, %v392
  %581 = vrot.lane.b32.xlu0 %v553, 124
  %v582 = vpop.permute.xlu0 %581
  %583 = vrot.lane.b32.xlu0 %v554, 124
  %v584 = vpop.permute.xlu0 %583
  %585 = vrot.lane.b32.xlu0 %v555, 124
  %v586 = vpop.permute.xlu0 %585
  %587 = vrot.lane.b32.xlu0 %v556, 124
  %v588 = vpop.permute.xlu0 %587
  %589 = vrot.lane.b32.xlu0 %v557, 124
  %v590 = vpop.permute.xlu0 %589
  %591 = vrot.lane.b32.xlu0 %v558, 124
  %v592 = vpop.permute.xlu0 %591
  %593 = vrot.lane.b32.xlu0 %v559, 124
  %v594 = vpop.permute.xlu0 %593
  %595 = vrot.lane.b32.xlu0 %v560, 124
  %v596 = vpop.permute.xlu0 %595
  %597 = vrot.lane.b32.xlu0 %v561, 124
  %v598 = vpop.permute.xlu0 %597
  %599 = vrot.lane.b32.xlu0 %v562, 124
  %v600 = vpop.permute.xlu0 %599
  %601 = vrot.lane.b32.xlu0 %v563, 124
  %v602 = vpop.permute.xlu0 %601
  %603 = vrot.lane.b32.xlu0 %v564, 124
  %v604 = vpop.permute.xlu0 %603
  %605 = vrot.lane.b32.xlu0 %v565, 124
  %v606 = vpop.permute.xlu0 %605
  %607 = vrot.lane.b32.xlu0 %v566, 124
  %v608 = vpop.permute.xlu0 %607
  %v623 = vsub.f32 %v259, %v582
  %v624 = vsub.f32 %v264, %v584
  %v625 = vsub.f32 %v269, %v582
  %v626 = vsub.f32 %v274, %v586
  %v627 = vsub.f32 %v279, %v588
  %v628 = vsub.f32 %v284, %v590
  %v629 = vsub.f32 %v289, %v592
  %v630 = vsub.f32 %v294, %v594
  %v631 = vsub.f32 %v299, %v596
  %v632 = vsub.f32 %v304, %v598
  %v633 = vsub.f32 %v309, %v596
  %v634 = vsub.f32 %v314, %v600
  %v635 = vsub.f32 %v319, %v602
  %v636 = vsub.f32 %v324, %v604
  %v637 = vsub.f32 %v329, %v606
  %v638 = vsub.f32 %v334, %v608
  %v641 = vrot.slane %v294, 1
  %v642 = vrot.slane %v334, 1
  %v645 = vrot.slane %v294, 7
  %v646 = vrot.slane %v334, 7
  %v649 = vsel %vm407, %v641, %v645
  %v650 = vsel %vm407, %v642, %v646
  %653 = vrot.lane.b32.xlu0 %v649, 124
  %v654 = vpop.permute.xlu0 %653
  %655 = vrot.lane.b32.xlu0 %v650, 124
  %v656 = vpop.permute.xlu0 %655
  %v659 = vsub.f32 %v259, %v439
  %v660 = vsub.f32 %v264, %v437
  %v661 = vsub.f32 %v269, %v441
  %v662 = vsub.f32 %v274, %v443
  %v663 = vsub.f32 %v279, %v445
  %v664 = vsub.f32 %v284, %v447
  %v665 = vsub.f32 %v289, %v449
  %v666 = vsub.f32 %v294, %v654
  %v667 = vsub.f32 %v299, %v453
  %v668 = vsub.f32 %v304, %v451
  %v669 = vsub.f32 %v309, %v455
  %v670 = vsub.f32 %v314, %v457
  %v671 = vsub.f32 %v319, %v459
  %v672 = vsub.f32 %v324, %v461
  %v673 = vsub.f32 %v329, %v463
  %v674 = vsub.f32 %v334, %v656
  %675 = vrot.lane.b32.xlu0 %v294, 124
  %v676 = vpop.permute.xlu0 %675
  %677 = vrot.lane.b32.xlu0 %v334, 124
  %v678 = vpop.permute.xlu0 %677
  %v681 = vsub.f32 %v259, %v497
  %v682 = vsub.f32 %v264, %v495
  %v683 = vsub.f32 %v269, %v499
  %v684 = vsub.f32 %v274, %v501
  %v685 = vsub.f32 %v279, %v503
  %v686 = vsub.f32 %v284, %v505
  %v687 = vsub.f32 %v289, %v507
  %v688 = vsub.f32 %v294, %v676
  %v689 = vsub.f32 %v299, %v511
  %v690 = vsub.f32 %v304, %v509
  %v691 = vsub.f32 %v309, %v513
  %v692 = vsub.f32 %v314, %v515
  %v693 = vsub.f32 %v319, %v517
  %v694 = vsub.f32 %v324, %v519
  %v695 = vsub.f32 %v329, %v521
  %v696 = vsub.f32 %v334, %v678
  %v697 = vsel %vm552, %v641, %v645
  %v698 = vsel %vm552, %v642, %v646
  %701 = vrot.lane.b32.xlu0 %v697, 124
  %v702 = vpop.permute.xlu0 %701
  %703 = vrot.lane.b32.xlu0 %v698, 124
  %v704 = vpop.permute.xlu0 %703
  %v707 = vsub.f32 %v259, %v584
  %v708 = vsub.f32 %v264, %v582
  %v709 = vsub.f32 %v269, %v586
  %v710 = vsub.f32 %v274, %v588
  %v711 = vsub.f32 %v279, %v590
  %v712 = vsub.f32 %v284, %v592
  %v713 = vsub.f32 %v289, %v594
  %v714 = vsub.f32 %v294, %v702
  %v715 = vsub.f32 %v299, %v598
  %v716 = vsub.f32 %v304, %v596
  %v717 = vsub.f32 %v309, %v600
  %v718 = vsub.f32 %v314, %v602
  %v719 = vsub.f32 %v319, %v604
  %v720 = vsub.f32 %v324, %v606
  %v721 = vsub.f32 %v329, %v608
  %v722 = vsub.f32 %v334, %v704
  %v723 = vsub.f32 %v264, %v441
  %v724 = vsub.f32 %v269, %v443
  %v725 = vsub.f32 %v274, %v445
  %v726 = vsub.f32 %v279, %v447
  %v727 = vsub.f32 %v284, %v449
  %v728 = vsub.f32 %v289, %v654
  %v729 = vsub.f32 %v304, %v455
  %v730 = vsub.f32 %v309, %v457
  %v731 = vsub.f32 %v314, %v459
  %v732 = vsub.f32 %v319, %v461
  %v733 = vsub.f32 %v324, %v463
  %v734 = vsub.f32 %v329, %v656
  %v735 = vsub.f32 %v264, %v499
  %v736 = vsub.f32 %v269, %v501
  %v737 = vsub.f32 %v274, %v503
  %v738 = vsub.f32 %v279, %v505
  %v739 = vsub.f32 %v284, %v507
  %v740 = vsub.f32 %v289, %v676
  %v741 = vsub.f32 %v304, %v513
  %v742 = vsub.f32 %v309, %v515
  %v743 = vsub.f32 %v314, %v517
  %v744 = vsub.f32 %v319, %v519
  %v745 = vsub.f32 %v324, %v521
  %v746 = vsub.f32 %v329, %v678
  %v747 = vsub.f32 %v264, %v586
  %v748 = vsub.f32 %v269, %v588
  %v749 = vsub.f32 %v274, %v590
  %v750 = vsub.f32 %v279, %v592
  %v751 = vsub.f32 %v284, %v594
  %v752 = vsub.f32 %v289, %v702
  %v753 = vsub.f32 %v304, %v600
  %v754 = vsub.f32 %v309, %v602
  %v755 = vsub.f32 %v314, %v604
  %v756 = vsub.f32 %v319, %v606
  %v757 = vsub.f32 %v324, %v608
  %v758 = vsub.f32 %v329, %v704
  %v759 = vld [vmem:[%s5] sm:$0x1]
  %v761 = vlaneseq
  %v762 = vshrl.u32 %v761, 7
  %v763 = vsub.s32 0, %v762
  %v764 = vrot.slane %v759, %v763
  %v766 = vmul.f32 %v478, %v764
  %v767 = vmul.f32 %v479, %v764
  %v768 = vmul.f32 %v480, %v764
  %v769 = vmul.f32 %v481, %v764
  %v770 = vmul.f32 %v482, %v764
  %v771 = vmul.f32 %v483, %v764
  %v772 = vmul.f32 %v484, %v764
  %v773 = vmul.f32 %v485, %v764
  %v774 = vmul.f32 %v486, %v764
  %v775 = vmul.f32 %v487, %v764
  %v776 = vmul.f32 %v488, %v764
  %v777 = vmul.f32 %v489, %v764
  %v778 = vmul.f32 %v490, %v764
  %v779 = vmul.f32 %v491, %v764
  %v780 = vmul.f32 %v492, %v764
  %v781 = vmul.f32 %v493, %v764
  %v782 = vmul.f32 %v536, %v764
  %v783 = vmul.f32 %v537, %v764
  %v784 = vmul.f32 %v538, %v764
  %v785 = vmul.f32 %v539, %v764
  %v786 = vmul.f32 %v540, %v764
  %v787 = vmul.f32 %v541, %v764
  %v788 = vmul.f32 %v542, %v764
  %v789 = vmul.f32 %v543, %v764
  %v790 = vmul.f32 %v544, %v764
  %v791 = vmul.f32 %v545, %v764
  %v792 = vmul.f32 %v546, %v764
  %v793 = vmul.f32 %v547, %v764
  %v794 = vmul.f32 %v548, %v764
  %v795 = vmul.f32 %v549, %v764
  %v796 = vmul.f32 %v550, %v764
  %v797 = vmul.f32 %v551, %v764
  %v798 = vmul.f32 %v623, %v764
  %v799 = vmul.f32 %v624, %v764
  %v800 = vmul.f32 %v625, %v764
  %v801 = vmul.f32 %v626, %v764
  %v802 = vmul.f32 %v627, %v764
  %v803 = vmul.f32 %v628, %v764
  %v804 = vmul.f32 %v629, %v764
  %v805 = vmul.f32 %v630, %v764
  %v806 = vmul.f32 %v631, %v764
  %v807 = vmul.f32 %v632, %v764
  %v808 = vmul.f32 %v633, %v764
  %v809 = vmul.f32 %v634, %v764
  %v810 = vmul.f32 %v635, %v764
  %v811 = vmul.f32 %v636, %v764
  %v812 = vmul.f32 %v637, %v764
  %v813 = vmul.f32 %v638, %v764
  %v814 = vmul.f32 %v659, %v764
  %v815 = vmul.f32 %v660, %v764
  %v816 = vmul.f32 %v661, %v764
  %v817 = vmul.f32 %v662, %v764
  %v818 = vmul.f32 %v663, %v764
  %v819 = vmul.f32 %v664, %v764
  %v820 = vmul.f32 %v665, %v764
  %v821 = vmul.f32 %v666, %v764
  %v822 = vmul.f32 %v667, %v764
  %v823 = vmul.f32 %v668, %v764
  %v824 = vmul.f32 %v669, %v764
  %v825 = vmul.f32 %v670, %v764
  %v826 = vmul.f32 %v671, %v764
  %v827 = vmul.f32 %v672, %v764
  %v828 = vmul.f32 %v673, %v764
  %v829 = vmul.f32 %v674, %v764
  %v830 = vmul.f32 %v681, %v764
  %v831 = vmul.f32 %v682, %v764
  %v832 = vmul.f32 %v683, %v764
  %v833 = vmul.f32 %v684, %v764
  %v834 = vmul.f32 %v685, %v764
  %v835 = vmul.f32 %v686, %v764
  %v836 = vmul.f32 %v687, %v764
  %v837 = vmul.f32 %v688, %v764
  %v838 = vmul.f32 %v689, %v764
  %v839 = vmul.f32 %v690, %v764
  %v840 = vmul.f32 %v691, %v764
  %v841 = vmul.f32 %v692, %v764
  %v842 = vmul.f32 %v693, %v764
  %v843 = vmul.f32 %v694, %v764
  %v844 = vmul.f32 %v695, %v764
  %v845 = vmul.f32 %v696, %v764
  %v846 = vmul.f32 %v707, %v764
  %v847 = vmul.f32 %v708, %v764
  %v848 = vmul.f32 %v709, %v764
  %v849 = vmul.f32 %v710, %v764
  %v850 = vmul.f32 %v711, %v764
  %v851 = vmul.f32 %v712, %v764
  %v852 = vmul.f32 %v713, %v764
  %v853 = vmul.f32 %v714, %v764
  %v854 = vmul.f32 %v715, %v764
  %v855 = vmul.f32 %v716, %v764
  %v856 = vmul.f32 %v717, %v764
  %v857 = vmul.f32 %v718, %v764
  %v858 = vmul.f32 %v719, %v764
  %v859 = vmul.f32 %v720, %v764
  %v860 = vmul.f32 %v721, %v764
  %v861 = vmul.f32 %v722, %v764
  %v862 = vmul.f32 %v723, %v764
  %v863 = vmul.f32 %v724, %v764
  %v864 = vmul.f32 %v725, %v764
  %v865 = vmul.f32 %v726, %v764
  %v866 = vmul.f32 %v727, %v764
  %v867 = vmul.f32 %v728, %v764
  %v868 = vmul.f32 %v729, %v764
  %v869 = vmul.f32 %v730, %v764
  %v870 = vmul.f32 %v731, %v764
  %v871 = vmul.f32 %v732, %v764
  %v872 = vmul.f32 %v733, %v764
  %v873 = vmul.f32 %v734, %v764
  %v874 = vmul.f32 %v735, %v764
  %v875 = vmul.f32 %v736, %v764
  %v876 = vmul.f32 %v737, %v764
  %v877 = vmul.f32 %v738, %v764
  %v878 = vmul.f32 %v739, %v764
  %v879 = vmul.f32 %v740, %v764
  %v880 = vmul.f32 %v741, %v764
  %v881 = vmul.f32 %v742, %v764
  %v882 = vmul.f32 %v743, %v764
  %v883 = vmul.f32 %v744, %v764
  %v884 = vmul.f32 %v745, %v764
  %v885 = vmul.f32 %v746, %v764
  %v886 = vmul.f32 %v747, %v764
  %v887 = vmul.f32 %v748, %v764
  %v888 = vmul.f32 %v749, %v764
  %v889 = vmul.f32 %v750, %v764
  %v890 = vmul.f32 %v751, %v764
  %v891 = vmul.f32 %v752, %v764
  %v892 = vmul.f32 %v753, %v764
  %v893 = vmul.f32 %v754, %v764
  %v894 = vmul.f32 %v755, %v764
  %v895 = vmul.f32 %v756, %v764
  %v896 = vmul.f32 %v757, %v764
  %v897 = vmul.f32 %v758, %v764
  %v898 = vld [vmem:[%s6] sm:$0x1]
  %v900 = vlaneseq
  %v901 = vshrl.u32 %v900, 7
  %v902 = vsub.s32 0, %v901
  %v903 = vrot.slane %v898, %v902
  %v905 = vadd.f32 %v766, %v903
  %v906 = vadd.f32 %v767, %v903
  %v907 = vadd.f32 %v768, %v903
  %v908 = vadd.f32 %v769, %v903
  %v909 = vadd.f32 %v770, %v903
  %v910 = vadd.f32 %v771, %v903
  %v911 = vadd.f32 %v772, %v903
  %v912 = vadd.f32 %v773, %v903
  %v913 = vadd.f32 %v774, %v903
  %v914 = vadd.f32 %v775, %v903
  %v915 = vadd.f32 %v776, %v903
  %v916 = vadd.f32 %v777, %v903
  %v917 = vadd.f32 %v778, %v903
  %v918 = vadd.f32 %v779, %v903
  %v919 = vadd.f32 %v780, %v903
  %v920 = vadd.f32 %v781, %v903
  %v921 = vadd.f32 %v782, %v903
  %v922 = vadd.f32 %v783, %v903
  %v923 = vadd.f32 %v784, %v903
  %v924 = vadd.f32 %v785, %v903
  %v925 = vadd.f32 %v786, %v903
  %v926 = vadd.f32 %v787, %v903
  %v927 = vadd.f32 %v788, %v903
  %v928 = vadd.f32 %v789, %v903
  %v929 = vadd.f32 %v790, %v903
  %v930 = vadd.f32 %v791, %v903
  %v931 = vadd.f32 %v792, %v903
  %v932 = vadd.f32 %v793, %v903
  %v933 = vadd.f32 %v794, %v903
  %v934 = vadd.f32 %v795, %v903
  %v935 = vadd.f32 %v796, %v903
  %v936 = vadd.f32 %v797, %v903
  %v937 = vadd.f32 %v798, %v903
  %v938 = vadd.f32 %v799, %v903
  %v939 = vadd.f32 %v800, %v903
  %v940 = vadd.f32 %v801, %v903
  %v941 = vadd.f32 %v802, %v903
  %v942 = vadd.f32 %v803, %v903
  %v943 = vadd.f32 %v804, %v903
  %v944 = vadd.f32 %v805, %v903
  %v945 = vadd.f32 %v806, %v903
  %v946 = vadd.f32 %v807, %v903
  %v947 = vadd.f32 %v808, %v903
  %v948 = vadd.f32 %v809, %v903
  %v949 = vadd.f32 %v810, %v903
  %v950 = vadd.f32 %v811, %v903
  %v951 = vadd.f32 %v812, %v903
  %v952 = vadd.f32 %v813, %v903
  %v953 = vadd.f32 %v814, %v903
  %v954 = vadd.f32 %v815, %v903
  %v955 = vadd.f32 %v816, %v903
  %v956 = vadd.f32 %v817, %v903
  %v957 = vadd.f32 %v818, %v903
  %v958 = vadd.f32 %v819, %v903
  %v959 = vadd.f32 %v820, %v903
  %v960 = vadd.f32 %v821, %v903
  %v961 = vadd.f32 %v822, %v903
  %v962 = vadd.f32 %v823, %v903
  %v963 = vadd.f32 %v824, %v903
  %v964 = vadd.f32 %v825, %v903
  %v965 = vadd.f32 %v826, %v903
  %v966 = vadd.f32 %v827, %v903
  %v967 = vadd.f32 %v828, %v903
  %v968 = vadd.f32 %v829, %v903
  %v969 = vadd.f32 %v830, %v903
  %v970 = vadd.f32 %v831, %v903
  %v971 = vadd.f32 %v832, %v903
  %v972 = vadd.f32 %v833, %v903
  %v973 = vadd.f32 %v834, %v903
  %v974 = vadd.f32 %v835, %v903
  %v975 = vadd.f32 %v836, %v903
  %v976 = vadd.f32 %v837, %v903
  %v977 = vadd.f32 %v838, %v903
  %v978 = vadd.f32 %v839, %v903
  %v979 = vadd.f32 %v840, %v903
  %v980 = vadd.f32 %v841, %v903
  %v981 = vadd.f32 %v842, %v903
  %v982 = vadd.f32 %v843, %v903
  %v983 = vadd.f32 %v844, %v903
  %v984 = vadd.f32 %v845, %v903
  %v985 = vadd.f32 %v846, %v903
  %v986 = vadd.f32 %v847, %v903
  %v987 = vadd.f32 %v848, %v903
  %v988 = vadd.f32 %v849, %v903
  %v989 = vadd.f32 %v850, %v903
  %v990 = vadd.f32 %v851, %v903
  %v991 = vadd.f32 %v852, %v903
  %v992 = vadd.f32 %v853, %v903
  %v993 = vadd.f32 %v854, %v903
  %v994 = vadd.f32 %v855, %v903
  %v995 = vadd.f32 %v856, %v903
  %v996 = vadd.f32 %v857, %v903
  %v997 = vadd.f32 %v858, %v903
  %v998 = vadd.f32 %v859, %v903
  %v999 = vadd.f32 %v860, %v903
  %v1000 = vadd.f32 %v861, %v903
  %v1001 = vadd.f32 %v862, %v903
  %v1002 = vadd.f32 %v863, %v903
  %v1003 = vadd.f32 %v864, %v903
  %v1004 = vadd.f32 %v865, %v903
  %v1005 = vadd.f32 %v866, %v903
  %v1006 = vadd.f32 %v867, %v903
  %v1007 = vadd.f32 %v868, %v903
  %v1008 = vadd.f32 %v869, %v903
  %v1009 = vadd.f32 %v870, %v903
  %v1010 = vadd.f32 %v871, %v903
  %v1011 = vadd.f32 %v872, %v903
  %v1012 = vadd.f32 %v873, %v903
  %v1013 = vadd.f32 %v874, %v903
  %v1014 = vadd.f32 %v875, %v903
  %v1015 = vadd.f32 %v876, %v903
  %v1016 = vadd.f32 %v877, %v903
  %v1017 = vadd.f32 %v878, %v903
  %v1018 = vadd.f32 %v879, %v903
  %v1019 = vadd.f32 %v880, %v903
  %v1020 = vadd.f32 %v881, %v903
  %v1021 = vadd.f32 %v882, %v903
  %v1022 = vadd.f32 %v883, %v903
  %v1023 = vadd.f32 %v884, %v903
  %v1024 = vadd.f32 %v885, %v903
  %v1025 = vadd.f32 %v886, %v903
  %v1026 = vadd.f32 %v887, %v903
  %v1027 = vadd.f32 %v888, %v903
  %v1028 = vadd.f32 %v889, %v903
  %v1029 = vadd.f32 %v890, %v903
  %v1030 = vadd.f32 %v891, %v903
  %v1031 = vadd.f32 %v892, %v903
  %v1032 = vadd.f32 %v893, %v903
  %v1033 = vadd.f32 %v894, %v903
  %v1034 = vadd.f32 %v895, %v903
  %v1035 = vadd.f32 %v896, %v903
  %v1036 = vadd.f32 %v897, %v903
  %v1037 = vmax.f32 %v905, 0.0
  %v1038 = vmax.f32 %v906, 0.0
  %v1039 = vmax.f32 %v907, 0.0
  %v1040 = vmax.f32 %v908, 0.0
  %v1041 = vmax.f32 %v909, 0.0
  %v1042 = vmax.f32 %v910, 0.0
  %v1043 = vmax.f32 %v911, 0.0
  %v1044 = vmax.f32 %v912, 0.0
  %v1045 = vmax.f32 %v913, 0.0
  %v1046 = vmax.f32 %v914, 0.0
  %v1047 = vmax.f32 %v915, 0.0
  %v1048 = vmax.f32 %v916, 0.0
  %v1049 = vmax.f32 %v917, 0.0
  %v1050 = vmax.f32 %v918, 0.0
  %v1051 = vmax.f32 %v919, 0.0
  %v1052 = vmax.f32 %v920, 0.0
  %v1053 = vmax.f32 %v921, 0.0
  %v1054 = vmax.f32 %v922, 0.0
  %v1055 = vmax.f32 %v923, 0.0
  %v1056 = vmax.f32 %v924, 0.0
  %v1057 = vmax.f32 %v925, 0.0
  %v1058 = vmax.f32 %v926, 0.0
  %v1059 = vmax.f32 %v927, 0.0
  %v1060 = vmax.f32 %v928, 0.0
  %v1061 = vmax.f32 %v929, 0.0
  %v1062 = vmax.f32 %v930, 0.0
  %v1063 = vmax.f32 %v931, 0.0
  %v1064 = vmax.f32 %v932, 0.0
  %v1065 = vmax.f32 %v933, 0.0
  %v1066 = vmax.f32 %v934, 0.0
  %v1067 = vmax.f32 %v935, 0.0
  %v1068 = vmax.f32 %v936, 0.0
  %v1069 = vmax.f32 %v937, 0.0
  %v1070 = vmax.f32 %v938, 0.0
  %v1071 = vmax.f32 %v939, 0.0
  %v1072 = vmax.f32 %v940, 0.0
  %v1073 = vmax.f32 %v941, 0.0
  %v1074 = vmax.f32 %v942, 0.0
  %v1075 = vmax.f32 %v943, 0.0
  %v1076 = vmax.f32 %v944, 0.0
  %v1077 = vmax.f32 %v945, 0.0
  %v1078 = vmax.f32 %v946, 0.0
  %v1079 = vmax.f32 %v947, 0.0
  %v1080 = vmax.f32 %v948, 0.0
  %v1081 = vmax.f32 %v949, 0.0
  %v1082 = vmax.f32 %v950, 0.0
  %v1083 = vmax.f32 %v951, 0.0
  %v1084 = vmax.f32 %v952, 0.0
  %v1085 = vmax.f32 %v953, 0.0
  %v1086 = vmax.f32 %v954, 0.0
  %v1087 = vmax.f32 %v955, 0.0
  %v1088 = vmax.f32 %v956, 0.0
  %v1089 = vmax.f32 %v957, 0.0
  %v1090 = vmax.f32 %v958, 0.0
  %v1091 = vmax.f32 %v959, 0.0
  %v1092 = vmax.f32 %v960, 0.0
  %v1093 = vmax.f32 %v961, 0.0
  %v1094 = vmax.f32 %v962, 0.0
  %v1095 = vmax.f32 %v963, 0.0
  %v1096 = vmax.f32 %v964, 0.0
  %v1097 = vmax.f32 %v965, 0.0
  %v1098 = vmax.f32 %v966, 0.0
  %v1099 = vmax.f32 %v967, 0.0
  %v1100 = vmax.f32 %v968, 0.0
  %v1101 = vmax.f32 %v969, 0.0
  %v1102 = vmax.f32 %v970, 0.0
  %v1103 = vmax.f32 %v971, 0.0
  %v1104 = vmax.f32 %v972, 0.0
  %v1105 = vmax.f32 %v973, 0.0
  %v1106 = vmax.f32 %v974, 0.0
  %v1107 = vmax.f32 %v975, 0.0
  %v1108 = vmax.f32 %v976, 0.0
  %v1109 = vmax.f32 %v977, 0.0
  %v1110 = vmax.f32 %v978, 0.0
  %v1111 = vmax.f32 %v979, 0.0
  %v1112 = vmax.f32 %v980, 0.0
  %v1113 = vmax.f32 %v981, 0.0
  %v1114 = vmax.f32 %v982, 0.0
  %v1115 = vmax.f32 %v983, 0.0
  %v1116 = vmax.f32 %v984, 0.0
  %v1117 = vmax.f32 %v985, 0.0
  %v1118 = vmax.f32 %v986, 0.0
  %v1119 = vmax.f32 %v987, 0.0
  %v1120 = vmax.f32 %v988, 0.0
  %v1121 = vmax.f32 %v989, 0.0
  %v1122 = vmax.f32 %v990, 0.0
  %v1123 = vmax.f32 %v991, 0.0
  %v1124 = vmax.f32 %v992, 0.0
  %v1125 = vmax.f32 %v993, 0.0
  %v1126 = vmax.f32 %v994, 0.0
  %v1127 = vmax.f32 %v995, 0.0
  %v1128 = vmax.f32 %v996, 0.0
  %v1129 = vmax.f32 %v997, 0.0
  %v1130 = vmax.f32 %v998, 0.0
  %v1131 = vmax.f32 %v999, 0.0
  %v1132 = vmax.f32 %v1000, 0.0
  %v1133 = vmax.f32 %v1001, 0.0
  %v1134 = vmax.f32 %v1002, 0.0
  %v1135 = vmax.f32 %v1003, 0.0
  %v1136 = vmax.f32 %v1004, 0.0
  %v1137 = vmax.f32 %v1005, 0.0
  %v1138 = vmax.f32 %v1006, 0.0
  %v1139 = vmax.f32 %v1007, 0.0
  %v1140 = vmax.f32 %v1008, 0.0
  %v1141 = vmax.f32 %v1009, 0.0
  %v1142 = vmax.f32 %v1010, 0.0
  %v1143 = vmax.f32 %v1011, 0.0
  %v1144 = vmax.f32 %v1012, 0.0
  %v1145 = vmax.f32 %v1013, 0.0
  %v1146 = vmax.f32 %v1014, 0.0
  %v1147 = vmax.f32 %v1015, 0.0
  %v1148 = vmax.f32 %v1016, 0.0
  %v1149 = vmax.f32 %v1017, 0.0
  %v1150 = vmax.f32 %v1018, 0.0
  %v1151 = vmax.f32 %v1019, 0.0
  %v1152 = vmax.f32 %v1020, 0.0
  %v1153 = vmax.f32 %v1021, 0.0
  %v1154 = vmax.f32 %v1022, 0.0
  %v1155 = vmax.f32 %v1023, 0.0
  %v1156 = vmax.f32 %v1024, 0.0
  %v1157 = vmax.f32 %v1025, 0.0
  %v1158 = vmax.f32 %v1026, 0.0
  %v1159 = vmax.f32 %v1027, 0.0
  %v1160 = vmax.f32 %v1028, 0.0
  %v1161 = vmax.f32 %v1029, 0.0
  %v1162 = vmax.f32 %v1030, 0.0
  %v1163 = vmax.f32 %v1031, 0.0
  %v1164 = vmax.f32 %v1032, 0.0
  %v1165 = vmax.f32 %v1033, 0.0
  %v1166 = vmax.f32 %v1034, 0.0
  %v1167 = vmax.f32 %v1035, 0.0
  %v1168 = vmax.f32 %v1036, 0.0
  %v1169 = vld [vmem:[%s7] sm:$0xf]
  %vm1170 = vcmask 31744
  %v1172 = vsel %vm1170, %v1037, 0
  %v1175 = vsel %vm1170, %v1038, 0
  %v1178 = vsel %vm1170, %v1039, 0
  %v1181 = vsel %vm1170, %v1040, 0
  %v1184 = vsel %vm1170, %v1041, 0
  %v1187 = vsel %vm1170, %v1042, 0
  %v1190 = vsel %vm1170, %v1043, 0
  %v1193 = vsel %vm1170, %v1044, 0
  %v1196 = vsel %vm1170, %v1045, 0
  %v1199 = vsel %vm1170, %v1046, 0
  %v1202 = vsel %vm1170, %v1047, 0
  %v1205 = vsel %vm1170, %v1048, 0
  %v1208 = vsel %vm1170, %v1049, 0
  %v1211 = vsel %vm1170, %v1050, 0
  %v1214 = vsel %vm1170, %v1051, 0
  %v1217 = vsel %vm1170, %v1052, 0
  %v1220 = vsel %vm1170, %v1053, 0
  %v1223 = vsel %vm1170, %v1054, 0
  %v1226 = vsel %vm1170, %v1055, 0
  %v1229 = vsel %vm1170, %v1056, 0
  %v1232 = vsel %vm1170, %v1057, 0
  %v1235 = vsel %vm1170, %v1058, 0
  %v1238 = vsel %vm1170, %v1059, 0
  %v1241 = vsel %vm1170, %v1060, 0
  %v1244 = vsel %vm1170, %v1061, 0
  %v1247 = vsel %vm1170, %v1062, 0
  %v1250 = vsel %vm1170, %v1063, 0
  %v1253 = vsel %vm1170, %v1064, 0
  %v1256 = vsel %vm1170, %v1065, 0
  %v1259 = vsel %vm1170, %v1066, 0
  %v1262 = vsel %vm1170, %v1067, 0
  %v1265 = vsel %vm1170, %v1068, 0
  %v1268 = vsel %vm1170, %v1069, 0
  %v1271 = vsel %vm1170, %v1070, 0
  %v1274 = vsel %vm1170, %v1071, 0
  %v1277 = vsel %vm1170, %v1072, 0
  %v1280 = vsel %vm1170, %v1073, 0
  %v1283 = vsel %vm1170, %v1074, 0
  %v1286 = vsel %vm1170, %v1075, 0
  %v1289 = vsel %vm1170, %v1076, 0
  %v1292 = vsel %vm1170, %v1077, 0
  %v1295 = vsel %vm1170, %v1078, 0
  %v1298 = vsel %vm1170, %v1079, 0
  %v1301 = vsel %vm1170, %v1080, 0
  %v1304 = vsel %vm1170, %v1081, 0
  %v1307 = vsel %vm1170, %v1082, 0
  %v1310 = vsel %vm1170, %v1083, 0
  %v1313 = vsel %vm1170, %v1084, 0
  %v1316 = vsel %vm1170, %v1085, 0
  %v1319 = vsel %vm1170, %v1086, 0
  %v1322 = vsel %vm1170, %v1087, 0
  %v1325 = vsel %vm1170, %v1088, 0
  %v1328 = vsel %vm1170, %v1089, 0
  %v1331 = vsel %vm1170, %v1090, 0
  %v1334 = vsel %vm1170, %v1091, 0
  %v1337 = vsel %vm1170, %v1092, 0
  %v1340 = vsel %vm1170, %v1093, 0
  %v1343 = vsel %vm1170, %v1094, 0
  %v1346 = vsel %vm1170, %v1095, 0
  %v1349 = vsel %vm1170, %v1096, 0
  %v1352 = vsel %vm1170, %v1097, 0
  %v1355 = vsel %vm1170, %v1098, 0
  %v1358 = vsel %vm1170, %v1099, 0
  %v1361 = vsel %vm1170, %v1100, 0
  %v1364 = vsel %vm1170, %v1101, 0
  %v1367 = vsel %vm1170, %v1102, 0
  %v1370 = vsel %vm1170, %v1103, 0
  %v1373 = vsel %vm1170, %v1104, 0
  %v1376 = vsel %vm1170, %v1105, 0
  %v1379 = vsel %vm1170, %v1106, 0
  %v1382 = vsel %vm1170, %v1107, 0
  %v1385 = vsel %vm1170, %v1108, 0
  %v1388 = vsel %vm1170, %v1109, 0
  %v1391 = vsel %vm1170, %v1110, 0
  %v1394 = vsel %vm1170, %v1111, 0
  %v1397 = vsel %vm1170, %v1112, 0
  %v1400 = vsel %vm1170, %v1113, 0
  %v1403 = vsel %vm1170, %v1114, 0
  %v1406 = vsel %vm1170, %v1115, 0
  %v1409 = vsel %vm1170, %v1116, 0
  %v1412 = vsel %vm1170, %v1117, 0
  %v1415 = vsel %vm1170, %v1118, 0
  %v1418 = vsel %vm1170, %v1119, 0
  %v1421 = vsel %vm1170, %v1120, 0
  %v1424 = vsel %vm1170, %v1121, 0
  %v1427 = vsel %vm1170, %v1122, 0
  %v1430 = vsel %vm1170, %v1123, 0
  %v1433 = vsel %vm1170, %v1124, 0
  %v1436 = vsel %vm1170, %v1125, 0
  %v1439 = vsel %vm1170, %v1126, 0
  %v1442 = vsel %vm1170, %v1127, 0
  %v1445 = vsel %vm1170, %v1128, 0
  %v1448 = vsel %vm1170, %v1129, 0
  %v1451 = vsel %vm1170, %v1130, 0
  %v1454 = vsel %vm1170, %v1131, 0
  %v1457 = vsel %vm1170, %v1132, 0
  %v1460 = vsel %vm1170, %v1133, 0
  %v1463 = vsel %vm1170, %v1134, 0
  %v1466 = vsel %vm1170, %v1135, 0
  %v1469 = vsel %vm1170, %v1136, 0
  %v1472 = vsel %vm1170, %v1137, 0
  %v1475 = vsel %vm1170, %v1138, 0
  %v1478 = vsel %vm1170, %v1139, 0
  %v1481 = vsel %vm1170, %v1140, 0
  %v1484 = vsel %vm1170, %v1141, 0
  %v1487 = vsel %vm1170, %v1142, 0
  %v1490 = vsel %vm1170, %v1143, 0
  %v1493 = vsel %vm1170, %v1144, 0
  %v1496 = vsel %vm1170, %v1145, 0
  %v1499 = vsel %vm1170, %v1146, 0
  %v1502 = vsel %vm1170, %v1147, 0
  %v1505 = vsel %vm1170, %v1148, 0
  %v1508 = vsel %vm1170, %v1149, 0
  %v1511 = vsel %vm1170, %v1150, 0
  %v1514 = vsel %vm1170, %v1151, 0
  %v1517 = vsel %vm1170, %v1152, 0
  %v1520 = vsel %vm1170, %v1153, 0
  %v1523 = vsel %vm1170, %v1154, 0
  %v1526 = vsel %vm1170, %v1155, 0
  %v1529 = vsel %vm1170, %v1156, 0
  %v1532 = vsel %vm1170, %v1157, 0
  %v1535 = vsel %vm1170, %v1158, 0
  %v1538 = vsel %vm1170, %v1159, 0
  %v1541 = vsel %vm1170, %v1160, 0
  %v1544 = vsel %vm1170, %v1161, 0
  %v1547 = vsel %vm1170, %v1162, 0
  %v1550 = vsel %vm1170, %v1163, 0
  %v1553 = vsel %vm1170, %v1164, 0
  %v1556 = vsel %vm1170, %v1165, 0
  %v1559 = vsel %vm1170, %v1166, 0
  %v1562 = vsel %vm1170, %v1167, 0
  %v1565 = vsel %vm1170, %v1168, 0
  %vm1567 = vcmask 1043456
  %v1569 = vsel %vm1567, %v1169, 0
  %1571 = vmatprep.subr.mxu0 0.0
  %1572 = vmatpush1.msra.mxu0 %v1569
  %1573 = vmatprep.subr.mxu0 0.0
  %1574 = vmatpush1.msra.mxu0 0.0
  %1575 = vmatprep.subr.mxu0 0.0
  %1576 = vmatpush1.msra.mxu0 0.0
  %1577 = vmatprep.subr.mxu0 0.0
  %1578 = vmatpush1.msra.mxu0 0.0
  %1579 = vmatprep.subr.mxu0 0.0
  %1580 = vmatpush1.msra.mxu0 0.0
  %1581 = vmatprep.subr.mxu0 0.0
  %1582 = vmatpush1.msra.mxu0 0.0
  %1583 = vmatprep.subr.mxu0 0.0
  %1584 = vmatpush1.msra.mxu0 0.0
  %1585 = vmatprep.subr.mxu0 0.0
  %1586 = vmatpush1.msra.mxu0 0.0
  %1587 = vmatprep.subr.mxu0 0.0
  %1588 = vmatpush1.msra.mxu0 0.0
  %1589 = vmatprep.subr.mxu0 0.0
  %1590 = vmatpush1.msra.mxu0 0.0
  %1591 = vmatprep.subr.mxu0 0.0
  %1592 = vmatpush1.msra.mxu0 0.0
  %1593 = vmatprep.subr.mxu0 0.0
  %1594 = vmatpush1.msra.mxu0 0.0
  %1595 = vmatprep.subr.mxu0 0.0
  %1596 = vmatpush1.msra.mxu0 0.0
  %1597 = vmatprep.subr.mxu0 0.0
  %1598 = vmatpush1.msra.mxu0 0.0
  %1599 = vmatprep.subr.mxu0 0.0
  %1600 = vmatpush1.msra.mxu0 0.0
  %1601 = vmatprep.subr.mxu0 0.0
  %1602 = vmatpush1.msra.mxu0 0.0
  %1603 = vmatprep.subr.mxu0 0.0
  %1604 = vmatpush1.msra.mxu0 0.0
  %1605 = vmatprep.subr.mxu0 0.0
  %1606 = vmatpush1.msra.mxu0 0.0
  %1607 = vmatprep.subr.mxu0 0.0
  %1608 = vmatpush1.msra.mxu0 0.0
  %1609 = vmatprep.subr.mxu0 0.0
  %1610 = vmatpush1.msra.mxu0 0.0
  %1611 = vmatprep.subr.mxu0 0.0
  %1612 = vmatpush1.msra.mxu0 0.0
  %1613 = vmatprep.subr.mxu0 0.0
  %1614 = vmatpush1.msra.mxu0 0.0
  %1615 = vmatprep.subr.mxu0 0.0
  %1616 = vmatpush1.msra.mxu0 0.0
  %1617 = vmatprep.subr.mxu0 0.0
  %1618 = vmatpush1.msra.mxu0 0.0
  %1619 = vmatprep.subr.mxu0 0.0
  %1620 = vmatpush1.msra.mxu0 0.0
  %1621 = vmatprep.subr.mxu0 0.0
  %1622 = vmatpush1.msra.mxu0 0.0
  %1623 = vmatprep.subr.mxu0 0.0
  %1624 = vmatpush1.msra.mxu0 0.0
  %1625 = vmatprep.subr.mxu0 0.0
  %1626 = vmatpush1.msra.mxu0 0.0
  %1627 = vmatprep.subr.mxu0 0.0
  %1628 = vmatpush1.msra.mxu0 0.0
  %1629 = vmatprep.subr.mxu0 0.0
  %1630 = vmatpush1.msra.mxu0 0.0
  %1631 = vmatprep.subr.mxu0 0.0
  %1632 = vmatpush1.msra.mxu0 0.0
  %1633 = vmatprep.subr.mxu0 0.0
  %1634 = vmatpush1.msra.mxu0 0.0
  %1635 = vmatprep.mubr.f32.mxu0 0.0
  %1636 = vmatmul.mubr.f32.gmra.mrb[0].mxu0 %v1172
  %v1637 = vpop.f32.mrb[0].mxu0
  %v1638 = vadd.f32 0.0, %v1637
  %v1639 = vpop.f32.mrb[0].mxu0
  %1640 = vmatprep.mubr.f32.mxu0 0.0
  %1641 = vmatmul.mubr.f32.gmra.mrb[0].mxu0 %v1175
  %v1642 = vpop.f32.mrb[0].mxu0
  %v1643 = vadd.f32 0.0, %v1642
  %v1644 = vpop.f32.mrb[0].mxu0
  %1645 = vmatprep.mubr.f32.mxu0 0.0
  %1646 = vmatmul.mubr.f32.gmra.mrb[0].mxu0 %v1178
  %v1647 = vpop.f32.mrb[0].mxu0
  %v1648 = vadd.f32 0.0, %v1647
  %v1649 = vpop.f32.mrb[0].mxu0
  %1650 = vmatprep.mubr.f32.mxu0 0.0
  %1651 = vmatmul.mubr.f32.gmra.mrb[0].mxu0 %v1181
  %v1652 = vpop.f32.mrb[0].mxu0
  %v1653 = vadd.f32 0.0, %v1652
  %v1654 = vpop.f32.mrb[0].mxu0
  %1655 = vmatprep.mubr.f32.mxu0 0.0
  %1656 = vmatmul.mubr.f32.gmra.mrb[0].mxu0 %v1184
  %v1657 = vpop.f32.mrb[0].mxu0
  %v1658 = vadd.f32 0.0, %v1657
  %v1659 = vpop.f32.mrb[0].mxu0
  %1660 = vmatprep.mubr.f32.mxu0 0.0
  %1661 = vmatmul.mubr.f32.gmra.mrb[0].mxu0 %v1187
  %v1662 = vpop.f32.mrb[0].mxu0
  %v1663 = vadd.f32 0.0, %v1662
  %v1664 = vpop.f32.mrb[0].mxu0
  %1665 = vmatprep.mubr.f32.mxu0 0.0
  %1666 = vmatmul.mubr.f32.gmra.mrb[0].mxu0 %v1190
  %v1667 = vpop.f32.mrb[0].mxu0
  %v1668 = vadd.f32 0.0, %v1667
  %v1669 = vpop.f32.mrb[0].mxu0
  %1670 = vmatprep.mubr.f32.mxu0 0.0
  %1671 = vmatmul.mubr.f32.gmra.mrb[0].mxu0 %v1193
  %v1672 = vpop.f32.mrb[0].mxu0
  %v1673 = vadd.f32 0.0, %v1672
  %v1674 = vpop.f32.mrb[0].mxu0
  %1675 = vmatprep.mubr.f32.mxu0 0.0
  %1676 = vmatmul.mubr.f32.gmra.mrb[0].mxu0 %v1196
  %v1677 = vpop.f32.mrb[0].mxu0
  %v1678 = vadd.f32 0.0, %v1677
  %v1679 = vpop.f32.mrb[0].mxu0
  %1680 = vmatprep.mubr.f32.mxu0 0.0
  %1681 = vmatmul.mubr.f32.gmra.mrb[0].mxu0 %v1199
  %v1682 = vpop.f32.mrb[0].mxu0
  %v1683 = vadd.f32 0.0, %v1682
  %v1684 = vpop.f32.mrb[0].mxu0
  %1685 = vmatprep.mubr.f32.mxu0 0.0
  %1686 = vmatmul.mubr.f32.gmra.mrb[0].mxu0 %v1202
  %v1687 = vpop.f32.mrb[0].mxu0
  %v1688 = vadd.f32 0.0, %v1687
  %v1689 = vpop.f32.mrb[0].mxu0
  %1690 = vmatprep.mubr.f32.mxu0 0.0
  %1691 = vmatmul.mubr.f32.gmra.mrb[0].mxu0 %v1205
  %v1692 = vpop.f32.mrb[0].mxu0
  %v1693 = vadd.f32 0.0, %v1692
  %v1694 = vpop.f32.mrb[0].mxu0
  %1695 = vmatprep.mubr.f32.mxu0 0.0
  %1696 = vmatmul.mubr.f32.gmra.mrb[0].mxu0 %v1208
  %v1697 = vpop.f32.mrb[0].mxu0
  %v1698 = vadd.f32 0.0, %v1697
  %v1699 = vpop.f32.mrb[0].mxu0
  %1700 = vmatprep.mubr.f32.mxu0 0.0
  %1701 = vmatmul.mubr.f32.gmra.mrb[0].mxu0 %v1211
  %v1702 = vpop.f32.mrb[0].mxu0
  %v1703 = vadd.f32 0.0, %v1702
  %v1704 = vpop.f32.mrb[0].mxu0
  %1705 = vmatprep.mubr.f32.mxu0 0.0
  %1706 = vmatmul.mubr.f32.gmra.mrb[0].mxu0 %v1214
  %v1707 = vpop.f32.mrb[0].mxu0
  %v1708 = vadd.f32 0.0, %v1707
  %v1709 = vpop.f32.mrb[0].mxu0
  %1710 = vmatprep.mubr.f32.mxu0 0.0
  %1711 = vmatmul.mubr.f32.gmra.mrb[0].mxu0 %v1217
  %v1712 = vpop.f32.mrb[0].mxu0
  %v1713 = vadd.f32 0.0, %v1712
  %v1714 = vpop.f32.mrb[0].mxu0
  %1715 = vmatprep.mubr.f32.mxu0 0.0
  %1716 = vmatmul.mubr.f32.gmra.mrb[0].mxu0 %v1220
  %v1717 = vpop.f32.mrb[0].mxu0
  %v1718 = vadd.f32 0.0, %v1717
  %v1719 = vpop.f32.mrb[0].mxu0
  %1720 = vmatprep.mubr.f32.mxu0 0.0
  %1721 = vmatmul.mubr.f32.gmra.mrb[0].mxu0 %v1223
  %v1722 = vpop.f32.mrb[0].mxu0
  %v1723 = vadd.f32 0.0, %v1722
  %v1724 = vpop.f32.mrb[0].mxu0
  %1725 = vmatprep.mubr.f32.mxu0 0.0
  %1726 = vmatmul.mubr.f32.gmra.mrb[0].mxu0 %v1226
  %v1727 = vpop.f32.mrb[0].mxu0
  %v1728 = vadd.f32 0.0, %v1727
  %v1729 = vpop.f32.mrb[0].mxu0
  %1730 = vmatprep.mubr.f32.mxu0 0.0
  %1731 = vmatmul.mubr.f32.gmra.mrb[0].mxu0 %v1229
  %v1732 = vpop.f32.mrb[0].mxu0
  %v1733 = vadd.f32 0.0, %v1732
  %v1734 = vpop.f32.mrb[0].mxu0
  %1735 = vmatprep.mubr.f32.mxu0 0.0
  %1736 = vmatmul.mubr.f32.gmra.mrb[0].mxu0 %v1232
  %v1737 = vpop.f32.mrb[0].mxu0
  %v1738 = vadd.f32 0.0, %v1737
  %v1739 = vpop.f32.mrb[0].mxu0
  %1740 = vmatprep.mubr.f32.mxu0 0.0
  %1741 = vmatmul.mubr.f32.gmra.mrb[0].mxu0 %v1235
  %v1742 = vpop.f32.mrb[0].mxu0
  %v1743 = vadd.f32 0.0, %v1742
  %v1744 = vpop.f32.mrb[0].mxu0
  %1745 = vmatprep.mubr.f32.mxu0 0.0
  %1746 = vmatmul.mubr.f32.gmra.mrb[0].mxu0 %v1238
  %v1747 = vpop.f32.mrb[0].mxu0
  %v1748 = vadd.f32 0.0, %v1747
  %v1749 = vpop.f32.mrb[0].mxu0
  %1750 = vmatprep.mubr.f32.mxu0 0.0
  %1751 = vmatmul.mubr.f32.gmra.mrb[0].mxu0 %v1241
  %v1752 = vpop.f32.mrb[0].mxu0
  %v1753 = vadd.f32 0.0, %v1752
  %v1754 = vpop.f32.mrb[0].mxu0
  %1755 = vmatprep.mubr.f32.mxu0 0.0
  %1756 = vmatmul.mubr.f32.gmra.mrb[0].mxu0 %v1244
  %v1757 = vpop.f32.mrb[0].mxu0
  %v1758 = vadd.f32 0.0, %v1757
  %v1759 = vpop.f32.mrb[0].mxu0
  %1760 = vmatprep.mubr.f32.mxu0 0.0
  %1761 = vmatmul.mubr.f32.gmra.mrb[0].mxu0 %v1247
  %v1762 = vpop.f32.mrb[0].mxu0
  %v1763 = vadd.f32 0.0, %v1762
  %v1764 = vpop.f32.mrb[0].mxu0
  %1765 = vmatprep.mubr.f32.mxu0 0.0
  %1766 = vmatmul.mubr.f32.gmra.mrb[0].mxu0 %v1250
  %v1767 = vpop.f32.mrb[0].mxu0
  %v1768 = vadd.f32 0.0, %v1767
  %v1769 = vpop.f32.mrb[0].mxu0
  %1770 = vmatprep.mubr.f32.mxu0 0.0
  %1771 = vmatmul.mubr.f32.gmra.mrb[0].mxu0 %v1253
  %v1772 = vpop.f32.mrb[0].mxu0
  %v1773 = vadd.f32 0.0, %v1772
  %v1774 = vpop.f32.mrb[0].mxu0
  %1775 = vmatprep.mubr.f32.mxu0 0.0
  %1776 = vmatmul.mubr.f32.gmra.mrb[0].mxu0 %v1256
  %v1777 = vpop.f32.mrb[0].mxu0
  %v1778 = vadd.f32 0.0, %v1777
  %v1779 = vpop.f32.mrb[0].mxu0
  %1780 = vmatprep.mubr.f32.mxu0 0.0
  %1781 = vmatmul.mubr.f32.gmra.mrb[0].mxu0 %v1259
  %v1782 = vpop.f32.mrb[0].mxu0
  %v1783 = vadd.f32 0.0, %v1782
  %v1784 = vpop.f32.mrb[0].mxu0
  %1785 = vmatprep.mubr.f32.mxu0 0.0
  %1786 = vmatmul.mubr.f32.gmra.mrb[0].mxu0 %v1262
  %v1787 = vpop.f32.mrb[0].mxu0
  %v1788 = vadd.f32 0.0, %v1787
  %v1789 = vpop.f32.mrb[0].mxu0
  %1790 = vmatprep.mubr.f32.mxu0 0.0
  %1791 = vmatmul.mubr.f32.gmra.mrb[0].mxu0 %v1265
  %v1792 = vpop.f32.mrb[0].mxu0
  %v1793 = vadd.f32 0.0, %v1792
  %v1794 = vpop.f32.mrb[0].mxu0
  %1795 = vmatprep.mubr.f32.mxu0 0.0
  %1796 = vmatmul.mubr.f32.gmra.mrb[0].mxu0 %v1268
  %v1797 = vpop.f32.mrb[0].mxu0
  %v1798 = vadd.f32 0.0, %v1797
  %v1799 = vpop.f32.mrb[0].mxu0
  %1800 = vmatprep.mubr.f32.mxu0 0.0
  %1801 = vmatmul.mubr.f32.gmra.mrb[0].mxu0 %v1271
  %v1802 = vpop.f32.mrb[0].mxu0
  %v1803 = vadd.f32 0.0, %v1802
  %v1804 = vpop.f32.mrb[0].mxu0
  %1805 = vmatprep.mubr.f32.mxu0 0.0
  %1806 = vmatmul.mubr.f32.gmra.mrb[0].mxu0 %v1274
  %v1807 = vpop.f32.mrb[0].mxu0
  %v1808 = vadd.f32 0.0, %v1807
  %v1809 = vpop.f32.mrb[0].mxu0
  %1810 = vmatprep.mubr.f32.mxu0 0.0
  %1811 = vmatmul.mubr.f32.gmra.mrb[0].mxu0 %v1277
  %v1812 = vpop.f32.mrb[0].mxu0
  %v1813 = vadd.f32 0.0, %v1812
  %v1814 = vpop.f32.mrb[0].mxu0
  %1815 = vmatprep.mubr.f32.mxu0 0.0
  %1816 = vmatmul.mubr.f32.gmra.mrb[0].mxu0 %v1280
  %v1817 = vpop.f32.mrb[0].mxu0
  %v1818 = vadd.f32 0.0, %v1817
  %v1819 = vpop.f32.mrb[0].mxu0
  %1820 = vmatprep.mubr.f32.mxu0 0.0
  %1821 = vmatmul.mubr.f32.gmra.mrb[0].mxu0 %v1283
  %v1822 = vpop.f32.mrb[0].mxu0
  %v1823 = vadd.f32 0.0, %v1822
  %v1824 = vpop.f32.mrb[0].mxu0
  %1825 = vmatprep.mubr.f32.mxu0 0.0
  %1826 = vmatmul.mubr.f32.gmra.mrb[0].mxu0 %v1286
  %v1827 = vpop.f32.mrb[0].mxu0
  %v1828 = vadd.f32 0.0, %v1827
  %v1829 = vpop.f32.mrb[0].mxu0
  %1830 = vmatprep.mubr.f32.mxu0 0.0
  %1831 = vmatmul.mubr.f32.gmra.mrb[0].mxu0 %v1289
  %v1832 = vpop.f32.mrb[0].mxu0
  %v1833 = vadd.f32 0.0, %v1832
  %v1834 = vpop.f32.mrb[0].mxu0
  %1835 = vmatprep.mubr.f32.mxu0 0.0
  %1836 = vmatmul.mubr.f32.gmra.mrb[0].mxu0 %v1292
  %v1837 = vpop.f32.mrb[0].mxu0
  %v1838 = vadd.f32 0.0, %v1837
  %v1839 = vpop.f32.mrb[0].mxu0
  %1840 = vmatprep.mubr.f32.mxu0 0.0
  %1841 = vmatmul.mubr.f32.gmra.mrb[0].mxu0 %v1295
  %v1842 = vpop.f32.mrb[0].mxu0
  %v1843 = vadd.f32 0.0, %v1842
  %v1844 = vpop.f32.mrb[0].mxu0
  %1845 = vmatprep.mubr.f32.mxu0 0.0
  %1846 = vmatmul.mubr.f32.gmra.mrb[0].mxu0 %v1298
  %v1847 = vpop.f32.mrb[0].mxu0
  %v1848 = vadd.f32 0.0, %v1847
  %v1849 = vpop.f32.mrb[0].mxu0
  %1850 = vmatprep.mubr.f32.mxu0 0.0
  %1851 = vmatmul.mubr.f32.gmra.mrb[0].mxu0 %v1301
  %v1852 = vpop.f32.mrb[0].mxu0
  %v1853 = vadd.f32 0.0, %v1852
  %v1854 = vpop.f32.mrb[0].mxu0
  %1855 = vmatprep.mubr.f32.mxu0 0.0
  %1856 = vmatmul.mubr.f32.gmra.mrb[0].mxu0 %v1304
  %v1857 = vpop.f32.mrb[0].mxu0
  %v1858 = vadd.f32 0.0, %v1857
  %v1859 = vpop.f32.mrb[0].mxu0
  %1860 = vmatprep.mubr.f32.mxu0 0.0
  %1861 = vmatmul.mubr.f32.gmra.mrb[0].mxu0 %v1307
  %v1862 = vpop.f32.mrb[0].mxu0
  %v1863 = vadd.f32 0.0, %v1862
  %v1864 = vpop.f32.mrb[0].mxu0
  %1865 = vmatprep.mubr.f32.mxu0 0.0
  %1866 = vmatmul.mubr.f32.gmra.mrb[0].mxu0 %v1310
  %v1867 = vpop.f32.mrb[0].mxu0
  %v1868 = vadd.f32 0.0, %v1867
  %v1869 = vpop.f32.mrb[0].mxu0
  %1870 = vmatprep.mubr.f32.mxu0 0.0
  %1871 = vmatmul.mubr.f32.gmra.mrb[0].mxu0 %v1313
  %v1872 = vpop.f32.mrb[0].mxu0
  %v1873 = vadd.f32 0.0, %v1872
  %v1874 = vpop.f32.mrb[0].mxu0
  %1875 = vmatprep.mubr.f32.mxu0 0.0
  %1876 = vmatmul.mubr.f32.gmra.mrb[0].mxu0 %v1316
  %v1877 = vpop.f32.mrb[0].mxu0
  %v1878 = vadd.f32 0.0, %v1877
  %v1879 = vpop.f32.mrb[0].mxu0
  %1880 = vmatprep.mubr.f32.mxu0 0.0
  %1881 = vmatmul.mubr.f32.gmra.mrb[0].mxu0 %v1319
  %v1882 = vpop.f32.mrb[0].mxu0
  %v1883 = vadd.f32 0.0, %v1882
  %v1884 = vpop.f32.mrb[0].mxu0
  %1885 = vmatprep.mubr.f32.mxu0 0.0
  %1886 = vmatmul.mubr.f32.gmra.mrb[0].mxu0 %v1322
  %v1887 = vpop.f32.mrb[0].mxu0
  %v1888 = vadd.f32 0.0, %v1887
  %v1889 = vpop.f32.mrb[0].mxu0
  %1890 = vmatprep.mubr.f32.mxu0 0.0
  %1891 = vmatmul.mubr.f32.gmra.mrb[0].mxu0 %v1325
  %v1892 = vpop.f32.mrb[0].mxu0
  %v1893 = vadd.f32 0.0, %v1892
  %v1894 = vpop.f32.mrb[0].mxu0
  %1895 = vmatprep.mubr.f32.mxu0 0.0
  %1896 = vmatmul.mubr.f32.gmra.mrb[0].mxu0 %v1328
  %v1897 = vpop.f32.mrb[0].mxu0
  %v1898 = vadd.f32 0.0, %v1897
  %v1899 = vpop.f32.mrb[0].mxu0
  %1900 = vmatprep.mubr.f32.mxu0 0.0
  %1901 = vmatmul.mubr.f32.gmra.mrb[0].mxu0 %v1331
  %v1902 = vpop.f32.mrb[0].mxu0
  %v1903 = vadd.f32 0.0, %v1902
  %v1904 = vpop.f32.mrb[0].mxu0
  %1905 = vmatprep.mubr.f32.mxu0 0.0
  %1906 = vmatmul.mubr.f32.gmra.mrb[0].mxu0 %v1334
  %v1907 = vpop.f32.mrb[0].mxu0
  %v1908 = vadd.f32 0.0, %v1907
  %v1909 = vpop.f32.mrb[0].mxu0
  %1910 = vmatprep.mubr.f32.mxu0 0.0
  %1911 = vmatmul.mubr.f32.gmra.mrb[0].mxu0 %v1337
  %v1912 = vpop.f32.mrb[0].mxu0
  %v1913 = vadd.f32 0.0, %v1912
  %v1914 = vpop.f32.mrb[0].mxu0
  %1915 = vmatprep.mubr.f32.mxu0 0.0
  %1916 = vmatmul.mubr.f32.gmra.mrb[0].mxu0 %v1340
  %v1917 = vpop.f32.mrb[0].mxu0
  %v1918 = vadd.f32 0.0, %v1917
  %v1919 = vpop.f32.mrb[0].mxu0
  %1920 = vmatprep.mubr.f32.mxu0 0.0
  %1921 = vmatmul.mubr.f32.gmra.mrb[0].mxu0 %v1343
  %v1922 = vpop.f32.mrb[0].mxu0
  %v1923 = vadd.f32 0.0, %v1922
  %v1924 = vpop.f32.mrb[0].mxu0
  %1925 = vmatprep.mubr.f32.mxu0 0.0
  %1926 = vmatmul.mubr.f32.gmra.mrb[0].mxu0 %v1346
  %v1927 = vpop.f32.mrb[0].mxu0
  %v1928 = vadd.f32 0.0, %v1927
  %v1929 = vpop.f32.mrb[0].mxu0
  %1930 = vmatprep.mubr.f32.mxu0 0.0
  %1931 = vmatmul.mubr.f32.gmra.mrb[0].mxu0 %v1349
  %v1932 = vpop.f32.mrb[0].mxu0
  %v1933 = vadd.f32 0.0, %v1932
  %v1934 = vpop.f32.mrb[0].mxu0
  %1935 = vmatprep.mubr.f32.mxu0 0.0
  %1936 = vmatmul.mubr.f32.gmra.mrb[0].mxu0 %v1352
  %v1937 = vpop.f32.mrb[0].mxu0
  %v1938 = vadd.f32 0.0, %v1937
  %v1939 = vpop.f32.mrb[0].mxu0
  %1940 = vmatprep.mubr.f32.mxu0 0.0
  %1941 = vmatmul.mubr.f32.gmra.mrb[0].mxu0 %v1355
  %v1942 = vpop.f32.mrb[0].mxu0
  %v1943 = vadd.f32 0.0, %v1942
  %v1944 = vpop.f32.mrb[0].mxu0
  %1945 = vmatprep.mubr.f32.mxu0 0.0
  %1946 = vmatmul.mubr.f32.gmra.mrb[0].mxu0 %v1358
  %v1947 = vpop.f32.mrb[0].mxu0
  %v1948 = vadd.f32 0.0, %v1947
  %v1949 = vpop.f32.mrb[0].mxu0
  %1950 = vmatprep.mubr.f32.mxu0 0.0
  %1951 = vmatmul.mubr.f32.gmra.mrb[0].mxu0 %v1361
  %v1952 = vpop.f32.mrb[0].mxu0
  %v1953 = vadd.f32 0.0, %v1952
  %v1954 = vpop.f32.mrb[0].mxu0
  %1955 = vmatprep.mubr.f32.mxu0 0.0
  %1956 = vmatmul.mubr.f32.gmra.mrb[0].mxu0 %v1364
  %v1957 = vpop.f32.mrb[0].mxu0
  %v1958 = vadd.f32 0.0, %v1957
  %v1959 = vpop.f32.mrb[0].mxu0
  %1960 = vmatprep.mubr.f32.mxu0 0.0
  %1961 = vmatmul.mubr.f32.gmra.mrb[0].mxu0 %v1367
  %v1962 = vpop.f32.mrb[0].mxu0
  %v1963 = vadd.f32 0.0, %v1962
  %v1964 = vpop.f32.mrb[0].mxu0
  %1965 = vmatprep.mubr.f32.mxu0 0.0
  %1966 = vmatmul.mubr.f32.gmra.mrb[0].mxu0 %v1370
  %v1967 = vpop.f32.mrb[0].mxu0
  %v1968 = vadd.f32 0.0, %v1967
  %v1969 = vpop.f32.mrb[0].mxu0
  %1970 = vmatprep.mubr.f32.mxu0 0.0
  %1971 = vmatmul.mubr.f32.gmra.mrb[0].mxu0 %v1373
  %v1972 = vpop.f32.mrb[0].mxu0
  %v1973 = vadd.f32 0.0, %v1972
  %v1974 = vpop.f32.mrb[0].mxu0
  %1975 = vmatprep.mubr.f32.mxu0 0.0
  %1976 = vmatmul.mubr.f32.gmra.mrb[0].mxu0 %v1376
  %v1977 = vpop.f32.mrb[0].mxu0
  %v1978 = vadd.f32 0.0, %v1977
  %v1979 = vpop.f32.mrb[0].mxu0
  %1980 = vmatprep.mubr.f32.mxu0 0.0
  %1981 = vmatmul.mubr.f32.gmra.mrb[0].mxu0 %v1379
  %v1982 = vpop.f32.mrb[0].mxu0
  %v1983 = vadd.f32 0.0, %v1982
  %v1984 = vpop.f32.mrb[0].mxu0
  %1985 = vmatprep.mubr.f32.mxu0 0.0
  %1986 = vmatmul.mubr.f32.gmra.mrb[0].mxu0 %v1382
  %v1987 = vpop.f32.mrb[0].mxu0
  %v1988 = vadd.f32 0.0, %v1987
  %v1989 = vpop.f32.mrb[0].mxu0
  %1990 = vmatprep.mubr.f32.mxu0 0.0
  %1991 = vmatmul.mubr.f32.gmra.mrb[0].mxu0 %v1385
  %v1992 = vpop.f32.mrb[0].mxu0
  %v1993 = vadd.f32 0.0, %v1992
  %v1994 = vpop.f32.mrb[0].mxu0
  %1995 = vmatprep.mubr.f32.mxu0 0.0
  %1996 = vmatmul.mubr.f32.gmra.mrb[0].mxu0 %v1388
  %v1997 = vpop.f32.mrb[0].mxu0
  %v1998 = vadd.f32 0.0, %v1997
  %v1999 = vpop.f32.mrb[0].mxu0
  %2000 = vmatprep.mubr.f32.mxu0 0.0
  %2001 = vmatmul.mubr.f32.gmra.mrb[0].mxu0 %v1391
  %v2002 = vpop.f32.mrb[0].mxu0
  %v2003 = vadd.f32 0.0, %v2002
  %v2004 = vpop.f32.mrb[0].mxu0
  %2005 = vmatprep.mubr.f32.mxu0 0.0
  %2006 = vmatmul.mubr.f32.gmra.mrb[0].mxu0 %v1394
  %v2007 = vpop.f32.mrb[0].mxu0
  %v2008 = vadd.f32 0.0, %v2007
  %v2009 = vpop.f32.mrb[0].mxu0
  %2010 = vmatprep.mubr.f32.mxu0 0.0
  %2011 = vmatmul.mubr.f32.gmra.mrb[0].mxu0 %v1397
  %v2012 = vpop.f32.mrb[0].mxu0
  %v2013 = vadd.f32 0.0, %v2012
  %v2014 = vpop.f32.mrb[0].mxu0
  %2015 = vmatprep.mubr.f32.mxu0 0.0
  %2016 = vmatmul.mubr.f32.gmra.mrb[0].mxu0 %v1400
  %v2017 = vpop.f32.mrb[0].mxu0
  %v2018 = vadd.f32 0.0, %v2017
  %v2019 = vpop.f32.mrb[0].mxu0
  %2020 = vmatprep.mubr.f32.mxu0 0.0
  %2021 = vmatmul.mubr.f32.gmra.mrb[0].mxu0 %v1403
  %v2022 = vpop.f32.mrb[0].mxu0
  %v2023 = vadd.f32 0.0, %v2022
  %v2024 = vpop.f32.mrb[0].mxu0
  %2025 = vmatprep.mubr.f32.mxu0 0.0
  %2026 = vmatmul.mubr.f32.gmra.mrb[0].mxu0 %v1406
  %v2027 = vpop.f32.mrb[0].mxu0
  %v2028 = vadd.f32 0.0, %v2027
  %v2029 = vpop.f32.mrb[0].mxu0
  %2030 = vmatprep.mubr.f32.mxu0 0.0
  %2031 = vmatmul.mubr.f32.gmra.mrb[0].mxu0 %v1409
  %v2032 = vpop.f32.mrb[0].mxu0
  %v2033 = vadd.f32 0.0, %v2032
  %v2034 = vpop.f32.mrb[0].mxu0
  %2035 = vmatprep.mubr.f32.mxu0 0.0
  %2036 = vmatmul.mubr.f32.gmra.mrb[0].mxu0 %v1412
  %v2037 = vpop.f32.mrb[0].mxu0
  %v2038 = vadd.f32 0.0, %v2037
  %v2039 = vpop.f32.mrb[0].mxu0
  %2040 = vmatprep.mubr.f32.mxu0 0.0
  %2041 = vmatmul.mubr.f32.gmra.mrb[0].mxu0 %v1415
  %v2042 = vpop.f32.mrb[0].mxu0
  %v2043 = vadd.f32 0.0, %v2042
  %v2044 = vpop.f32.mrb[0].mxu0
  %2045 = vmatprep.mubr.f32.mxu0 0.0
  %2046 = vmatmul.mubr.f32.gmra.mrb[0].mxu0 %v1418
  %v2047 = vpop.f32.mrb[0].mxu0
  %v2048 = vadd.f32 0.0, %v2047
  %v2049 = vpop.f32.mrb[0].mxu0
  %2050 = vmatprep.mubr.f32.mxu0 0.0
  %2051 = vmatmul.mubr.f32.gmra.mrb[0].mxu0 %v1421
  %v2052 = vpop.f32.mrb[0].mxu0
  %v2053 = vadd.f32 0.0, %v2052
  %v2054 = vpop.f32.mrb[0].mxu0
  %2055 = vmatprep.mubr.f32.mxu0 0.0
  %2056 = vmatmul.mubr.f32.gmra.mrb[0].mxu0 %v1424
  %v2057 = vpop.f32.mrb[0].mxu0
  %v2058 = vadd.f32 0.0, %v2057
  %v2059 = vpop.f32.mrb[0].mxu0
  %2060 = vmatprep.mubr.f32.mxu0 0.0
  %2061 = vmatmul.mubr.f32.gmra.mrb[0].mxu0 %v1427
  %v2062 = vpop.f32.mrb[0].mxu0
  %v2063 = vadd.f32 0.0, %v2062
  %v2064 = vpop.f32.mrb[0].mxu0
  %2065 = vmatprep.mubr.f32.mxu0 0.0
  %2066 = vmatmul.mubr.f32.gmra.mrb[0].mxu0 %v1430
  %v2067 = vpop.f32.mrb[0].mxu0
  %v2068 = vadd.f32 0.0, %v2067
  %v2069 = vpop.f32.mrb[0].mxu0
  %2070 = vmatprep.mubr.f32.mxu0 0.0
  %2071 = vmatmul.mubr.f32.gmra.mrb[0].mxu0 %v1433
  %v2072 = vpop.f32.mrb[0].mxu0
  %v2073 = vadd.f32 0.0, %v2072
  %v2074 = vpop.f32.mrb[0].mxu0
  %2075 = vmatprep.mubr.f32.mxu0 0.0
  %2076 = vmatmul.mubr.f32.gmra.mrb[0].mxu0 %v1436
  %v2077 = vpop.f32.mrb[0].mxu0
  %v2078 = vadd.f32 0.0, %v2077
  %v2079 = vpop.f32.mrb[0].mxu0
  %2080 = vmatprep.mubr.f32.mxu0 0.0
  %2081 = vmatmul.mubr.f32.gmra.mrb[0].mxu0 %v1439
  %v2082 = vpop.f32.mrb[0].mxu0
  %v2083 = vadd.f32 0.0, %v2082
  %v2084 = vpop.f32.mrb[0].mxu0
  %2085 = vmatprep.mubr.f32.mxu0 0.0
  %2086 = vmatmul.mubr.f32.gmra.mrb[0].mxu0 %v1442
  %v2087 = vpop.f32.mrb[0].mxu0
  %v2088 = vadd.f32 0.0, %v2087
  %v2089 = vpop.f32.mrb[0].mxu0
  %2090 = vmatprep.mubr.f32.mxu0 0.0
  %2091 = vmatmul.mubr.f32.gmra.mrb[0].mxu0 %v1445
  %v2092 = vpop.f32.mrb[0].mxu0
  %v2093 = vadd.f32 0.0, %v2092
  %v2094 = vpop.f32.mrb[0].mxu0
  %2095 = vmatprep.mubr.f32.mxu0 0.0
  %2096 = vmatmul.mubr.f32.gmra.mrb[0].mxu0 %v1448
  %v2097 = vpop.f32.mrb[0].mxu0
  %v2098 = vadd.f32 0.0, %v2097
  %v2099 = vpop.f32.mrb[0].mxu0
  %2100 = vmatprep.mubr.f32.mxu0 0.0
  %2101 = vmatmul.mubr.f32.gmra.mrb[0].mxu0 %v1451
  %v2102 = vpop.f32.mrb[0].mxu0
  %v2103 = vadd.f32 0.0, %v2102
  %v2104 = vpop.f32.mrb[0].mxu0
  %2105 = vmatprep.mubr.f32.mxu0 0.0
  %2106 = vmatmul.mubr.f32.gmra.mrb[0].mxu0 %v1454
  %v2107 = vpop.f32.mrb[0].mxu0
  %v2108 = vadd.f32 0.0, %v2107
  %v2109 = vpop.f32.mrb[0].mxu0
  %2110 = vmatprep.mubr.f32.mxu0 0.0
  %2111 = vmatmul.mubr.f32.gmra.mrb[0].mxu0 %v1457
  %v2112 = vpop.f32.mrb[0].mxu0
  %v2113 = vadd.f32 0.0, %v2112
  %v2114 = vpop.f32.mrb[0].mxu0
  %2115 = vmatprep.mubr.f32.mxu0 0.0
  %2116 = vmatmul.mubr.f32.gmra.mrb[0].mxu0 %v1172
  %v2117 = vpop.f32.mrb[0].mxu0
  %v2118 = vadd.f32 0.0, %v2117
  %v2119 = vpop.f32.mrb[0].mxu0
  %2120 = vmatprep.mubr.f32.mxu0 0.0
  %2121 = vmatmul.mubr.f32.gmra.mrb[0].mxu0 %v1460
  %v2122 = vpop.f32.mrb[0].mxu0
  %v2123 = vadd.f32 0.0, %v2122
  %v2124 = vpop.f32.mrb[0].mxu0
  %2125 = vmatprep.mubr.f32.mxu0 0.0
  %2126 = vmatmul.mubr.f32.gmra.mrb[0].mxu0 %v1463
  %v2127 = vpop.f32.mrb[0].mxu0
  %v2128 = vadd.f32 0.0, %v2127
  %v2129 = vpop.f32.mrb[0].mxu0
  %2130 = vmatprep.mubr.f32.mxu0 0.0
  %2131 = vmatmul.mubr.f32.gmra.mrb[0].mxu0 %v1466
  %v2132 = vpop.f32.mrb[0].mxu0
  %v2133 = vadd.f32 0.0, %v2132
  %v2134 = vpop.f32.mrb[0].mxu0
  %2135 = vmatprep.mubr.f32.mxu0 0.0
  %2136 = vmatmul.mubr.f32.gmra.mrb[0].mxu0 %v1469
  %v2137 = vpop.f32.mrb[0].mxu0
  %v2138 = vadd.f32 0.0, %v2137
  %v2139 = vpop.f32.mrb[0].mxu0
  %2140 = vmatprep.mubr.f32.mxu0 0.0
  %2141 = vmatmul.mubr.f32.gmra.mrb[0].mxu0 %v1472
  %v2142 = vpop.f32.mrb[0].mxu0
  %v2143 = vadd.f32 0.0, %v2142
  %v2144 = vpop.f32.mrb[0].mxu0
  %2145 = vmatprep.mubr.f32.mxu0 0.0
  %2146 = vmatmul.mubr.f32.gmra.mrb[0].mxu0 %v1475
  %v2147 = vpop.f32.mrb[0].mxu0
  %v2148 = vadd.f32 0.0, %v2147
  %v2149 = vpop.f32.mrb[0].mxu0
  %2150 = vmatprep.mubr.f32.mxu0 0.0
  %2151 = vmatmul.mubr.f32.gmra.mrb[0].mxu0 %v1193
  %v2152 = vpop.f32.mrb[0].mxu0
  %v2153 = vadd.f32 0.0, %v2152
  %v2154 = vpop.f32.mrb[0].mxu0
  %2155 = vmatprep.mubr.f32.mxu0 0.0
  %2156 = vmatmul.mubr.f32.gmra.mrb[0].mxu0 %v1196
  %v2157 = vpop.f32.mrb[0].mxu0
  %v2158 = vadd.f32 0.0, %v2157
  %v2159 = vpop.f32.mrb[0].mxu0
  %2160 = vmatprep.mubr.f32.mxu0 0.0
  %2161 = vmatmul.mubr.f32.gmra.mrb[0].mxu0 %v1478
  %v2162 = vpop.f32.mrb[0].mxu0
  %v2163 = vadd.f32 0.0, %v2162
  %v2164 = vpop.f32.mrb[0].mxu0
  %2165 = vmatprep.mubr.f32.mxu0 0.0
  %2166 = vmatmul.mubr.f32.gmra.mrb[0].mxu0 %v1481
  %v2167 = vpop.f32.mrb[0].mxu0
  %v2168 = vadd.f32 0.0, %v2167
  %v2169 = vpop.f32.mrb[0].mxu0
  %2170 = vmatprep.mubr.f32.mxu0 0.0
  %2171 = vmatmul.mubr.f32.gmra.mrb[0].mxu0 %v1484
  %v2172 = vpop.f32.mrb[0].mxu0
  %v2173 = vadd.f32 0.0, %v2172
  %v2174 = vpop.f32.mrb[0].mxu0
  %2175 = vmatprep.mubr.f32.mxu0 0.0
  %2176 = vmatmul.mubr.f32.gmra.mrb[0].mxu0 %v1487
  %v2177 = vpop.f32.mrb[0].mxu0
  %v2178 = vadd.f32 0.0, %v2177
  %v2179 = vpop.f32.mrb[0].mxu0
  %2180 = vmatprep.mubr.f32.mxu0 0.0
  %2181 = vmatmul.mubr.f32.gmra.mrb[0].mxu0 %v1490
  %v2182 = vpop.f32.mrb[0].mxu0
  %v2183 = vadd.f32 0.0, %v2182
  %v2184 = vpop.f32.mrb[0].mxu0
  %2185 = vmatprep.mubr.f32.mxu0 0.0
  %2186 = vmatmul.mubr.f32.gmra.mrb[0].mxu0 %v1493
  %v2187 = vpop.f32.mrb[0].mxu0
  %v2188 = vadd.f32 0.0, %v2187
  %v2189 = vpop.f32.mrb[0].mxu0
  %2190 = vmatprep.mubr.f32.mxu0 0.0
  %2191 = vmatmul.mubr.f32.gmra.mrb[0].mxu0 %v1217
  %v2192 = vpop.f32.mrb[0].mxu0
  %v2193 = vadd.f32 0.0, %v2192
  %v2194 = vpop.f32.mrb[0].mxu0
  %2195 = vmatprep.mubr.f32.mxu0 0.0
  %2196 = vmatmul.mubr.f32.gmra.mrb[0].mxu0 %v1220
  %v2197 = vpop.f32.mrb[0].mxu0
  %v2198 = vadd.f32 0.0, %v2197
  %v2199 = vpop.f32.mrb[0].mxu0
  %2200 = vmatprep.mubr.f32.mxu0 0.0
  %2201 = vmatmul.mubr.f32.gmra.mrb[0].mxu0 %v1496
  %v2202 = vpop.f32.mrb[0].mxu0
  %v2203 = vadd.f32 0.0, %v2202
  %v2204 = vpop.f32.mrb[0].mxu0
  %2205 = vmatprep.mubr.f32.mxu0 0.0
  %2206 = vmatmul.mubr.f32.gmra.mrb[0].mxu0 %v1499
  %v2207 = vpop.f32.mrb[0].mxu0
  %v2208 = vadd.f32 0.0, %v2207
  %v2209 = vpop.f32.mrb[0].mxu0
  %2210 = vmatprep.mubr.f32.mxu0 0.0
  %2211 = vmatmul.mubr.f32.gmra.mrb[0].mxu0 %v1502
  %v2212 = vpop.f32.mrb[0].mxu0
  %v2213 = vadd.f32 0.0, %v2212
  %v2214 = vpop.f32.mrb[0].mxu0
  %2215 = vmatprep.mubr.f32.mxu0 0.0
  %2216 = vmatmul.mubr.f32.gmra.mrb[0].mxu0 %v1505
  %v2217 = vpop.f32.mrb[0].mxu0
  %v2218 = vadd.f32 0.0, %v2217
  %v2219 = vpop.f32.mrb[0].mxu0
  %2220 = vmatprep.mubr.f32.mxu0 0.0
  %2221 = vmatmul.mubr.f32.gmra.mrb[0].mxu0 %v1508
  %v2222 = vpop.f32.mrb[0].mxu0
  %v2223 = vadd.f32 0.0, %v2222
  %v2224 = vpop.f32.mrb[0].mxu0
  %2225 = vmatprep.mubr.f32.mxu0 0.0
  %2226 = vmatmul.mubr.f32.gmra.mrb[0].mxu0 %v1511
  %v2227 = vpop.f32.mrb[0].mxu0
  %v2228 = vadd.f32 0.0, %v2227
  %v2229 = vpop.f32.mrb[0].mxu0
  %2230 = vmatprep.mubr.f32.mxu0 0.0
  %2231 = vmatmul.mubr.f32.gmra.mrb[0].mxu0 %v1241
  %v2232 = vpop.f32.mrb[0].mxu0
  %v2233 = vadd.f32 0.0, %v2232
  %v2234 = vpop.f32.mrb[0].mxu0
  %2235 = vmatprep.mubr.f32.mxu0 0.0
  %2236 = vmatmul.mubr.f32.gmra.mrb[0].mxu0 %v1244
  %v2237 = vpop.f32.mrb[0].mxu0
  %v2238 = vadd.f32 0.0, %v2237
  %v2239 = vpop.f32.mrb[0].mxu0
  %2240 = vmatprep.mubr.f32.mxu0 0.0
  %2241 = vmatmul.mubr.f32.gmra.mrb[0].mxu0 %v1514
  %v2242 = vpop.f32.mrb[0].mxu0
  %v2243 = vadd.f32 0.0, %v2242
  %v2244 = vpop.f32.mrb[0].mxu0
  %2245 = vmatprep.mubr.f32.mxu0 0.0
  %2246 = vmatmul.mubr.f32.gmra.mrb[0].mxu0 %v1517
  %v2247 = vpop.f32.mrb[0].mxu0
  %v2248 = vadd.f32 0.0, %v2247
  %v2249 = vpop.f32.mrb[0].mxu0
  %2250 = vmatprep.mubr.f32.mxu0 0.0
  %2251 = vmatmul.mubr.f32.gmra.mrb[0].mxu0 %v1520
  %v2252 = vpop.f32.mrb[0].mxu0
  %v2253 = vadd.f32 0.0, %v2252
  %v2254 = vpop.f32.mrb[0].mxu0
  %2255 = vmatprep.mubr.f32.mxu0 0.0
  %2256 = vmatmul.mubr.f32.gmra.mrb[0].mxu0 %v1523
  %v2257 = vpop.f32.mrb[0].mxu0
  %v2258 = vadd.f32 0.0, %v2257
  %v2259 = vpop.f32.mrb[0].mxu0
  %2260 = vmatprep.mubr.f32.mxu0 0.0
  %2261 = vmatmul.mubr.f32.gmra.mrb[0].mxu0 %v1526
  %v2262 = vpop.f32.mrb[0].mxu0
  %v2263 = vadd.f32 0.0, %v2262
  %v2264 = vpop.f32.mrb[0].mxu0
  %2265 = vmatprep.mubr.f32.mxu0 0.0
  %2266 = vmatmul.mubr.f32.gmra.mrb[0].mxu0 %v1529
  %v2267 = vpop.f32.mrb[0].mxu0
  %v2268 = vadd.f32 0.0, %v2267
  %v2269 = vpop.f32.mrb[0].mxu0
  %2270 = vmatprep.mubr.f32.mxu0 0.0
  %2271 = vmatmul.mubr.f32.gmra.mrb[0].mxu0 %v1265
  %v2272 = vpop.f32.mrb[0].mxu0
  %v2273 = vadd.f32 0.0, %v2272
  %v2274 = vpop.f32.mrb[0].mxu0
  %2275 = vmatprep.mubr.f32.mxu0 0.0
  %2276 = vmatmul.mubr.f32.gmra.mrb[0].mxu0 %v1268
  %v2277 = vpop.f32.mrb[0].mxu0
  %v2278 = vadd.f32 0.0, %v2277
  %v2279 = vpop.f32.mrb[0].mxu0
  %2280 = vmatprep.mubr.f32.mxu0 0.0
  %2281 = vmatmul.mubr.f32.gmra.mrb[0].mxu0 %v1532
  %v2282 = vpop.f32.mrb[0].mxu0
  %v2283 = vadd.f32 0.0, %v2282
  %v2284 = vpop.f32.mrb[0].mxu0
  %2285 = vmatprep.mubr.f32.mxu0 0.0
  %2286 = vmatmul.mubr.f32.gmra.mrb[0].mxu0 %v1535
  %v2287 = vpop.f32.mrb[0].mxu0
  %v2288 = vadd.f32 0.0, %v2287
  %v2289 = vpop.f32.mrb[0].mxu0
  %2290 = vmatprep.mubr.f32.mxu0 0.0
  %2291 = vmatmul.mubr.f32.gmra.mrb[0].mxu0 %v1538
  %v2292 = vpop.f32.mrb[0].mxu0
  %v2293 = vadd.f32 0.0, %v2292
  %v2294 = vpop.f32.mrb[0].mxu0
  %2295 = vmatprep.mubr.f32.mxu0 0.0
  %2296 = vmatmul.mubr.f32.gmra.mrb[0].mxu0 %v1541
  %v2297 = vpop.f32.mrb[0].mxu0
  %v2298 = vadd.f32 0.0, %v2297
  %v2299 = vpop.f32.mrb[0].mxu0
  %2300 = vmatprep.mubr.f32.mxu0 0.0
  %2301 = vmatmul.mubr.f32.gmra.mrb[0].mxu0 %v1544
  %v2302 = vpop.f32.mrb[0].mxu0
  %v2303 = vadd.f32 0.0, %v2302
  %v2304 = vpop.f32.mrb[0].mxu0
  %2305 = vmatprep.mubr.f32.mxu0 0.0
  %2306 = vmatmul.mubr.f32.gmra.mrb[0].mxu0 %v1547
  %v2307 = vpop.f32.mrb[0].mxu0
  %v2308 = vadd.f32 0.0, %v2307
  %v2309 = vpop.f32.mrb[0].mxu0
  %2310 = vmatprep.mubr.f32.mxu0 0.0
  %2311 = vmatmul.mubr.f32.gmra.mrb[0].mxu0 %v1289
  %v2312 = vpop.f32.mrb[0].mxu0
  %v2313 = vadd.f32 0.0, %v2312
  %v2314 = vpop.f32.mrb[0].mxu0
  %2315 = vmatprep.mubr.f32.mxu0 0.0
  %2316 = vmatmul.mubr.f32.gmra.mrb[0].mxu0 %v1292
  %v2317 = vpop.f32.mrb[0].mxu0
  %v2318 = vadd.f32 0.0, %v2317
  %v2319 = vpop.f32.mrb[0].mxu0
  %2320 = vmatprep.mubr.f32.mxu0 0.0
  %2321 = vmatmul.mubr.f32.gmra.mrb[0].mxu0 %v1550
  %v2322 = vpop.f32.mrb[0].mxu0
  %v2323 = vadd.f32 0.0, %v2322
  %v2324 = vpop.f32.mrb[0].mxu0
  %2325 = vmatprep.mubr.f32.mxu0 0.0
  %2326 = vmatmul.mubr.f32.gmra.mrb[0].mxu0 %v1553
  %v2327 = vpop.f32.mrb[0].mxu0
  %v2328 = vadd.f32 0.0, %v2327
  %v2329 = vpop.f32.mrb[0].mxu0
  %2330 = vmatprep.mubr.f32.mxu0 0.0
  %2331 = vmatmul.mubr.f32.gmra.mrb[0].mxu0 %v1556
  %v2332 = vpop.f32.mrb[0].mxu0
  %v2333 = vadd.f32 0.0, %v2332
  %v2334 = vpop.f32.mrb[0].mxu0
  %2335 = vmatprep.mubr.f32.mxu0 0.0
  %2336 = vmatmul.mubr.f32.gmra.mrb[0].mxu0 %v1559
  %v2337 = vpop.f32.mrb[0].mxu0
  %v2338 = vadd.f32 0.0, %v2337
  %v2339 = vpop.f32.mrb[0].mxu0
  %2340 = vmatprep.mubr.f32.mxu0 0.0
  %2341 = vmatmul.mubr.f32.gmra.mrb[0].mxu0 %v1562
  %v2342 = vpop.f32.mrb[0].mxu0
  %v2343 = vadd.f32 0.0, %v2342
  %v2344 = vpop.f32.mrb[0].mxu0
  %2345 = vmatprep.mubr.f32.mxu0 0.0
  %2346 = vmatmul.mubr.f32.gmra.mrb[0].mxu0 %v1565
  %v2347 = vpop.f32.mrb[0].mxu0
  %v2348 = vadd.f32 0.0, %v2347
  %v2349 = vpop.f32.mrb[0].mxu0
  %2350 = vmatprep.mubr.f32.mxu0 0.0
  %2351 = vmatmul.mubr.f32.gmra.mrb[0].mxu0 %v1313
  %v2352 = vpop.f32.mrb[0].mxu0
  %v2353 = vadd.f32 0.0, %v2352
  %v2354 = vpop.f32.mrb[0].mxu0
  %2355 = vdwg.mxu0
  %v2356 = vld [vmem:[%s8] sm:$0x1]
  %v2358 = vlaneseq
  %v2359 = vshrl.u32 %v2358, 7
  %v2360 = vsub.s32 0, %v2359
  %v2361 = vrot.slane %v2356, %v2360
  %v2363 = vmul.f32 %v1638, %v2361
  %v2364 = vmul.f32 %v1643, %v2361
  %v2365 = vmul.f32 %v1648, %v2361
  %v2366 = vmul.f32 %v1653, %v2361
  %v2367 = vmul.f32 %v1658, %v2361
  %v2368 = vmul.f32 %v1663, %v2361
  %v2369 = vmul.f32 %v1668, %v2361
  %v2370 = vmul.f32 %v1673, %v2361
  %v2371 = vmul.f32 %v1678, %v2361
  %v2372 = vmul.f32 %v1683, %v2361
  %v2373 = vmul.f32 %v1688, %v2361
  %v2374 = vmul.f32 %v1693, %v2361
  %v2375 = vmul.f32 %v1698, %v2361
  %v2376 = vmul.f32 %v1703, %v2361
  %v2377 = vmul.f32 %v1708, %v2361
  %v2378 = vmul.f32 %v1713, %v2361
  %v2379 = vmul.f32 %v1718, %v2361
  %v2380 = vmul.f32 %v1723, %v2361
  %v2381 = vmul.f32 %v1728, %v2361
  %v2382 = vmul.f32 %v1733, %v2361
  %v2383 = vmul.f32 %v1738, %v2361
  %v2384 = vmul.f32 %v1743, %v2361
  %v2385 = vmul.f32 %v1748, %v2361
  %v2386 = vmul.f32 %v1753, %v2361
  %v2387 = vmul.f32 %v1758, %v2361
  %v2388 = vmul.f32 %v1763, %v2361
  %v2389 = vmul.f32 %v1768, %v2361
  %v2390 = vmul.f32 %v1773, %v2361
  %v2391 = vmul.f32 %v1778, %v2361
  %v2392 = vmul.f32 %v1783, %v2361
  %v2393 = vmul.f32 %v1788, %v2361
  %v2394 = vmul.f32 %v1793, %v2361
  %v2395 = vmul.f32 %v1798, %v2361
  %v2396 = vmul.f32 %v1803, %v2361
  %v2397 = vmul.f32 %v1808, %v2361
  %v2398 = vmul.f32 %v1813, %v2361
  %v2399 = vmul.f32 %v1818, %v2361
  %v2400 = vmul.f32 %v1823, %v2361
  %v2401 = vmul.f32 %v1828, %v2361
  %v2402 = vmul.f32 %v1833, %v2361
  %v2403 = vmul.f32 %v1838, %v2361
  %v2404 = vmul.f32 %v1843, %v2361
  %v2405 = vmul.f32 %v1848, %v2361
  %v2406 = vmul.f32 %v1853, %v2361
  %v2407 = vmul.f32 %v1858, %v2361
  %v2408 = vmul.f32 %v1863, %v2361
  %v2409 = vmul.f32 %v1868, %v2361
  %v2410 = vmul.f32 %v1873, %v2361
  %v2411 = vmul.f32 %v1878, %v2361
  %v2412 = vmul.f32 %v1883, %v2361
  %v2413 = vmul.f32 %v1888, %v2361
  %v2414 = vmul.f32 %v1893, %v2361
  %v2415 = vmul.f32 %v1898, %v2361
  %v2416 = vmul.f32 %v1903, %v2361
  %v2417 = vmul.f32 %v1908, %v2361
  %v2418 = vmul.f32 %v1913, %v2361
  %v2419 = vmul.f32 %v1918, %v2361
  %v2420 = vmul.f32 %v1923, %v2361
  %v2421 = vmul.f32 %v1928, %v2361
  %v2422 = vmul.f32 %v1933, %v2361
  %v2423 = vmul.f32 %v1938, %v2361
  %v2424 = vmul.f32 %v1943, %v2361
  %v2425 = vmul.f32 %v1948, %v2361
  %v2426 = vmul.f32 %v1953, %v2361
  %v2427 = vmul.f32 %v1958, %v2361
  %v2428 = vmul.f32 %v1963, %v2361
  %v2429 = vmul.f32 %v1968, %v2361
  %v2430 = vmul.f32 %v1973, %v2361
  %v2431 = vmul.f32 %v1978, %v2361
  %v2432 = vmul.f32 %v1983, %v2361
  %v2433 = vmul.f32 %v1988, %v2361
  %v2434 = vmul.f32 %v1993, %v2361
  %v2435 = vmul.f32 %v1998, %v2361
  %v2436 = vmul.f32 %v2003, %v2361
  %v2437 = vmul.f32 %v2008, %v2361
  %v2438 = vmul.f32 %v2013, %v2361
  %v2439 = vmul.f32 %v2018, %v2361
  %v2440 = vmul.f32 %v2023, %v2361
  %v2441 = vmul.f32 %v2028, %v2361
  %v2442 = vmul.f32 %v2033, %v2361
  %v2443 = vmul.f32 %v2038, %v2361
  %v2444 = vmul.f32 %v2043, %v2361
  %v2445 = vmul.f32 %v2048, %v2361
  %v2446 = vmul.f32 %v2053, %v2361
  %v2447 = vmul.f32 %v2058, %v2361
  %v2448 = vmul.f32 %v2063, %v2361
  %v2449 = vmul.f32 %v2068, %v2361
  %v2450 = vmul.f32 %v2073, %v2361
  %v2451 = vmul.f32 %v2078, %v2361
  %v2452 = vmul.f32 %v2083, %v2361
  %v2453 = vmul.f32 %v2088, %v2361
  %v2454 = vmul.f32 %v2093, %v2361
  %v2455 = vmul.f32 %v2098, %v2361
  %v2456 = vmul.f32 %v2103, %v2361
  %v2457 = vmul.f32 %v2108, %v2361
  %v2458 = vmul.f32 %v2113, %v2361
  %v2459 = vmul.f32 %v2118, %v2361
  %v2460 = vmul.f32 %v2123, %v2361
  %v2461 = vmul.f32 %v2128, %v2361
  %v2462 = vmul.f32 %v2133, %v2361
  %v2463 = vmul.f32 %v2138, %v2361
  %v2464 = vmul.f32 %v2143, %v2361
  %v2465 = vmul.f32 %v2148, %v2361
  %v2466 = vmul.f32 %v2153, %v2361
  %v2467 = vmul.f32 %v2158, %v2361
  %v2468 = vmul.f32 %v2163, %v2361
  %v2469 = vmul.f32 %v2168, %v2361
  %v2470 = vmul.f32 %v2173, %v2361
  %v2471 = vmul.f32 %v2178, %v2361
  %v2472 = vmul.f32 %v2183, %v2361
  %v2473 = vmul.f32 %v2188, %v2361
  %v2474 = vmul.f32 %v2193, %v2361
  %v2475 = vmul.f32 %v2198, %v2361
  %v2476 = vmul.f32 %v2203, %v2361
  %v2477 = vmul.f32 %v2208, %v2361
  %v2478 = vmul.f32 %v2213, %v2361
  %v2479 = vmul.f32 %v2218, %v2361
  %v2480 = vmul.f32 %v2223, %v2361
  %v2481 = vmul.f32 %v2228, %v2361
  %v2482 = vmul.f32 %v2233, %v2361
  %v2483 = vmul.f32 %v2238, %v2361
  %v2484 = vmul.f32 %v2243, %v2361
  %v2485 = vmul.f32 %v2248, %v2361
  %v2486 = vmul.f32 %v2253, %v2361
  %v2487 = vmul.f32 %v2258, %v2361
  %v2488 = vmul.f32 %v2263, %v2361
  %v2489 = vmul.f32 %v2268, %v2361
  %v2490 = vmul.f32 %v2273, %v2361
  %v2491 = vmul.f32 %v2278, %v2361
  %v2492 = vmul.f32 %v2283, %v2361
  %v2493 = vmul.f32 %v2288, %v2361
  %v2494 = vmul.f32 %v2293, %v2361
  %v2495 = vmul.f32 %v2298, %v2361
  %v2496 = vmul.f32 %v2303, %v2361
  %v2497 = vmul.f32 %v2308, %v2361
  %v2498 = vmul.f32 %v2313, %v2361
  %v2499 = vmul.f32 %v2318, %v2361
  %v2500 = vmul.f32 %v2323, %v2361
  %v2501 = vmul.f32 %v2328, %v2361
  %v2502 = vmul.f32 %v2333, %v2361
  %v2503 = vmul.f32 %v2338, %v2361
  %v2504 = vmul.f32 %v2343, %v2361
  %v2505 = vmul.f32 %v2348, %v2361
  %v2506 = vmul.f32 %v2353, %v2361
  %v2507 = vld [vmem:[%s9] sm:$0x1]
  %v2509 = vlaneseq
  %v2510 = vshrl.u32 %v2509, 7
  %v2511 = vsub.s32 0, %v2510
  %v2512 = vrot.slane %v2507, %v2511
  %v2514 = vadd.f32 %v2363, %v2512
  %v2515 = vadd.f32 %v2364, %v2512
  %v2516 = vadd.f32 %v2365, %v2512
  %v2517 = vadd.f32 %v2366, %v2512
  %v2518 = vadd.f32 %v2367, %v2512
  %v2519 = vadd.f32 %v2368, %v2512
  %v2520 = vadd.f32 %v2369, %v2512
  %v2521 = vadd.f32 %v2370, %v2512
  %v2522 = vadd.f32 %v2371, %v2512
  %v2523 = vadd.f32 %v2372, %v2512
  %v2524 = vadd.f32 %v2373, %v2512
  %v2525 = vadd.f32 %v2374, %v2512
  %v2526 = vadd.f32 %v2375, %v2512
  %v2527 = vadd.f32 %v2376, %v2512
  %v2528 = vadd.f32 %v2377, %v2512
  %v2529 = vadd.f32 %v2378, %v2512
  %v2530 = vadd.f32 %v2379, %v2512
  %v2531 = vadd.f32 %v2380, %v2512
  %v2532 = vadd.f32 %v2381, %v2512
  %v2533 = vadd.f32 %v2382, %v2512
  %v2534 = vadd.f32 %v2383, %v2512
  %v2535 = vadd.f32 %v2384, %v2512
  %v2536 = vadd.f32 %v2385, %v2512
  %v2537 = vadd.f32 %v2386, %v2512
  %v2538 = vadd.f32 %v2387, %v2512
  %v2539 = vadd.f32 %v2388, %v2512
  %v2540 = vadd.f32 %v2389, %v2512
  %v2541 = vadd.f32 %v2390, %v2512
  %v2542 = vadd.f32 %v2391, %v2512
  %v2543 = vadd.f32 %v2392, %v2512
  %v2544 = vadd.f32 %v2393, %v2512
  %v2545 = vadd.f32 %v2394, %v2512
  %v2546 = vadd.f32 %v2395, %v2512
  %v2547 = vadd.f32 %v2396, %v2512
  %v2548 = vadd.f32 %v2397, %v2512
  %v2549 = vadd.f32 %v2398, %v2512
  %v2550 = vadd.f32 %v2399, %v2512
  %v2551 = vadd.f32 %v2400, %v2512
  %v2552 = vadd.f32 %v2401, %v2512
  %v2553 = vadd.f32 %v2402, %v2512
  %v2554 = vadd.f32 %v2403, %v2512
  %v2555 = vadd.f32 %v2404, %v2512
  %v2556 = vadd.f32 %v2405, %v2512
  %v2557 = vadd.f32 %v2406, %v2512
  %v2558 = vadd.f32 %v2407, %v2512
  %v2559 = vadd.f32 %v2408, %v2512
  %v2560 = vadd.f32 %v2409, %v2512
  %v2561 = vadd.f32 %v2410, %v2512
  %v2562 = vadd.f32 %v2411, %v2512
  %v2563 = vadd.f32 %v2412, %v2512
  %v2564 = vadd.f32 %v2413, %v2512
  %v2565 = vadd.f32 %v2414, %v2512
  %v2566 = vadd.f32 %v2415, %v2512
  %v2567 = vadd.f32 %v2416, %v2512
  %v2568 = vadd.f32 %v2417, %v2512
  %v2569 = vadd.f32 %v2418, %v2512
  %v2570 = vadd.f32 %v2419, %v2512
  %v2571 = vadd.f32 %v2420, %v2512
  %v2572 = vadd.f32 %v2421, %v2512
  %v2573 = vadd.f32 %v2422, %v2512
  %v2574 = vadd.f32 %v2423, %v2512
  %v2575 = vadd.f32 %v2424, %v2512
  %v2576 = vadd.f32 %v2425, %v2512
  %v2577 = vadd.f32 %v2426, %v2512
  %v2578 = vadd.f32 %v2427, %v2512
  %v2579 = vadd.f32 %v2428, %v2512
  %v2580 = vadd.f32 %v2429, %v2512
  %v2581 = vadd.f32 %v2430, %v2512
  %v2582 = vadd.f32 %v2431, %v2512
  %v2583 = vadd.f32 %v2432, %v2512
  %v2584 = vadd.f32 %v2433, %v2512
  %v2585 = vadd.f32 %v2434, %v2512
  %v2586 = vadd.f32 %v2435, %v2512
  %v2587 = vadd.f32 %v2436, %v2512
  %v2588 = vadd.f32 %v2437, %v2512
  %v2589 = vadd.f32 %v2438, %v2512
  %v2590 = vadd.f32 %v2439, %v2512
  %v2591 = vadd.f32 %v2440, %v2512
  %v2592 = vadd.f32 %v2441, %v2512
  %v2593 = vadd.f32 %v2442, %v2512
  %v2594 = vadd.f32 %v2443, %v2512
  %v2595 = vadd.f32 %v2444, %v2512
  %v2596 = vadd.f32 %v2445, %v2512
  %v2597 = vadd.f32 %v2446, %v2512
  %v2598 = vadd.f32 %v2447, %v2512
  %v2599 = vadd.f32 %v2448, %v2512
  %v2600 = vadd.f32 %v2449, %v2512
  %v2601 = vadd.f32 %v2450, %v2512
  %v2602 = vadd.f32 %v2451, %v2512
  %v2603 = vadd.f32 %v2452, %v2512
  %v2604 = vadd.f32 %v2453, %v2512
  %v2605 = vadd.f32 %v2454, %v2512
  %v2606 = vadd.f32 %v2455, %v2512
  %v2607 = vadd.f32 %v2456, %v2512
  %v2608 = vadd.f32 %v2457, %v2512
  %v2609 = vadd.f32 %v2458, %v2512
  %v2610 = vadd.f32 %v2459, %v2512
  %v2611 = vadd.f32 %v2460, %v2512
  %v2612 = vadd.f32 %v2461, %v2512
  %v2613 = vadd.f32 %v2462, %v2512
  %v2614 = vadd.f32 %v2463, %v2512
  %v2615 = vadd.f32 %v2464, %v2512
  %v2616 = vadd.f32 %v2465, %v2512
  %v2617 = vadd.f32 %v2466, %v2512
  %v2618 = vadd.f32 %v2467, %v2512
  %v2619 = vadd.f32 %v2468, %v2512
  %v2620 = vadd.f32 %v2469, %v2512
  %v2621 = vadd.f32 %v2470, %v2512
  %v2622 = vadd.f32 %v2471, %v2512
  %v2623 = vadd.f32 %v2472, %v2512
  %v2624 = vadd.f32 %v2473, %v2512
  %v2625 = vadd.f32 %v2474, %v2512
  %v2626 = vadd.f32 %v2475, %v2512
  %v2627 = vadd.f32 %v2476, %v2512
  %v2628 = vadd.f32 %v2477, %v2512
  %v2629 = vadd.f32 %v2478, %v2512
  %v2630 = vadd.f32 %v2479, %v2512
  %v2631 = vadd.f32 %v2480, %v2512
  %v2632 = vadd.f32 %v2481, %v2512
  %v2633 = vadd.f32 %v2482, %v2512
  %v2634 = vadd.f32 %v2483, %v2512
  %v2635 = vadd.f32 %v2484, %v2512
  %v2636 = vadd.f32 %v2485, %v2512
  %v2637 = vadd.f32 %v2486, %v2512
  %v2638 = vadd.f32 %v2487, %v2512
  %v2639 = vadd.f32 %v2488, %v2512
  %v2640 = vadd.f32 %v2489, %v2512
  %v2641 = vadd.f32 %v2490, %v2512
  %v2642 = vadd.f32 %v2491, %v2512
  %v2643 = vadd.f32 %v2492, %v2512
  %v2644 = vadd.f32 %v2493, %v2512
  %v2645 = vadd.f32 %v2494, %v2512
  %v2646 = vadd.f32 %v2495, %v2512
  %v2647 = vadd.f32 %v2496, %v2512
  %v2648 = vadd.f32 %v2497, %v2512
  %v2649 = vadd.f32 %v2498, %v2512
  %v2650 = vadd.f32 %v2499, %v2512
  %v2651 = vadd.f32 %v2500, %v2512
  %v2652 = vadd.f32 %v2501, %v2512
  %v2653 = vadd.f32 %v2502, %v2512
  %v2654 = vadd.f32 %v2503, %v2512
  %v2655 = vadd.f32 %v2504, %v2512
  %v2656 = vadd.f32 %v2505, %v2512
  %v2657 = vadd.f32 %v2506, %v2512
  %v2658 = vmax.f32 %v2514, 0.0
  %v2659 = vmax.f32 %v2515, 0.0
  %v2660 = vmax.f32 %v2516, 0.0
  %v2661 = vmax.f32 %v2517, 0.0
  %v2662 = vmax.f32 %v2518, 0.0
  %v2663 = vmax.f32 %v2519, 0.0
  %v2664 = vmax.f32 %v2520, 0.0
  %v2665 = vmax.f32 %v2521, 0.0
  %v2666 = vmax.f32 %v2522, 0.0
  %v2667 = vmax.f32 %v2523, 0.0
  %v2668 = vmax.f32 %v2524, 0.0
  %v2669 = vmax.f32 %v2525, 0.0
  %v2670 = vmax.f32 %v2526, 0.0
  %v2671 = vmax.f32 %v2527, 0.0
  %v2672 = vmax.f32 %v2528, 0.0
  %v2673 = vmax.f32 %v2529, 0.0
  %v2674 = vmax.f32 %v2530, 0.0
  %v2675 = vmax.f32 %v2531, 0.0
  %v2676 = vmax.f32 %v2532, 0.0
  %v2677 = vmax.f32 %v2533, 0.0
  %v2678 = vmax.f32 %v2534, 0.0
  %v2679 = vmax.f32 %v2535, 0.0
  %v2680 = vmax.f32 %v2536, 0.0
  %v2681 = vmax.f32 %v2537, 0.0
  %v2682 = vmax.f32 %v2538, 0.0
  %v2683 = vmax.f32 %v2539, 0.0
  %v2684 = vmax.f32 %v2540, 0.0
  %v2685 = vmax.f32 %v2541, 0.0
  %v2686 = vmax.f32 %v2542, 0.0
  %v2687 = vmax.f32 %v2543, 0.0
  %v2688 = vmax.f32 %v2544, 0.0
  %v2689 = vmax.f32 %v2545, 0.0
  %v2690 = vmax.f32 %v2546, 0.0
  %v2691 = vmax.f32 %v2547, 0.0
  %v2692 = vmax.f32 %v2548, 0.0
  %v2693 = vmax.f32 %v2549, 0.0
  %v2694 = vmax.f32 %v2550, 0.0
  %v2695 = vmax.f32 %v2551, 0.0
  %v2696 = vmax.f32 %v2552, 0.0
  %v2697 = vmax.f32 %v2553, 0.0
  %v2698 = vmax.f32 %v2554, 0.0
  %v2699 = vmax.f32 %v2555, 0.0
  %v2700 = vmax.f32 %v2556, 0.0
  %v2701 = vmax.f32 %v2557, 0.0
  %v2702 = vmax.f32 %v2558, 0.0
  %v2703 = vmax.f32 %v2559, 0.0
  %v2704 = vmax.f32 %v2560, 0.0
  %v2705 = vmax.f32 %v2561, 0.0
  %v2706 = vmax.f32 %v2562, 0.0
  %v2707 = vmax.f32 %v2563, 0.0
  %v2708 = vmax.f32 %v2564, 0.0
  %v2709 = vmax.f32 %v2565, 0.0
  %v2710 = vmax.f32 %v2566, 0.0
  %v2711 = vmax.f32 %v2567, 0.0
  %v2712 = vmax.f32 %v2568, 0.0
  %v2713 = vmax.f32 %v2569, 0.0
  %v2714 = vmax.f32 %v2570, 0.0
  %v2715 = vmax.f32 %v2571, 0.0
  %v2716 = vmax.f32 %v2572, 0.0
  %v2717 = vmax.f32 %v2573, 0.0
  %v2718 = vmax.f32 %v2574, 0.0
  %v2719 = vmax.f32 %v2575, 0.0
  %v2720 = vmax.f32 %v2576, 0.0
  %v2721 = vmax.f32 %v2577, 0.0
  %v2722 = vmax.f32 %v2578, 0.0
  %v2723 = vmax.f32 %v2579, 0.0
  %v2724 = vmax.f32 %v2580, 0.0
  %v2725 = vmax.f32 %v2581, 0.0
  %v2726 = vmax.f32 %v2582, 0.0
  %v2727 = vmax.f32 %v2583, 0.0
  %v2728 = vmax.f32 %v2584, 0.0
  %v2729 = vmax.f32 %v2585, 0.0
  %v2730 = vmax.f32 %v2586, 0.0
  %v2731 = vmax.f32 %v2587, 0.0
  %v2732 = vmax.f32 %v2588, 0.0
  %v2733 = vmax.f32 %v2589, 0.0
  %v2734 = vmax.f32 %v2590, 0.0
  %v2735 = vmax.f32 %v2591, 0.0
  %v2736 = vmax.f32 %v2592, 0.0
  %v2737 = vmax.f32 %v2593, 0.0
  %v2738 = vmax.f32 %v2594, 0.0
  %v2739 = vmax.f32 %v2595, 0.0
  %v2740 = vmax.f32 %v2596, 0.0
  %v2741 = vmax.f32 %v2597, 0.0
  %v2742 = vmax.f32 %v2598, 0.0
  %v2743 = vmax.f32 %v2599, 0.0
  %v2744 = vmax.f32 %v2600, 0.0
  %v2745 = vmax.f32 %v2601, 0.0
  %v2746 = vmax.f32 %v2602, 0.0
  %v2747 = vmax.f32 %v2603, 0.0
  %v2748 = vmax.f32 %v2604, 0.0
  %v2749 = vmax.f32 %v2605, 0.0
  %v2750 = vmax.f32 %v2606, 0.0
  %v2751 = vmax.f32 %v2607, 0.0
  %v2752 = vmax.f32 %v2608, 0.0
  %v2753 = vmax.f32 %v2609, 0.0
  %v2754 = vmax.f32 %v2610, 0.0
  %v2755 = vmax.f32 %v2611, 0.0
  %v2756 = vmax.f32 %v2612, 0.0
  %v2757 = vmax.f32 %v2613, 0.0
  %v2758 = vmax.f32 %v2614, 0.0
  %v2759 = vmax.f32 %v2615, 0.0
  %v2760 = vmax.f32 %v2616, 0.0
  %v2761 = vmax.f32 %v2617, 0.0
  %v2762 = vmax.f32 %v2618, 0.0
  %v2763 = vmax.f32 %v2619, 0.0
  %v2764 = vmax.f32 %v2620, 0.0
  %v2765 = vmax.f32 %v2621, 0.0
  %v2766 = vmax.f32 %v2622, 0.0
  %v2767 = vmax.f32 %v2623, 0.0
  %v2768 = vmax.f32 %v2624, 0.0
  %v2769 = vmax.f32 %v2625, 0.0
  %v2770 = vmax.f32 %v2626, 0.0
  %v2771 = vmax.f32 %v2627, 0.0
  %v2772 = vmax.f32 %v2628, 0.0
  %v2773 = vmax.f32 %v2629, 0.0
  %v2774 = vmax.f32 %v2630, 0.0
  %v2775 = vmax.f32 %v2631, 0.0
  %v2776 = vmax.f32 %v2632, 0.0
  %v2777 = vmax.f32 %v2633, 0.0
  %v2778 = vmax.f32 %v2634, 0.0
  %v2779 = vmax.f32 %v2635, 0.0
  %v2780 = vmax.f32 %v2636, 0.0
  %v2781 = vmax.f32 %v2637, 0.0
  %v2782 = vmax.f32 %v2638, 0.0
  %v2783 = vmax.f32 %v2639, 0.0
  %v2784 = vmax.f32 %v2640, 0.0
  %v2785 = vmax.f32 %v2641, 0.0
  %v2786 = vmax.f32 %v2642, 0.0
  %v2787 = vmax.f32 %v2643, 0.0
  %v2788 = vmax.f32 %v2644, 0.0
  %v2789 = vmax.f32 %v2645, 0.0
  %v2790 = vmax.f32 %v2646, 0.0
  %v2791 = vmax.f32 %v2647, 0.0
  %v2792 = vmax.f32 %v2648, 0.0
  %v2793 = vmax.f32 %v2649, 0.0
  %v2794 = vmax.f32 %v2650, 0.0
  %v2795 = vmax.f32 %v2651, 0.0
  %v2796 = vmax.f32 %v2652, 0.0
  %v2797 = vmax.f32 %v2653, 0.0
  %v2798 = vmax.f32 %v2654, 0.0
  %v2799 = vmax.f32 %v2655, 0.0
  %v2800 = vmax.f32 %v2656, 0.0
  %v2801 = vmax.f32 %v2657, 0.0
  %v2802 = vld [vmem:[%s10] sm:$0xf]
  %v2803 = vld [vmem:[%s11] sm:$0x1]
  %v2805 = vlaneseq
  %v2806 = vshrl.u32 %v2805, 7
  %v2807 = vsub.s32 0, %v2806
  %v2808 = vrot.slane %v2803, %v2807
  %v2811 = vsel %vm1170, %v2658, 0
  %v2814 = vsel %vm1170, %v2659, 0
  %v2817 = vsel %vm1170, %v2660, 0
  %v2820 = vsel %vm1170, %v2661, 0
  %v2823 = vsel %vm1170, %v2662, 0
  %v2826 = vsel %vm1170, %v2663, 0
  %v2829 = vsel %vm1170, %v2664, 0
  %v2832 = vsel %vm1170, %v2665, 0
  %v2835 = vsel %vm1170, %v2666, 0
  %v2838 = vsel %vm1170, %v2667, 0
  %v2841 = vsel %vm1170, %v2668, 0
  %v2844 = vsel %vm1170, %v2669, 0
  %v2847 = vsel %vm1170, %v2670, 0
  %v2850 = vsel %vm1170, %v2671, 0
  %v2853 = vsel %vm1170, %v2672, 0
  %v2856 = vsel %vm1170, %v2673, 0
  %v2859 = vsel %vm1170, %v2674, 0
  %v2862 = vsel %vm1170, %v2675, 0
  %v2865 = vsel %vm1170, %v2676, 0
  %v2868 = vsel %vm1170, %v2677, 0
  %v2871 = vsel %vm1170, %v2678, 0
  %v2874 = vsel %vm1170, %v2679, 0
  %v2877 = vsel %vm1170, %v2680, 0
  %v2880 = vsel %vm1170, %v2681, 0
  %v2883 = vsel %vm1170, %v2682, 0
  %v2886 = vsel %vm1170, %v2683, 0
  %v2889 = vsel %vm1170, %v2684, 0
  %v2892 = vsel %vm1170, %v2685, 0
  %v2895 = vsel %vm1170, %v2686, 0
  %v2898 = vsel %vm1170, %v2687, 0
  %v2901 = vsel %vm1170, %v2688, 0
  %v2904 = vsel %vm1170, %v2689, 0
  %v2907 = vsel %vm1170, %v2690, 0
  %v2910 = vsel %vm1170, %v2691, 0
  %v2913 = vsel %vm1170, %v2692, 0
  %v2916 = vsel %vm1170, %v2693, 0
  %v2919 = vsel %vm1170, %v2694, 0
  %v2922 = vsel %vm1170, %v2695, 0
  %v2925 = vsel %vm1170, %v2696, 0
  %v2928 = vsel %vm1170, %v2697, 0
  %v2931 = vsel %vm1170, %v2698, 0
  %v2934 = vsel %vm1170, %v2699, 0
  %v2937 = vsel %vm1170, %v2700, 0
  %v2940 = vsel %vm1170, %v2701, 0
  %v2943 = vsel %vm1170, %v2702, 0
  %v2946 = vsel %vm1170, %v2703, 0
  %v2949 = vsel %vm1170, %v2704, 0
  %v2952 = vsel %vm1170, %v2705, 0
  %v2955 = vsel %vm1170, %v2706, 0
  %v2958 = vsel %vm1170, %v2707, 0
  %v2961 = vsel %vm1170, %v2708, 0
  %v2964 = vsel %vm1170, %v2709, 0
  %v2967 = vsel %vm1170, %v2710, 0
  %v2970 = vsel %vm1170, %v2711, 0
  %v2973 = vsel %vm1170, %v2712, 0
  %v2976 = vsel %vm1170, %v2713, 0
  %v2979 = vsel %vm1170, %v2714, 0
  %v2982 = vsel %vm1170, %v2715, 0
  %v2985 = vsel %vm1170, %v2716, 0
  %v2988 = vsel %vm1170, %v2717, 0
  %v2991 = vsel %vm1170, %v2718, 0
  %v2994 = vsel %vm1170, %v2719, 0
  %v2997 = vsel %vm1170, %v2720, 0
  %v3000 = vsel %vm1170, %v2721, 0
  %v3003 = vsel %vm1170, %v2722, 0
  %v3006 = vsel %vm1170, %v2723, 0
  %v3009 = vsel %vm1170, %v2724, 0
  %v3012 = vsel %vm1170, %v2725, 0
  %v3015 = vsel %vm1170, %v2726, 0
  %v3018 = vsel %vm1170, %v2727, 0
  %v3021 = vsel %vm1170, %v2728, 0
  %v3024 = vsel %vm1170, %v2729, 0
  %v3027 = vsel %vm1170, %v2730, 0
  %v3030 = vsel %vm1170, %v2731, 0
  %v3033 = vsel %vm1170, %v2732, 0
  %v3036 = vsel %vm1170, %v2733, 0
  %v3039 = vsel %vm1170, %v2734, 0
  %v3042 = vsel %vm1170, %v2735, 0
  %v3045 = vsel %vm1170, %v2736, 0
  %v3048 = vsel %vm1170, %v2737, 0
  %v3051 = vsel %vm1170, %v2738, 0
  %v3054 = vsel %vm1170, %v2739, 0
  %v3057 = vsel %vm1170, %v2740, 0
  %v3060 = vsel %vm1170, %v2741, 0
  %v3063 = vsel %vm1170, %v2742, 0
  %v3066 = vsel %vm1170, %v2743, 0
  %v3069 = vsel %vm1170, %v2744, 0
  %v3072 = vsel %vm1170, %v2745, 0
  %v3075 = vsel %vm1170, %v2746, 0
  %v3078 = vsel %vm1170, %v2747, 0
  %v3081 = vsel %vm1170, %v2748, 0
  %v3084 = vsel %vm1170, %v2749, 0
  %v3087 = vsel %vm1170, %v2750, 0
  %v3090 = vsel %vm1170, %v2751, 0
  %v3093 = vsel %vm1170, %v2752, 0
  %v3096 = vsel %vm1170, %v2753, 0
  %v3099 = vsel %vm1170, %v2754, 0
  %v3102 = vsel %vm1170, %v2755, 0
  %v3105 = vsel %vm1170, %v2756, 0
  %v3108 = vsel %vm1170, %v2757, 0
  %v3111 = vsel %vm1170, %v2758, 0
  %v3114 = vsel %vm1170, %v2759, 0
  %v3117 = vsel %vm1170, %v2760, 0
  %v3120 = vsel %vm1170, %v2761, 0
  %v3123 = vsel %vm1170, %v2762, 0
  %v3126 = vsel %vm1170, %v2763, 0
  %v3129 = vsel %vm1170, %v2764, 0
  %v3132 = vsel %vm1170, %v2765, 0
  %v3135 = vsel %vm1170, %v2766, 0
  %v3138 = vsel %vm1170, %v2767, 0
  %v3141 = vsel %vm1170, %v2768, 0
  %v3144 = vsel %vm1170, %v2769, 0
  %v3147 = vsel %vm1170, %v2770, 0
  %v3150 = vsel %vm1170, %v2771, 0
  %v3153 = vsel %vm1170, %v2772, 0
  %v3156 = vsel %vm1170, %v2773, 0
  %v3159 = vsel %vm1170, %v2774, 0
  %v3162 = vsel %vm1170, %v2775, 0
  %v3165 = vsel %vm1170, %v2776, 0
  %v3168 = vsel %vm1170, %v2777, 0
  %v3171 = vsel %vm1170, %v2778, 0
  %v3174 = vsel %vm1170, %v2779, 0
  %v3177 = vsel %vm1170, %v2780, 0
  %v3180 = vsel %vm1170, %v2781, 0
  %v3183 = vsel %vm1170, %v2782, 0
  %v3186 = vsel %vm1170, %v2783, 0
  %v3189 = vsel %vm1170, %v2784, 0
  %v3192 = vsel %vm1170, %v2785, 0
  %v3195 = vsel %vm1170, %v2786, 0
  %v3198 = vsel %vm1170, %v2787, 0
  %v3201 = vsel %vm1170, %v2788, 0
  %v3204 = vsel %vm1170, %v2789, 0
  %v3207 = vsel %vm1170, %v2790, 0
  %v3210 = vsel %vm1170, %v2791, 0
  %v3213 = vsel %vm1170, %v2792, 0
  %v3216 = vsel %vm1170, %v2793, 0
  %v3219 = vsel %vm1170, %v2794, 0
  %v3222 = vsel %vm1170, %v2795, 0
  %v3225 = vsel %vm1170, %v2796, 0
  %v3228 = vsel %vm1170, %v2797, 0
  %v3231 = vsel %vm1170, %v2798, 0
  %v3234 = vsel %vm1170, %v2799, 0
  %v3237 = vsel %vm1170, %v2800, 0
  %v3240 = vsel %vm1170, %v2801, 0
  %v3243 = vsel %vm1567, %v2802, 0
  %3245 = vmatprep.subr.mxu0 0.0
  %3246 = vmatpush1.msra.mxu0 %v3243
  %3247 = vmatprep.subr.mxu0 0.0
  %3248 = vmatpush1.msra.mxu0 0.0
  %3249 = vmatprep.subr.mxu0 0.0
  %3250 = vmatpush1.msra.mxu0 0.0
  %3251 = vmatprep.subr.mxu0 0.0
  %3252 = vmatpush1.msra.mxu0 0.0
  %3253 = vmatprep.subr.mxu0 0.0
  %3254 = vmatpush1.msra.mxu0 0.0
  %3255 = vmatprep.subr.mxu0 0.0
  %3256 = vmatpush1.msra.mxu0 0.0
  %3257 = vmatprep.subr.mxu0 0.0
  %3258 = vmatpush1.msra.mxu0 0.0
  %3259 = vmatprep.subr.mxu0 0.0
  %3260 = vmatpush1.msra.mxu0 0.0
  %3261 = vmatprep.subr.mxu0 0.0
  %3262 = vmatpush1.msra.mxu0 0.0
  %3263 = vmatprep.subr.mxu0 0.0
  %3264 = vmatpush1.msra.mxu0 0.0
  %3265 = vmatprep.subr.mxu0 0.0
  %3266 = vmatpush1.msra.mxu0 0.0
  %3267 = vmatprep.subr.mxu0 0.0
  %3268 = vmatpush1.msra.mxu0 0.0
  %3269 = vmatprep.subr.mxu0 0.0
  %3270 = vmatpush1.msra.mxu0 0.0
  %3271 = vmatprep.subr.mxu0 0.0
  %3272 = vmatpush1.msra.mxu0 0.0
  %3273 = vmatprep.subr.mxu0 0.0
  %3274 = vmatpush1.msra.mxu0 0.0
  %3275 = vmatprep.subr.mxu0 0.0
  %3276 = vmatpush1.msra.mxu0 0.0
  %3277 = vmatprep.subr.mxu0 0.0
  %3278 = vmatpush1.msra.mxu0 0.0
  %3279 = vmatprep.subr.mxu0 0.0
  %3280 = vmatpush1.msra.mxu0 0.0
  %3281 = vmatprep.subr.mxu0 0.0
  %3282 = vmatpush1.msra.mxu0 0.0
  %3283 = vmatprep.subr.mxu0 0.0
  %3284 = vmatpush1.msra.mxu0 0.0
  %3285 = vmatprep.subr.mxu0 0.0
  %3286 = vmatpush1.msra.mxu0 0.0
  %3287 = vmatprep.subr.mxu0 0.0
  %3288 = vmatpush1.msra.mxu0 0.0
  %3289 = vmatprep.subr.mxu0 0.0
  %3290 = vmatpush1.msra.mxu0 0.0
  %3291 = vmatprep.subr.mxu0 0.0
  %3292 = vmatpush1.msra.mxu0 0.0
  %3293 = vmatprep.subr.mxu0 0.0
  %3294 = vmatpush1.msra.mxu0 0.0
  %3295 = vmatprep.subr.mxu0 0.0
  %3296 = vmatpush1.msra.mxu0 0.0
  %3297 = vmatprep.subr.mxu0 0.0
  %3298 = vmatpush1.msra.mxu0 0.0
  %3299 = vmatprep.subr.mxu0 0.0
  %3300 = vmatpush1.msra.mxu0 0.0
  %3301 = vmatprep.subr.mxu0 0.0
  %3302 = vmatpush1.msra.mxu0 0.0
  %3303 = vmatprep.subr.mxu0 0.0
  %3304 = vmatpush1.msra.mxu0 0.0
  %3305 = vmatprep.subr.mxu0 0.0
  %3306 = vmatpush1.msra.mxu0 0.0
  %3307 = vmatprep.subr.mxu0 0.0
  %3308 = vmatpush1.msra.mxu0 0.0
  %3309 = vmatprep.mubr.f32.mxu0 0.0
  %3310 = vmatmul.mubr.f32.gmra.mrb[0].mxu0 %v2811
  %v3311 = vpop.f32.mrb[0].mxu0
  %v3312 = vadd.f32 %v2808, %v3311
  %v3313 = vpop.f32.mrb[0].mxu0
  %3314 = vmatprep.mubr.f32.mxu0 0.0
  %3315 = vmatmul.mubr.f32.gmra.mrb[0].mxu0 %v2814
  %v3316 = vpop.f32.mrb[0].mxu0
  %v3317 = vadd.f32 %v2808, %v3316
  %v3318 = vpop.f32.mrb[0].mxu0
  %3319 = vmatprep.mubr.f32.mxu0 0.0
  %3320 = vmatmul.mubr.f32.gmra.mrb[0].mxu0 %v2817
  %v3321 = vpop.f32.mrb[0].mxu0
  %v3322 = vadd.f32 %v2808, %v3321
  %v3323 = vpop.f32.mrb[0].mxu0
  %3324 = vmatprep.mubr.f32.mxu0 0.0
  %3325 = vmatmul.mubr.f32.gmra.mrb[0].mxu0 %v2820
  %v3326 = vpop.f32.mrb[0].mxu0
  %v3327 = vadd.f32 %v2808, %v3326
  %v3328 = vpop.f32.mrb[0].mxu0
  %3329 = vmatprep.mubr.f32.mxu0 0.0
  %3330 = vmatmul.mubr.f32.gmra.mrb[0].mxu0 %v2823
  %v3331 = vpop.f32.mrb[0].mxu0
  %v3332 = vadd.f32 %v2808, %v3331
  %v3333 = vpop.f32.mrb[0].mxu0
  %3334 = vmatprep.mubr.f32.mxu0 0.0
  %3335 = vmatmul.mubr.f32.gmra.mrb[0].mxu0 %v2826
  %v3336 = vpop.f32.mrb[0].mxu0
  %v3337 = vadd.f32 %v2808, %v3336
  %v3338 = vpop.f32.mrb[0].mxu0
  %3339 = vmatprep.mubr.f32.mxu0 0.0
  %3340 = vmatmul.mubr.f32.gmra.mrb[0].mxu0 %v2829
  %v3341 = vpop.f32.mrb[0].mxu0
  %v3342 = vadd.f32 %v2808, %v3341
  %v3343 = vpop.f32.mrb[0].mxu0
  %3344 = vmatprep.mubr.f32.mxu0 0.0
  %3345 = vmatmul.mubr.f32.gmra.mrb[0].mxu0 %v2832
  %v3346 = vpop.f32.mrb[0].mxu0
  %v3347 = vadd.f32 %v2808, %v3346
  %v3348 = vpop.f32.mrb[0].mxu0
  %3349 = vmatprep.mubr.f32.mxu0 0.0
  %3350 = vmatmul.mubr.f32.gmra.mrb[0].mxu0 %v2835
  %v3351 = vpop.f32.mrb[0].mxu0
  %v3352 = vadd.f32 %v2808, %v3351
  %v3353 = vpop.f32.mrb[0].mxu0
  %3354 = vmatprep.mubr.f32.mxu0 0.0
  %3355 = vmatmul.mubr.f32.gmra.mrb[0].mxu0 %v2838
  %v3356 = vpop.f32.mrb[0].mxu0
  %v3357 = vadd.f32 %v2808, %v3356
  %v3358 = vpop.f32.mrb[0].mxu0
  %3359 = vmatprep.mubr.f32.mxu0 0.0
  %3360 = vmatmul.mubr.f32.gmra.mrb[0].mxu0 %v2841
  %v3361 = vpop.f32.mrb[0].mxu0
  %v3362 = vadd.f32 %v2808, %v3361
  %v3363 = vpop.f32.mrb[0].mxu0
  %3364 = vmatprep.mubr.f32.mxu0 0.0
  %3365 = vmatmul.mubr.f32.gmra.mrb[0].mxu0 %v2844
  %v3366 = vpop.f32.mrb[0].mxu0
  %v3367 = vadd.f32 %v2808, %v3366
  %v3368 = vpop.f32.mrb[0].mxu0
  %3369 = vmatprep.mubr.f32.mxu0 0.0
  %3370 = vmatmul.mubr.f32.gmra.mrb[0].mxu0 %v2847
  %v3371 = vpop.f32.mrb[0].mxu0
  %v3372 = vadd.f32 %v2808, %v3371
  %v3373 = vpop.f32.mrb[0].mxu0
  %3374 = vmatprep.mubr.f32.mxu0 0.0
  %3375 = vmatmul.mubr.f32.gmra.mrb[0].mxu0 %v2850
  %v3376 = vpop.f32.mrb[0].mxu0
  %v3377 = vadd.f32 %v2808, %v3376
  %v3378 = vpop.f32.mrb[0].mxu0
  %3379 = vmatprep.mubr.f32.mxu0 0.0
  %3380 = vmatmul.mubr.f32.gmra.mrb[0].mxu0 %v2853
  %v3381 = vpop.f32.mrb[0].mxu0
  %v3382 = vadd.f32 %v2808, %v3381
  %v3383 = vpop.f32.mrb[0].mxu0
  %3384 = vmatprep.mubr.f32.mxu0 0.0
  %3385 = vmatmul.mubr.f32.gmra.mrb[0].mxu0 %v2856
  %v3386 = vpop.f32.mrb[0].mxu0
  %v3387 = vadd.f32 %v2808, %v3386
  %v3388 = vpop.f32.mrb[0].mxu0
  %3389 = vmatprep.mubr.f32.mxu0 0.0
  %3390 = vmatmul.mubr.f32.gmra.mrb[0].mxu0 %v2859
  %v3391 = vpop.f32.mrb[0].mxu0
  %v3392 = vadd.f32 %v2808, %v3391
  %v3393 = vpop.f32.mrb[0].mxu0
  %3394 = vmatprep.mubr.f32.mxu0 0.0
  %3395 = vmatmul.mubr.f32.gmra.mrb[0].mxu0 %v2862
  %v3396 = vpop.f32.mrb[0].mxu0
  %v3397 = vadd.f32 %v2808, %v3396
  %v3398 = vpop.f32.mrb[0].mxu0
  %3399 = vmatprep.mubr.f32.mxu0 0.0
  %3400 = vmatmul.mubr.f32.gmra.mrb[0].mxu0 %v2865
  %v3401 = vpop.f32.mrb[0].mxu0
  %v3402 = vadd.f32 %v2808, %v3401
  %v3403 = vpop.f32.mrb[0].mxu0
  %3404 = vmatprep.mubr.f32.mxu0 0.0
  %3405 = vmatmul.mubr.f32.gmra.mrb[0].mxu0 %v2868
  %v3406 = vpop.f32.mrb[0].mxu0
  %v3407 = vadd.f32 %v2808, %v3406
  %v3408 = vpop.f32.mrb[0].mxu0
  %3409 = vmatprep.mubr.f32.mxu0 0.0
  %3410 = vmatmul.mubr.f32.gmra.mrb[0].mxu0 %v2871
  %v3411 = vpop.f32.mrb[0].mxu0
  %v3412 = vadd.f32 %v2808, %v3411
  %v3413 = vpop.f32.mrb[0].mxu0
  %3414 = vmatprep.mubr.f32.mxu0 0.0
  %3415 = vmatmul.mubr.f32.gmra.mrb[0].mxu0 %v2874
  %v3416 = vpop.f32.mrb[0].mxu0
  %v3417 = vadd.f32 %v2808, %v3416
  %v3418 = vpop.f32.mrb[0].mxu0
  %3419 = vmatprep.mubr.f32.mxu0 0.0
  %3420 = vmatmul.mubr.f32.gmra.mrb[0].mxu0 %v2877
  %v3421 = vpop.f32.mrb[0].mxu0
  %v3422 = vadd.f32 %v2808, %v3421
  %v3423 = vpop.f32.mrb[0].mxu0
  %3424 = vmatprep.mubr.f32.mxu0 0.0
  %3425 = vmatmul.mubr.f32.gmra.mrb[0].mxu0 %v2880
  %v3426 = vpop.f32.mrb[0].mxu0
  %v3427 = vadd.f32 %v2808, %v3426
  %v3428 = vpop.f32.mrb[0].mxu0
  %3429 = vmatprep.mubr.f32.mxu0 0.0
  %3430 = vmatmul.mubr.f32.gmra.mrb[0].mxu0 %v2883
  %v3431 = vpop.f32.mrb[0].mxu0
  %v3432 = vadd.f32 %v2808, %v3431
  %v3433 = vpop.f32.mrb[0].mxu0
  %3434 = vmatprep.mubr.f32.mxu0 0.0
  %3435 = vmatmul.mubr.f32.gmra.mrb[0].mxu0 %v2886
  %v3436 = vpop.f32.mrb[0].mxu0
  %v3437 = vadd.f32 %v2808, %v3436
  %v3438 = vpop.f32.mrb[0].mxu0
  %3439 = vmatprep.mubr.f32.mxu0 0.0
  %3440 = vmatmul.mubr.f32.gmra.mrb[0].mxu0 %v2889
  %v3441 = vpop.f32.mrb[0].mxu0
  %v3442 = vadd.f32 %v2808, %v3441
  %v3443 = vpop.f32.mrb[0].mxu0
  %3444 = vmatprep.mubr.f32.mxu0 0.0
  %3445 = vmatmul.mubr.f32.gmra.mrb[0].mxu0 %v2892
  %v3446 = vpop.f32.mrb[0].mxu0
  %v3447 = vadd.f32 %v2808, %v3446
  %v3448 = vpop.f32.mrb[0].mxu0
  %3449 = vmatprep.mubr.f32.mxu0 0.0
  %3450 = vmatmul.mubr.f32.gmra.mrb[0].mxu0 %v2895
  %v3451 = vpop.f32.mrb[0].mxu0
  %v3452 = vadd.f32 %v2808, %v3451
  %v3453 = vpop.f32.mrb[0].mxu0
  %3454 = vmatprep.mubr.f32.mxu0 0.0
  %3455 = vmatmul.mubr.f32.gmra.mrb[0].mxu0 %v2898
  %v3456 = vpop.f32.mrb[0].mxu0
  %v3457 = vadd.f32 %v2808, %v3456
  %v3458 = vpop.f32.mrb[0].mxu0
  %3459 = vmatprep.mubr.f32.mxu0 0.0
  %3460 = vmatmul.mubr.f32.gmra.mrb[0].mxu0 %v2901
  %v3461 = vpop.f32.mrb[0].mxu0
  %v3462 = vadd.f32 %v2808, %v3461
  %v3463 = vpop.f32.mrb[0].mxu0
  %3464 = vmatprep.mubr.f32.mxu0 0.0
  %3465 = vmatmul.mubr.f32.gmra.mrb[0].mxu0 %v2904
  %v3466 = vpop.f32.mrb[0].mxu0
  %v3467 = vadd.f32 %v2808, %v3466
  %v3468 = vpop.f32.mrb[0].mxu0
  %3469 = vmatprep.mubr.f32.mxu0 0.0
  %3470 = vmatmul.mubr.f32.gmra.mrb[0].mxu0 %v2907
  %v3471 = vpop.f32.mrb[0].mxu0
  %v3472 = vadd.f32 %v2808, %v3471
  %v3473 = vpop.f32.mrb[0].mxu0
  %3474 = vmatprep.mubr.f32.mxu0 0.0
  %3475 = vmatmul.mubr.f32.gmra.mrb[0].mxu0 %v2910
  %v3476 = vpop.f32.mrb[0].mxu0
  %v3477 = vadd.f32 %v2808, %v3476
  %v3478 = vpop.f32.mrb[0].mxu0
  %3479 = vmatprep.mubr.f32.mxu0 0.0
  %3480 = vmatmul.mubr.f32.gmra.mrb[0].mxu0 %v2913
  %v3481 = vpop.f32.mrb[0].mxu0
  %v3482 = vadd.f32 %v2808, %v3481
  %v3483 = vpop.f32.mrb[0].mxu0
  %3484 = vmatprep.mubr.f32.mxu0 0.0
  %3485 = vmatmul.mubr.f32.gmra.mrb[0].mxu0 %v2916
  %v3486 = vpop.f32.mrb[0].mxu0
  %v3487 = vadd.f32 %v2808, %v3486
  %v3488 = vpop.f32.mrb[0].mxu0
  %3489 = vmatprep.mubr.f32.mxu0 0.0
  %3490 = vmatmul.mubr.f32.gmra.mrb[0].mxu0 %v2919
  %v3491 = vpop.f32.mrb[0].mxu0
  %v3492 = vadd.f32 %v2808, %v3491
  %v3493 = vpop.f32.mrb[0].mxu0
  %3494 = vmatprep.mubr.f32.mxu0 0.0
  %3495 = vmatmul.mubr.f32.gmra.mrb[0].mxu0 %v2922
  %v3496 = vpop.f32.mrb[0].mxu0
  %v3497 = vadd.f32 %v2808, %v3496
  %v3498 = vpop.f32.mrb[0].mxu0
  %3499 = vmatprep.mubr.f32.mxu0 0.0
  %3500 = vmatmul.mubr.f32.gmra.mrb[0].mxu0 %v2925
  %v3501 = vpop.f32.mrb[0].mxu0
  %v3502 = vadd.f32 %v2808, %v3501
  %v3503 = vpop.f32.mrb[0].mxu0
  %3504 = vmatprep.mubr.f32.mxu0 0.0
  %3505 = vmatmul.mubr.f32.gmra.mrb[0].mxu0 %v2928
  %v3506 = vpop.f32.mrb[0].mxu0
  %v3507 = vadd.f32 %v2808, %v3506
  %v3508 = vpop.f32.mrb[0].mxu0
  %3509 = vmatprep.mubr.f32.mxu0 0.0
  %3510 = vmatmul.mubr.f32.gmra.mrb[0].mxu0 %v2931
  %v3511 = vpop.f32.mrb[0].mxu0
  %v3512 = vadd.f32 %v2808, %v3511
  %v3513 = vpop.f32.mrb[0].mxu0
  %3514 = vmatprep.mubr.f32.mxu0 0.0
  %3515 = vmatmul.mubr.f32.gmra.mrb[0].mxu0 %v2934
  %v3516 = vpop.f32.mrb[0].mxu0
  %v3517 = vadd.f32 %v2808, %v3516
  %v3518 = vpop.f32.mrb[0].mxu0
  %3519 = vmatprep.mubr.f32.mxu0 0.0
  %3520 = vmatmul.mubr.f32.gmra.mrb[0].mxu0 %v2937
  %v3521 = vpop.f32.mrb[0].mxu0
  %v3522 = vadd.f32 %v2808, %v3521
  %v3523 = vpop.f32.mrb[0].mxu0
  %3524 = vmatprep.mubr.f32.mxu0 0.0
  %3525 = vmatmul.mubr.f32.gmra.mrb[0].mxu0 %v2940
  %v3526 = vpop.f32.mrb[0].mxu0
  %v3527 = vadd.f32 %v2808, %v3526
  %v3528 = vpop.f32.mrb[0].mxu0
  %3529 = vmatprep.mubr.f32.mxu0 0.0
  %3530 = vmatmul.mubr.f32.gmra.mrb[0].mxu0 %v2943
  %v3531 = vpop.f32.mrb[0].mxu0
  %v3532 = vadd.f32 %v2808, %v3531
  %v3533 = vpop.f32.mrb[0].mxu0
  %3534 = vmatprep.mubr.f32.mxu0 0.0
  %3535 = vmatmul.mubr.f32.gmra.mrb[0].mxu0 %v2946
  %v3536 = vpop.f32.mrb[0].mxu0
  %v3537 = vadd.f32 %v2808, %v3536
  %v3538 = vpop.f32.mrb[0].mxu0
  %3539 = vmatprep.mubr.f32.mxu0 0.0
  %3540 = vmatmul.mubr.f32.gmra.mrb[0].mxu0 %v2949
  %v3541 = vpop.f32.mrb[0].mxu0
  %v3542 = vadd.f32 %v2808, %v3541
  %v3543 = vpop.f32.mrb[0].mxu0
  %3544 = vmatprep.mubr.f32.mxu0 0.0
  %3545 = vmatmul.mubr.f32.gmra.mrb[0].mxu0 %v2952
  %v3546 = vpop.f32.mrb[0].mxu0
  %v3547 = vadd.f32 %v2808, %v3546
  %v3548 = vpop.f32.mrb[0].mxu0
  %3549 = vmatprep.mubr.f32.mxu0 0.0
  %3550 = vmatmul.mubr.f32.gmra.mrb[0].mxu0 %v2955
  %v3551 = vpop.f32.mrb[0].mxu0
  %v3552 = vadd.f32 %v2808, %v3551
  %v3553 = vpop.f32.mrb[0].mxu0
  %3554 = vmatprep.mubr.f32.mxu0 0.0
  %3555 = vmatmul.mubr.f32.gmra.mrb[0].mxu0 %v2958
  %v3556 = vpop.f32.mrb[0].mxu0
  %v3557 = vadd.f32 %v2808, %v3556
  %v3558 = vpop.f32.mrb[0].mxu0
  %3559 = vmatprep.mubr.f32.mxu0 0.0
  %3560 = vmatmul.mubr.f32.gmra.mrb[0].mxu0 %v2961
  %v3561 = vpop.f32.mrb[0].mxu0
  %v3562 = vadd.f32 %v2808, %v3561
  %v3563 = vpop.f32.mrb[0].mxu0
  %3564 = vmatprep.mubr.f32.mxu0 0.0
  %3565 = vmatmul.mubr.f32.gmra.mrb[0].mxu0 %v2964
  %v3566 = vpop.f32.mrb[0].mxu0
  %v3567 = vadd.f32 %v2808, %v3566
  %v3568 = vpop.f32.mrb[0].mxu0
  %3569 = vmatprep.mubr.f32.mxu0 0.0
  %3570 = vmatmul.mubr.f32.gmra.mrb[0].mxu0 %v2967
  %v3571 = vpop.f32.mrb[0].mxu0
  %v3572 = vadd.f32 %v2808, %v3571
  %v3573 = vpop.f32.mrb[0].mxu0
  %3574 = vmatprep.mubr.f32.mxu0 0.0
  %3575 = vmatmul.mubr.f32.gmra.mrb[0].mxu0 %v2970
  %v3576 = vpop.f32.mrb[0].mxu0
  %v3577 = vadd.f32 %v2808, %v3576
  %v3578 = vpop.f32.mrb[0].mxu0
  %3579 = vmatprep.mubr.f32.mxu0 0.0
  %3580 = vmatmul.mubr.f32.gmra.mrb[0].mxu0 %v2973
  %v3581 = vpop.f32.mrb[0].mxu0
  %v3582 = vadd.f32 %v2808, %v3581
  %v3583 = vpop.f32.mrb[0].mxu0
  %3584 = vmatprep.mubr.f32.mxu0 0.0
  %3585 = vmatmul.mubr.f32.gmra.mrb[0].mxu0 %v2976
  %v3586 = vpop.f32.mrb[0].mxu0
  %v3587 = vadd.f32 %v2808, %v3586
  %v3588 = vpop.f32.mrb[0].mxu0
  %3589 = vmatprep.mubr.f32.mxu0 0.0
  %3590 = vmatmul.mubr.f32.gmra.mrb[0].mxu0 %v2979
  %v3591 = vpop.f32.mrb[0].mxu0
  %v3592 = vadd.f32 %v2808, %v3591
  %v3593 = vpop.f32.mrb[0].mxu0
  %3594 = vmatprep.mubr.f32.mxu0 0.0
  %3595 = vmatmul.mubr.f32.gmra.mrb[0].mxu0 %v2982
  %v3596 = vpop.f32.mrb[0].mxu0
  %v3597 = vadd.f32 %v2808, %v3596
  %v3598 = vpop.f32.mrb[0].mxu0
  %3599 = vmatprep.mubr.f32.mxu0 0.0
  %3600 = vmatmul.mubr.f32.gmra.mrb[0].mxu0 %v2985
  %v3601 = vpop.f32.mrb[0].mxu0
  %v3602 = vadd.f32 %v2808, %v3601
  %v3603 = vpop.f32.mrb[0].mxu0
  %3604 = vmatprep.mubr.f32.mxu0 0.0
  %3605 = vmatmul.mubr.f32.gmra.mrb[0].mxu0 %v2988
  %v3606 = vpop.f32.mrb[0].mxu0
  %v3607 = vadd.f32 %v2808, %v3606
  %v3608 = vpop.f32.mrb[0].mxu0
  %3609 = vmatprep.mubr.f32.mxu0 0.0
  %3610 = vmatmul.mubr.f32.gmra.mrb[0].mxu0 %v2991
  %v3611 = vpop.f32.mrb[0].mxu0
  %v3612 = vadd.f32 %v2808, %v3611
  %v3613 = vpop.f32.mrb[0].mxu0
  %3614 = vmatprep.mubr.f32.mxu0 0.0
  %3615 = vmatmul.mubr.f32.gmra.mrb[0].mxu0 %v2994
  %v3616 = vpop.f32.mrb[0].mxu0
  %v3617 = vadd.f32 %v2808, %v3616
  %v3618 = vpop.f32.mrb[0].mxu0
  %3619 = vmatprep.mubr.f32.mxu0 0.0
  %3620 = vmatmul.mubr.f32.gmra.mrb[0].mxu0 %v2997
  %v3621 = vpop.f32.mrb[0].mxu0
  %v3622 = vadd.f32 %v2808, %v3621
  %v3623 = vpop.f32.mrb[0].mxu0
  %3624 = vmatprep.mubr.f32.mxu0 0.0
  %3625 = vmatmul.mubr.f32.gmra.mrb[0].mxu0 %v3000
  %v3626 = vpop.f32.mrb[0].mxu0
  %v3627 = vadd.f32 %v2808, %v3626
  %v3628 = vpop.f32.mrb[0].mxu0
  %3629 = vmatprep.mubr.f32.mxu0 0.0
  %3630 = vmatmul.mubr.f32.gmra.mrb[0].mxu0 %v3003
  %v3631 = vpop.f32.mrb[0].mxu0
  %v3632 = vadd.f32 %v2808, %v3631
  %v3633 = vpop.f32.mrb[0].mxu0
  %3634 = vmatprep.mubr.f32.mxu0 0.0
  %3635 = vmatmul.mubr.f32.gmra.mrb[0].mxu0 %v3006
  %v3636 = vpop.f32.mrb[0].mxu0
  %v3637 = vadd.f32 %v2808, %v3636
  %v3638 = vpop.f32.mrb[0].mxu0
  %3639 = vmatprep.mubr.f32.mxu0 0.0
  %3640 = vmatmul.mubr.f32.gmra.mrb[0].mxu0 %v3009
  %v3641 = vpop.f32.mrb[0].mxu0
  %v3642 = vadd.f32 %v2808, %v3641
  %v3643 = vpop.f32.mrb[0].mxu0
  %3644 = vmatprep.mubr.f32.mxu0 0.0
  %3645 = vmatmul.mubr.f32.gmra.mrb[0].mxu0 %v3012
  %v3646 = vpop.f32.mrb[0].mxu0
  %v3647 = vadd.f32 %v2808, %v3646
  %v3648 = vpop.f32.mrb[0].mxu0
  %3649 = vmatprep.mubr.f32.mxu0 0.0
  %3650 = vmatmul.mubr.f32.gmra.mrb[0].mxu0 %v3015
  %v3651 = vpop.f32.mrb[0].mxu0
  %v3652 = vadd.f32 %v2808, %v3651
  %v3653 = vpop.f32.mrb[0].mxu0
  %3654 = vmatprep.mubr.f32.mxu0 0.0
  %3655 = vmatmul.mubr.f32.gmra.mrb[0].mxu0 %v3018
  %v3656 = vpop.f32.mrb[0].mxu0
  %v3657 = vadd.f32 %v2808, %v3656
  %v3658 = vpop.f32.mrb[0].mxu0
  %3659 = vmatprep.mubr.f32.mxu0 0.0
  %3660 = vmatmul.mubr.f32.gmra.mrb[0].mxu0 %v3021
  %v3661 = vpop.f32.mrb[0].mxu0
  %v3662 = vadd.f32 %v2808, %v3661
  %v3663 = vpop.f32.mrb[0].mxu0
  %3664 = vmatprep.mubr.f32.mxu0 0.0
  %3665 = vmatmul.mubr.f32.gmra.mrb[0].mxu0 %v3024
  %v3666 = vpop.f32.mrb[0].mxu0
  %v3667 = vadd.f32 %v2808, %v3666
  %v3668 = vpop.f32.mrb[0].mxu0
  %3669 = vmatprep.mubr.f32.mxu0 0.0
  %3670 = vmatmul.mubr.f32.gmra.mrb[0].mxu0 %v3027
  %v3671 = vpop.f32.mrb[0].mxu0
  %v3672 = vadd.f32 %v2808, %v3671
  %v3673 = vpop.f32.mrb[0].mxu0
  %3674 = vmatprep.mubr.f32.mxu0 0.0
  %3675 = vmatmul.mubr.f32.gmra.mrb[0].mxu0 %v3030
  %v3676 = vpop.f32.mrb[0].mxu0
  %v3677 = vadd.f32 %v2808, %v3676
  %v3678 = vpop.f32.mrb[0].mxu0
  %3679 = vmatprep.mubr.f32.mxu0 0.0
  %3680 = vmatmul.mubr.f32.gmra.mrb[0].mxu0 %v3033
  %v3681 = vpop.f32.mrb[0].mxu0
  %v3682 = vadd.f32 %v2808, %v3681
  %v3683 = vpop.f32.mrb[0].mxu0
  %3684 = vmatprep.mubr.f32.mxu0 0.0
  %3685 = vmatmul.mubr.f32.gmra.mrb[0].mxu0 %v3036
  %v3686 = vpop.f32.mrb[0].mxu0
  %v3687 = vadd.f32 %v2808, %v3686
  %v3688 = vpop.f32.mrb[0].mxu0
  %3689 = vmatprep.mubr.f32.mxu0 0.0
  %3690 = vmatmul.mubr.f32.gmra.mrb[0].mxu0 %v3039
  %v3691 = vpop.f32.mrb[0].mxu0
  %v3692 = vadd.f32 %v2808, %v3691
  %v3693 = vpop.f32.mrb[0].mxu0
  %3694 = vmatprep.mubr.f32.mxu0 0.0
  %3695 = vmatmul.mubr.f32.gmra.mrb[0].mxu0 %v3042
  %v3696 = vpop.f32.mrb[0].mxu0
  %v3697 = vadd.f32 %v2808, %v3696
  %v3698 = vpop.f32.mrb[0].mxu0
  %3699 = vmatprep.mubr.f32.mxu0 0.0
  %3700 = vmatmul.mubr.f32.gmra.mrb[0].mxu0 %v3045
  %v3701 = vpop.f32.mrb[0].mxu0
  %v3702 = vadd.f32 %v2808, %v3701
  %v3703 = vpop.f32.mrb[0].mxu0
  %3704 = vmatprep.mubr.f32.mxu0 0.0
  %3705 = vmatmul.mubr.f32.gmra.mrb[0].mxu0 %v3048
  %v3706 = vpop.f32.mrb[0].mxu0
  %v3707 = vadd.f32 %v2808, %v3706
  %v3708 = vpop.f32.mrb[0].mxu0
  %3709 = vmatprep.mubr.f32.mxu0 0.0
  %3710 = vmatmul.mubr.f32.gmra.mrb[0].mxu0 %v3051
  %v3711 = vpop.f32.mrb[0].mxu0
  %v3712 = vadd.f32 %v2808, %v3711
  %v3713 = vpop.f32.mrb[0].mxu0
  %3714 = vmatprep.mubr.f32.mxu0 0.0
  %3715 = vmatmul.mubr.f32.gmra.mrb[0].mxu0 %v3054
  %v3716 = vpop.f32.mrb[0].mxu0
  %v3717 = vadd.f32 %v2808, %v3716
  %v3718 = vpop.f32.mrb[0].mxu0
  %3719 = vmatprep.mubr.f32.mxu0 0.0
  %3720 = vmatmul.mubr.f32.gmra.mrb[0].mxu0 %v3057
  %v3721 = vpop.f32.mrb[0].mxu0
  %v3722 = vadd.f32 %v2808, %v3721
  %v3723 = vpop.f32.mrb[0].mxu0
  %3724 = vmatprep.mubr.f32.mxu0 0.0
  %3725 = vmatmul.mubr.f32.gmra.mrb[0].mxu0 %v3060
  %v3726 = vpop.f32.mrb[0].mxu0
  %v3727 = vadd.f32 %v2808, %v3726
  %v3728 = vpop.f32.mrb[0].mxu0
  %3729 = vmatprep.mubr.f32.mxu0 0.0
  %3730 = vmatmul.mubr.f32.gmra.mrb[0].mxu0 %v3063
  %v3731 = vpop.f32.mrb[0].mxu0
  %v3732 = vadd.f32 %v2808, %v3731
  %v3733 = vpop.f32.mrb[0].mxu0
  %3734 = vmatprep.mubr.f32.mxu0 0.0
  %3735 = vmatmul.mubr.f32.gmra.mrb[0].mxu0 %v3066
  %v3736 = vpop.f32.mrb[0].mxu0
  %v3737 = vadd.f32 %v2808, %v3736
  %v3738 = vpop.f32.mrb[0].mxu0
  %3739 = vmatprep.mubr.f32.mxu0 0.0
  %3740 = vmatmul.mubr.f32.gmra.mrb[0].mxu0 %v3069
  %v3741 = vpop.f32.mrb[0].mxu0
  %v3742 = vadd.f32 %v2808, %v3741
  %v3743 = vpop.f32.mrb[0].mxu0
  %3744 = vmatprep.mubr.f32.mxu0 0.0
  %3745 = vmatmul.mubr.f32.gmra.mrb[0].mxu0 %v3072
  %v3746 = vpop.f32.mrb[0].mxu0
  %v3747 = vadd.f32 %v2808, %v3746
  %v3748 = vpop.f32.mrb[0].mxu0
  %3749 = vmatprep.mubr.f32.mxu0 0.0
  %3750 = vmatmul.mubr.f32.gmra.mrb[0].mxu0 %v3075
  %v3751 = vpop.f32.mrb[0].mxu0
  %v3752 = vadd.f32 %v2808, %v3751
  %v3753 = vpop.f32.mrb[0].mxu0
  %3754 = vmatprep.mubr.f32.mxu0 0.0
  %3755 = vmatmul.mubr.f32.gmra.mrb[0].mxu0 %v3078
  %v3756 = vpop.f32.mrb[0].mxu0
  %v3757 = vadd.f32 %v2808, %v3756
  %v3758 = vpop.f32.mrb[0].mxu0
  %3759 = vmatprep.mubr.f32.mxu0 0.0
  %3760 = vmatmul.mubr.f32.gmra.mrb[0].mxu0 %v3081
  %v3761 = vpop.f32.mrb[0].mxu0
  %v3762 = vadd.f32 %v2808, %v3761
  %v3763 = vpop.f32.mrb[0].mxu0
  %3764 = vmatprep.mubr.f32.mxu0 0.0
  %3765 = vmatmul.mubr.f32.gmra.mrb[0].mxu0 %v3084
  %v3766 = vpop.f32.mrb[0].mxu0
  %v3767 = vadd.f32 %v2808, %v3766
  %v3768 = vpop.f32.mrb[0].mxu0
  %3769 = vmatprep.mubr.f32.mxu0 0.0
  %3770 = vmatmul.mubr.f32.gmra.mrb[0].mxu0 %v3087
  %v3771 = vpop.f32.mrb[0].mxu0
  %v3772 = vadd.f32 %v2808, %v3771
  %v3773 = vpop.f32.mrb[0].mxu0
  %3774 = vmatprep.mubr.f32.mxu0 0.0
  %3775 = vmatmul.mubr.f32.gmra.mrb[0].mxu0 %v3090
  %v3776 = vpop.f32.mrb[0].mxu0
  %v3777 = vadd.f32 %v2808, %v3776
  %v3778 = vpop.f32.mrb[0].mxu0
  %3779 = vmatprep.mubr.f32.mxu0 0.0
  %3780 = vmatmul.mubr.f32.gmra.mrb[0].mxu0 %v3093
  %v3781 = vpop.f32.mrb[0].mxu0
  %v3782 = vadd.f32 %v2808, %v3781
  %v3783 = vpop.f32.mrb[0].mxu0
  %3784 = vmatprep.mubr.f32.mxu0 0.0
  %3785 = vmatmul.mubr.f32.gmra.mrb[0].mxu0 %v3096
  %v3786 = vpop.f32.mrb[0].mxu0
  %v3787 = vadd.f32 %v2808, %v3786
  %v3788 = vpop.f32.mrb[0].mxu0
  %3789 = vmatprep.mubr.f32.mxu0 0.0
  %3790 = vmatmul.mubr.f32.gmra.mrb[0].mxu0 %v3099
  %v3791 = vpop.f32.mrb[0].mxu0
  %v3792 = vadd.f32 %v2808, %v3791
  %v3793 = vpop.f32.mrb[0].mxu0
  %3794 = vmatprep.mubr.f32.mxu0 0.0
  %3795 = vmatmul.mubr.f32.gmra.mrb[0].mxu0 %v3102
  %v3796 = vpop.f32.mrb[0].mxu0
  %v3797 = vadd.f32 %v2808, %v3796
  %v3798 = vpop.f32.mrb[0].mxu0
  %3799 = vmatprep.mubr.f32.mxu0 0.0
  %3800 = vmatmul.mubr.f32.gmra.mrb[0].mxu0 %v3105
  %v3801 = vpop.f32.mrb[0].mxu0
  %v3802 = vadd.f32 %v2808, %v3801
  %v3803 = vpop.f32.mrb[0].mxu0
  %3804 = vmatprep.mubr.f32.mxu0 0.0
  %3805 = vmatmul.mubr.f32.gmra.mrb[0].mxu0 %v3108
  %v3806 = vpop.f32.mrb[0].mxu0
  %v3807 = vadd.f32 %v2808, %v3806
  %v3808 = vpop.f32.mrb[0].mxu0
  %3809 = vmatprep.mubr.f32.mxu0 0.0
  %3810 = vmatmul.mubr.f32.gmra.mrb[0].mxu0 %v3111
  %v3811 = vpop.f32.mrb[0].mxu0
  %v3812 = vadd.f32 %v2808, %v3811
  %v3813 = vpop.f32.mrb[0].mxu0
  %3814 = vmatprep.mubr.f32.mxu0 0.0
  %3815 = vmatmul.mubr.f32.gmra.mrb[0].mxu0 %v3114
  %v3816 = vpop.f32.mrb[0].mxu0
  %v3817 = vadd.f32 %v2808, %v3816
  %v3818 = vpop.f32.mrb[0].mxu0
  %3819 = vmatprep.mubr.f32.mxu0 0.0
  %3820 = vmatmul.mubr.f32.gmra.mrb[0].mxu0 %v3117
  %v3821 = vpop.f32.mrb[0].mxu0
  %v3822 = vadd.f32 %v2808, %v3821
  %v3823 = vpop.f32.mrb[0].mxu0
  %3824 = vmatprep.mubr.f32.mxu0 0.0
  %3825 = vmatmul.mubr.f32.gmra.mrb[0].mxu0 %v3120
  %v3826 = vpop.f32.mrb[0].mxu0
  %v3827 = vadd.f32 %v2808, %v3826
  %v3828 = vpop.f32.mrb[0].mxu0
  %3829 = vmatprep.mubr.f32.mxu0 0.0
  %3830 = vmatmul.mubr.f32.gmra.mrb[0].mxu0 %v3123
  %v3831 = vpop.f32.mrb[0].mxu0
  %v3832 = vadd.f32 %v2808, %v3831
  %v3833 = vpop.f32.mrb[0].mxu0
  %3834 = vmatprep.mubr.f32.mxu0 0.0
  %3835 = vmatmul.mubr.f32.gmra.mrb[0].mxu0 %v3126
  %v3836 = vpop.f32.mrb[0].mxu0
  %v3837 = vadd.f32 %v2808, %v3836
  %v3838 = vpop.f32.mrb[0].mxu0
  %3839 = vmatprep.mubr.f32.mxu0 0.0
  %3840 = vmatmul.mubr.f32.gmra.mrb[0].mxu0 %v3129
  %v3841 = vpop.f32.mrb[0].mxu0
  %v3842 = vadd.f32 %v2808, %v3841
  %v3843 = vpop.f32.mrb[0].mxu0
  %3844 = vmatprep.mubr.f32.mxu0 0.0
  %3845 = vmatmul.mubr.f32.gmra.mrb[0].mxu0 %v3132
  %v3846 = vpop.f32.mrb[0].mxu0
  %v3847 = vadd.f32 %v2808, %v3846
  %v3848 = vpop.f32.mrb[0].mxu0
  %3849 = vmatprep.mubr.f32.mxu0 0.0
  %3850 = vmatmul.mubr.f32.gmra.mrb[0].mxu0 %v3135
  %v3851 = vpop.f32.mrb[0].mxu0
  %v3852 = vadd.f32 %v2808, %v3851
  %v3853 = vpop.f32.mrb[0].mxu0
  %3854 = vmatprep.mubr.f32.mxu0 0.0
  %3855 = vmatmul.mubr.f32.gmra.mrb[0].mxu0 %v3138
  %v3856 = vpop.f32.mrb[0].mxu0
  %v3857 = vadd.f32 %v2808, %v3856
  %v3858 = vpop.f32.mrb[0].mxu0
  %3859 = vmatprep.mubr.f32.mxu0 0.0
  %3860 = vmatmul.mubr.f32.gmra.mrb[0].mxu0 %v3141
  %v3861 = vpop.f32.mrb[0].mxu0
  %v3862 = vadd.f32 %v2808, %v3861
  %v3863 = vpop.f32.mrb[0].mxu0
  %3864 = vmatprep.mubr.f32.mxu0 0.0
  %3865 = vmatmul.mubr.f32.gmra.mrb[0].mxu0 %v3144
  %v3866 = vpop.f32.mrb[0].mxu0
  %v3867 = vadd.f32 %v2808, %v3866
  %v3868 = vpop.f32.mrb[0].mxu0
  %3869 = vmatprep.mubr.f32.mxu0 0.0
  %3870 = vmatmul.mubr.f32.gmra.mrb[0].mxu0 %v3147
  %v3871 = vpop.f32.mrb[0].mxu0
  %v3872 = vadd.f32 %v2808, %v3871
  %v3873 = vpop.f32.mrb[0].mxu0
  %3874 = vmatprep.mubr.f32.mxu0 0.0
  %3875 = vmatmul.mubr.f32.gmra.mrb[0].mxu0 %v3150
  %v3876 = vpop.f32.mrb[0].mxu0
  %v3877 = vadd.f32 %v2808, %v3876
  %v3878 = vpop.f32.mrb[0].mxu0
  %3879 = vmatprep.mubr.f32.mxu0 0.0
  %3880 = vmatmul.mubr.f32.gmra.mrb[0].mxu0 %v3153
  %v3881 = vpop.f32.mrb[0].mxu0
  %v3882 = vadd.f32 %v2808, %v3881
  %v3883 = vpop.f32.mrb[0].mxu0
  %3884 = vmatprep.mubr.f32.mxu0 0.0
  %3885 = vmatmul.mubr.f32.gmra.mrb[0].mxu0 %v3156
  %v3886 = vpop.f32.mrb[0].mxu0
  %v3887 = vadd.f32 %v2808, %v3886
  %v3888 = vpop.f32.mrb[0].mxu0
  %3889 = vmatprep.mubr.f32.mxu0 0.0
  %3890 = vmatmul.mubr.f32.gmra.mrb[0].mxu0 %v3159
  %v3891 = vpop.f32.mrb[0].mxu0
  %v3892 = vadd.f32 %v2808, %v3891
  %v3893 = vpop.f32.mrb[0].mxu0
  %3894 = vmatprep.mubr.f32.mxu0 0.0
  %3895 = vmatmul.mubr.f32.gmra.mrb[0].mxu0 %v3162
  %v3896 = vpop.f32.mrb[0].mxu0
  %v3897 = vadd.f32 %v2808, %v3896
  %v3898 = vpop.f32.mrb[0].mxu0
  %3899 = vmatprep.mubr.f32.mxu0 0.0
  %3900 = vmatmul.mubr.f32.gmra.mrb[0].mxu0 %v3165
  %v3901 = vpop.f32.mrb[0].mxu0
  %v3902 = vadd.f32 %v2808, %v3901
  %v3903 = vpop.f32.mrb[0].mxu0
  %3904 = vmatprep.mubr.f32.mxu0 0.0
  %3905 = vmatmul.mubr.f32.gmra.mrb[0].mxu0 %v3168
  %v3906 = vpop.f32.mrb[0].mxu0
  %v3907 = vadd.f32 %v2808, %v3906
  %v3908 = vpop.f32.mrb[0].mxu0
  %3909 = vmatprep.mubr.f32.mxu0 0.0
  %3910 = vmatmul.mubr.f32.gmra.mrb[0].mxu0 %v3171
  %v3911 = vpop.f32.mrb[0].mxu0
  %v3912 = vadd.f32 %v2808, %v3911
  %v3913 = vpop.f32.mrb[0].mxu0
  %3914 = vmatprep.mubr.f32.mxu0 0.0
  %3915 = vmatmul.mubr.f32.gmra.mrb[0].mxu0 %v3174
  %v3916 = vpop.f32.mrb[0].mxu0
  %v3917 = vadd.f32 %v2808, %v3916
  %v3918 = vpop.f32.mrb[0].mxu0
  %3919 = vmatprep.mubr.f32.mxu0 0.0
  %3920 = vmatmul.mubr.f32.gmra.mrb[0].mxu0 %v3177
  %v3921 = vpop.f32.mrb[0].mxu0
  %v3922 = vadd.f32 %v2808, %v3921
  %v3923 = vpop.f32.mrb[0].mxu0
  %3924 = vmatprep.mubr.f32.mxu0 0.0
  %3925 = vmatmul.mubr.f32.gmra.mrb[0].mxu0 %v3180
  %v3926 = vpop.f32.mrb[0].mxu0
  %v3927 = vadd.f32 %v2808, %v3926
  %v3928 = vpop.f32.mrb[0].mxu0
  %3929 = vmatprep.mubr.f32.mxu0 0.0
  %3930 = vmatmul.mubr.f32.gmra.mrb[0].mxu0 %v3183
  %v3931 = vpop.f32.mrb[0].mxu0
  %v3932 = vadd.f32 %v2808, %v3931
  %v3933 = vpop.f32.mrb[0].mxu0
  %3934 = vmatprep.mubr.f32.mxu0 0.0
  %3935 = vmatmul.mubr.f32.gmra.mrb[0].mxu0 %v3186
  %v3936 = vpop.f32.mrb[0].mxu0
  %v3937 = vadd.f32 %v2808, %v3936
  %v3938 = vpop.f32.mrb[0].mxu0
  %3939 = vmatprep.mubr.f32.mxu0 0.0
  %3940 = vmatmul.mubr.f32.gmra.mrb[0].mxu0 %v3189
  %v3941 = vpop.f32.mrb[0].mxu0
  %v3942 = vadd.f32 %v2808, %v3941
  %v3943 = vpop.f32.mrb[0].mxu0
  %3944 = vmatprep.mubr.f32.mxu0 0.0
  %3945 = vmatmul.mubr.f32.gmra.mrb[0].mxu0 %v3192
  %v3946 = vpop.f32.mrb[0].mxu0
  %v3947 = vadd.f32 %v2808, %v3946
  %v3948 = vpop.f32.mrb[0].mxu0
  %3949 = vmatprep.mubr.f32.mxu0 0.0
  %3950 = vmatmul.mubr.f32.gmra.mrb[0].mxu0 %v3195
  %v3951 = vpop.f32.mrb[0].mxu0
  %v3952 = vadd.f32 %v2808, %v3951
  %v3953 = vpop.f32.mrb[0].mxu0
  %3954 = vmatprep.mubr.f32.mxu0 0.0
  %3955 = vmatmul.mubr.f32.gmra.mrb[0].mxu0 %v3198
  %v3956 = vpop.f32.mrb[0].mxu0
  %v3957 = vadd.f32 %v2808, %v3956
  %v3958 = vpop.f32.mrb[0].mxu0
  %3959 = vmatprep.mubr.f32.mxu0 0.0
  %3960 = vmatmul.mubr.f32.gmra.mrb[0].mxu0 %v3201
  %v3961 = vpop.f32.mrb[0].mxu0
  %v3962 = vadd.f32 %v2808, %v3961
  %v3963 = vpop.f32.mrb[0].mxu0
  %3964 = vmatprep.mubr.f32.mxu0 0.0
  %3965 = vmatmul.mubr.f32.gmra.mrb[0].mxu0 %v3204
  %v3966 = vpop.f32.mrb[0].mxu0
  %v3967 = vadd.f32 %v2808, %v3966
  %v3968 = vpop.f32.mrb[0].mxu0
  %3969 = vmatprep.mubr.f32.mxu0 0.0
  %3970 = vmatmul.mubr.f32.gmra.mrb[0].mxu0 %v3207
  %v3971 = vpop.f32.mrb[0].mxu0
  %v3972 = vadd.f32 %v2808, %v3971
  %v3973 = vpop.f32.mrb[0].mxu0
  %3974 = vmatprep.mubr.f32.mxu0 0.0
  %3975 = vmatmul.mubr.f32.gmra.mrb[0].mxu0 %v3210
  %v3976 = vpop.f32.mrb[0].mxu0
  %v3977 = vadd.f32 %v2808, %v3976
  %v3978 = vpop.f32.mrb[0].mxu0
  %3979 = vmatprep.mubr.f32.mxu0 0.0
  %3980 = vmatmul.mubr.f32.gmra.mrb[0].mxu0 %v3213
  %v3981 = vpop.f32.mrb[0].mxu0
  %v3982 = vadd.f32 %v2808, %v3981
  %v3983 = vpop.f32.mrb[0].mxu0
  %3984 = vmatprep.mubr.f32.mxu0 0.0
  %3985 = vmatmul.mubr.f32.gmra.mrb[0].mxu0 %v3216
  %v3986 = vpop.f32.mrb[0].mxu0
  %v3987 = vadd.f32 %v2808, %v3986
  %v3988 = vpop.f32.mrb[0].mxu0
  %3989 = vmatprep.mubr.f32.mxu0 0.0
  %3990 = vmatmul.mubr.f32.gmra.mrb[0].mxu0 %v3219
  %v3991 = vpop.f32.mrb[0].mxu0
  %v3992 = vadd.f32 %v2808, %v3991
  %v3993 = vpop.f32.mrb[0].mxu0
  %3994 = vmatprep.mubr.f32.mxu0 0.0
  %3995 = vmatmul.mubr.f32.gmra.mrb[0].mxu0 %v3222
  %v3996 = vpop.f32.mrb[0].mxu0
  %v3997 = vadd.f32 %v2808, %v3996
  %v3998 = vpop.f32.mrb[0].mxu0
  %3999 = vmatprep.mubr.f32.mxu0 0.0
  %4000 = vmatmul.mubr.f32.gmra.mrb[0].mxu0 %v3225
  %v4001 = vpop.f32.mrb[0].mxu0
  %v4002 = vadd.f32 %v2808, %v4001
  %v4003 = vpop.f32.mrb[0].mxu0
  %4004 = vmatprep.mubr.f32.mxu0 0.0
  %4005 = vmatmul.mubr.f32.gmra.mrb[0].mxu0 %v3228
  %v4006 = vpop.f32.mrb[0].mxu0
  %v4007 = vadd.f32 %v2808, %v4006
  %v4008 = vpop.f32.mrb[0].mxu0
  %4009 = vmatprep.mubr.f32.mxu0 0.0
  %4010 = vmatmul.mubr.f32.gmra.mrb[0].mxu0 %v3231
  %v4011 = vpop.f32.mrb[0].mxu0
  %v4012 = vadd.f32 %v2808, %v4011
  %v4013 = vpop.f32.mrb[0].mxu0
  %4014 = vmatprep.mubr.f32.mxu0 0.0
  %4015 = vmatmul.mubr.f32.gmra.mrb[0].mxu0 %v3234
  %v4016 = vpop.f32.mrb[0].mxu0
  %v4017 = vadd.f32 %v2808, %v4016
  %v4018 = vpop.f32.mrb[0].mxu0
  %4019 = vmatprep.mubr.f32.mxu0 0.0
  %4020 = vmatmul.mubr.f32.gmra.mrb[0].mxu0 %v3237
  %v4021 = vpop.f32.mrb[0].mxu0
  %v4022 = vadd.f32 %v2808, %v4021
  %v4023 = vpop.f32.mrb[0].mxu0
  %4024 = vmatprep.mubr.f32.mxu0 0.0
  %4025 = vmatmul.mubr.f32.gmra.mrb[0].mxu0 %v3240
  %v4026 = vpop.f32.mrb[0].mxu0
  %v4027 = vadd.f32 %v2808, %v4026
  %v4028 = vpop.f32.mrb[0].mxu0
  %4029 = vdwg.mxu0
  %vm4030 = vcmask 15360
  %v4031 = vsel %vm4030, %v3312, -inf
  %v4032 = vsel %vm4030, %v3392, -inf
  %v4033 = vmax.f32 %v4031, %v4032
  %v4034 = vsel %vm4030, %v3472, -inf
  %v4035 = vmax.f32 %v4033, %v4034
  %v4036 = vsel %vm4030, %v3552, -inf
  %v4037 = vmax.f32 %v4035, %v4036
  %v4038 = vsel %vm4030, %v3632, -inf
  %v4039 = vmax.f32 %v4037, %v4038
  %v4040 = vsel %vm4030, %v3712, -inf
  %v4041 = vmax.f32 %v4039, %v4040
  %v4042 = vsel %vm4030, %v3792, -inf
  %v4043 = vmax.f32 %v4041, %v4042
  %v4044 = vsel %vm4030, %v3872, -inf
  %v4045 = vmax.f32 %v4043, %v4044
  %v4046 = vsel %vm4030, %v3952, -inf
  %v4047 = vmax.f32 %v4045, %v4046
  %v4048 = vsel %vm4030, %v3317, -inf
  %v4049 = vsel %vm4030, %v3397, -inf
  %v4050 = vmax.f32 %v4048, %v4049
  %v4051 = vsel %vm4030, %v3477, -inf
  %v4052 = vmax.f32 %v4050, %v4051
  %v4053 = vsel %vm4030, %v3557, -inf
  %v4054 = vmax.f32 %v4052, %v4053
  %v4055 = vsel %vm4030, %v3637, -inf
  %v4056 = vmax.f32 %v4054, %v4055
  %v4057 = vsel %vm4030, %v3717, -inf
  %v4058 = vmax.f32 %v4056, %v4057
  %v4059 = vsel %vm4030, %v3797, -inf
  %v4060 = vmax.f32 %v4058, %v4059
  %v4061 = vsel %vm4030, %v3877, -inf
  %v4062 = vmax.f32 %v4060, %v4061
  %v4063 = vsel %vm4030, %v3957, -inf
  %v4064 = vmax.f32 %v4062, %v4063
  %v4065 = vsel %vm4030, %v3322, -inf
  %v4066 = vsel %vm4030, %v3402, -inf
  %v4067 = vmax.f32 %v4065, %v4066
  %v4068 = vsel %vm4030, %v3482, -inf
  %v4069 = vmax.f32 %v4067, %v4068
  %v4070 = vsel %vm4030, %v3562, -inf
  %v4071 = vmax.f32 %v4069, %v4070
  %v4072 = vsel %vm4030, %v3642, -inf
  %v4073 = vmax.f32 %v4071, %v4072
  %v4074 = vsel %vm4030, %v3722, -inf
  %v4075 = vmax.f32 %v4073, %v4074
  %v4076 = vsel %vm4030, %v3802, -inf
  %v4077 = vmax.f32 %v4075, %v4076
  %v4078 = vsel %vm4030, %v3882, -inf
  %v4079 = vmax.f32 %v4077, %v4078
  %v4080 = vsel %vm4030, %v3962, -inf
  %v4081 = vmax.f32 %v4079, %v4080
  %v4082 = vsel %vm4030, %v3327, -inf
  %v4083 = vsel %vm4030, %v3407, -inf
  %v4084 = vmax.f32 %v4082, %v4083
  %v4085 = vsel %vm4030, %v3487, -inf
  %v4086 = vmax.f32 %v4084, %v4085
  %v4087 = vsel %vm4030, %v3567, -inf
  %v4088 = vmax.f32 %v4086, %v4087
  %v4089 = vsel %vm4030, %v3647, -inf
  %v4090 = vmax.f32 %v4088, %v4089
  %v4091 = vsel %vm4030, %v3727, -inf
  %v4092 = vmax.f32 %v4090, %v4091
  %v4093 = vsel %vm4030, %v3807, -inf
  %v4094 = vmax.f32 %v4092, %v4093
  %v4095 = vsel %vm4030, %v3887, -inf
  %v4096 = vmax.f32 %v4094, %v4095
  %v4097 = vsel %vm4030, %v3967, -inf
  %v4098 = vmax.f32 %v4096, %v4097
  %v4099 = vsel %vm4030, %v3332, -inf
  %v4100 = vsel %vm4030, %v3412, -inf
  %v4101 = vmax.f32 %v4099, %v4100
  %v4102 = vsel %vm4030, %v3492, -inf
  %v4103 = vmax.f32 %v4101, %v4102
  %v4104 = vsel %vm4030, %v3572, -inf
  %v4105 = vmax.f32 %v4103, %v4104
  %v4106 = vsel %vm4030, %v3652, -inf
  %v4107 = vmax.f32 %v4105, %v4106
  %v4108 = vsel %vm4030, %v3732, -inf
  %v4109 = vmax.f32 %v4107, %v4108
  %v4110 = vsel %vm4030, %v3812, -inf
  %v4111 = vmax.f32 %v4109, %v4110
  %v4112 = vsel %vm4030, %v3892, -inf
  %v4113 = vmax.f32 %v4111, %v4112
  %v4114 = vsel %vm4030, %v3972, -inf
  %v4115 = vmax.f32 %v4113, %v4114
  %v4116 = vsel %vm4030, %v3337, -inf
  %v4117 = vsel %vm4030, %v3417, -inf
  %v4118 = vmax.f32 %v4116, %v4117
  %v4119 = vsel %vm4030, %v3497, -inf
  %v4120 = vmax.f32 %v4118, %v4119
  %v4121 = vsel %vm4030, %v3577, -inf
  %v4122 = vmax.f32 %v4120, %v4121
  %v4123 = vsel %vm4030, %v3657, -inf
  %v4124 = vmax.f32 %v4122, %v4123
  %v4125 = vsel %vm4030, %v3737, -inf
  %v4126 = vmax.f32 %v4124, %v4125
  %v4127 = vsel %vm4030, %v3817, -inf
  %v4128 = vmax.f32 %v4126, %v4127
  %v4129 = vsel %vm4030, %v3897, -inf
  %v4130 = vmax.f32 %v4128, %v4129
  %v4131 = vsel %vm4030, %v3977, -inf
  %v4132 = vmax.f32 %v4130, %v4131
  %v4133 = vsel %vm4030, %v3342, -inf
  %v4134 = vsel %vm4030, %v3422, -inf
  %v4135 = vmax.f32 %v4133, %v4134
  %v4136 = vsel %vm4030, %v3502, -inf
  %v4137 = vmax.f32 %v4135, %v4136
  %v4138 = vsel %vm4030, %v3582, -inf
  %v4139 = vmax.f32 %v4137, %v4138
  %v4140 = vsel %vm4030, %v3662, -inf
  %v4141 = vmax.f32 %v4139, %v4140
  %v4142 = vsel %vm4030, %v3742, -inf
  %v4143 = vmax.f32 %v4141, %v4142
  %v4144 = vsel %vm4030, %v3822, -inf
  %v4145 = vmax.f32 %v4143, %v4144
  %v4146 = vsel %vm4030, %v3902, -inf
  %v4147 = vmax.f32 %v4145, %v4146
  %v4148 = vsel %vm4030, %v3982, -inf
  %v4149 = vmax.f32 %v4147, %v4148
  %v4150 = vsel %vm4030, %v3347, -inf
  %v4151 = vsel %vm4030, %v3427, -inf
  %v4152 = vmax.f32 %v4150, %v4151
  %v4153 = vsel %vm4030, %v3507, -inf
  %v4154 = vmax.f32 %v4152, %v4153
  %v4155 = vsel %vm4030, %v3587, -inf
  %v4156 = vmax.f32 %v4154, %v4155
  %v4157 = vsel %vm4030, %v3667, -inf
  %v4158 = vmax.f32 %v4156, %v4157
  %v4159 = vsel %vm4030, %v3747, -inf
  %v4160 = vmax.f32 %v4158, %v4159
  %v4161 = vsel %vm4030, %v3827, -inf
  %v4162 = vmax.f32 %v4160, %v4161
  %v4163 = vsel %vm4030, %v3907, -inf
  %v4164 = vmax.f32 %v4162, %v4163
  %v4165 = vsel %vm4030, %v3987, -inf
  %v4166 = vmax.f32 %v4164, %v4165
  %v4167 = vsel %vm4030, %v3352, -inf
  %v4168 = vsel %vm4030, %v3432, -inf
  %v4169 = vmax.f32 %v4167, %v4168
  %v4170 = vsel %vm4030, %v3512, -inf
  %v4171 = vmax.f32 %v4169, %v4170
  %v4172 = vsel %vm4030, %v3592, -inf
  %v4173 = vmax.f32 %v4171, %v4172
  %v4174 = vsel %vm4030, %v3672, -inf
  %v4175 = vmax.f32 %v4173, %v4174
  %v4176 = vsel %vm4030, %v3752, -inf
  %v4177 = vmax.f32 %v4175, %v4176
  %v4178 = vsel %vm4030, %v3832, -inf
  %v4179 = vmax.f32 %v4177, %v4178
  %v4180 = vsel %vm4030, %v3912, -inf
  %v4181 = vmax.f32 %v4179, %v4180
  %v4182 = vsel %vm4030, %v3992, -inf
  %v4183 = vmax.f32 %v4181, %v4182
  %v4184 = vsel %vm4030, %v3357, -inf
  %v4185 = vsel %vm4030, %v3437, -inf
  %v4186 = vmax.f32 %v4184, %v4185
  %v4187 = vsel %vm4030, %v3517, -inf
  %v4188 = vmax.f32 %v4186, %v4187
  %v4189 = vsel %vm4030, %v3597, -inf
  %v4190 = vmax.f32 %v4188, %v4189
  %v4191 = vsel %vm4030, %v3677, -inf
  %v4192 = vmax.f32 %v4190, %v4191
  %v4193 = vsel %vm4030, %v3757, -inf
  %v4194 = vmax.f32 %v4192, %v4193
  %v4195 = vsel %vm4030, %v3837, -inf
  %v4196 = vmax.f32 %v4194, %v4195
  %v4197 = vsel %vm4030, %v3917, -inf
  %v4198 = vmax.f32 %v4196, %v4197
  %v4199 = vsel %vm4030, %v3997, -inf
  %v4200 = vmax.f32 %v4198, %v4199
  %v4201 = vsel %vm4030, %v3362, -inf
  %v4202 = vsel %vm4030, %v3442, -inf
  %v4203 = vmax.f32 %v4201, %v4202
  %v4204 = vsel %vm4030, %v3522, -inf
  %v4205 = vmax.f32 %v4203, %v4204
  %v4206 = vsel %vm4030, %v3602, -inf
  %v4207 = vmax.f32 %v4205, %v4206
  %v4208 = vsel %vm4030, %v3682, -inf
  %v4209 = vmax.f32 %v4207, %v4208
  %v4210 = vsel %vm4030, %v3762, -inf
  %v4211 = vmax.f32 %v4209, %v4210
  %v4212 = vsel %vm4030, %v3842, -inf
  %v4213 = vmax.f32 %v4211, %v4212
  %v4214 = vsel %vm4030, %v3922, -inf
  %v4215 = vmax.f32 %v4213, %v4214
  %v4216 = vsel %vm4030, %v4002, -inf
  %v4217 = vmax.f32 %v4215, %v4216
  %v4218 = vsel %vm4030, %v3367, -inf
  %v4219 = vsel %vm4030, %v3447, -inf
  %v4220 = vmax.f32 %v4218, %v4219
  %v4221 = vsel %vm4030, %v3527, -inf
  %v4222 = vmax.f32 %v4220, %v4221
  %v4223 = vsel %vm4030, %v3607, -inf
  %v4224 = vmax.f32 %v4222, %v4223
  %v4225 = vsel %vm4030, %v3687, -inf
  %v4226 = vmax.f32 %v4224, %v4225
  %v4227 = vsel %vm4030, %v3767, -inf
  %v4228 = vmax.f32 %v4226, %v4227
  %v4229 = vsel %vm4030, %v3847, -inf
  %v4230 = vmax.f32 %v4228, %v4229
  %v4231 = vsel %vm4030, %v3927, -inf
  %v4232 = vmax.f32 %v4230, %v4231
  %v4233 = vsel %vm4030, %v4007, -inf
  %v4234 = vmax.f32 %v4232, %v4233
  %v4235 = vsel %vm4030, %v3372, -inf
  %v4236 = vsel %vm4030, %v3452, -inf
  %v4237 = vmax.f32 %v4235, %v4236
  %v4238 = vsel %vm4030, %v3532, -inf
  %v4239 = vmax.f32 %v4237, %v4238
  %v4240 = vsel %vm4030, %v3612, -inf
  %v4241 = vmax.f32 %v4239, %v4240
  %v4242 = vsel %vm4030, %v3692, -inf
  %v4243 = vmax.f32 %v4241, %v4242
  %v4244 = vsel %vm4030, %v3772, -inf
  %v4245 = vmax.f32 %v4243, %v4244
  %v4246 = vsel %vm4030, %v3852, -inf
  %v4247 = vmax.f32 %v4245, %v4246
  %v4248 = vsel %vm4030, %v3932, -inf
  %v4249 = vmax.f32 %v4247, %v4248
  %v4250 = vsel %vm4030, %v4012, -inf
  %v4251 = vmax.f32 %v4249, %v4250
  %v4252 = vsel %vm4030, %v3377, -inf
  %v4253 = vsel %vm4030, %v3457, -inf
  %v4254 = vmax.f32 %v4252, %v4253
  %v4255 = vsel %vm4030, %v3537, -inf
  %v4256 = vmax.f32 %v4254, %v4255
  %v4257 = vsel %vm4030, %v3617, -inf
  %v4258 = vmax.f32 %v4256, %v4257
  %v4259 = vsel %vm4030, %v3697, -inf
  %v4260 = vmax.f32 %v4258, %v4259
  %v4261 = vsel %vm4030, %v3777, -inf
  %v4262 = vmax.f32 %v4260, %v4261
  %v4263 = vsel %vm4030, %v3857, -inf
  %v4264 = vmax.f32 %v4262, %v4263
  %v4265 = vsel %vm4030, %v3937, -inf
  %v4266 = vmax.f32 %v4264, %v4265
  %v4267 = vsel %vm4030, %v4017, -inf
  %v4268 = vmax.f32 %v4266, %v4267
  %v4269 = vsel %vm4030, %v3382, -inf
  %v4270 = vsel %vm4030, %v3462, -inf
  %v4271 = vmax.f32 %v4269, %v4270
  %v4272 = vsel %vm4030, %v3542, -inf
  %v4273 = vmax.f32 %v4271, %v4272
  %v4274 = vsel %vm4030, %v3622, -inf
  %v4275 = vmax.f32 %v4273, %v4274
  %v4276 = vsel %vm4030, %v3702, -inf
  %v4277 = vmax.f32 %v4275, %v4276
  %v4278 = vsel %vm4030, %v3782, -inf
  %v4279 = vmax.f32 %v4277, %v4278
  %v4280 = vsel %vm4030, %v3862, -inf
  %v4281 = vmax.f32 %v4279, %v4280
  %v4282 = vsel %vm4030, %v3942, -inf
  %v4283 = vmax.f32 %v4281, %v4282
  %v4284 = vsel %vm4030, %v4022, -inf
  %v4285 = vmax.f32 %v4283, %v4284
  %v4286 = vsel %vm4030, %v3387, -inf
  %v4287 = vsel %vm4030, %v3467, -inf
  %v4288 = vmax.f32 %v4286, %v4287
  %v4289 = vsel %vm4030, %v3547, -inf
  %v4290 = vmax.f32 %v4288, %v4289
  %v4291 = vsel %vm4030, %v3627, -inf
  %v4292 = vmax.f32 %v4290, %v4291
  %v4293 = vsel %vm4030, %v3707, -inf
  %v4294 = vmax.f32 %v4292, %v4293
  %v4295 = vsel %vm4030, %v3787, -inf
  %v4296 = vmax.f32 %v4294, %v4295
  %v4297 = vsel %vm4030, %v3867, -inf
  %v4298 = vmax.f32 %v4296, %v4297
  %v4299 = vsel %vm4030, %v3947, -inf
  %v4300 = vmax.f32 %v4298, %v4299
  %v4301 = vsel %vm4030, %v4027, -inf
  %v4302 = vmax.f32 %v4300, %v4301
  %v4303 = vsub.f32 %v3312, %v4047
  %v4304 = vsub.f32 %v3317, %v4064
  %v4305 = vsub.f32 %v3322, %v4081
  %v4306 = vsub.f32 %v3327, %v4098
  %v4307 = vsub.f32 %v3332, %v4115
  %v4308 = vsub.f32 %v3337, %v4132
  %v4309 = vsub.f32 %v3342, %v4149
  %v4310 = vsub.f32 %v3347, %v4166
  %v4311 = vsub.f32 %v3352, %v4183
  %v4312 = vsub.f32 %v3357, %v4200
  %v4313 = vsub.f32 %v3362, %v4217
  %v4314 = vsub.f32 %v3367, %v4234
  %v4315 = vsub.f32 %v3372, %v4251
  %v4316 = vsub.f32 %v3377, %v4268
  %v4317 = vsub.f32 %v3382, %v4285
  %v4318 = vsub.f32 %v3387, %v4302
  %v4319 = vsub.f32 %v3392, %v4047
  %v4320 = vsub.f32 %v3397, %v4064
  %v4321 = vsub.f32 %v3402, %v4081
  %v4322 = vsub.f32 %v3407, %v4098
  %v4323 = vsub.f32 %v3412, %v4115
  %v4324 = vsub.f32 %v3417, %v4132
  %v4325 = vsub.f32 %v3422, %v4149
  %v4326 = vsub.f32 %v3427, %v4166
  %v4327 = vsub.f32 %v3432, %v4183
  %v4328 = vsub.f32 %v3437, %v4200
  %v4329 = vsub.f32 %v3442, %v4217
  %v4330 = vsub.f32 %v3447, %v4234
  %v4331 = vsub.f32 %v3452, %v4251
  %v4332 = vsub.f32 %v3457, %v4268
  %v4333 = vsub.f32 %v3462, %v4285
  %v4334 = vsub.f32 %v3467, %v4302
  %v4335 = vsub.f32 %v3472, %v4047
  %v4336 = vsub.f32 %v3477, %v4064
  %v4337 = vsub.f32 %v3482, %v4081
  %v4338 = vsub.f32 %v3487, %v4098
  %v4339 = vsub.f32 %v3492, %v4115
  %v4340 = vsub.f32 %v3497, %v4132
  %v4341 = vsub.f32 %v3502, %v4149
  %v4342 = vsub.f32 %v3507, %v4166
  %v4343 = vsub.f32 %v3512, %v4183
  %v4344 = vsub.f32 %v3517, %v4200
  %v4345 = vsub.f32 %v3522, %v4217
  %v4346 = vsub.f32 %v3527, %v4234
  %v4347 = vsub.f32 %v3532, %v4251
  %v4348 = vsub.f32 %v3537, %v4268
  %v4349 = vsub.f32 %v3542, %v4285
  %v4350 = vsub.f32 %v3547, %v4302
  %v4351 = vsub.f32 %v3552, %v4047
  %v4352 = vsub.f32 %v3557, %v4064
  %v4353 = vsub.f32 %v3562, %v4081
  %v4354 = vsub.f32 %v3567, %v4098
  %v4355 = vsub.f32 %v3572, %v4115
  %v4356 = vsub.f32 %v3577, %v4132
  %v4357 = vsub.f32 %v3582, %v4149
  %v4358 = vsub.f32 %v3587, %v4166
  %v4359 = vsub.f32 %v3592, %v4183
  %v4360 = vsub.f32 %v3597, %v4200
  %v4361 = vsub.f32 %v3602, %v4217
  %v4362 = vsub.f32 %v3607, %v4234
  %v4363 = vsub.f32 %v3612, %v4251
  %v4364 = vsub.f32 %v3617, %v4268
  %v4365 = vsub.f32 %v3622, %v4285
  %v4366 = vsub.f32 %v3627, %v4302
  %v4367 = vsub.f32 %v3632, %v4047
  %v4368 = vsub.f32 %v3637, %v4064
  %v4369 = vsub.f32 %v3642, %v4081
  %v4370 = vsub.f32 %v3647, %v4098
  %v4371 = vsub.f32 %v3652, %v4115
  %v4372 = vsub.f32 %v3657, %v4132
  %v4373 = vsub.f32 %v3662, %v4149
  %v4374 = vsub.f32 %v3667, %v4166
  %v4375 = vsub.f32 %v3672, %v4183
  %v4376 = vsub.f32 %v3677, %v4200
  %v4377 = vsub.f32 %v3682, %v4217
  %v4378 = vsub.f32 %v3687, %v4234
  %v4379 = vsub.f32 %v3692, %v4251
  %v4380 = vsub.f32 %v3697, %v4268
  %v4381 = vsub.f32 %v3702, %v4285
  %v4382 = vsub.f32 %v3707, %v4302
  %v4383 = vsub.f32 %v3712, %v4047
  %v4384 = vsub.f32 %v3717, %v4064
  %v4385 = vsub.f32 %v3722, %v4081
  %v4386 = vsub.f32 %v3727, %v4098
  %v4387 = vsub.f32 %v3732, %v4115
  %v4388 = vsub.f32 %v3737, %v4132
  %v4389 = vsub.f32 %v3742, %v4149
  %v4390 = vsub.f32 %v3747, %v4166
  %v4391 = vsub.f32 %v3752, %v4183
  %v4392 = vsub.f32 %v3757, %v4200
  %v4393 = vsub.f32 %v3762, %v4217
  %v4394 = vsub.f32 %v3767, %v4234
  %v4395 = vsub.f32 %v3772, %v4251
  %v4396 = vsub.f32 %v3777, %v4268
  %v4397 = vsub.f32 %v3782, %v4285
  %v4398 = vsub.f32 %v3787, %v4302
  %v4399 = vsub.f32 %v3792, %v4047
  %v4400 = vsub.f32 %v3797, %v4064
  %v4401 = vsub.f32 %v3802, %v4081
  %v4402 = vsub.f32 %v3807, %v4098
  %v4403 = vsub.f32 %v3812, %v4115
  %v4404 = vsub.f32 %v3817, %v4132
  %v4405 = vsub.f32 %v3822, %v4149
  %v4406 = vsub.f32 %v3827, %v4166
  %v4407 = vsub.f32 %v3832, %v4183
  %v4408 = vsub.f32 %v3837, %v4200
  %v4409 = vsub.f32 %v3842, %v4217
  %v4410 = vsub.f32 %v3847, %v4234
  %v4411 = vsub.f32 %v3852, %v4251
  %v4412 = vsub.f32 %v3857, %v4268
  %v4413 = vsub.f32 %v3862, %v4285
  %v4414 = vsub.f32 %v3867, %v4302
  %v4415 = vsub.f32 %v3872, %v4047
  %v4416 = vsub.f32 %v3877, %v4064
  %v4417 = vsub.f32 %v3882, %v4081
  %v4418 = vsub.f32 %v3887, %v4098
  %v4419 = vsub.f32 %v3892, %v4115
  %v4420 = vsub.f32 %v3897, %v4132
  %v4421 = vsub.f32 %v3902, %v4149
  %v4422 = vsub.f32 %v3907, %v4166
  %v4423 = vsub.f32 %v3912, %v4183
  %v4424 = vsub.f32 %v3917, %v4200
  %v4425 = vsub.f32 %v3922, %v4217
  %v4426 = vsub.f32 %v3927, %v4234
  %v4427 = vsub.f32 %v3932, %v4251
  %v4428 = vsub.f32 %v3937, %v4268
  %v4429 = vsub.f32 %v3942, %v4285
  %v4430 = vsub.f32 %v3947, %v4302
  %v4431 = vsub.f32 %v3952, %v4047
  %v4432 = vsub.f32 %v3957, %v4064
  %v4433 = vsub.f32 %v3962, %v4081
  %v4434 = vsub.f32 %v3967, %v4098
  %v4435 = vsub.f32 %v3972, %v4115
  %v4436 = vsub.f32 %v3977, %v4132
  %v4437 = vsub.f32 %v3982, %v4149
  %v4438 = vsub.f32 %v3987, %v4166
  %v4439 = vsub.f32 %v3992, %v4183
  %v4440 = vsub.f32 %v3997, %v4200
  %v4441 = vsub.f32 %v4002, %v4217
  %v4442 = vsub.f32 %v4007, %v4234
  %v4443 = vsub.f32 %v4012, %v4251
  %v4444 = vsub.f32 %v4017, %v4268
  %v4445 = vsub.f32 %v4022, %v4285
  %v4446 = vsub.f32 %v4027, %v4302
  %v4447 = vmul.f32 %v4303, 1.442695
  %v4448 = vpow.pop %v4447
  %v4449 = vmul.f32 %v4304, 1.442695
  %v4450 = vpow.pop %v4449
  %v4451 = vmul.f32 %v4305, 1.442695
  %v4452 = vpow.pop %v4451
  %v4453 = vmul.f32 %v4306, 1.442695
  %v4454 = vpow.pop %v4453
  %v4455 = vmul.f32 %v4307, 1.442695
  %v4456 = vpow.pop %v4455
  %v4457 = vmul.f32 %v4308, 1.442695
  %v4458 = vpow.pop %v4457
  %v4459 = vmul.f32 %v4309, 1.442695
  %v4460 = vpow.pop %v4459
  %v4461 = vmul.f32 %v4310, 1.442695
  %v4462 = vpow.pop %v4461
  %v4463 = vmul.f32 %v4311, 1.442695
  %v4464 = vpow.pop %v4463
  %v4465 = vmul.f32 %v4312, 1.442695
  %v4466 = vpow.pop %v4465
  %v4467 = vmul.f32 %v4313, 1.442695
  %v4468 = vpow.pop %v4467
  %v4469 = vmul.f32 %v4314, 1.442695
  %v4470 = vpow.pop %v4469
  %v4471 = vmul.f32 %v4315, 1.442695
  %v4472 = vpow.pop %v4471
  %v4473 = vmul.f32 %v4316, 1.442695
  %v4474 = vpow.pop %v4473
  %v4475 = vmul.f32 %v4317, 1.442695
  %v4476 = vpow.pop %v4475
  %v4477 = vmul.f32 %v4318, 1.442695
  %v4478 = vpow.pop %v4477
  %v4479 = vmul.f32 %v4319, 1.442695
  %v4480 = vpow.pop %v4479
  %v4481 = vmul.f32 %v4320, 1.442695
  %v4482 = vpow.pop %v4481
  %v4483 = vmul.f32 %v4321, 1.442695
  %v4484 = vpow.pop %v4483
  %v4485 = vmul.f32 %v4322, 1.442695
  %v4486 = vpow.pop %v4485
  %v4487 = vmul.f32 %v4323, 1.442695
  %v4488 = vpow.pop %v4487
  %v4489 = vmul.f32 %v4324, 1.442695
  %v4490 = vpow.pop %v4489
  %v4491 = vmul.f32 %v4325, 1.442695
  %v4492 = vpow.pop %v4491
  %v4493 = vmul.f32 %v4326, 1.442695
  %v4494 = vpow.pop %v4493
  %v4495 = vmul.f32 %v4327, 1.442695
  %v4496 = vpow.pop %v4495
  %v4497 = vmul.f32 %v4328, 1.442695
  %v4498 = vpow.pop %v4497
  %v4499 = vmul.f32 %v4329, 1.442695
  %v4500 = vpow.pop %v4499
  %v4501 = vmul.f32 %v4330, 1.442695
  %v4502 = vpow.pop %v4501
  %v4503 = vmul.f32 %v4331, 1.442695
  %v4504 = vpow.pop %v4503
  %v4505 = vmul.f32 %v4332, 1.442695
  %v4506 = vpow.pop %v4505
  %v4507 = vmul.f32 %v4333, 1.442695
  %v4508 = vpow.pop %v4507
  %v4509 = vmul.f32 %v4334, 1.442695
  %v4510 = vpow.pop %v4509
  %v4511 = vmul.f32 %v4335, 1.442695
  %v4512 = vpow.pop %v4511
  %v4513 = vmul.f32 %v4336, 1.442695
  %v4514 = vpow.pop %v4513
  %v4515 = vmul.f32 %v4337, 1.442695
  %v4516 = vpow.pop %v4515
  %v4517 = vmul.f32 %v4338, 1.442695
  %v4518 = vpow.pop %v4517
  %v4519 = vmul.f32 %v4339, 1.442695
  %v4520 = vpow.pop %v4519
  %v4521 = vmul.f32 %v4340, 1.442695
  %v4522 = vpow.pop %v4521
  %v4523 = vmul.f32 %v4341, 1.442695
  %v4524 = vpow.pop %v4523
  %v4525 = vmul.f32 %v4342, 1.442695
  %v4526 = vpow.pop %v4525
  %v4527 = vmul.f32 %v4343, 1.442695
  %v4528 = vpow.pop %v4527
  %v4529 = vmul.f32 %v4344, 1.442695
  %v4530 = vpow.pop %v4529
  %v4531 = vmul.f32 %v4345, 1.442695
  %v4532 = vpow.pop %v4531
  %v4533 = vmul.f32 %v4346, 1.442695
  %v4534 = vpow.pop %v4533
  %v4535 = vmul.f32 %v4347, 1.442695
  %v4536 = vpow.pop %v4535
  %v4537 = vmul.f32 %v4348, 1.442695
  %v4538 = vpow.pop %v4537
  %v4539 = vmul.f32 %v4349, 1.442695
  %v4540 = vpow.pop %v4539
  %v4541 = vmul.f32 %v4350, 1.442695
  %v4542 = vpow.pop %v4541
  %v4543 = vmul.f32 %v4351, 1.442695
  %v4544 = vpow.pop %v4543
  %v4545 = vmul.f32 %v4352, 1.442695
  %v4546 = vpow.pop %v4545
  %v4547 = vmul.f32 %v4353, 1.442695
  %v4548 = vpow.pop %v4547
  %v4549 = vmul.f32 %v4354, 1.442695
  %v4550 = vpow.pop %v4549
  %v4551 = vmul.f32 %v4355, 1.442695
  %v4552 = vpow.pop %v4551
  %v4553 = vmul.f32 %v4356, 1.442695
  %v4554 = vpow.pop %v4553
  %v4555 = vmul.f32 %v4357, 1.442695
  %v4556 = vpow.pop %v4555
  %v4557 = vmul.f32 %v4358, 1.442695
  %v4558 = vpow.pop %v4557
  %v4559 = vmul.f32 %v4359, 1.442695
  %v4560 = vpow.pop %v4559
  %v4561 = vmul.f32 %v4360, 1.442695
  %v4562 = vpow.pop %v4561
  %v4563 = vmul.f32 %v4361, 1.442695
  %v4564 = vpow.pop %v4563
  %v4565 = vmul.f32 %v4362, 1.442695
  %v4566 = vpow.pop %v4565
  %v4567 = vmul.f32 %v4363, 1.442695
  %v4568 = vpow.pop %v4567
  %v4569 = vmul.f32 %v4364, 1.442695
  %v4570 = vpow.pop %v4569
  %v4571 = vmul.f32 %v4365, 1.442695
  %v4572 = vpow.pop %v4571
  %v4573 = vmul.f32 %v4366, 1.442695
  %v4574 = vpow.pop %v4573
  %v4575 = vmul.f32 %v4367, 1.442695
  %v4576 = vpow.pop %v4575
  %v4577 = vmul.f32 %v4368, 1.442695
  %v4578 = vpow.pop %v4577
  %v4579 = vmul.f32 %v4369, 1.442695
  %v4580 = vpow.pop %v4579
  %v4581 = vmul.f32 %v4370, 1.442695
  %v4582 = vpow.pop %v4581
  %v4583 = vmul.f32 %v4371, 1.442695
  %v4584 = vpow.pop %v4583
  %v4585 = vmul.f32 %v4372, 1.442695
  %v4586 = vpow.pop %v4585
  %v4587 = vmul.f32 %v4373, 1.442695
  %v4588 = vpow.pop %v4587
  %v4589 = vmul.f32 %v4374, 1.442695
  %v4590 = vpow.pop %v4589
  %v4591 = vmul.f32 %v4375, 1.442695
  %v4592 = vpow.pop %v4591
  %v4593 = vmul.f32 %v4376, 1.442695
  %v4594 = vpow.pop %v4593
  %v4595 = vmul.f32 %v4377, 1.442695
  %v4596 = vpow.pop %v4595
  %v4597 = vmul.f32 %v4378, 1.442695
  %v4598 = vpow.pop %v4597
  %v4599 = vmul.f32 %v4379, 1.442695
  %v4600 = vpow.pop %v4599
  %v4601 = vmul.f32 %v4380, 1.442695
  %v4602 = vpow.pop %v4601
  %v4603 = vmul.f32 %v4381, 1.442695
  %v4604 = vpow.pop %v4603
  %v4605 = vmul.f32 %v4382, 1.442695
  %v4606 = vpow.pop %v4605
  %v4607 = vmul.f32 %v4383, 1.442695
  %v4608 = vpow.pop %v4607
  %v4609 = vmul.f32 %v4384, 1.442695
  %v4610 = vpow.pop %v4609
  %v4611 = vmul.f32 %v4385, 1.442695
  %v4612 = vpow.pop %v4611
  %v4613 = vmul.f32 %v4386, 1.442695
  %v4614 = vpow.pop %v4613
  %v4615 = vmul.f32 %v4387, 1.442695
  %v4616 = vpow.pop %v4615
  %v4617 = vmul.f32 %v4388, 1.442695
  %v4618 = vpow.pop %v4617
  %v4619 = vmul.f32 %v4389, 1.442695
  %v4620 = vpow.pop %v4619
  %v4621 = vmul.f32 %v4390, 1.442695
  %v4622 = vpow.pop %v4621
  %v4623 = vmul.f32 %v4391, 1.442695
  %v4624 = vpow.pop %v4623
  %v4625 = vmul.f32 %v4392, 1.442695
  %v4626 = vpow.pop %v4625
  %v4627 = vmul.f32 %v4393, 1.442695
  %v4628 = vpow.pop %v4627
  %v4629 = vmul.f32 %v4394, 1.442695
  %v4630 = vpow.pop %v4629
  %v4631 = vmul.f32 %v4395, 1.442695
  %v4632 = vpow.pop %v4631
  %v4633 = vmul.f32 %v4396, 1.442695
  %v4634 = vpow.pop %v4633
  %v4635 = vmul.f32 %v4397, 1.442695
  %v4636 = vpow.pop %v4635
  %v4637 = vmul.f32 %v4398, 1.442695
  %v4638 = vpow.pop %v4637
  %v4639 = vmul.f32 %v4399, 1.442695
  %v4640 = vpow.pop %v4639
  %v4641 = vmul.f32 %v4400, 1.442695
  %v4642 = vpow.pop %v4641
  %v4643 = vmul.f32 %v4401, 1.442695
  %v4644 = vpow.pop %v4643
  %v4645 = vmul.f32 %v4402, 1.442695
  %v4646 = vpow.pop %v4645
  %v4647 = vmul.f32 %v4403, 1.442695
  %v4648 = vpow.pop %v4647
  %v4649 = vmul.f32 %v4404, 1.442695
  %v4650 = vpow.pop %v4649
  %v4651 = vmul.f32 %v4405, 1.442695
  %v4652 = vpow.pop %v4651
  %v4653 = vmul.f32 %v4406, 1.442695
  %v4654 = vpow.pop %v4653
  %v4655 = vmul.f32 %v4407, 1.442695
  %v4656 = vpow.pop %v4655
  %v4657 = vmul.f32 %v4408, 1.442695
  %v4658 = vpow.pop %v4657
  %v4659 = vmul.f32 %v4409, 1.442695
  %v4660 = vpow.pop %v4659
  %v4661 = vmul.f32 %v4410, 1.442695
  %v4662 = vpow.pop %v4661
  %v4663 = vmul.f32 %v4411, 1.442695
  %v4664 = vpow.pop %v4663
  %v4665 = vmul.f32 %v4412, 1.442695
  %v4666 = vpow.pop %v4665
  %v4667 = vmul.f32 %v4413, 1.442695
  %v4668 = vpow.pop %v4667
  %v4669 = vmul.f32 %v4414, 1.442695
  %v4670 = vpow.pop %v4669
  %v4671 = vmul.f32 %v4415, 1.442695
  %v4672 = vpow.pop %v4671
  %v4673 = vmul.f32 %v4416, 1.442695
  %v4674 = vpow.pop %v4673
  %v4675 = vmul.f32 %v4417, 1.442695
  %v4676 = vpow.pop %v4675
  %v4677 = vmul.f32 %v4418, 1.442695
  %v4678 = vpow.pop %v4677
  %v4679 = vmul.f32 %v4419, 1.442695
  %v4680 = vpow.pop %v4679
  %v4681 = vmul.f32 %v4420, 1.442695
  %v4682 = vpow.pop %v4681
  %v4683 = vmul.f32 %v4421, 1.442695
  %v4684 = vpow.pop %v4683
  %v4685 = vmul.f32 %v4422, 1.442695
  %v4686 = vpow.pop %v4685
  %v4687 = vmul.f32 %v4423, 1.442695
  %v4688 = vpow.pop %v4687
  %v4689 = vmul.f32 %v4424, 1.442695
  %v4690 = vpow.pop %v4689
  %v4691 = vmul.f32 %v4425, 1.442695
  %v4692 = vpow.pop %v4691
  %v4693 = vmul.f32 %v4426, 1.442695
  %v4694 = vpow.pop %v4693
  %v4695 = vmul.f32 %v4427, 1.442695
  %v4696 = vpow.pop %v4695
  %v4697 = vmul.f32 %v4428, 1.442695
  %v4698 = vpow.pop %v4697
  %v4699 = vmul.f32 %v4429, 1.442695
  %v4700 = vpow.pop %v4699
  %v4701 = vmul.f32 %v4430, 1.442695
  %v4702 = vpow.pop %v4701
  %v4703 = vmul.f32 %v4431, 1.442695
  %v4704 = vpow.pop %v4703
  %v4705 = vmul.f32 %v4432, 1.442695
  %v4706 = vpow.pop %v4705
  %v4707 = vmul.f32 %v4433, 1.442695
  %v4708 = vpow.pop %v4707
  %v4709 = vmul.f32 %v4434, 1.442695
  %v4710 = vpow.pop %v4709
  %v4711 = vmul.f32 %v4435, 1.442695
  %v4712 = vpow.pop %v4711
  %v4713 = vmul.f32 %v4436, 1.442695
  %v4714 = vpow.pop %v4713
  %v4715 = vmul.f32 %v4437, 1.442695
  %v4716 = vpow.pop %v4715
  %v4717 = vmul.f32 %v4438, 1.442695
  %v4718 = vpow.pop %v4717
  %v4719 = vmul.f32 %v4439, 1.442695
  %v4720 = vpow.pop %v4719
  %v4721 = vmul.f32 %v4440, 1.442695
  %v4722 = vpow.pop %v4721
  %v4723 = vmul.f32 %v4441, 1.442695
  %v4724 = vpow.pop %v4723
  %v4725 = vmul.f32 %v4442, 1.442695
  %v4726 = vpow.pop %v4725
  %v4727 = vmul.f32 %v4443, 1.442695
  %v4728 = vpow.pop %v4727
  %v4729 = vmul.f32 %v4444, 1.442695
  %v4730 = vpow.pop %v4729
  %v4731 = vmul.f32 %v4445, 1.442695
  %v4732 = vpow.pop %v4731
  %v4733 = vmul.f32 %v4446, 1.442695
  %v4734 = vpow.pop %v4733
  %v4735 = vsel %vm4030, %v4448, 0.0
  %v4736 = vsel %vm4030, %v4480, 0.0
  %v4737 = vadd.f32 %v4735, %v4736
  %v4738 = vsel %vm4030, %v4512, 0.0
  %v4739 = vadd.f32 %v4737, %v4738
  %v4740 = vsel %vm4030, %v4544, 0.0
  %v4741 = vadd.f32 %v4739, %v4740
  %v4742 = vsel %vm4030, %v4576, 0.0
  %v4743 = vadd.f32 %v4741, %v4742
  %v4744 = vsel %vm4030, %v4608, 0.0
  %v4745 = vadd.f32 %v4743, %v4744
  %v4746 = vsel %vm4030, %v4640, 0.0
  %v4747 = vadd.f32 %v4745, %v4746
  %v4748 = vsel %vm4030, %v4672, 0.0
  %v4749 = vadd.f32 %v4747, %v4748
  %v4750 = vsel %vm4030, %v4704, 0.0
  %v4751 = vadd.f32 %v4749, %v4750
  %v4752 = vsel %vm4030, %v4450, 0.0
  %v4753 = vsel %vm4030, %v4482, 0.0
  %v4754 = vadd.f32 %v4752, %v4753
  %v4755 = vsel %vm4030, %v4514, 0.0
  %v4756 = vadd.f32 %v4754, %v4755
  %v4757 = vsel %vm4030, %v4546, 0.0
  %v4758 = vadd.f32 %v4756, %v4757
  %v4759 = vsel %vm4030, %v4578, 0.0
  %v4760 = vadd.f32 %v4758, %v4759
  %v4761 = vsel %vm4030, %v4610, 0.0
  %v4762 = vadd.f32 %v4760, %v4761
  %v4763 = vsel %vm4030, %v4642, 0.0
  %v4764 = vadd.f32 %v4762, %v4763
  %v4765 = vsel %vm4030, %v4674, 0.0
  %v4766 = vadd.f32 %v4764, %v4765
  %v4767 = vsel %vm4030, %v4706, 0.0
  %v4768 = vadd.f32 %v4766, %v4767
  %v4769 = vsel %vm4030, %v4452, 0.0
  %v4770 = vsel %vm4030, %v4484, 0.0
  %v4771 = vadd.f32 %v4769, %v4770
  %v4772 = vsel %vm4030, %v4516, 0.0
  %v4773 = vadd.f32 %v4771, %v4772
  %v4774 = vsel %vm4030, %v4548, 0.0
  %v4775 = vadd.f32 %v4773, %v4774
  %v4776 = vsel %vm4030, %v4580, 0.0
  %v4777 = vadd.f32 %v4775, %v4776
  %v4778 = vsel %vm4030, %v4612, 0.0
  %v4779 = vadd.f32 %v4777, %v4778
  %v4780 = vsel %vm4030, %v4644, 0.0
  %v4781 = vadd.f32 %v4779, %v4780
  %v4782 = vsel %vm4030, %v4676, 0.0
  %v4783 = vadd.f32 %v4781, %v4782
  %v4784 = vsel %vm4030, %v4708, 0.0
  %v4785 = vadd.f32 %v4783, %v4784
  %v4786 = vsel %vm4030, %v4454, 0.0
  %v4787 = vsel %vm4030, %v4486, 0.0
  %v4788 = vadd.f32 %v4786, %v4787
  %v4789 = vsel %vm4030, %v4518, 0.0
  %v4790 = vadd.f32 %v4788, %v4789
  %v4791 = vsel %vm4030, %v4550, 0.0
  %v4792 = vadd.f32 %v4790, %v4791
  %v4793 = vsel %vm4030, %v4582, 0.0
  %v4794 = vadd.f32 %v4792, %v4793
  %v4795 = vsel %vm4030, %v4614, 0.0
  %v4796 = vadd.f32 %v4794, %v4795
  %v4797 = vsel %vm4030, %v4646, 0.0
  %v4798 = vadd.f32 %v4796, %v4797
  %v4799 = vsel %vm4030, %v4678, 0.0
  %v4800 = vadd.f32 %v4798, %v4799
  %v4801 = vsel %vm4030, %v4710, 0.0
  %v4802 = vadd.f32 %v4800, %v4801
  %v4803 = vsel %vm4030, %v4456, 0.0
  %v4804 = vsel %vm4030, %v4488, 0.0
  %v4805 = vadd.f32 %v4803, %v4804
  %v4806 = vsel %vm4030, %v4520, 0.0
  %v4807 = vadd.f32 %v4805, %v4806
  %v4808 = vsel %vm4030, %v4552, 0.0
  %v4809 = vadd.f32 %v4807, %v4808
  %v4810 = vsel %vm4030, %v4584, 0.0
  %v4811 = vadd.f32 %v4809, %v4810
  %v4812 = vsel %vm4030, %v4616, 0.0
  %v4813 = vadd.f32 %v4811, %v4812
  %v4814 = vsel %vm4030, %v4648, 0.0
  %v4815 = vadd.f32 %v4813, %v4814
  %v4816 = vsel %vm4030, %v4680, 0.0
  %v4817 = vadd.f32 %v4815, %v4816
  %v4818 = vsel %vm4030, %v4712, 0.0
  %v4819 = vadd.f32 %v4817, %v4818
  %v4820 = vsel %vm4030, %v4458, 0.0
  %v4821 = vsel %vm4030, %v4490, 0.0
  %v4822 = vadd.f32 %v4820, %v4821
  %v4823 = vsel %vm4030, %v4522, 0.0
  %v4824 = vadd.f32 %v4822, %v4823
  %v4825 = vsel %vm4030, %v4554, 0.0
  %v4826 = vadd.f32 %v4824, %v4825
  %v4827 = vsel %vm4030, %v4586, 0.0
  %v4828 = vadd.f32 %v4826, %v4827
  %v4829 = vsel %vm4030, %v4618, 0.0
  %v4830 = vadd.f32 %v4828, %v4829
  %v4831 = vsel %vm4030, %v4650, 0.0
  %v4832 = vadd.f32 %v4830, %v4831
  %v4833 = vsel %vm4030, %v4682, 0.0
  %v4834 = vadd.f32 %v4832, %v4833
  %v4835 = vsel %vm4030, %v4714, 0.0
  %v4836 = vadd.f32 %v4834, %v4835
  %v4837 = vsel %vm4030, %v4460, 0.0
  %v4838 = vsel %vm4030, %v4492, 0.0
  %v4839 = vadd.f32 %v4837, %v4838
  %v4840 = vsel %vm4030, %v4524, 0.0
  %v4841 = vadd.f32 %v4839, %v4840
  %v4842 = vsel %vm4030, %v4556, 0.0
  %v4843 = vadd.f32 %v4841, %v4842
  %v4844 = vsel %vm4030, %v4588, 0.0
  %v4845 = vadd.f32 %v4843, %v4844
  %v4846 = vsel %vm4030, %v4620, 0.0
  %v4847 = vadd.f32 %v4845, %v4846
  %v4848 = vsel %vm4030, %v4652, 0.0
  %v4849 = vadd.f32 %v4847, %v4848
  %v4850 = vsel %vm4030, %v4684, 0.0
  %v4851 = vadd.f32 %v4849, %v4850
  %v4852 = vsel %vm4030, %v4716, 0.0
  %v4853 = vadd.f32 %v4851, %v4852
  %v4854 = vsel %vm4030, %v4462, 0.0
  %v4855 = vsel %vm4030, %v4494, 0.0
  %v4856 = vadd.f32 %v4854, %v4855
  %v4857 = vsel %vm4030, %v4526, 0.0
  %v4858 = vadd.f32 %v4856, %v4857
  %v4859 = vsel %vm4030, %v4558, 0.0
  %v4860 = vadd.f32 %v4858, %v4859
  %v4861 = vsel %vm4030, %v4590, 0.0
  %v4862 = vadd.f32 %v4860, %v4861
  %v4863 = vsel %vm4030, %v4622, 0.0
  %v4864 = vadd.f32 %v4862, %v4863
  %v4865 = vsel %vm4030, %v4654, 0.0
  %v4866 = vadd.f32 %v4864, %v4865
  %v4867 = vsel %vm4030, %v4686, 0.0
  %v4868 = vadd.f32 %v4866, %v4867
  %v4869 = vsel %vm4030, %v4718, 0.0
  %v4870 = vadd.f32 %v4868, %v4869
  %v4871 = vsel %vm4030, %v4464, 0.0
  %v4872 = vsel %vm4030, %v4496, 0.0
  %v4873 = vadd.f32 %v4871, %v4872
  %v4874 = vsel %vm4030, %v4528, 0.0
  %v4875 = vadd.f32 %v4873, %v4874
  %v4876 = vsel %vm4030, %v4560, 0.0
  %v4877 = vadd.f32 %v4875, %v4876
  %v4878 = vsel %vm4030, %v4592, 0.0
  %v4879 = vadd.f32 %v4877, %v4878
  %v4880 = vsel %vm4030, %v4624, 0.0
  %v4881 = vadd.f32 %v4879, %v4880
  %v4882 = vsel %vm4030, %v4656, 0.0
  %v4883 = vadd.f32 %v4881, %v4882
  %v4884 = vsel %vm4030, %v4688, 0.0
  %v4885 = vadd.f32 %v4883, %v4884
  %v4886 = vsel %vm4030, %v4720, 0.0
  %v4887 = vadd.f32 %v4885, %v4886
  %v4888 = vsel %vm4030, %v4466, 0.0
  %v4889 = vsel %vm4030, %v4498, 0.0
  %v4890 = vadd.f32 %v4888, %v4889
  %v4891 = vsel %vm4030, %v4530, 0.0
  %v4892 = vadd.f32 %v4890, %v4891
  %v4893 = vsel %vm4030, %v4562, 0.0
  %v4894 = vadd.f32 %v4892, %v4893
  %v4895 = vsel %vm4030, %v4594, 0.0
  %v4896 = vadd.f32 %v4894, %v4895
  %v4897 = vsel %vm4030, %v4626, 0.0
  %v4898 = vadd.f32 %v4896, %v4897
  %v4899 = vsel %vm4030, %v4658, 0.0
  %v4900 = vadd.f32 %v4898, %v4899
  %v4901 = vsel %vm4030, %v4690, 0.0
  %v4902 = vadd.f32 %v4900, %v4901
  %v4903 = vsel %vm4030, %v4722, 0.0
  %v4904 = vadd.f32 %v4902, %v4903
  %v4905 = vsel %vm4030, %v4468, 0.0
  %v4906 = vsel %vm4030, %v4500, 0.0
  %v4907 = vadd.f32 %v4905, %v4906
  %v4908 = vsel %vm4030, %v4532, 0.0
  %v4909 = vadd.f32 %v4907, %v4908
  %v4910 = vsel %vm4030, %v4564, 0.0
  %v4911 = vadd.f32 %v4909, %v4910
  %v4912 = vsel %vm4030, %v4596, 0.0
  %v4913 = vadd.f32 %v4911, %v4912
  %v4914 = vsel %vm4030, %v4628, 0.0
  %v4915 = vadd.f32 %v4913, %v4914
  %v4916 = vsel %vm4030, %v4660, 0.0
  %v4917 = vadd.f32 %v4915, %v4916
  %v4918 = vsel %vm4030, %v4692, 0.0
  %v4919 = vadd.f32 %v4917, %v4918
  %v4920 = vsel %vm4030, %v4724, 0.0
  %v4921 = vadd.f32 %v4919, %v4920
  %v4922 = vsel %vm4030, %v4470, 0.0
  %v4923 = vsel %vm4030, %v4502, 0.0
  %v4924 = vadd.f32 %v4922, %v4923
  %v4925 = vsel %vm4030, %v4534, 0.0
  %v4926 = vadd.f32 %v4924, %v4925
  %v4927 = vsel %vm4030, %v4566, 0.0
  %v4928 = vadd.f32 %v4926, %v4927
  %v4929 = vsel %vm4030, %v4598, 0.0
  %v4930 = vadd.f32 %v4928, %v4929
  %v4931 = vsel %vm4030, %v4630, 0.0
  %v4932 = vadd.f32 %v4930, %v4931
  %v4933 = vsel %vm4030, %v4662, 0.0
  %v4934 = vadd.f32 %v4932, %v4933
  %v4935 = vsel %vm4030, %v4694, 0.0
  %v4936 = vadd.f32 %v4934, %v4935
  %v4937 = vsel %vm4030, %v4726, 0.0
  %v4938 = vadd.f32 %v4936, %v4937
  %v4939 = vsel %vm4030, %v4472, 0.0
  %v4940 = vsel %vm4030, %v4504, 0.0
  %v4941 = vadd.f32 %v4939, %v4940
  %v4942 = vsel %vm4030, %v4536, 0.0
  %v4943 = vadd.f32 %v4941, %v4942
  %v4944 = vsel %vm4030, %v4568, 0.0
  %v4945 = vadd.f32 %v4943, %v4944
  %v4946 = vsel %vm4030, %v4600, 0.0
  %v4947 = vadd.f32 %v4945, %v4946
  %v4948 = vsel %vm4030, %v4632, 0.0
  %v4949 = vadd.f32 %v4947, %v4948
  %v4950 = vsel %vm4030, %v4664, 0.0
  %v4951 = vadd.f32 %v4949, %v4950
  %v4952 = vsel %vm4030, %v4696, 0.0
  %v4953 = vadd.f32 %v4951, %v4952
  %v4954 = vsel %vm4030, %v4728, 0.0
  %v4955 = vadd.f32 %v4953, %v4954
  %v4956 = vsel %vm4030, %v4474, 0.0
  %v4957 = vsel %vm4030, %v4506, 0.0
  %v4958 = vadd.f32 %v4956, %v4957
  %v4959 = vsel %vm4030, %v4538, 0.0
  %v4960 = vadd.f32 %v4958, %v4959
  %v4961 = vsel %vm4030, %v4570, 0.0
  %v4962 = vadd.f32 %v4960, %v4961
  %v4963 = vsel %vm4030, %v4602, 0.0
  %v4964 = vadd.f32 %v4962, %v4963
  %v4965 = vsel %vm4030, %v4634, 0.0
  %v4966 = vadd.f32 %v4964, %v4965
  %v4967 = vsel %vm4030, %v4666, 0.0
  %v4968 = vadd.f32 %v4966, %v4967
  %v4969 = vsel %vm4030, %v4698, 0.0
  %v4970 = vadd.f32 %v4968, %v4969
  %v4971 = vsel %vm4030, %v4730, 0.0
  %v4972 = vadd.f32 %v4970, %v4971
  %v4973 = vsel %vm4030, %v4476, 0.0
  %v4974 = vsel %vm4030, %v4508, 0.0
  %v4975 = vadd.f32 %v4973, %v4974
  %v4976 = vsel %vm4030, %v4540, 0.0
  %v4977 = vadd.f32 %v4975, %v4976
  %v4978 = vsel %vm4030, %v4572, 0.0
  %v4979 = vadd.f32 %v4977, %v4978
  %v4980 = vsel %vm4030, %v4604, 0.0
  %v4981 = vadd.f32 %v4979, %v4980
  %v4982 = vsel %vm4030, %v4636, 0.0
  %v4983 = vadd.f32 %v4981, %v4982
  %v4984 = vsel %vm4030, %v4668, 0.0
  %v4985 = vadd.f32 %v4983, %v4984
  %v4986 = vsel %vm4030, %v4700, 0.0
  %v4987 = vadd.f32 %v4985, %v4986
  %v4988 = vsel %vm4030, %v4732, 0.0
  %v4989 = vadd.f32 %v4987, %v4988
  %v4990 = vsel %vm4030, %v4478, 0.0
  %v4991 = vsel %vm4030, %v4510, 0.0
  %v4992 = vadd.f32 %v4990, %v4991
  %v4993 = vsel %vm4030, %v4542, 0.0
  %v4994 = vadd.f32 %v4992, %v4993
  %v4995 = vsel %vm4030, %v4574, 0.0
  %v4996 = vadd.f32 %v4994, %v4995
  %v4997 = vsel %vm4030, %v4606, 0.0
  %v4998 = vadd.f32 %v4996, %v4997
  %v4999 = vsel %vm4030, %v4638, 0.0
  %v5000 = vadd.f32 %v4998, %v4999
  %v5001 = vsel %vm4030, %v4670, 0.0
  %v5002 = vadd.f32 %v5000, %v5001
  %v5003 = vsel %vm4030, %v4702, 0.0
  %v5004 = vadd.f32 %v5002, %v5003
  %v5005 = vsel %vm4030, %v4734, 0.0
  %v5006 = vadd.f32 %v5004, %v5005
  %v5007 = vrcp.pop %v4751
  %v5008 = vrcp.pop %v4768
  %v5009 = vrcp.pop %v4785
  %v5010 = vrcp.pop %v4802
  %v5011 = vrcp.pop %v4819
  %v5012 = vrcp.pop %v4836
  %v5013 = vrcp.pop %v4853
  %v5014 = vrcp.pop %v4870
  %v5015 = vrcp.pop %v4887
  %v5016 = vrcp.pop %v4904
  %v5017 = vrcp.pop %v4921
  %v5018 = vrcp.pop %v4938
  %v5019 = vrcp.pop %v4955
  %v5020 = vrcp.pop %v4972
  %v5021 = vrcp.pop %v4989
  %v5022 = vrcp.pop %v5006
  %v5023 = vmul.f32 %v4448, %v5007
  %v5024 = vmul.f32 %v4450, %v5008
  %v5025 = vmul.f32 %v4452, %v5009
  %v5026 = vmul.f32 %v4454, %v5010
  %v5027 = vmul.f32 %v4456, %v5011
  %v5028 = vmul.f32 %v4458, %v5012
  %v5029 = vmul.f32 %v4460, %v5013
  %v5030 = vmul.f32 %v4462, %v5014
  %v5031 = vmul.f32 %v4464, %v5015
  %v5032 = vmul.f32 %v4466, %v5016
  %v5033 = vmul.f32 %v4468, %v5017
  %v5034 = vmul.f32 %v4470, %v5018
  %v5035 = vmul.f32 %v4472, %v5019
  %v5036 = vmul.f32 %v4474, %v5020
  %v5037 = vmul.f32 %v4476, %v5021
  %v5038 = vmul.f32 %v4478, %v5022
  %v5039 = vmul.f32 %v4480, %v5007
  %v5040 = vmul.f32 %v4482, %v5008
  %v5041 = vmul.f32 %v4484, %v5009
  %v5042 = vmul.f32 %v4486, %v5010
  %v5043 = vmul.f32 %v4488, %v5011
  %v5044 = vmul.f32 %v4490, %v5012
  %v5045 = vmul.f32 %v4492, %v5013
  %v5046 = vmul.f32 %v4494, %v5014
  %v5047 = vmul.f32 %v4496, %v5015
  %v5048 = vmul.f32 %v4498, %v5016
  %v5049 = vmul.f32 %v4500, %v5017
  %v5050 = vmul.f32 %v4502, %v5018
  %v5051 = vmul.f32 %v4504, %v5019
  %v5052 = vmul.f32 %v4506, %v5020
  %v5053 = vmul.f32 %v4508, %v5021
  %v5054 = vmul.f32 %v4510, %v5022
  %v5055 = vmul.f32 %v4512, %v5007
  %v5056 = vmul.f32 %v4514, %v5008
  %v5057 = vmul.f32 %v4516, %v5009
  %v5058 = vmul.f32 %v4518, %v5010
  %v5059 = vmul.f32 %v4520, %v5011
  %v5060 = vmul.f32 %v4522, %v5012
  %v5061 = vmul.f32 %v4524, %v5013
  %v5062 = vmul.f32 %v4526, %v5014
  %v5063 = vmul.f32 %v4528, %v5015
  %v5064 = vmul.f32 %v4530, %v5016
  %v5065 = vmul.f32 %v4532, %v5017
  %v5066 = vmul.f32 %v4534, %v5018
  %v5067 = vmul.f32 %v4536, %v5019
  %v5068 = vmul.f32 %v4538, %v5020
  %v5069 = vmul.f32 %v4540, %v5021
  %v5070 = vmul.f32 %v4542, %v5022
  %v5071 = vmul.f32 %v4544, %v5007
  %v5072 = vmul.f32 %v4546, %v5008
  %v5073 = vmul.f32 %v4548, %v5009
  %v5074 = vmul.f32 %v4550, %v5010
  %v5075 = vmul.f32 %v4552, %v5011
  %v5076 = vmul.f32 %v4554, %v5012
  %v5077 = vmul.f32 %v4556, %v5013
  %v5078 = vmul.f32 %v4558, %v5014
  %v5079 = vmul.f32 %v4560, %v5015
  %v5080 = vmul.f32 %v4562, %v5016
  %v5081 = vmul.f32 %v4564, %v5017
  %v5082 = vmul.f32 %v4566, %v5018
  %v5083 = vmul.f32 %v4568, %v5019
  %v5084 = vmul.f32 %v4570, %v5020
  %v5085 = vmul.f32 %v4572, %v5021
  %v5086 = vmul.f32 %v4574, %v5022
  %v5087 = vmul.f32 %v4576, %v5007
  %v5088 = vmul.f32 %v4578, %v5008
  %v5089 = vmul.f32 %v4580, %v5009
  %v5090 = vmul.f32 %v4582, %v5010
  %v5091 = vmul.f32 %v4584, %v5011
  %v5092 = vmul.f32 %v4586, %v5012
  %v5093 = vmul.f32 %v4588, %v5013
  %v5094 = vmul.f32 %v4590, %v5014
  %v5095 = vmul.f32 %v4592, %v5015
  %v5096 = vmul.f32 %v4594, %v5016
  %v5097 = vmul.f32 %v4596, %v5017
  %v5098 = vmul.f32 %v4598, %v5018
  %v5099 = vmul.f32 %v4600, %v5019
  %v5100 = vmul.f32 %v4602, %v5020
  %v5101 = vmul.f32 %v4604, %v5021
  %v5102 = vmul.f32 %v4606, %v5022
  %v5103 = vmul.f32 %v4608, %v5007
  %v5104 = vmul.f32 %v4610, %v5008
  %v5105 = vmul.f32 %v4612, %v5009
  %v5106 = vmul.f32 %v4614, %v5010
  %v5107 = vmul.f32 %v4616, %v5011
  %v5108 = vmul.f32 %v4618, %v5012
  %v5109 = vmul.f32 %v4620, %v5013
  %v5110 = vmul.f32 %v4622, %v5014
  %v5111 = vmul.f32 %v4624, %v5015
  %v5112 = vmul.f32 %v4626, %v5016
  %v5113 = vmul.f32 %v4628, %v5017
  %v5114 = vmul.f32 %v4630, %v5018
  %v5115 = vmul.f32 %v4632, %v5019
  %v5116 = vmul.f32 %v4634, %v5020
  %v5117 = vmul.f32 %v4636, %v5021
  %v5118 = vmul.f32 %v4638, %v5022
  %v5119 = vmul.f32 %v4640, %v5007
  %v5120 = vmul.f32 %v4642, %v5008
  %v5121 = vmul.f32 %v4644, %v5009
  %v5122 = vmul.f32 %v4646, %v5010
  %v5123 = vmul.f32 %v4648, %v5011
  %v5124 = vmul.f32 %v4650, %v5012
  %v5125 = vmul.f32 %v4652, %v5013
  %v5126 = vmul.f32 %v4654, %v5014
  %v5127 = vmul.f32 %v4656, %v5015
  %v5128 = vmul.f32 %v4658, %v5016
  %v5129 = vmul.f32 %v4660, %v5017
  %v5130 = vmul.f32 %v4662, %v5018
  %v5131 = vmul.f32 %v4664, %v5019
  %v5132 = vmul.f32 %v4666, %v5020
  %v5133 = vmul.f32 %v4668, %v5021
  %v5134 = vmul.f32 %v4670, %v5022
  %v5135 = vmul.f32 %v4672, %v5007
  %v5136 = vmul.f32 %v4674, %v5008
  %v5137 = vmul.f32 %v4676, %v5009
  %v5138 = vmul.f32 %v4678, %v5010
  %v5139 = vmul.f32 %v4680, %v5011
  %v5140 = vmul.f32 %v4682, %v5012
  %v5141 = vmul.f32 %v4684, %v5013
  %v5142 = vmul.f32 %v4686, %v5014
  %v5143 = vmul.f32 %v4688, %v5015
  %v5144 = vmul.f32 %v4690, %v5016
  %v5145 = vmul.f32 %v4692, %v5017
  %v5146 = vmul.f32 %v4694, %v5018
  %v5147 = vmul.f32 %v4696, %v5019
  %v5148 = vmul.f32 %v4698, %v5020
  %v5149 = vmul.f32 %v4700, %v5021
  %v5150 = vmul.f32 %v4702, %v5022
  %v5151 = vmul.f32 %v4704, %v5007
  %v5152 = vmul.f32 %v4706, %v5008
  %v5153 = vmul.f32 %v4708, %v5009
  %v5154 = vmul.f32 %v4710, %v5010
  %v5155 = vmul.f32 %v4712, %v5011
  %v5156 = vmul.f32 %v4714, %v5012
  %v5157 = vmul.f32 %v4716, %v5013
  %v5158 = vmul.f32 %v4718, %v5014
  %v5159 = vmul.f32 %v4720, %v5015
  %v5160 = vmul.f32 %v4722, %v5016
  %v5161 = vmul.f32 %v4724, %v5017
  %v5162 = vmul.f32 %v4726, %v5018
  %v5163 = vmul.f32 %v4728, %v5019
  %v5164 = vmul.f32 %v4730, %v5020
  %v5165 = vmul.f32 %v4732, %v5021
  %v5166 = vmul.f32 %v4734, %v5022
  %v5167 = vld [vmem:[%s16] sm:$0x3]
  %v5169 = vsel %vm4030, %v5023, 0
  %v5172 = vsel %vm4030, %v5024, 0
  %v5175 = vsel %vm4030, %v5025, 0
  %v5178 = vsel %vm4030, %v5026, 0
  %v5181 = vsel %vm4030, %v5027, 0
  %v5184 = vsel %vm4030, %v5028, 0
  %v5187 = vsel %vm4030, %v5029, 0
  %v5190 = vsel %vm4030, %v5030, 0
  %v5193 = vsel %vm4030, %v5031, 0
  %v5196 = vsel %vm4030, %v5032, 0
  %v5199 = vsel %vm4030, %v5033, 0
  %v5202 = vsel %vm4030, %v5034, 0
  %v5205 = vsel %vm4030, %v5035, 0
  %v5208 = vsel %vm4030, %v5036, 0
  %v5211 = vsel %vm4030, %v5037, 0
  %v5214 = vsel %vm4030, %v5038, 0
  %v5217 = vsel %vm4030, %v5039, 0
  %v5220 = vsel %vm4030, %v5040, 0
  %v5223 = vsel %vm4030, %v5041, 0
  %v5226 = vsel %vm4030, %v5042, 0
  %v5229 = vsel %vm4030, %v5043, 0
  %v5232 = vsel %vm4030, %v5044, 0
  %v5235 = vsel %vm4030, %v5045, 0
  %v5238 = vsel %vm4030, %v5046, 0
  %v5241 = vsel %vm4030, %v5047, 0
  %v5244 = vsel %vm4030, %v5048, 0
  %v5247 = vsel %vm4030, %v5049, 0
  %v5250 = vsel %vm4030, %v5050, 0
  %v5253 = vsel %vm4030, %v5051, 0
  %v5256 = vsel %vm4030, %v5052, 0
  %v5259 = vsel %vm4030, %v5053, 0
  %v5262 = vsel %vm4030, %v5054, 0
  %v5265 = vsel %vm4030, %v5055, 0
  %v5268 = vsel %vm4030, %v5056, 0
  %v5271 = vsel %vm4030, %v5057, 0
  %v5274 = vsel %vm4030, %v5058, 0
  %v5277 = vsel %vm4030, %v5059, 0
  %v5280 = vsel %vm4030, %v5060, 0
  %v5283 = vsel %vm4030, %v5061, 0
  %v5286 = vsel %vm4030, %v5062, 0
  %v5289 = vsel %vm4030, %v5063, 0
  %v5292 = vsel %vm4030, %v5064, 0
  %v5295 = vsel %vm4030, %v5065, 0
  %v5298 = vsel %vm4030, %v5066, 0
  %v5301 = vsel %vm4030, %v5067, 0
  %v5304 = vsel %vm4030, %v5068, 0
  %v5307 = vsel %vm4030, %v5069, 0
  %v5310 = vsel %vm4030, %v5070, 0
  %v5313 = vsel %vm4030, %v5071, 0
  %v5316 = vsel %vm4030, %v5072, 0
  %v5319 = vsel %vm4030, %v5073, 0
  %v5322 = vsel %vm4030, %v5074, 0
  %v5325 = vsel %vm4030, %v5075, 0
  %v5328 = vsel %vm4030, %v5076, 0
  %v5331 = vsel %vm4030, %v5077, 0
  %v5334 = vsel %vm4030, %v5078, 0
  %v5337 = vsel %vm4030, %v5079, 0
  %v5340 = vsel %vm4030, %v5080, 0
  %v5343 = vsel %vm4030, %v5081, 0
  %v5346 = vsel %vm4030, %v5082, 0
  %v5349 = vsel %vm4030, %v5083, 0
  %v5352 = vsel %vm4030, %v5084, 0
  %v5355 = vsel %vm4030, %v5085, 0
  %v5358 = vsel %vm4030, %v5086, 0
  %v5361 = vsel %vm4030, %v5087, 0
  %v5364 = vsel %vm4030, %v5088, 0
  %v5367 = vsel %vm4030, %v5089, 0
  %v5370 = vsel %vm4030, %v5090, 0
  %v5373 = vsel %vm4030, %v5091, 0
  %v5376 = vsel %vm4030, %v5092, 0
  %v5379 = vsel %vm4030, %v5093, 0
  %v5382 = vsel %vm4030, %v5094, 0
  %v5385 = vsel %vm4030, %v5095, 0
  %v5388 = vsel %vm4030, %v5096, 0
  %v5391 = vsel %vm4030, %v5097, 0
  %v5394 = vsel %vm4030, %v5098, 0
  %v5397 = vsel %vm4030, %v5099, 0
  %v5400 = vsel %vm4030, %v5100, 0
  %v5403 = vsel %vm4030, %v5101, 0
  %v5406 = vsel %vm4030, %v5102, 0
  %v5409 = vsel %vm4030, %v5103, 0
  %v5412 = vsel %vm4030, %v5104, 0
  %v5415 = vsel %vm4030, %v5105, 0
  %v5418 = vsel %vm4030, %v5106, 0
  %v5421 = vsel %vm4030, %v5107, 0
  %v5424 = vsel %vm4030, %v5108, 0
  %v5427 = vsel %vm4030, %v5109, 0
  %v5430 = vsel %vm4030, %v5110, 0
  %v5433 = vsel %vm4030, %v5111, 0
  %v5436 = vsel %vm4030, %v5112, 0
  %v5439 = vsel %vm4030, %v5113, 0
  %v5442 = vsel %vm4030, %v5114, 0
  %v5445 = vsel %vm4030, %v5115, 0
  %v5448 = vsel %vm4030, %v5116, 0
  %v5451 = vsel %vm4030, %v5117, 0
  %v5454 = vsel %vm4030, %v5118, 0
  %v5457 = vsel %vm4030, %v5119, 0
  %v5460 = vsel %vm4030, %v5120, 0
  %v5463 = vsel %vm4030, %v5121, 0
  %v5466 = vsel %vm4030, %v5122, 0
  %v5469 = vsel %vm4030, %v5123, 0
  %v5472 = vsel %vm4030, %v5124, 0
  %v5475 = vsel %vm4030, %v5125, 0
  %v5478 = vsel %vm4030, %v5126, 0
  %v5481 = vsel %vm4030, %v5127, 0
  %v5484 = vsel %vm4030, %v5128, 0
  %v5487 = vsel %vm4030, %v5129, 0
  %v5490 = vsel %vm4030, %v5130, 0
  %v5493 = vsel %vm4030, %v5131, 0
  %v5496 = vsel %vm4030, %v5132, 0
  %v5499 = vsel %vm4030, %v5133, 0
  %v5502 = vsel %vm4030, %v5134, 0
  %v5505 = vsel %vm4030, %v5135, 0
  %v5508 = vsel %vm4030, %v5136, 0
  %v5511 = vsel %vm4030, %v5137, 0
  %v5514 = vsel %vm4030, %v5138, 0
  %v5517 = vsel %vm4030, %v5139, 0
  %v5520 = vsel %vm4030, %v5140, 0
  %v5523 = vsel %vm4030, %v5141, 0
  %v5526 = vsel %vm4030, %v5142, 0
  %v5529 = vsel %vm4030, %v5143, 0
  %v5532 = vsel %vm4030, %v5144, 0
  %v5535 = vsel %vm4030, %v5145, 0
  %v5538 = vsel %vm4030, %v5146, 0
  %v5541 = vsel %vm4030, %v5147, 0
  %v5544 = vsel %vm4030, %v5148, 0
  %v5547 = vsel %vm4030, %v5149, 0
  %v5550 = vsel %vm4030, %v5150, 0
  %v5553 = vsel %vm4030, %v5151, 0
  %v5556 = vsel %vm4030, %v5152, 0
  %v5559 = vsel %vm4030, %v5153, 0
  %v5562 = vsel %vm4030, %v5154, 0
  %v5565 = vsel %vm4030, %v5155, 0
  %v5568 = vsel %vm4030, %v5156, 0
  %v5571 = vsel %vm4030, %v5157, 0
  %v5574 = vsel %vm4030, %v5158, 0
  %v5577 = vsel %vm4030, %v5159, 0
  %v5580 = vsel %vm4030, %v5160, 0
  %v5583 = vsel %vm4030, %v5161, 0
  %v5586 = vsel %vm4030, %v5162, 0
  %v5589 = vsel %vm4030, %v5163, 0
  %v5592 = vsel %vm4030, %v5164, 0
  %v5595 = vsel %vm4030, %v5165, 0
  %v5598 = vsel %vm4030, %v5166, 0
  %vm5600 = vcmask 1041408
  %v5602 = vsel %vm5600, %v5167, 0
  %5604 = vmatprep.subr.mxu0 0.0
  %5605 = vmatpush1.msra.mxu0 %v5602
  %5606 = vmatprep.subr.mxu0 0.0
  %5607 = vmatpush1.msra.mxu0 0.0
  %5608 = vmatprep.subr.mxu0 0.0
  %5609 = vmatpush1.msra.mxu0 0.0
  %5610 = vmatprep.subr.mxu0 0.0
  %5611 = vmatpush1.msra.mxu0 0.0
  %5612 = vmatprep.subr.mxu0 0.0
  %5613 = vmatpush1.msra.mxu0 0.0
  %5614 = vmatprep.subr.mxu0 0.0
  %5615 = vmatpush1.msra.mxu0 0.0
  %5616 = vmatprep.subr.mxu0 0.0
  %5617 = vmatpush1.msra.mxu0 0.0
  %5618 = vmatprep.subr.mxu0 0.0
  %5619 = vmatpush1.msra.mxu0 0.0
  %5620 = vmatprep.subr.mxu0 0.0
  %5621 = vmatpush1.msra.mxu0 0.0
  %5622 = vmatprep.subr.mxu0 0.0
  %5623 = vmatpush1.msra.mxu0 0.0
  %5624 = vmatprep.subr.mxu0 0.0
  %5625 = vmatpush1.msra.mxu0 0.0
  %5626 = vmatprep.subr.mxu0 0.0
  %5627 = vmatpush1.msra.mxu0 0.0
  %5628 = vmatprep.subr.mxu0 0.0
  %5629 = vmatpush1.msra.mxu0 0.0
  %5630 = vmatprep.subr.mxu0 0.0
  %5631 = vmatpush1.msra.mxu0 0.0
  %5632 = vmatprep.subr.mxu0 0.0
  %5633 = vmatpush1.msra.mxu0 0.0
  %5634 = vmatprep.subr.mxu0 0.0
  %5635 = vmatpush1.msra.mxu0 0.0
  %5636 = vmatprep.subr.mxu0 0.0
  %5637 = vmatpush1.msra.mxu0 0.0
  %5638 = vmatprep.subr.mxu0 0.0
  %5639 = vmatpush1.msra.mxu0 0.0
  %5640 = vmatprep.subr.mxu0 0.0
  %5641 = vmatpush1.msra.mxu0 0.0
  %5642 = vmatprep.subr.mxu0 0.0
  %5643 = vmatpush1.msra.mxu0 0.0
  %5644 = vmatprep.subr.mxu0 0.0
  %5645 = vmatpush1.msra.mxu0 0.0
  %5646 = vmatprep.subr.mxu0 0.0
  %5647 = vmatpush1.msra.mxu0 0.0
  %5648 = vmatprep.subr.mxu0 0.0
  %5649 = vmatpush1.msra.mxu0 0.0
  %5650 = vmatprep.subr.mxu0 0.0
  %5651 = vmatpush1.msra.mxu0 0.0
  %5652 = vmatprep.subr.mxu0 0.0
  %5653 = vmatpush1.msra.mxu0 0.0
  %5654 = vmatprep.subr.mxu0 0.0
  %5655 = vmatpush1.msra.mxu0 0.0
  %5656 = vmatprep.subr.mxu0 0.0
  %5657 = vmatpush1.msra.mxu0 0.0
  %5658 = vmatprep.subr.mxu0 0.0
  %5659 = vmatpush1.msra.mxu0 0.0
  %5660 = vmatprep.subr.mxu0 0.0
  %5661 = vmatpush1.msra.mxu0 0.0
  %5662 = vmatprep.subr.mxu0 0.0
  %5663 = vmatpush1.msra.mxu0 0.0
  %5664 = vmatprep.subr.mxu0 0.0
  %5665 = vmatpush1.msra.mxu0 0.0
  %5666 = vmatprep.subr.mxu0 0.0
  %5667 = vmatpush1.msra.mxu0 0.0
  %5668 = vmatprep.mubr.f32.mxu0 0.0
  %5669 = vmatmul.mubr.f32.gmra.mrb[0].mxu0 %v5169
  %v5670 = vpop.f32.mrb[0].mxu0
  %v5671 = vadd.f32 0.0, %v5670
  %v5672 = vpop.f32.mrb[0].mxu0
  %5673 = vmatprep.mubr.f32.mxu0 0.0
  %5674 = vmatmul.mubr.f32.gmra.mrb[0].mxu0 %v5172
  %v5675 = vpop.f32.mrb[0].mxu0
  %v5676 = vadd.f32 0.0, %v5675
  %v5677 = vpop.f32.mrb[0].mxu0
  %5678 = vmatprep.mubr.f32.mxu0 0.0
  %5679 = vmatmul.mubr.f32.gmra.mrb[0].mxu0 %v5175
  %v5680 = vpop.f32.mrb[0].mxu0
  %v5681 = vadd.f32 0.0, %v5680
  %v5682 = vpop.f32.mrb[0].mxu0
  %5683 = vmatprep.mubr.f32.mxu0 0.0
  %5684 = vmatmul.mubr.f32.gmra.mrb[0].mxu0 %v5178
  %v5685 = vpop.f32.mrb[0].mxu0
  %v5686 = vadd.f32 0.0, %v5685
  %v5687 = vpop.f32.mrb[0].mxu0
  %5688 = vmatprep.mubr.f32.mxu0 0.0
  %5689 = vmatmul.mubr.f32.gmra.mrb[0].mxu0 %v5181
  %v5690 = vpop.f32.mrb[0].mxu0
  %v5691 = vadd.f32 0.0, %v5690
  %v5692 = vpop.f32.mrb[0].mxu0
  %5693 = vmatprep.mubr.f32.mxu0 0.0
  %5694 = vmatmul.mubr.f32.gmra.mrb[0].mxu0 %v5184
  %v5695 = vpop.f32.mrb[0].mxu0
  %v5696 = vadd.f32 0.0, %v5695
  %v5697 = vpop.f32.mrb[0].mxu0
  %5698 = vmatprep.mubr.f32.mxu0 0.0
  %5699 = vmatmul.mubr.f32.gmra.mrb[0].mxu0 %v5187
  %v5700 = vpop.f32.mrb[0].mxu0
  %v5701 = vadd.f32 0.0, %v5700
  %v5702 = vpop.f32.mrb[0].mxu0
  %5703 = vmatprep.mubr.f32.mxu0 0.0
  %5704 = vmatmul.mubr.f32.gmra.mrb[0].mxu0 %v5190
  %v5705 = vpop.f32.mrb[0].mxu0
  %v5706 = vadd.f32 0.0, %v5705
  %v5707 = vpop.f32.mrb[0].mxu0
  %5708 = vmatprep.mubr.f32.mxu0 0.0
  %5709 = vmatmul.mubr.f32.gmra.mrb[0].mxu0 %v5193
  %v5710 = vpop.f32.mrb[0].mxu0
  %v5711 = vadd.f32 0.0, %v5710
  %v5712 = vpop.f32.mrb[0].mxu0
  %5713 = vmatprep.mubr.f32.mxu0 0.0
  %5714 = vmatmul.mubr.f32.gmra.mrb[0].mxu0 %v5196
  %v5715 = vpop.f32.mrb[0].mxu0
  %v5716 = vadd.f32 0.0, %v5715
  %v5717 = vpop.f32.mrb[0].mxu0
  %5718 = vmatprep.mubr.f32.mxu0 0.0
  %5719 = vmatmul.mubr.f32.gmra.mrb[0].mxu0 %v5199
  %v5720 = vpop.f32.mrb[0].mxu0
  %v5721 = vadd.f32 0.0, %v5720
  %v5722 = vpop.f32.mrb[0].mxu0
  %5723 = vmatprep.mubr.f32.mxu0 0.0
  %5724 = vmatmul.mubr.f32.gmra.mrb[0].mxu0 %v5202
  %v5725 = vpop.f32.mrb[0].mxu0
  %v5726 = vadd.f32 0.0, %v5725
  %v5727 = vpop.f32.mrb[0].mxu0
  %5728 = vmatprep.mubr.f32.mxu0 0.0
  %5729 = vmatmul.mubr.f32.gmra.mrb[0].mxu0 %v5205
  %v5730 = vpop.f32.mrb[0].mxu0
  %v5731 = vadd.f32 0.0, %v5730
  %v5732 = vpop.f32.mrb[0].mxu0
  %5733 = vmatprep.mubr.f32.mxu0 0.0
  %5734 = vmatmul.mubr.f32.gmra.mrb[0].mxu0 %v5208
  %v5735 = vpop.f32.mrb[0].mxu0
  %v5736 = vadd.f32 0.0, %v5735
  %v5737 = vpop.f32.mrb[0].mxu0
  %5738 = vmatprep.mubr.f32.mxu0 0.0
  %5739 = vmatmul.mubr.f32.gmra.mrb[0].mxu0 %v5211
  %v5740 = vpop.f32.mrb[0].mxu0
  %v5741 = vadd.f32 0.0, %v5740
  %v5742 = vpop.f32.mrb[0].mxu0
  %5743 = vmatprep.mubr.f32.mxu0 0.0
  %5744 = vmatmul.mubr.f32.gmra.mrb[0].mxu0 %v5214
  %v5745 = vpop.f32.mrb[0].mxu0
  %v5746 = vadd.f32 0.0, %v5745
  %v5747 = vpop.f32.mrb[0].mxu0
  %5748 = vmatprep.mubr.f32.mxu0 0.0
  %5749 = vmatmul.mubr.f32.gmra.mrb[0].mxu0 %v5217
  %v5750 = vpop.f32.mrb[0].mxu0
  %v5751 = vadd.f32 0.0, %v5750
  %v5752 = vpop.f32.mrb[0].mxu0
  %5753 = vmatprep.mubr.f32.mxu0 0.0
  %5754 = vmatmul.mubr.f32.gmra.mrb[0].mxu0 %v5220
  %v5755 = vpop.f32.mrb[0].mxu0
  %v5756 = vadd.f32 0.0, %v5755
  %v5757 = vpop.f32.mrb[0].mxu0
  %5758 = vmatprep.mubr.f32.mxu0 0.0
  %5759 = vmatmul.mubr.f32.gmra.mrb[0].mxu0 %v5223
  %v5760 = vpop.f32.mrb[0].mxu0
  %v5761 = vadd.f32 0.0, %v5760
  %v5762 = vpop.f32.mrb[0].mxu0
  %5763 = vmatprep.mubr.f32.mxu0 0.0
  %5764 = vmatmul.mubr.f32.gmra.mrb[0].mxu0 %v5226
  %v5765 = vpop.f32.mrb[0].mxu0
  %v5766 = vadd.f32 0.0, %v5765
  %v5767 = vpop.f32.mrb[0].mxu0
  %5768 = vmatprep.mubr.f32.mxu0 0.0
  %5769 = vmatmul.mubr.f32.gmra.mrb[0].mxu0 %v5229
  %v5770 = vpop.f32.mrb[0].mxu0
  %v5771 = vadd.f32 0.0, %v5770
  %v5772 = vpop.f32.mrb[0].mxu0
  %5773 = vmatprep.mubr.f32.mxu0 0.0
  %5774 = vmatmul.mubr.f32.gmra.mrb[0].mxu0 %v5232
  %v5775 = vpop.f32.mrb[0].mxu0
  %v5776 = vadd.f32 0.0, %v5775
  %v5777 = vpop.f32.mrb[0].mxu0
  %5778 = vmatprep.mubr.f32.mxu0 0.0
  %5779 = vmatmul.mubr.f32.gmra.mrb[0].mxu0 %v5235
  %v5780 = vpop.f32.mrb[0].mxu0
  %v5781 = vadd.f32 0.0, %v5780
  %v5782 = vpop.f32.mrb[0].mxu0
  %5783 = vmatprep.mubr.f32.mxu0 0.0
  %5784 = vmatmul.mubr.f32.gmra.mrb[0].mxu0 %v5238
  %v5785 = vpop.f32.mrb[0].mxu0
  %v5786 = vadd.f32 0.0, %v5785
  %v5787 = vpop.f32.mrb[0].mxu0
  %5788 = vmatprep.mubr.f32.mxu0 0.0
  %5789 = vmatmul.mubr.f32.gmra.mrb[0].mxu0 %v5241
  %v5790 = vpop.f32.mrb[0].mxu0
  %v5791 = vadd.f32 0.0, %v5790
  %v5792 = vpop.f32.mrb[0].mxu0
  %5793 = vmatprep.mubr.f32.mxu0 0.0
  %5794 = vmatmul.mubr.f32.gmra.mrb[0].mxu0 %v5244
  %v5795 = vpop.f32.mrb[0].mxu0
  %v5796 = vadd.f32 0.0, %v5795
  %v5797 = vpop.f32.mrb[0].mxu0
  %5798 = vmatprep.mubr.f32.mxu0 0.0
  %5799 = vmatmul.mubr.f32.gmra.mrb[0].mxu0 %v5247
  %v5800 = vpop.f32.mrb[0].mxu0
  %v5801 = vadd.f32 0.0, %v5800
  %v5802 = vpop.f32.mrb[0].mxu0
  %5803 = vmatprep.mubr.f32.mxu0 0.0
  %5804 = vmatmul.mubr.f32.gmra.mrb[0].mxu0 %v5250
  %v5805 = vpop.f32.mrb[0].mxu0
  %v5806 = vadd.f32 0.0, %v5805
  %v5807 = vpop.f32.mrb[0].mxu0
  %5808 = vmatprep.mubr.f32.mxu0 0.0
  %5809 = vmatmul.mubr.f32.gmra.mrb[0].mxu0 %v5253
  %v5810 = vpop.f32.mrb[0].mxu0
  %v5811 = vadd.f32 0.0, %v5810
  %v5812 = vpop.f32.mrb[0].mxu0
  %5813 = vmatprep.mubr.f32.mxu0 0.0
  %5814 = vmatmul.mubr.f32.gmra.mrb[0].mxu0 %v5256
  %v5815 = vpop.f32.mrb[0].mxu0
  %v5816 = vadd.f32 0.0, %v5815
  %v5817 = vpop.f32.mrb[0].mxu0
  %5818 = vmatprep.mubr.f32.mxu0 0.0
  %5819 = vmatmul.mubr.f32.gmra.mrb[0].mxu0 %v5259
  %v5820 = vpop.f32.mrb[0].mxu0
  %v5821 = vadd.f32 0.0, %v5820
  %v5822 = vpop.f32.mrb[0].mxu0
  %5823 = vmatprep.mubr.f32.mxu0 0.0
  %5824 = vmatmul.mubr.f32.gmra.mrb[0].mxu0 %v5262
  %v5825 = vpop.f32.mrb[0].mxu0
  %v5826 = vadd.f32 0.0, %v5825
  %v5827 = vpop.f32.mrb[0].mxu0
  %5828 = vmatprep.mubr.f32.mxu0 0.0
  %5829 = vmatmul.mubr.f32.gmra.mrb[0].mxu0 %v5265
  %v5830 = vpop.f32.mrb[0].mxu0
  %v5831 = vadd.f32 0.0, %v5830
  %v5832 = vpop.f32.mrb[0].mxu0
  %5833 = vmatprep.mubr.f32.mxu0 0.0
  %5834 = vmatmul.mubr.f32.gmra.mrb[0].mxu0 %v5268
  %v5835 = vpop.f32.mrb[0].mxu0
  %v5836 = vadd.f32 0.0, %v5835
  %v5837 = vpop.f32.mrb[0].mxu0
  %5838 = vmatprep.mubr.f32.mxu0 0.0
  %5839 = vmatmul.mubr.f32.gmra.mrb[0].mxu0 %v5271
  %v5840 = vpop.f32.mrb[0].mxu0
  %v5841 = vadd.f32 0.0, %v5840
  %v5842 = vpop.f32.mrb[0].mxu0
  %5843 = vmatprep.mubr.f32.mxu0 0.0
  %5844 = vmatmul.mubr.f32.gmra.mrb[0].mxu0 %v5274
  %v5845 = vpop.f32.mrb[0].mxu0
  %v5846 = vadd.f32 0.0, %v5845
  %v5847 = vpop.f32.mrb[0].mxu0
  %5848 = vmatprep.mubr.f32.mxu0 0.0
  %5849 = vmatmul.mubr.f32.gmra.mrb[0].mxu0 %v5277
  %v5850 = vpop.f32.mrb[0].mxu0
  %v5851 = vadd.f32 0.0, %v5850
  %v5852 = vpop.f32.mrb[0].mxu0
  %5853 = vmatprep.mubr.f32.mxu0 0.0
  %5854 = vmatmul.mubr.f32.gmra.mrb[0].mxu0 %v5280
  %v5855 = vpop.f32.mrb[0].mxu0
  %v5856 = vadd.f32 0.0, %v5855
  %v5857 = vpop.f32.mrb[0].mxu0
  %5858 = vmatprep.mubr.f32.mxu0 0.0
  %5859 = vmatmul.mubr.f32.gmra.mrb[0].mxu0 %v5283
  %v5860 = vpop.f32.mrb[0].mxu0
  %v5861 = vadd.f32 0.0, %v5860
  %v5862 = vpop.f32.mrb[0].mxu0
  %5863 = vmatprep.mubr.f32.mxu0 0.0
  %5864 = vmatmul.mubr.f32.gmra.mrb[0].mxu0 %v5286
  %v5865 = vpop.f32.mrb[0].mxu0
  %v5866 = vadd.f32 0.0, %v5865
  %v5867 = vpop.f32.mrb[0].mxu0
  %5868 = vmatprep.mubr.f32.mxu0 0.0
  %5869 = vmatmul.mubr.f32.gmra.mrb[0].mxu0 %v5289
  %v5870 = vpop.f32.mrb[0].mxu0
  %v5871 = vadd.f32 0.0, %v5870
  %v5872 = vpop.f32.mrb[0].mxu0
  %5873 = vmatprep.mubr.f32.mxu0 0.0
  %5874 = vmatmul.mubr.f32.gmra.mrb[0].mxu0 %v5292
  %v5875 = vpop.f32.mrb[0].mxu0
  %v5876 = vadd.f32 0.0, %v5875
  %v5877 = vpop.f32.mrb[0].mxu0
  %5878 = vmatprep.mubr.f32.mxu0 0.0
  %5879 = vmatmul.mubr.f32.gmra.mrb[0].mxu0 %v5295
  %v5880 = vpop.f32.mrb[0].mxu0
  %v5881 = vadd.f32 0.0, %v5880
  %v5882 = vpop.f32.mrb[0].mxu0
  %5883 = vmatprep.mubr.f32.mxu0 0.0
  %5884 = vmatmul.mubr.f32.gmra.mrb[0].mxu0 %v5298
  %v5885 = vpop.f32.mrb[0].mxu0
  %v5886 = vadd.f32 0.0, %v5885
  %v5887 = vpop.f32.mrb[0].mxu0
  %5888 = vmatprep.mubr.f32.mxu0 0.0
  %5889 = vmatmul.mubr.f32.gmra.mrb[0].mxu0 %v5301
  %v5890 = vpop.f32.mrb[0].mxu0
  %v5891 = vadd.f32 0.0, %v5890
  %v5892 = vpop.f32.mrb[0].mxu0
  %5893 = vmatprep.mubr.f32.mxu0 0.0
  %5894 = vmatmul.mubr.f32.gmra.mrb[0].mxu0 %v5304
  %v5895 = vpop.f32.mrb[0].mxu0
  %v5896 = vadd.f32 0.0, %v5895
  %v5897 = vpop.f32.mrb[0].mxu0
  %5898 = vmatprep.mubr.f32.mxu0 0.0
  %5899 = vmatmul.mubr.f32.gmra.mrb[0].mxu0 %v5307
  %v5900 = vpop.f32.mrb[0].mxu0
  %v5901 = vadd.f32 0.0, %v5900
  %v5902 = vpop.f32.mrb[0].mxu0
  %5903 = vmatprep.mubr.f32.mxu0 0.0
  %5904 = vmatmul.mubr.f32.gmra.mrb[0].mxu0 %v5310
  %v5905 = vpop.f32.mrb[0].mxu0
  %v5906 = vadd.f32 0.0, %v5905
  %v5907 = vpop.f32.mrb[0].mxu0
  %5908 = vmatprep.mubr.f32.mxu0 0.0
  %5909 = vmatmul.mubr.f32.gmra.mrb[0].mxu0 %v5313
  %v5910 = vpop.f32.mrb[0].mxu0
  %v5911 = vadd.f32 0.0, %v5910
  %v5912 = vpop.f32.mrb[0].mxu0
  %5913 = vmatprep.mubr.f32.mxu0 0.0
  %5914 = vmatmul.mubr.f32.gmra.mrb[0].mxu0 %v5316
  %v5915 = vpop.f32.mrb[0].mxu0
  %v5916 = vadd.f32 0.0, %v5915
  %v5917 = vpop.f32.mrb[0].mxu0
  %5918 = vmatprep.mubr.f32.mxu0 0.0
  %5919 = vmatmul.mubr.f32.gmra.mrb[0].mxu0 %v5319
  %v5920 = vpop.f32.mrb[0].mxu0
  %v5921 = vadd.f32 0.0, %v5920
  %v5922 = vpop.f32.mrb[0].mxu0
  %5923 = vmatprep.mubr.f32.mxu0 0.0
  %5924 = vmatmul.mubr.f32.gmra.mrb[0].mxu0 %v5322
  %v5925 = vpop.f32.mrb[0].mxu0
  %v5926 = vadd.f32 0.0, %v5925
  %v5927 = vpop.f32.mrb[0].mxu0
  %5928 = vmatprep.mubr.f32.mxu0 0.0
  %5929 = vmatmul.mubr.f32.gmra.mrb[0].mxu0 %v5325
  %v5930 = vpop.f32.mrb[0].mxu0
  %v5931 = vadd.f32 0.0, %v5930
  %v5932 = vpop.f32.mrb[0].mxu0
  %5933 = vmatprep.mubr.f32.mxu0 0.0
  %5934 = vmatmul.mubr.f32.gmra.mrb[0].mxu0 %v5328
  %v5935 = vpop.f32.mrb[0].mxu0
  %v5936 = vadd.f32 0.0, %v5935
  %v5937 = vpop.f32.mrb[0].mxu0
  %5938 = vmatprep.mubr.f32.mxu0 0.0
  %5939 = vmatmul.mubr.f32.gmra.mrb[0].mxu0 %v5331
  %v5940 = vpop.f32.mrb[0].mxu0
  %v5941 = vadd.f32 0.0, %v5940
  %v5942 = vpop.f32.mrb[0].mxu0
  %5943 = vmatprep.mubr.f32.mxu0 0.0
  %5944 = vmatmul.mubr.f32.gmra.mrb[0].mxu0 %v5334
  %v5945 = vpop.f32.mrb[0].mxu0
  %v5946 = vadd.f32 0.0, %v5945
  %v5947 = vpop.f32.mrb[0].mxu0
  %5948 = vmatprep.mubr.f32.mxu0 0.0
  %5949 = vmatmul.mubr.f32.gmra.mrb[0].mxu0 %v5337
  %v5950 = vpop.f32.mrb[0].mxu0
  %v5951 = vadd.f32 0.0, %v5950
  %v5952 = vpop.f32.mrb[0].mxu0
  %5953 = vmatprep.mubr.f32.mxu0 0.0
  %5954 = vmatmul.mubr.f32.gmra.mrb[0].mxu0 %v5340
  %v5955 = vpop.f32.mrb[0].mxu0
  %v5956 = vadd.f32 0.0, %v5955
  %v5957 = vpop.f32.mrb[0].mxu0
  %5958 = vmatprep.mubr.f32.mxu0 0.0
  %5959 = vmatmul.mubr.f32.gmra.mrb[0].mxu0 %v5343
  %v5960 = vpop.f32.mrb[0].mxu0
  %v5961 = vadd.f32 0.0, %v5960
  %v5962 = vpop.f32.mrb[0].mxu0
  %5963 = vmatprep.mubr.f32.mxu0 0.0
  %5964 = vmatmul.mubr.f32.gmra.mrb[0].mxu0 %v5346
  %v5965 = vpop.f32.mrb[0].mxu0
  %v5966 = vadd.f32 0.0, %v5965
  %v5967 = vpop.f32.mrb[0].mxu0
  %5968 = vmatprep.mubr.f32.mxu0 0.0
  %5969 = vmatmul.mubr.f32.gmra.mrb[0].mxu0 %v5349
  %v5970 = vpop.f32.mrb[0].mxu0
  %v5971 = vadd.f32 0.0, %v5970
  %v5972 = vpop.f32.mrb[0].mxu0
  %5973 = vmatprep.mubr.f32.mxu0 0.0
  %5974 = vmatmul.mubr.f32.gmra.mrb[0].mxu0 %v5352
  %v5975 = vpop.f32.mrb[0].mxu0
  %v5976 = vadd.f32 0.0, %v5975
  %v5977 = vpop.f32.mrb[0].mxu0
  %5978 = vmatprep.mubr.f32.mxu0 0.0
  %5979 = vmatmul.mubr.f32.gmra.mrb[0].mxu0 %v5355
  %v5980 = vpop.f32.mrb[0].mxu0
  %v5981 = vadd.f32 0.0, %v5980
  %v5982 = vpop.f32.mrb[0].mxu0
  %5983 = vmatprep.mubr.f32.mxu0 0.0
  %5984 = vmatmul.mubr.f32.gmra.mrb[0].mxu0 %v5358
  %v5985 = vpop.f32.mrb[0].mxu0
  %v5986 = vadd.f32 0.0, %v5985
  %v5987 = vpop.f32.mrb[0].mxu0
  %5988 = vmatprep.mubr.f32.mxu0 0.0
  %5989 = vmatmul.mubr.f32.gmra.mrb[0].mxu0 %v5361
  %v5990 = vpop.f32.mrb[0].mxu0
  %v5991 = vadd.f32 0.0, %v5990
  %v5992 = vpop.f32.mrb[0].mxu0
  %5993 = vmatprep.mubr.f32.mxu0 0.0
  %5994 = vmatmul.mubr.f32.gmra.mrb[0].mxu0 %v5364
  %v5995 = vpop.f32.mrb[0].mxu0
  %v5996 = vadd.f32 0.0, %v5995
  %v5997 = vpop.f32.mrb[0].mxu0
  %5998 = vmatprep.mubr.f32.mxu0 0.0
  %5999 = vmatmul.mubr.f32.gmra.mrb[0].mxu0 %v5367
  %v6000 = vpop.f32.mrb[0].mxu0
  %v6001 = vadd.f32 0.0, %v6000
  %v6002 = vpop.f32.mrb[0].mxu0
  %6003 = vmatprep.mubr.f32.mxu0 0.0
  %6004 = vmatmul.mubr.f32.gmra.mrb[0].mxu0 %v5370
  %v6005 = vpop.f32.mrb[0].mxu0
  %v6006 = vadd.f32 0.0, %v6005
  %v6007 = vpop.f32.mrb[0].mxu0
  %6008 = vmatprep.mubr.f32.mxu0 0.0
  %6009 = vmatmul.mubr.f32.gmra.mrb[0].mxu0 %v5373
  %v6010 = vpop.f32.mrb[0].mxu0
  %v6011 = vadd.f32 0.0, %v6010
  %v6012 = vpop.f32.mrb[0].mxu0
  %6013 = vmatprep.mubr.f32.mxu0 0.0
  %6014 = vmatmul.mubr.f32.gmra.mrb[0].mxu0 %v5376
  %v6015 = vpop.f32.mrb[0].mxu0
  %v6016 = vadd.f32 0.0, %v6015
  %v6017 = vpop.f32.mrb[0].mxu0
  %6018 = vmatprep.mubr.f32.mxu0 0.0
  %6019 = vmatmul.mubr.f32.gmra.mrb[0].mxu0 %v5379
  %v6020 = vpop.f32.mrb[0].mxu0
  %v6021 = vadd.f32 0.0, %v6020
  %v6022 = vpop.f32.mrb[0].mxu0
  %6023 = vmatprep.mubr.f32.mxu0 0.0
  %6024 = vmatmul.mubr.f32.gmra.mrb[0].mxu0 %v5382
  %v6025 = vpop.f32.mrb[0].mxu0
  %v6026 = vadd.f32 0.0, %v6025
  %v6027 = vpop.f32.mrb[0].mxu0
  %6028 = vmatprep.mubr.f32.mxu0 0.0
  %6029 = vmatmul.mubr.f32.gmra.mrb[0].mxu0 %v5385
  %v6030 = vpop.f32.mrb[0].mxu0
  %v6031 = vadd.f32 0.0, %v6030
  %v6032 = vpop.f32.mrb[0].mxu0
  %6033 = vmatprep.mubr.f32.mxu0 0.0
  %6034 = vmatmul.mubr.f32.gmra.mrb[0].mxu0 %v5388
  %v6035 = vpop.f32.mrb[0].mxu0
  %v6036 = vadd.f32 0.0, %v6035
  %v6037 = vpop.f32.mrb[0].mxu0
  %6038 = vmatprep.mubr.f32.mxu0 0.0
  %6039 = vmatmul.mubr.f32.gmra.mrb[0].mxu0 %v5391
  %v6040 = vpop.f32.mrb[0].mxu0
  %v6041 = vadd.f32 0.0, %v6040
  %v6042 = vpop.f32.mrb[0].mxu0
  %6043 = vmatprep.mubr.f32.mxu0 0.0
  %6044 = vmatmul.mubr.f32.gmra.mrb[0].mxu0 %v5394
  %v6045 = vpop.f32.mrb[0].mxu0
  %v6046 = vadd.f32 0.0, %v6045
  %v6047 = vpop.f32.mrb[0].mxu0
  %6048 = vmatprep.mubr.f32.mxu0 0.0
  %6049 = vmatmul.mubr.f32.gmra.mrb[0].mxu0 %v5397
  %v6050 = vpop.f32.mrb[0].mxu0
  %v6051 = vadd.f32 0.0, %v6050
  %v6052 = vpop.f32.mrb[0].mxu0
  %6053 = vmatprep.mubr.f32.mxu0 0.0
  %6054 = vmatmul.mubr.f32.gmra.mrb[0].mxu0 %v5400
  %v6055 = vpop.f32.mrb[0].mxu0
  %v6056 = vadd.f32 0.0, %v6055
  %v6057 = vpop.f32.mrb[0].mxu0
  %6058 = vmatprep.mubr.f32.mxu0 0.0
  %6059 = vmatmul.mubr.f32.gmra.mrb[0].mxu0 %v5403
  %v6060 = vpop.f32.mrb[0].mxu0
  %v6061 = vadd.f32 0.0, %v6060
  %v6062 = vpop.f32.mrb[0].mxu0
  %6063 = vmatprep.mubr.f32.mxu0 0.0
  %6064 = vmatmul.mubr.f32.gmra.mrb[0].mxu0 %v5406
  %v6065 = vpop.f32.mrb[0].mxu0
  %v6066 = vadd.f32 0.0, %v6065
  %v6067 = vpop.f32.mrb[0].mxu0
  %6068 = vmatprep.mubr.f32.mxu0 0.0
  %6069 = vmatmul.mubr.f32.gmra.mrb[0].mxu0 %v5409
  %v6070 = vpop.f32.mrb[0].mxu0
  %v6071 = vadd.f32 0.0, %v6070
  %v6072 = vpop.f32.mrb[0].mxu0
  %6073 = vmatprep.mubr.f32.mxu0 0.0
  %6074 = vmatmul.mubr.f32.gmra.mrb[0].mxu0 %v5412
  %v6075 = vpop.f32.mrb[0].mxu0
  %v6076 = vadd.f32 0.0, %v6075
  %v6077 = vpop.f32.mrb[0].mxu0
  %6078 = vmatprep.mubr.f32.mxu0 0.0
  %6079 = vmatmul.mubr.f32.gmra.mrb[0].mxu0 %v5415
  %v6080 = vpop.f32.mrb[0].mxu0
  %v6081 = vadd.f32 0.0, %v6080
  %v6082 = vpop.f32.mrb[0].mxu0
  %6083 = vmatprep.mubr.f32.mxu0 0.0
  %6084 = vmatmul.mubr.f32.gmra.mrb[0].mxu0 %v5418
  %v6085 = vpop.f32.mrb[0].mxu0
  %v6086 = vadd.f32 0.0, %v6085
  %v6087 = vpop.f32.mrb[0].mxu0
  %6088 = vmatprep.mubr.f32.mxu0 0.0
  %6089 = vmatmul.mubr.f32.gmra.mrb[0].mxu0 %v5421
  %v6090 = vpop.f32.mrb[0].mxu0
  %v6091 = vadd.f32 0.0, %v6090
  %v6092 = vpop.f32.mrb[0].mxu0
  %6093 = vmatprep.mubr.f32.mxu0 0.0
  %6094 = vmatmul.mubr.f32.gmra.mrb[0].mxu0 %v5424
  %v6095 = vpop.f32.mrb[0].mxu0
  %v6096 = vadd.f32 0.0, %v6095
  %v6097 = vpop.f32.mrb[0].mxu0
  %6098 = vmatprep.mubr.f32.mxu0 0.0
  %6099 = vmatmul.mubr.f32.gmra.mrb[0].mxu0 %v5427
  %v6100 = vpop.f32.mrb[0].mxu0
  %v6101 = vadd.f32 0.0, %v6100
  %v6102 = vpop.f32.mrb[0].mxu0
  %6103 = vmatprep.mubr.f32.mxu0 0.0
  %6104 = vmatmul.mubr.f32.gmra.mrb[0].mxu0 %v5430
  %v6105 = vpop.f32.mrb[0].mxu0
  %v6106 = vadd.f32 0.0, %v6105
  %v6107 = vpop.f32.mrb[0].mxu0
  %6108 = vmatprep.mubr.f32.mxu0 0.0
  %6109 = vmatmul.mubr.f32.gmra.mrb[0].mxu0 %v5433
  %v6110 = vpop.f32.mrb[0].mxu0
  %v6111 = vadd.f32 0.0, %v6110
  %v6112 = vpop.f32.mrb[0].mxu0
  %6113 = vmatprep.mubr.f32.mxu0 0.0
  %6114 = vmatmul.mubr.f32.gmra.mrb[0].mxu0 %v5436
  %v6115 = vpop.f32.mrb[0].mxu0
  %v6116 = vadd.f32 0.0, %v6115
  %v6117 = vpop.f32.mrb[0].mxu0
  %6118 = vmatprep.mubr.f32.mxu0 0.0
  %6119 = vmatmul.mubr.f32.gmra.mrb[0].mxu0 %v5439
  %v6120 = vpop.f32.mrb[0].mxu0
  %v6121 = vadd.f32 0.0, %v6120
  %v6122 = vpop.f32.mrb[0].mxu0
  %6123 = vmatprep.mubr.f32.mxu0 0.0
  %6124 = vmatmul.mubr.f32.gmra.mrb[0].mxu0 %v5442
  %v6125 = vpop.f32.mrb[0].mxu0
  %v6126 = vadd.f32 0.0, %v6125
  %v6127 = vpop.f32.mrb[0].mxu0
  %6128 = vmatprep.mubr.f32.mxu0 0.0
  %6129 = vmatmul.mubr.f32.gmra.mrb[0].mxu0 %v5445
  %v6130 = vpop.f32.mrb[0].mxu0
  %v6131 = vadd.f32 0.0, %v6130
  %v6132 = vpop.f32.mrb[0].mxu0
  %6133 = vmatprep.mubr.f32.mxu0 0.0
  %6134 = vmatmul.mubr.f32.gmra.mrb[0].mxu0 %v5448
  %v6135 = vpop.f32.mrb[0].mxu0
  %v6136 = vadd.f32 0.0, %v6135
  %v6137 = vpop.f32.mrb[0].mxu0
  %6138 = vmatprep.mubr.f32.mxu0 0.0
  %6139 = vmatmul.mubr.f32.gmra.mrb[0].mxu0 %v5451
  %v6140 = vpop.f32.mrb[0].mxu0
  %v6141 = vadd.f32 0.0, %v6140
  %v6142 = vpop.f32.mrb[0].mxu0
  %6143 = vmatprep.mubr.f32.mxu0 0.0
  %6144 = vmatmul.mubr.f32.gmra.mrb[0].mxu0 %v5454
  %v6145 = vpop.f32.mrb[0].mxu0
  %v6146 = vadd.f32 0.0, %v6145
  %v6147 = vpop.f32.mrb[0].mxu0
  %6148 = vmatprep.mubr.f32.mxu0 0.0
  %6149 = vmatmul.mubr.f32.gmra.mrb[0].mxu0 %v5457
  %v6150 = vpop.f32.mrb[0].mxu0
  %v6151 = vadd.f32 0.0, %v6150
  %v6152 = vpop.f32.mrb[0].mxu0
  %6153 = vmatprep.mubr.f32.mxu0 0.0
  %6154 = vmatmul.mubr.f32.gmra.mrb[0].mxu0 %v5460
  %v6155 = vpop.f32.mrb[0].mxu0
  %v6156 = vadd.f32 0.0, %v6155
  %v6157 = vpop.f32.mrb[0].mxu0
  %6158 = vmatprep.mubr.f32.mxu0 0.0
  %6159 = vmatmul.mubr.f32.gmra.mrb[0].mxu0 %v5463
  %v6160 = vpop.f32.mrb[0].mxu0
  %v6161 = vadd.f32 0.0, %v6160
  %v6162 = vpop.f32.mrb[0].mxu0
  %6163 = vmatprep.mubr.f32.mxu0 0.0
  %6164 = vmatmul.mubr.f32.gmra.mrb[0].mxu0 %v5466
  %v6165 = vpop.f32.mrb[0].mxu0
  %v6166 = vadd.f32 0.0, %v6165
  %v6167 = vpop.f32.mrb[0].mxu0
  %6168 = vmatprep.mubr.f32.mxu0 0.0
  %6169 = vmatmul.mubr.f32.gmra.mrb[0].mxu0 %v5469
  %v6170 = vpop.f32.mrb[0].mxu0
  %v6171 = vadd.f32 0.0, %v6170
  %v6172 = vpop.f32.mrb[0].mxu0
  %6173 = vmatprep.mubr.f32.mxu0 0.0
  %6174 = vmatmul.mubr.f32.gmra.mrb[0].mxu0 %v5472
  %v6175 = vpop.f32.mrb[0].mxu0
  %v6176 = vadd.f32 0.0, %v6175
  %v6177 = vpop.f32.mrb[0].mxu0
  %6178 = vmatprep.mubr.f32.mxu0 0.0
  %6179 = vmatmul.mubr.f32.gmra.mrb[0].mxu0 %v5475
  %v6180 = vpop.f32.mrb[0].mxu0
  %v6181 = vadd.f32 0.0, %v6180
  %v6182 = vpop.f32.mrb[0].mxu0
  %6183 = vmatprep.mubr.f32.mxu0 0.0
  %6184 = vmatmul.mubr.f32.gmra.mrb[0].mxu0 %v5478
  %v6185 = vpop.f32.mrb[0].mxu0
  %v6186 = vadd.f32 0.0, %v6185
  %v6187 = vpop.f32.mrb[0].mxu0
  %6188 = vmatprep.mubr.f32.mxu0 0.0
  %6189 = vmatmul.mubr.f32.gmra.mrb[0].mxu0 %v5481
  %v6190 = vpop.f32.mrb[0].mxu0
  %v6191 = vadd.f32 0.0, %v6190
  %v6192 = vpop.f32.mrb[0].mxu0
  %6193 = vmatprep.mubr.f32.mxu0 0.0
  %6194 = vmatmul.mubr.f32.gmra.mrb[0].mxu0 %v5484
  %v6195 = vpop.f32.mrb[0].mxu0
  %v6196 = vadd.f32 0.0, %v6195
  %v6197 = vpop.f32.mrb[0].mxu0
  %6198 = vmatprep.mubr.f32.mxu0 0.0
  %6199 = vmatmul.mubr.f32.gmra.mrb[0].mxu0 %v5487
  %v6200 = vpop.f32.mrb[0].mxu0
  %v6201 = vadd.f32 0.0, %v6200
  %v6202 = vpop.f32.mrb[0].mxu0
  %6203 = vmatprep.mubr.f32.mxu0 0.0
  %6204 = vmatmul.mubr.f32.gmra.mrb[0].mxu0 %v5490
  %v6205 = vpop.f32.mrb[0].mxu0
  %v6206 = vadd.f32 0.0, %v6205
  %v6207 = vpop.f32.mrb[0].mxu0
  %6208 = vmatprep.mubr.f32.mxu0 0.0
  %6209 = vmatmul.mubr.f32.gmra.mrb[0].mxu0 %v5493
  %v6210 = vpop.f32.mrb[0].mxu0
  %v6211 = vadd.f32 0.0, %v6210
  %v6212 = vpop.f32.mrb[0].mxu0
  %6213 = vmatprep.mubr.f32.mxu0 0.0
  %6214 = vmatmul.mubr.f32.gmra.mrb[0].mxu0 %v5496
  %v6215 = vpop.f32.mrb[0].mxu0
  %v6216 = vadd.f32 0.0, %v6215
  %v6217 = vpop.f32.mrb[0].mxu0
  %6218 = vmatprep.mubr.f32.mxu0 0.0
  %6219 = vmatmul.mubr.f32.gmra.mrb[0].mxu0 %v5499
  %v6220 = vpop.f32.mrb[0].mxu0
  %v6221 = vadd.f32 0.0, %v6220
  %v6222 = vpop.f32.mrb[0].mxu0
  %6223 = vmatprep.mubr.f32.mxu0 0.0
  %6224 = vmatmul.mubr.f32.gmra.mrb[0].mxu0 %v5502
  %v6225 = vpop.f32.mrb[0].mxu0
  %v6226 = vadd.f32 0.0, %v6225
  %v6227 = vpop.f32.mrb[0].mxu0
  %6228 = vmatprep.mubr.f32.mxu0 0.0
  %6229 = vmatmul.mubr.f32.gmra.mrb[0].mxu0 %v5505
  %v6230 = vpop.f32.mrb[0].mxu0
  %v6231 = vadd.f32 0.0, %v6230
  %v6232 = vpop.f32.mrb[0].mxu0
  %6233 = vmatprep.mubr.f32.mxu0 0.0
  %6234 = vmatmul.mubr.f32.gmra.mrb[0].mxu0 %v5508
  %v6235 = vpop.f32.mrb[0].mxu0
  %v6236 = vadd.f32 0.0, %v6235
  %v6237 = vpop.f32.mrb[0].mxu0
  %6238 = vmatprep.mubr.f32.mxu0 0.0
  %6239 = vmatmul.mubr.f32.gmra.mrb[0].mxu0 %v5511
  %v6240 = vpop.f32.mrb[0].mxu0
  %v6241 = vadd.f32 0.0, %v6240
  %v6242 = vpop.f32.mrb[0].mxu0
  %6243 = vmatprep.mubr.f32.mxu0 0.0
  %6244 = vmatmul.mubr.f32.gmra.mrb[0].mxu0 %v5514
  %v6245 = vpop.f32.mrb[0].mxu0
  %v6246 = vadd.f32 0.0, %v6245
  %v6247 = vpop.f32.mrb[0].mxu0
  %6248 = vmatprep.mubr.f32.mxu0 0.0
  %6249 = vmatmul.mubr.f32.gmra.mrb[0].mxu0 %v5517
  %v6250 = vpop.f32.mrb[0].mxu0
  %v6251 = vadd.f32 0.0, %v6250
  %v6252 = vpop.f32.mrb[0].mxu0
  %6253 = vmatprep.mubr.f32.mxu0 0.0
  %6254 = vmatmul.mubr.f32.gmra.mrb[0].mxu0 %v5520
  %v6255 = vpop.f32.mrb[0].mxu0
  %v6256 = vadd.f32 0.0, %v6255
  %v6257 = vpop.f32.mrb[0].mxu0
  %6258 = vmatprep.mubr.f32.mxu0 0.0
  %6259 = vmatmul.mubr.f32.gmra.mrb[0].mxu0 %v5523
  %v6260 = vpop.f32.mrb[0].mxu0
  %v6261 = vadd.f32 0.0, %v6260
  %v6262 = vpop.f32.mrb[0].mxu0
  %6263 = vmatprep.mubr.f32.mxu0 0.0
  %6264 = vmatmul.mubr.f32.gmra.mrb[0].mxu0 %v5526
  %v6265 = vpop.f32.mrb[0].mxu0
  %v6266 = vadd.f32 0.0, %v6265
  %v6267 = vpop.f32.mrb[0].mxu0
  %6268 = vmatprep.mubr.f32.mxu0 0.0
  %6269 = vmatmul.mubr.f32.gmra.mrb[0].mxu0 %v5529
  %v6270 = vpop.f32.mrb[0].mxu0
  %v6271 = vadd.f32 0.0, %v6270
  %v6272 = vpop.f32.mrb[0].mxu0
  %6273 = vmatprep.mubr.f32.mxu0 0.0
  %6274 = vmatmul.mubr.f32.gmra.mrb[0].mxu0 %v5532
  %v6275 = vpop.f32.mrb[0].mxu0
  %v6276 = vadd.f32 0.0, %v6275
  %v6277 = vpop.f32.mrb[0].mxu0
  %6278 = vmatprep.mubr.f32.mxu0 0.0
  %6279 = vmatmul.mubr.f32.gmra.mrb[0].mxu0 %v5535
  %v6280 = vpop.f32.mrb[0].mxu0
  %v6281 = vadd.f32 0.0, %v6280
  %v6282 = vpop.f32.mrb[0].mxu0
  %6283 = vmatprep.mubr.f32.mxu0 0.0
  %6284 = vmatmul.mubr.f32.gmra.mrb[0].mxu0 %v5538
  %v6285 = vpop.f32.mrb[0].mxu0
  %v6286 = vadd.f32 0.0, %v6285
  %v6287 = vpop.f32.mrb[0].mxu0
  %6288 = vmatprep.mubr.f32.mxu0 0.0
  %6289 = vmatmul.mubr.f32.gmra.mrb[0].mxu0 %v5541
  %v6290 = vpop.f32.mrb[0].mxu0
  %v6291 = vadd.f32 0.0, %v6290
  %v6292 = vpop.f32.mrb[0].mxu0
  %6293 = vmatprep.mubr.f32.mxu0 0.0
  %6294 = vmatmul.mubr.f32.gmra.mrb[0].mxu0 %v5544
  %v6295 = vpop.f32.mrb[0].mxu0
  %v6296 = vadd.f32 0.0, %v6295
  %v6297 = vpop.f32.mrb[0].mxu0
  %6298 = vmatprep.mubr.f32.mxu0 0.0
  %6299 = vmatmul.mubr.f32.gmra.mrb[0].mxu0 %v5547
  %v6300 = vpop.f32.mrb[0].mxu0
  %v6301 = vadd.f32 0.0, %v6300
  %v6302 = vpop.f32.mrb[0].mxu0
  %6303 = vmatprep.mubr.f32.mxu0 0.0
  %6304 = vmatmul.mubr.f32.gmra.mrb[0].mxu0 %v5550
  %v6305 = vpop.f32.mrb[0].mxu0
  %v6306 = vadd.f32 0.0, %v6305
  %v6307 = vpop.f32.mrb[0].mxu0
  %6308 = vmatprep.mubr.f32.mxu0 0.0
  %6309 = vmatmul.mubr.f32.gmra.mrb[0].mxu0 %v5553
  %v6310 = vpop.f32.mrb[0].mxu0
  %v6311 = vadd.f32 0.0, %v6310
  %v6312 = vpop.f32.mrb[0].mxu0
  %6313 = vmatprep.mubr.f32.mxu0 0.0
  %6314 = vmatmul.mubr.f32.gmra.mrb[0].mxu0 %v5556
  %v6315 = vpop.f32.mrb[0].mxu0
  %v6316 = vadd.f32 0.0, %v6315
  %v6317 = vpop.f32.mrb[0].mxu0
  %6318 = vmatprep.mubr.f32.mxu0 0.0
  %6319 = vmatmul.mubr.f32.gmra.mrb[0].mxu0 %v5559
  %v6320 = vpop.f32.mrb[0].mxu0
  %v6321 = vadd.f32 0.0, %v6320
  %v6322 = vpop.f32.mrb[0].mxu0
  %6323 = vmatprep.mubr.f32.mxu0 0.0
  %6324 = vmatmul.mubr.f32.gmra.mrb[0].mxu0 %v5562
  %v6325 = vpop.f32.mrb[0].mxu0
  %v6326 = vadd.f32 0.0, %v6325
  %v6327 = vpop.f32.mrb[0].mxu0
  %6328 = vmatprep.mubr.f32.mxu0 0.0
  %6329 = vmatmul.mubr.f32.gmra.mrb[0].mxu0 %v5565
  %v6330 = vpop.f32.mrb[0].mxu0
  %v6331 = vadd.f32 0.0, %v6330
  %v6332 = vpop.f32.mrb[0].mxu0
  %6333 = vmatprep.mubr.f32.mxu0 0.0
  %6334 = vmatmul.mubr.f32.gmra.mrb[0].mxu0 %v5568
  %v6335 = vpop.f32.mrb[0].mxu0
  %v6336 = vadd.f32 0.0, %v6335
  %v6337 = vpop.f32.mrb[0].mxu0
  %6338 = vmatprep.mubr.f32.mxu0 0.0
  %6339 = vmatmul.mubr.f32.gmra.mrb[0].mxu0 %v5571
  %v6340 = vpop.f32.mrb[0].mxu0
  %v6341 = vadd.f32 0.0, %v6340
  %v6342 = vpop.f32.mrb[0].mxu0
  %6343 = vmatprep.mubr.f32.mxu0 0.0
  %6344 = vmatmul.mubr.f32.gmra.mrb[0].mxu0 %v5574
  %v6345 = vpop.f32.mrb[0].mxu0
  %v6346 = vadd.f32 0.0, %v6345
  %v6347 = vpop.f32.mrb[0].mxu0
  %6348 = vmatprep.mubr.f32.mxu0 0.0
  %6349 = vmatmul.mubr.f32.gmra.mrb[0].mxu0 %v5577
  %v6350 = vpop.f32.mrb[0].mxu0
  %v6351 = vadd.f32 0.0, %v6350
  %v6352 = vpop.f32.mrb[0].mxu0
  %6353 = vmatprep.mubr.f32.mxu0 0.0
  %6354 = vmatmul.mubr.f32.gmra.mrb[0].mxu0 %v5580
  %v6355 = vpop.f32.mrb[0].mxu0
  %v6356 = vadd.f32 0.0, %v6355
  %v6357 = vpop.f32.mrb[0].mxu0
  %6358 = vmatprep.mubr.f32.mxu0 0.0
  %6359 = vmatmul.mubr.f32.gmra.mrb[0].mxu0 %v5583
  %v6360 = vpop.f32.mrb[0].mxu0
  %v6361 = vadd.f32 0.0, %v6360
  %v6362 = vpop.f32.mrb[0].mxu0
  %6363 = vmatprep.mubr.f32.mxu0 0.0
  %6364 = vmatmul.mubr.f32.gmra.mrb[0].mxu0 %v5586
  %v6365 = vpop.f32.mrb[0].mxu0
  %v6366 = vadd.f32 0.0, %v6365
  %v6367 = vpop.f32.mrb[0].mxu0
  %6368 = vmatprep.mubr.f32.mxu0 0.0
  %6369 = vmatmul.mubr.f32.gmra.mrb[0].mxu0 %v5589
  %v6370 = vpop.f32.mrb[0].mxu0
  %v6371 = vadd.f32 0.0, %v6370
  %v6372 = vpop.f32.mrb[0].mxu0
  %6373 = vmatprep.mubr.f32.mxu0 0.0
  %6374 = vmatmul.mubr.f32.gmra.mrb[0].mxu0 %v5592
  %v6375 = vpop.f32.mrb[0].mxu0
  %v6376 = vadd.f32 0.0, %v6375
  %v6377 = vpop.f32.mrb[0].mxu0
  %6378 = vmatprep.mubr.f32.mxu0 0.0
  %6379 = vmatmul.mubr.f32.gmra.mrb[0].mxu0 %v5595
  %v6380 = vpop.f32.mrb[0].mxu0
  %v6381 = vadd.f32 0.0, %v6380
  %v6382 = vpop.f32.mrb[0].mxu0
  %6383 = vmatprep.mubr.f32.mxu0 0.0
  %6384 = vmatmul.mubr.f32.gmra.mrb[0].mxu0 %v5598
  %v6385 = vpop.f32.mrb[0].mxu0
  %v6386 = vadd.f32 0.0, %v6385
  %v6387 = vpop.f32.mrb[0].mxu0
  %6388 = vdwg.mxu0
  %6389 = vrot.lane.b32.xlu0 %v408, 120
  %v6390 = vpop.permute.xlu0 %6389
  %6391 = vrot.lane.b32.xlu0 %v409, 120
  %v6392 = vpop.permute.xlu0 %6391
  %6393 = vrot.lane.b32.xlu0 %v410, 120
  %v6394 = vpop.permute.xlu0 %6393
  %6395 = vrot.lane.b32.xlu0 %v411, 120
  %v6396 = vpop.permute.xlu0 %6395
  %6397 = vrot.lane.b32.xlu0 %v412, 120
  %v6398 = vpop.permute.xlu0 %6397
  %6399 = vrot.lane.b32.xlu0 %v413, 120
  %v6400 = vpop.permute.xlu0 %6399
  %6401 = vrot.lane.b32.xlu0 %v414, 120
  %v6402 = vpop.permute.xlu0 %6401
  %6403 = vrot.lane.b32.xlu0 %v415, 120
  %v6404 = vpop.permute.xlu0 %6403
  %6405 = vrot.lane.b32.xlu0 %v416, 120
  %v6406 = vpop.permute.xlu0 %6405
  %6407 = vrot.lane.b32.xlu0 %v417, 120
  %v6408 = vpop.permute.xlu0 %6407
  %6409 = vrot.lane.b32.xlu0 %v418, 120
  %v6410 = vpop.permute.xlu0 %6409
  %6411 = vrot.lane.b32.xlu0 %v419, 120
  %v6412 = vpop.permute.xlu0 %6411
  %6413 = vrot.lane.b32.xlu0 %v420, 120
  %v6414 = vpop.permute.xlu0 %6413
  %6415 = vrot.lane.b32.xlu0 %v421, 120
  %v6416 = vpop.permute.xlu0 %6415
  %v6431 = vmul.f32 %v5671, %v6390
  %v6432 = vmul.f32 %v5676, %v6392
  %v6433 = vmul.f32 %v5681, %v6390
  %v6434 = vmul.f32 %v5686, %v6394
  %v6435 = vmul.f32 %v5691, %v6396
  %v6436 = vmul.f32 %v5696, %v6398
  %v6437 = vmul.f32 %v5701, %v6400
  %v6438 = vmul.f32 %v5706, %v6402
  %v6439 = vmul.f32 %v5711, %v6404
  %v6440 = vmul.f32 %v5716, %v6406
  %v6441 = vmul.f32 %v5721, %v6404
  %v6442 = vmul.f32 %v5726, %v6408
  %v6443 = vmul.f32 %v5731, %v6410
  %v6444 = vmul.f32 %v5736, %v6412
  %v6445 = vmul.f32 %v5741, %v6414
  %v6446 = vmul.f32 %v5746, %v6416
  %v6447 = vadd.f32 %v6431, 0.0
  %v6448 = vadd.f32 %v6432, 0.0
  %v6449 = vadd.f32 %v6433, 0.0
  %v6450 = vadd.f32 %v6434, 0.0
  %v6451 = vadd.f32 %v6435, 0.0
  %v6452 = vadd.f32 %v6436, 0.0
  %v6453 = vadd.f32 %v6437, 0.0
  %v6454 = vadd.f32 %v6438, 0.0
  %v6455 = vadd.f32 %v6439, 0.0
  %v6456 = vadd.f32 %v6440, 0.0
  %v6457 = vadd.f32 %v6441, 0.0
  %v6458 = vadd.f32 %v6442, 0.0
  %v6459 = vadd.f32 %v6443, 0.0
  %v6460 = vadd.f32 %v6444, 0.0
  %v6461 = vadd.f32 %v6445, 0.0
  %v6462 = vadd.f32 %v6446, 0.0
  %6463 = vrot.lane.b32.xlu0 %v264, 120
  %v6464 = vpop.permute.xlu0 %6463
  %6465 = vrot.lane.b32.xlu0 %v259, 120
  %v6466 = vpop.permute.xlu0 %6465
  %6467 = vrot.lane.b32.xlu0 %v269, 120
  %v6468 = vpop.permute.xlu0 %6467
  %6469 = vrot.lane.b32.xlu0 %v274, 120
  %v6470 = vpop.permute.xlu0 %6469
  %6471 = vrot.lane.b32.xlu0 %v279, 120
  %v6472 = vpop.permute.xlu0 %6471
  %6473 = vrot.lane.b32.xlu0 %v284, 120
  %v6474 = vpop.permute.xlu0 %6473
  %6475 = vrot.lane.b32.xlu0 %v289, 120
  %v6476 = vpop.permute.xlu0 %6475
  %6477 = vrot.lane.b32.xlu0 %v304, 120
  %v6478 = vpop.permute.xlu0 %6477
  %6479 = vrot.lane.b32.xlu0 %v299, 120
  %v6480 = vpop.permute.xlu0 %6479
  %6481 = vrot.lane.b32.xlu0 %v309, 120
  %v6482 = vpop.permute.xlu0 %6481
  %6483 = vrot.lane.b32.xlu0 %v314, 120
  %v6484 = vpop.permute.xlu0 %6483
  %6485 = vrot.lane.b32.xlu0 %v319, 120
  %v6486 = vpop.permute.xlu0 %6485
  %6487 = vrot.lane.b32.xlu0 %v324, 120
  %v6488 = vpop.permute.xlu0 %6487
  %6489 = vrot.lane.b32.xlu0 %v329, 120
  %v6490 = vpop.permute.xlu0 %6489
  %v6505 = vmul.f32 %v5751, %v6464
  %v6506 = vmul.f32 %v5756, %v6466
  %v6507 = vmul.f32 %v5761, %v6464
  %v6508 = vmul.f32 %v5766, %v6468
  %v6509 = vmul.f32 %v5771, %v6470
  %v6510 = vmul.f32 %v5776, %v6472
  %v6511 = vmul.f32 %v5781, %v6474
  %v6512 = vmul.f32 %v5786, %v6476
  %v6513 = vmul.f32 %v5791, %v6478
  %v6514 = vmul.f32 %v5796, %v6480
  %v6515 = vmul.f32 %v5801, %v6478
  %v6516 = vmul.f32 %v5806, %v6482
  %v6517 = vmul.f32 %v5811, %v6484
  %v6518 = vmul.f32 %v5816, %v6486
  %v6519 = vmul.f32 %v5821, %v6488
  %v6520 = vmul.f32 %v5826, %v6490
  %v6521 = vadd.f32 %v6447, %v6505
  %v6522 = vadd.f32 %v6448, %v6506
  %v6523 = vadd.f32 %v6449, %v6507
  %v6524 = vadd.f32 %v6450, %v6508
  %v6525 = vadd.f32 %v6451, %v6509
  %v6526 = vadd.f32 %v6452, %v6510
  %v6527 = vadd.f32 %v6453, %v6511
  %v6528 = vadd.f32 %v6454, %v6512
  %v6529 = vadd.f32 %v6455, %v6513
  %v6530 = vadd.f32 %v6456, %v6514
  %v6531 = vadd.f32 %v6457, %v6515
  %v6532 = vadd.f32 %v6458, %v6516
  %v6533 = vadd.f32 %v6459, %v6517
  %v6534 = vadd.f32 %v6460, %v6518
  %v6535 = vadd.f32 %v6461, %v6519
  %v6536 = vadd.f32 %v6462, %v6520
  %6537 = vrot.lane.b32.xlu0 %v553, 120
  %v6538 = vpop.permute.xlu0 %6537
  %6539 = vrot.lane.b32.xlu0 %v554, 120
  %v6540 = vpop.permute.xlu0 %6539
  %6541 = vrot.lane.b32.xlu0 %v555, 120
  %v6542 = vpop.permute.xlu0 %6541
  %6543 = vrot.lane.b32.xlu0 %v556, 120
  %v6544 = vpop.permute.xlu0 %6543
  %6545 = vrot.lane.b32.xlu0 %v557, 120
  %v6546 = vpop.permute.xlu0 %6545
  %6547 = vrot.lane.b32.xlu0 %v558, 120
  %v6548 = vpop.permute.xlu0 %6547
  %6549 = vrot.lane.b32.xlu0 %v559, 120
  %v6550 = vpop.permute.xlu0 %6549
  %6551 = vrot.lane.b32.xlu0 %v560, 120
  %v6552 = vpop.permute.xlu0 %6551
  %6553 = vrot.lane.b32.xlu0 %v561, 120
  %v6554 = vpop.permute.xlu0 %6553
  %6555 = vrot.lane.b32.xlu0 %v562, 120
  %v6556 = vpop.permute.xlu0 %6555
  %6557 = vrot.lane.b32.xlu0 %v563, 120
  %v6558 = vpop.permute.xlu0 %6557
  %6559 = vrot.lane.b32.xlu0 %v564, 120
  %v6560 = vpop.permute.xlu0 %6559
  %6561 = vrot.lane.b32.xlu0 %v565, 120
  %v6562 = vpop.permute.xlu0 %6561
  %6563 = vrot.lane.b32.xlu0 %v566, 120
  %v6564 = vpop.permute.xlu0 %6563
  %v6579 = vmul.f32 %v5831, %v6538
  %v6580 = vmul.f32 %v5836, %v6540
  %v6581 = vmul.f32 %v5841, %v6538
  %v6582 = vmul.f32 %v5846, %v6542
  %v6583 = vmul.f32 %v5851, %v6544
  %v6584 = vmul.f32 %v5856, %v6546
  %v6585 = vmul.f32 %v5861, %v6548
  %v6586 = vmul.f32 %v5866, %v6550
  %v6587 = vmul.f32 %v5871, %v6552
  %v6588 = vmul.f32 %v5876, %v6554
  %v6589 = vmul.f32 %v5881, %v6552
  %v6590 = vmul.f32 %v5886, %v6556
  %v6591 = vmul.f32 %v5891, %v6558
  %v6592 = vmul.f32 %v5896, %v6560
  %v6593 = vmul.f32 %v5901, %v6562
  %v6594 = vmul.f32 %v5906, %v6564
  %v6595 = vadd.f32 %v6521, %v6579
  %v6596 = vadd.f32 %v6522, %v6580
  %v6597 = vadd.f32 %v6523, %v6581
  %v6598 = vadd.f32 %v6524, %v6582
  %v6599 = vadd.f32 %v6525, %v6583
  %v6600 = vadd.f32 %v6526, %v6584
  %v6601 = vadd.f32 %v6527, %v6585
  %v6602 = vadd.f32 %v6528, %v6586
  %v6603 = vadd.f32 %v6529, %v6587
  %v6604 = vadd.f32 %v6530, %v6588
  %v6605 = vadd.f32 %v6531, %v6589
  %v6606 = vadd.f32 %v6532, %v6590
  %v6607 = vadd.f32 %v6533, %v6591
  %v6608 = vadd.f32 %v6534, %v6592
  %v6609 = vadd.f32 %v6535, %v6593
  %v6610 = vadd.f32 %v6536, %v6594
  %6611 = vrot.lane.b32.xlu0 %v649, 120
  %v6612 = vpop.permute.xlu0 %6611
  %6613 = vrot.lane.b32.xlu0 %v650, 120
  %v6614 = vpop.permute.xlu0 %6613
  %v6617 = vmul.f32 %v5911, %v6392
  %v6618 = vmul.f32 %v5916, %v6390
  %v6619 = vmul.f32 %v5921, %v6394
  %v6620 = vmul.f32 %v5926, %v6396
  %v6621 = vmul.f32 %v5931, %v6398
  %v6622 = vmul.f32 %v5936, %v6400
  %v6623 = vmul.f32 %v5941, %v6402
  %v6624 = vmul.f32 %v5946, %v6612
  %v6625 = vmul.f32 %v5951, %v6406
  %v6626 = vmul.f32 %v5956, %v6404
  %v6627 = vmul.f32 %v5961, %v6408
  %v6628 = vmul.f32 %v5966, %v6410
  %v6629 = vmul.f32 %v5971, %v6412
  %v6630 = vmul.f32 %v5976, %v6414
  %v6631 = vmul.f32 %v5981, %v6416
  %v6632 = vmul.f32 %v5986, %v6614
  %v6633 = vadd.f32 %v6595, %v6617
  %v6634 = vadd.f32 %v6596, %v6618
  %v6635 = vadd.f32 %v6597, %v6619
  %v6636 = vadd.f32 %v6598, %v6620
  %v6637 = vadd.f32 %v6599, %v6621
  %v6638 = vadd.f32 %v6600, %v6622
  %v6639 = vadd.f32 %v6601, %v6623
  %v6640 = vadd.f32 %v6602, %v6624
  %v6641 = vadd.f32 %v6603, %v6625
  %v6642 = vadd.f32 %v6604, %v6626
  %v6643 = vadd.f32 %v6605, %v6627
  %v6644 = vadd.f32 %v6606, %v6628
  %v6645 = vadd.f32 %v6607, %v6629
  %v6646 = vadd.f32 %v6608, %v6630
  %v6647 = vadd.f32 %v6609, %v6631
  %v6648 = vadd.f32 %v6610, %v6632
  %6649 = vrot.lane.b32.xlu0 %v294, 120
  %v6650 = vpop.permute.xlu0 %6649
  %6651 = vrot.lane.b32.xlu0 %v334, 120
  %v6652 = vpop.permute.xlu0 %6651
  %v6655 = vmul.f32 %v5991, %v6466
  %v6656 = vmul.f32 %v5996, %v6464
  %v6657 = vmul.f32 %v6001, %v6468
  %v6658 = vmul.f32 %v6006, %v6470
  %v6659 = vmul.f32 %v6011, %v6472
  %v6660 = vmul.f32 %v6016, %v6474
  %v6661 = vmul.f32 %v6021, %v6476
  %v6662 = vmul.f32 %v6026, %v6650
  %v6663 = vmul.f32 %v6031, %v6480
  %v6664 = vmul.f32 %v6036, %v6478
  %v6665 = vmul.f32 %v6041, %v6482
  %v6666 = vmul.f32 %v6046, %v6484
  %v6667 = vmul.f32 %v6051, %v6486
  %v6668 = vmul.f32 %v6056, %v6488
  %v6669 = vmul.f32 %v6061, %v6490
  %v6670 = vmul.f32 %v6066, %v6652
  %v6671 = vadd.f32 %v6633, %v6655
  %v6672 = vadd.f32 %v6634, %v6656
  %v6673 = vadd.f32 %v6635, %v6657
  %v6674 = vadd.f32 %v6636, %v6658
  %v6675 = vadd.f32 %v6637, %v6659
  %v6676 = vadd.f32 %v6638, %v6660
  %v6677 = vadd.f32 %v6639, %v6661
  %v6678 = vadd.f32 %v6640, %v6662
  %v6679 = vadd.f32 %v6641, %v6663
  %v6680 = vadd.f32 %v6642, %v6664
  %v6681 = vadd.f32 %v6643, %v6665
  %v6682 = vadd.f32 %v6644, %v6666
  %v6683 = vadd.f32 %v6645, %v6667
  %v6684 = vadd.f32 %v6646, %v6668
  %v6685 = vadd.f32 %v6647, %v6669
  %v6686 = vadd.f32 %v6648, %v6670
  %6687 = vrot.lane.b32.xlu0 %v697, 120
  %v6688 = vpop.permute.xlu0 %6687
  %6689 = vrot.lane.b32.xlu0 %v698, 120
  %v6690 = vpop.permute.xlu0 %6689
  %v6693 = vmul.f32 %v6071, %v6540
  %v6694 = vmul.f32 %v6076, %v6538
  %v6695 = vmul.f32 %v6081, %v6542
  %v6696 = vmul.f32 %v6086, %v6544
  %v6697 = vmul.f32 %v6091, %v6546
  %v6698 = vmul.f32 %v6096, %v6548
  %v6699 = vmul.f32 %v6101, %v6550
  %v6700 = vmul.f32 %v6106, %v6688
  %v6701 = vmul.f32 %v6111, %v6554
  %v6702 = vmul.f32 %v6116, %v6552
  %v6703 = vmul.f32 %v6121, %v6556
  %v6704 = vmul.f32 %v6126, %v6558
  %v6705 = vmul.f32 %v6131, %v6560
  %v6706 = vmul.f32 %v6136, %v6562
  %v6707 = vmul.f32 %v6141, %v6564
  %v6708 = vmul.f32 %v6146, %v6690
  %v6709 = vadd.f32 %v6671, %v6693
  %v6710 = vadd.f32 %v6672, %v6694
  %v6711 = vadd.f32 %v6673, %v6695
  %v6712 = vadd.f32 %v6674, %v6696
  %v6713 = vadd.f32 %v6675, %v6697
  %v6714 = vadd.f32 %v6676, %v6698
  %v6715 = vadd.f32 %v6677, %v6699
  %v6716 = vadd.f32 %v6678, %v6700
  %v6717 = vadd.f32 %v6679, %v6701
  %v6718 = vadd.f32 %v6680, %v6702
  %v6719 = vadd.f32 %v6681, %v6703
  %v6720 = vadd.f32 %v6682, %v6704
  %v6721 = vadd.f32 %v6683, %v6705
  %v6722 = vadd.f32 %v6684, %v6706
  %v6723 = vadd.f32 %v6685, %v6707
  %v6724 = vadd.f32 %v6686, %v6708
  %v6725 = vmul.f32 %v6151, %v6390
  %v6726 = vmul.f32 %v6156, %v6394
  %v6727 = vmul.f32 %v6161, %v6396
  %v6728 = vmul.f32 %v6166, %v6398
  %v6729 = vmul.f32 %v6171, %v6400
  %v6730 = vmul.f32 %v6176, %v6402
  %v6731 = vmul.f32 %v6181, %v6612
  %v6732 = vmul.f32 %v6186, %v6402
  %v6733 = vmul.f32 %v6191, %v6404
  %v6734 = vmul.f32 %v6196, %v6408
  %v6735 = vmul.f32 %v6201, %v6410
  %v6736 = vmul.f32 %v6206, %v6412
  %v6737 = vmul.f32 %v6211, %v6414
  %v6738 = vmul.f32 %v6216, %v6416
  %v6739 = vmul.f32 %v6221, %v6614
  %v6740 = vmul.f32 %v6226, %v6416
  %v6741 = vadd.f32 %v6709, %v6725
  %v6742 = vadd.f32 %v6710, %v6726
  %v6743 = vadd.f32 %v6711, %v6727
  %v6744 = vadd.f32 %v6712, %v6728
  %v6745 = vadd.f32 %v6713, %v6729
  %v6746 = vadd.f32 %v6714, %v6730
  %v6747 = vadd.f32 %v6715, %v6731
  %v6748 = vadd.f32 %v6716, %v6732
  %v6749 = vadd.f32 %v6717, %v6733
  %v6750 = vadd.f32 %v6718, %v6734
  %v6751 = vadd.f32 %v6719, %v6735
  %v6752 = vadd.f32 %v6720, %v6736
  %v6753 = vadd.f32 %v6721, %v6737
  %v6754 = vadd.f32 %v6722, %v6738
  %v6755 = vadd.f32 %v6723, %v6739
  %v6756 = vadd.f32 %v6724, %v6740
  %v6757 = vmul.f32 %v6231, %v6464
  %v6758 = vmul.f32 %v6236, %v6468
  %v6759 = vmul.f32 %v6241, %v6470
  %v6760 = vmul.f32 %v6246, %v6472
  %v6761 = vmul.f32 %v6251, %v6474
  %v6762 = vmul.f32 %v6256, %v6476
  %v6763 = vmul.f32 %v6261, %v6650
  %v6764 = vmul.f32 %v6266, %v6476
  %v6765 = vmul.f32 %v6271, %v6478
  %v6766 = vmul.f32 %v6276, %v6482
  %v6767 = vmul.f32 %v6281, %v6484
  %v6768 = vmul.f32 %v6286, %v6486
  %v6769 = vmul.f32 %v6291, %v6488
  %v6770 = vmul.f32 %v6296, %v6490
  %v6771 = vmul.f32 %v6301, %v6652
  %v6772 = vmul.f32 %v6306, %v6490
  %v6773 = vadd.f32 %v6741, %v6757
  %v6774 = vadd.f32 %v6742, %v6758
  %v6775 = vadd.f32 %v6743, %v6759
  %v6776 = vadd.f32 %v6744, %v6760
  %v6777 = vadd.f32 %v6745, %v6761
  %v6778 = vadd.f32 %v6746, %v6762
  %v6779 = vadd.f32 %v6747, %v6763
  %v6780 = vadd.f32 %v6748, %v6764
  %v6781 = vadd.f32 %v6749, %v6765
  %v6782 = vadd.f32 %v6750, %v6766
  %v6783 = vadd.f32 %v6751, %v6767
  %v6784 = vadd.f32 %v6752, %v6768
  %v6785 = vadd.f32 %v6753, %v6769
  %v6786 = vadd.f32 %v6754, %v6770
  %v6787 = vadd.f32 %v6755, %v6771
  %v6788 = vadd.f32 %v6756, %v6772
  %v6789 = vmul.f32 %v6311, %v6538
  %v6790 = vmul.f32 %v6316, %v6542
  %v6791 = vmul.f32 %v6321, %v6544
  %v6792 = vmul.f32 %v6326, %v6546
  %v6793 = vmul.f32 %v6331, %v6548
  %v6794 = vmul.f32 %v6336, %v6550
  %v6795 = vmul.f32 %v6341, %v6688
  %v6796 = vmul.f32 %v6346, %v6550
  %v6797 = vmul.f32 %v6351, %v6552
  %v6798 = vmul.f32 %v6356, %v6556
  %v6799 = vmul.f32 %v6361, %v6558
  %v6800 = vmul.f32 %v6366, %v6560
  %v6801 = vmul.f32 %v6371, %v6562
  %v6802 = vmul.f32 %v6376, %v6564
  %v6803 = vmul.f32 %v6381, %v6690
  %v6804 = vmul.f32 %v6386, %v6564
  %v6805 = vadd.f32 %v6773, %v6789
  %v6806 = vadd.f32 %v6774, %v6790
  %v6807 = vadd.f32 %v6775, %v6791
  %v6808 = vadd.f32 %v6776, %v6792
  %v6809 = vadd.f32 %v6777, %v6793
  %v6810 = vadd.f32 %v6778, %v6794
  %v6811 = vadd.f32 %v6779, %v6795
  %v6812 = vadd.f32 %v6780, %v6796
  %v6813 = vadd.f32 %v6781, %v6797
  %v6814 = vadd.f32 %v6782, %v6798
  %v6815 = vadd.f32 %v6783, %v6799
  %v6816 = vadd.f32 %v6784, %v6800
  %v6817 = vadd.f32 %v6785, %v6801
  %v6818 = vadd.f32 %v6786, %v6802
  %v6819 = vadd.f32 %v6787, %v6803
  %v6820 = vadd.f32 %v6788, %v6804
  %v6821 = vld [vmem:[%s12] sm:$0x1]
  %v6823 = vlaneseq
  %v6824 = vshrl.u32 %v6823, 7
  %v6825 = vsub.s32 0, %v6824
  %v6826 = vrot.slane %v6821, %v6825
  %v6828 = vmul.f32 %v6805, %v6826
  %v6829 = vmul.f32 %v6806, %v6826
  %v6830 = vmul.f32 %v6807, %v6826
  %v6831 = vmul.f32 %v6808, %v6826
  %v6832 = vmul.f32 %v6809, %v6826
  %v6833 = vmul.f32 %v6810, %v6826
  %v6834 = vmul.f32 %v6811, %v6826
  %v6835 = vmul.f32 %v6812, %v6826
  %v6836 = vmul.f32 %v6813, %v6826
  %v6837 = vmul.f32 %v6814, %v6826
  %v6838 = vmul.f32 %v6815, %v6826
  %v6839 = vmul.f32 %v6816, %v6826
  %v6840 = vmul.f32 %v6817, %v6826
  %v6841 = vmul.f32 %v6818, %v6826
  %v6842 = vmul.f32 %v6819, %v6826
  %v6843 = vmul.f32 %v6820, %v6826
  %v6844 = vld [vmem:[%s13] sm:$0x1]
  %v6846 = vlaneseq
  %v6847 = vshrl.u32 %v6846, 7
  %v6848 = vsub.s32 0, %v6847
  %v6849 = vrot.slane %v6844, %v6848
  %v6851 = vadd.f32 %v6828, %v6849
  %v6852 = vadd.f32 %v6829, %v6849
  %v6853 = vadd.f32 %v6830, %v6849
  %v6854 = vadd.f32 %v6831, %v6849
  %v6855 = vadd.f32 %v6832, %v6849
  %v6856 = vadd.f32 %v6833, %v6849
  %v6857 = vadd.f32 %v6834, %v6849
  %v6858 = vadd.f32 %v6835, %v6849
  %v6859 = vadd.f32 %v6836, %v6849
  %v6860 = vadd.f32 %v6837, %v6849
  %v6861 = vadd.f32 %v6838, %v6849
  %v6862 = vadd.f32 %v6839, %v6849
  %v6863 = vadd.f32 %v6840, %v6849
  %v6864 = vadd.f32 %v6841, %v6849
  %v6865 = vadd.f32 %v6842, %v6849
  %v6866 = vadd.f32 %v6843, %v6849
  %v6867 = vmax.f32 %v6851, 0.0
  %v6868 = vmax.f32 %v6852, 0.0
  %v6869 = vmax.f32 %v6853, 0.0
  %v6870 = vmax.f32 %v6854, 0.0
  %v6871 = vmax.f32 %v6855, 0.0
  %v6872 = vmax.f32 %v6856, 0.0
  %v6873 = vmax.f32 %v6857, 0.0
  %v6874 = vmax.f32 %v6858, 0.0
  %v6875 = vmax.f32 %v6859, 0.0
  %v6876 = vmax.f32 %v6860, 0.0
  %v6877 = vmax.f32 %v6861, 0.0
  %v6878 = vmax.f32 %v6862, 0.0
  %v6879 = vmax.f32 %v6863, 0.0
  %v6880 = vmax.f32 %v6864, 0.0
  %v6881 = vmax.f32 %v6865, 0.0
  %v6882 = vmax.f32 %v6866, 0.0
  %v6883 = vld [vmem:[%s14] sm:$0xff]
  %v6884 = vld [vmem:[%s14 + $0x8] sm:$0xff]
  %v6885 = vld [vmem:[%s15] sm:$0x1]
  %v6887 = vlaneseq
  %v6888 = vshrl.u32 %v6887, 7
  %v6889 = vsub.s32 0, %v6888
  %v6890 = vrot.slane %v6885, %v6889
  %v6893 = vsel %vm143, %v6867, 0
  %v6896 = vsel %vm143, %v6868, 0
  %v6899 = vsel %vm143, %v6869, 0
  %v6902 = vsel %vm143, %v6870, 0
  %v6905 = vsel %vm143, %v6871, 0
  %v6908 = vsel %vm143, %v6872, 0
  %v6911 = vsel %vm143, %v6873, 0
  %v6914 = vsel %vm143, %v6874, 0
  %v6917 = vsel %vm143, %v6875, 0
  %v6920 = vsel %vm143, %v6876, 0
  %v6923 = vsel %vm143, %v6877, 0
  %v6926 = vsel %vm143, %v6878, 0
  %v6929 = vsel %vm143, %v6879, 0
  %v6932 = vsel %vm143, %v6880, 0
  %v6935 = vsel %vm143, %v6881, 0
  %v6938 = vsel %vm143, %v6882, 0
  %6940 = vmatprep.subr.mxu0 0.0
  %6941 = vmatpush1.msra.mxu0 %v6883
  %6942 = vmatprep.subr.mxu0 0.0
  %6943 = vmatpush1.msra.mxu0 %v6884
  %6944 = vmatprep.subr.mxu0 0.0
  %6945 = vmatpush1.msra.mxu0 0.0
  %6946 = vmatprep.subr.mxu0 0.0
  %6947 = vmatpush1.msra.mxu0 0.0
  %6948 = vmatprep.subr.mxu0 0.0
  %6949 = vmatpush1.msra.mxu0 0.0
  %6950 = vmatprep.subr.mxu0 0.0
  %6951 = vmatpush1.msra.mxu0 0.0
  %6952 = vmatprep.subr.mxu0 0.0
  %6953 = vmatpush1.msra.mxu0 0.0
  %6954 = vmatprep.subr.mxu0 0.0
  %6955 = vmatpush1.msra.mxu0 0.0
  %6956 = vmatprep.subr.mxu0 0.0
  %6957 = vmatpush1.msra.mxu0 0.0
  %6958 = vmatprep.subr.mxu0 0.0
  %6959 = vmatpush1.msra.mxu0 0.0
  %6960 = vmatprep.subr.mxu0 0.0
  %6961 = vmatpush1.msra.mxu0 0.0
  %6962 = vmatprep.subr.mxu0 0.0
  %6963 = vmatpush1.msra.mxu0 0.0
  %6964 = vmatprep.subr.mxu0 0.0
  %6965 = vmatpush1.msra.mxu0 0.0
  %6966 = vmatprep.subr.mxu0 0.0
  %6967 = vmatpush1.msra.mxu0 0.0
  %6968 = vmatprep.subr.mxu0 0.0
  %6969 = vmatpush1.msra.mxu0 0.0
  %6970 = vmatprep.subr.mxu0 0.0
  %6971 = vmatpush1.msra.mxu0 0.0
  %6972 = vmatprep.subr.mxu0 0.0
  %6973 = vmatpush1.msra.mxu0 0.0
  %6974 = vmatprep.subr.mxu0 0.0
  %6975 = vmatpush1.msra.mxu0 0.0
  %6976 = vmatprep.subr.mxu0 0.0
  %6977 = vmatpush1.msra.mxu0 0.0
  %6978 = vmatprep.subr.mxu0 0.0
  %6979 = vmatpush1.msra.mxu0 0.0
  %6980 = vmatprep.subr.mxu0 0.0
  %6981 = vmatpush1.msra.mxu0 0.0
  %6982 = vmatprep.subr.mxu0 0.0
  %6983 = vmatpush1.msra.mxu0 0.0
  %6984 = vmatprep.subr.mxu0 0.0
  %6985 = vmatpush1.msra.mxu0 0.0
  %6986 = vmatprep.subr.mxu0 0.0
  %6987 = vmatpush1.msra.mxu0 0.0
  %6988 = vmatprep.subr.mxu0 0.0
  %6989 = vmatpush1.msra.mxu0 0.0
  %6990 = vmatprep.subr.mxu0 0.0
  %6991 = vmatpush1.msra.mxu0 0.0
  %6992 = vmatprep.subr.mxu0 0.0
  %6993 = vmatpush1.msra.mxu0 0.0
  %6994 = vmatprep.subr.mxu0 0.0
  %6995 = vmatpush1.msra.mxu0 0.0
  %6996 = vmatprep.subr.mxu0 0.0
  %6997 = vmatpush1.msra.mxu0 0.0
  %6998 = vmatprep.subr.mxu0 0.0
  %6999 = vmatpush1.msra.mxu0 0.0
  %7000 = vmatprep.subr.mxu0 0.0
  %7001 = vmatpush1.msra.mxu0 0.0
  %7002 = vmatprep.subr.mxu0 0.0
  %7003 = vmatpush1.msra.mxu0 0.0
  %7004 = vmatprep.mubr.f32.mxu0 0.0
  %7005 = vmatmul.mubr.f32.gmra.mrb[0].mxu0 %v6893
  %v7006 = vpop.f32.mrb[0].mxu0
  %v7007 = vadd.f32 %v6890, %v7006
  %v7008 = vpop.f32.mrb[0].mxu0
  %7009 = vmatprep.mubr.f32.mxu0 0.0
  %7010 = vmatmul.mubr.f32.gmra.mrb[0].mxu0 %v6896
  %v7011 = vpop.f32.mrb[0].mxu0
  %v7012 = vadd.f32 %v6890, %v7011
  %v7013 = vpop.f32.mrb[0].mxu0
  %7014 = vmatprep.mubr.f32.mxu0 0.0
  %7015 = vmatmul.mubr.f32.gmra.mrb[0].mxu0 %v6899
  %v7016 = vpop.f32.mrb[0].mxu0
  %v7017 = vadd.f32 %v6890, %v7016
  %v7018 = vpop.f32.mrb[0].mxu0
  %7019 = vmatprep.mubr.f32.mxu0 0.0
  %7020 = vmatmul.mubr.f32.gmra.mrb[0].mxu0 %v6902
  %v7021 = vpop.f32.mrb[0].mxu0
  %v7022 = vadd.f32 %v6890, %v7021
  %v7023 = vpop.f32.mrb[0].mxu0
  %7024 = vmatprep.mubr.f32.mxu0 0.0
  %7025 = vmatmul.mubr.f32.gmra.mrb[0].mxu0 %v6905
  %v7026 = vpop.f32.mrb[0].mxu0
  %v7027 = vadd.f32 %v6890, %v7026
  %v7028 = vpop.f32.mrb[0].mxu0
  %7029 = vmatprep.mubr.f32.mxu0 0.0
  %7030 = vmatmul.mubr.f32.gmra.mrb[0].mxu0 %v6908
  %v7031 = vpop.f32.mrb[0].mxu0
  %v7032 = vadd.f32 %v6890, %v7031
  %v7033 = vpop.f32.mrb[0].mxu0
  %7034 = vmatprep.mubr.f32.mxu0 0.0
  %7035 = vmatmul.mubr.f32.gmra.mrb[0].mxu0 %v6911
  %v7036 = vpop.f32.mrb[0].mxu0
  %v7037 = vadd.f32 %v6890, %v7036
  %v7038 = vpop.f32.mrb[0].mxu0
  %7039 = vmatprep.mubr.f32.mxu0 0.0
  %7040 = vmatmul.mubr.f32.gmra.mrb[0].mxu0 %v6914
  %v7041 = vpop.f32.mrb[0].mxu0
  %v7042 = vadd.f32 %v6890, %v7041
  %v7043 = vpop.f32.mrb[0].mxu0
  %7044 = vmatprep.mubr.f32.mxu0 0.0
  %7045 = vmatmul.mubr.f32.gmra.mrb[0].mxu0 %v6917
  %v7046 = vpop.f32.mrb[0].mxu0
  %v7047 = vadd.f32 %v6890, %v7046
  %v7048 = vpop.f32.mrb[0].mxu0
  %7049 = vmatprep.mubr.f32.mxu0 0.0
  %7050 = vmatmul.mubr.f32.gmra.mrb[0].mxu0 %v6920
  %v7051 = vpop.f32.mrb[0].mxu0
  %v7052 = vadd.f32 %v6890, %v7051
  %v7053 = vpop.f32.mrb[0].mxu0
  %7054 = vmatprep.mubr.f32.mxu0 0.0
  %7055 = vmatmul.mubr.f32.gmra.mrb[0].mxu0 %v6923
  %v7056 = vpop.f32.mrb[0].mxu0
  %v7057 = vadd.f32 %v6890, %v7056
  %v7058 = vpop.f32.mrb[0].mxu0
  %7059 = vmatprep.mubr.f32.mxu0 0.0
  %7060 = vmatmul.mubr.f32.gmra.mrb[0].mxu0 %v6926
  %v7061 = vpop.f32.mrb[0].mxu0
  %v7062 = vadd.f32 %v6890, %v7061
  %v7063 = vpop.f32.mrb[0].mxu0
  %7064 = vmatprep.mubr.f32.mxu0 0.0
  %7065 = vmatmul.mubr.f32.gmra.mrb[0].mxu0 %v6929
  %v7066 = vpop.f32.mrb[0].mxu0
  %v7067 = vadd.f32 %v6890, %v7066
  %v7068 = vpop.f32.mrb[0].mxu0
  %7069 = vmatprep.mubr.f32.mxu0 0.0
  %7070 = vmatmul.mubr.f32.gmra.mrb[0].mxu0 %v6932
  %v7071 = vpop.f32.mrb[0].mxu0
  %v7072 = vadd.f32 %v6890, %v7071
  %v7073 = vpop.f32.mrb[0].mxu0
  %7074 = vmatprep.mubr.f32.mxu0 0.0
  %7075 = vmatmul.mubr.f32.gmra.mrb[0].mxu0 %v6935
  %v7076 = vpop.f32.mrb[0].mxu0
  %v7077 = vadd.f32 %v6890, %v7076
  %v7078 = vpop.f32.mrb[0].mxu0
  %7079 = vmatprep.mubr.f32.mxu0 0.0
  %7080 = vmatmul.mubr.f32.gmra.mrb[0].mxu0 %v6938
  %v7081 = vpop.f32.mrb[0].mxu0
  %v7082 = vadd.f32 %v6890, %v7081
  %v7083 = vpop.f32.mrb[0].mxu0
  %7084 = vdwg.mxu0
  %v7085 = vadd.f32 %v7007, %v56
  %v7086 = vadd.f32 %v7012, %v57
  %v7087 = vadd.f32 %v7017, %v58
  %v7088 = vadd.f32 %v7022, %v59
  %v7089 = vadd.f32 %v7027, %v60
  %v7090 = vadd.f32 %v7032, %v61
  %v7091 = vadd.f32 %v7037, %v62
  %v7092 = vadd.f32 %v7042, %v63
  %v7093 = vadd.f32 %v7047, %v64
  %v7094 = vadd.f32 %v7052, %v65
  %v7095 = vadd.f32 %v7057, %v66
  %v7096 = vadd.f32 %v7062, %v67
  %v7097 = vadd.f32 %v7067, %v68
  %v7098 = vadd.f32 %v7072, %v69
  %v7099 = vadd.f32 %v7077, %v70
  %v7100 = vadd.f32 %v7082, %v71
  %7101 = vst.msk [vmem:[%s17] sm:$0xff] %vm143, %v7085
  %7102 = vst.msk [vmem:[%s17 + $0x8] sm:$0xff] %vm143, %v7086
  %7103 = vst.msk [vmem:[%s17 + $0x10] sm:$0xff] %vm143, %v7087
  %7104 = vst.msk [vmem:[%s17 + $0x18] sm:$0xff] %vm143, %v7088
  %7105 = vst.msk [vmem:[%s17 + $0x20] sm:$0xff] %vm143, %v7089
  %7106 = vst.msk [vmem:[%s17 + $0x28] sm:$0xff] %vm143, %v7090
  %7107 = vst.msk [vmem:[%s17 + $0x30] sm:$0xff] %vm143, %v7091
  %7108 = vst.msk [vmem:[%s17 + $0x38] sm:$0xff] %vm143, %v7092
  %7109 = vst.msk [vmem:[%s17 + $0x40] sm:$0xff] %vm143, %v7093
  %7110 = vst.msk [vmem:[%s17 + $0x48] sm:$0xff] %vm143, %v7094
  %7111 = vst.msk [vmem:[%s17 + $0x50] sm:$0xff] %vm143, %v7095
  %7112 = vst.msk [vmem:[%s17 + $0x58] sm:$0xff] %vm143, %v7096
  %7113 = vst.msk [vmem:[%s17 + $0x60] sm:$0xff] %vm143, %v7097
  %7114 = vst.msk [vmem:[%s17 + $0x68] sm:$0xff] %vm143, %v7098
  %7115 = vst.msk [vmem:[%s17 + $0x70] sm:$0xff] %vm143, %v7099
  %7116 = vst.msk [vmem:[%s17 + $0x78] sm:$0xff] %vm143, %v7100
  // Predicated region
  $region70: #{tpu_custom_call.1} parent=0 // pred_check
    _
  $region71: #{tpu_custom_call.1} parent=0 // pred_check_branch
    %7118 = sbr.rel (0) target = $region73
  $region72: #{tpu_custom_call.1} parent=0 // pred_region
    _
  $region73: #{tpu_custom_call.1} parent=0 // pred_fallthru
    _
  // Predicated region
  $region74: #{tpu_custom_call.1} parent=0 // pred_check
    _
  $region75: #{tpu_custom_call.1} parent=0 // pred_check_branch
    %7120 = sbr.rel (0) target = $region77
  $region76: #{tpu_custom_call.1} parent=0 // pred_region
    _
  $region77: #{tpu_custom_call.1} parent=0 // pred_fallthru
    _

</llo_original>
